<compile_context>
chip_gen: v6e
topology: v6e:2x2x1
jax: 0.10.0
libtpu: 0.0.40
codegen_flags: <defaults>
</compile_context>

<pallas_src>
import functools

import numpy as np
import jax
import jax.numpy as jnp
from jax.experimental import pallas as pl
from jax.experimental.pallas import tpu as pltpu


def _round_up(x, m):
    return (x + m - 1) // m * m


@functools.lru_cache(maxsize=None)
def _vmem_limit():
    # Generation-aware VMEM budget: ~48 MiB on v7x (64 MiB physical), 64 MiB on
    # v5e/v6e (128 MiB physical).
    try:
        cap = int(pltpu.get_tpu_info().vmem_capacity_bytes)
    except Exception:
        cap = 64 * 1024 * 1024
    return int(min(max(cap - 16 * 1024 * 1024, 32 * 1024 * 1024), 64 * 1024 * 1024))


def _pick_tile(d, cap):
    """Largest 128-multiple tile <= cap that adds no padding beyond 128-alignment."""
    dp = _round_up(d, 128)
    v = (min(cap, dp) // 128) * 128
    while v >= 128:
        if _round_up(d, v) == dp:
            return v
        v -= 128
    return 128


def _pick_m_tile(M, cap=512):
    Mp = _round_up(M, 128)
    tm = _pick_tile(M, cap)
    # Keep >=2 M-steps when possible so v7x's two TensorCores both get work.
    if Mp // tm < 2 and Mp >= 256 and (Mp // 2) % 128 == 0:
        tm = Mp // 2
    return tm


def _pad2d(x, Mp, Np):
    M, N = x.shape
    if (M, N) == (Mp, Np):
        return x
    return jnp.pad(x, ((0, Mp - M), (0, Np - N)))


# ----------------------------------------------------------------------------
# Fused LayerNorm + matmul (K resident in one block, no K grid loop)
# ----------------------------------------------------------------------------
def _ln_mm_kernel(x_ref, g_ref, b_ref, w_ref, o_ref, *, eps):
    x = x_ref[...].astype(jnp.float32)                      # (tm, K)
    mean = jnp.mean(x, axis=-1, keepdims=True)
    var = jnp.mean(jnp.square(x - mean), axis=-1, keepdims=True)
    h = ((x - mean) * jax.lax.rsqrt(var + eps) * g_ref[...] + b_ref[...]
         ).astype(jnp.bfloat16)
    o_ref[...] = jnp.dot(h, w_ref[...],
                         preferred_element_type=jnp.float32).astype(o_ref.dtype)


def pallas_ln_matmul(x2d, gamma, beta, w_bf, *, eps=1e-5, out_dtype=jnp.bfloat16):
    """LayerNorm(x) @ w, with LN fused into the matmul prologue. x2d:(M,K) f32."""
    M, K = x2d.shape
    N = w_bf.shape[1]
    assert K <= 2048, "fused-LN matmul expects the whole K in one block"
    tm, tn = _pick_m_tile(M), _pick_tile(N, 512)
    Mp, Np = _round_up(M, tm), _round_up(N, tn)
    x_p = _pad2d(x2d, Mp, K)
    w_p = _pad2d(w_bf, K, Np)
    grid = (Mp // tm, Np // tn)
    out = pl.pallas_call(
        functools.partial(_ln_mm_kernel, eps=eps),
        out_shape=jax.ShapeDtypeStruct((Mp, Np), out_dtype),
        grid_spec=pltpu.PrefetchScalarGridSpec(
            num_scalar_prefetch=0, grid=grid,
            in_specs=[pl.BlockSpec((tm, K), lambda i, j: (i, 0)),
                      pl.BlockSpec((1, K), lambda i, j: (0, 0)),
                      pl.BlockSpec((1, K), lambda i, j: (0, 0)),
                      pl.BlockSpec((K, tn), lambda i, j: (0, j))],
            out_specs=pl.BlockSpec((tm, tn), lambda i, j: (i, j))),
        compiler_params=pltpu.CompilerParams(
            dimension_semantics=("parallel", "parallel"),
            vmem_limit_bytes=_vmem_limit()),
        cost_estimate=pl.CostEstimate(
            flops=2 * Mp * Np * K, transcendentals=Mp,
            bytes_accessed=4 * Mp * K * grid[1] + 2 * K * Np * grid[0] + 2 * Mp * Np),
    )(x_p, gamma.reshape(1, K), beta.reshape(1, K), w_p)
    return out[:M, :N] if (Mp, Np) != (M, N) else out


# ----------------------------------------------------------------------------
# Fused LayerNorm + dual matmul + GEGLU (FFN first half)
# ----------------------------------------------------------------------------
def _ln_mm_geglu_kernel(x_ref, g_ref, b_ref, w1_ref, w2_ref, b1_ref, b2_ref,
                        o_ref, *, eps):
    x = x_ref[...].astype(jnp.float32)
    mean = jnp.mean(x, axis=-1, keepdims=True)
    var = jnp.mean(jnp.square(x - mean), axis=-1, keepdims=True)
    h = ((x - mean) * jax.lax.rsqrt(var + eps) * g_ref[...] + b_ref[...]
         ).astype(jnp.bfloat16)
    u1 = jnp.dot(h, w1_ref[...], preferred_element_type=jnp.float32) + b1_ref[...]
    u2 = jnp.dot(h, w2_ref[...], preferred_element_type=jnp.float32) + b2_ref[...]
    o_ref[...] = (u1 * jax.nn.gelu(u2, approximate=True)).astype(o_ref.dtype)


def pallas_ln_geglu(x2d, gamma, beta, w1_bf, w2_bf, b1, b2, *, eps=1e-5,
                    out_dtype=jnp.bfloat16):
    M, K = x2d.shape
    N = w1_bf.shape[1]
    assert K <= 2048
    tm, tn = _pick_m_tile(M), _pick_tile(N, 512)
    Mp, Np = _round_up(M, tm), _round_up(N, tn)
    x_p = _pad2d(x2d, Mp, K)
    w1_p, w2_p = _pad2d(w1_bf, K, Np), _pad2d(w2_bf, K, Np)
    b1_p = _pad2d(b1.reshape(1, N), 1, Np)
    b2_p = _pad2d(b2.reshape(1, N), 1, Np)
    grid = (Mp // tm, Np // tn)
    row = pl.BlockSpec((1, tn), lambda i, j: (0, j))
    out = pl.pallas_call(
        functools.partial(_ln_mm_geglu_kernel, eps=eps),
        out_shape=jax.ShapeDtypeStruct((Mp, Np), out_dtype),
        grid_spec=pltpu.PrefetchScalarGridSpec(
            num_scalar_prefetch=0, grid=grid,
            in_specs=[pl.BlockSpec((tm, K), lambda i, j: (i, 0)),
                      pl.BlockSpec((1, K), lambda i, j: (0, 0)),
                      pl.BlockSpec((1, K), lambda i, j: (0, 0)),
                      pl.BlockSpec((K, tn), lambda i, j: (0, j)),
                      pl.BlockSpec((K, tn), lambda i, j: (0, j)),
                      row, row],
            out_specs=pl.BlockSpec((tm, tn), lambda i, j: (i, j))),
        compiler_params=pltpu.CompilerParams(
            dimension_semantics=("parallel", "parallel"),
            vmem_limit_bytes=_vmem_limit()),
        cost_estimate=pl.CostEstimate(
            flops=4 * Mp * Np * K, transcendentals=Mp * Np,
            bytes_accessed=4 * Mp * K * grid[1] + 4 * K * Np * grid[0] + 2 * Mp * Np),
    )(x_p, gamma.reshape(1, K), beta.reshape(1, K), w1_p, w2_p, b1_p, b2_p)
    return out[:M, :N] if (Mp, Np) != (M, N) else out


# ----------------------------------------------------------------------------
# Output projection: matmul + bias + LayerScale + f32 residual add epilogue
# ----------------------------------------------------------------------------
def _mm_bias_scale_res_kernel(a_ref, w_ref, bias_ref, ls_ref, res_ref, o_ref):
    acc = jnp.dot(a_ref[...], w_ref[...], preferred_element_type=jnp.float32)
    o_ref[...] = (res_ref[...].astype(jnp.float32)
                  + (acc + bias_ref[...]) * ls_ref[...]).astype(o_ref.dtype)


def pallas_matmul_scale_residual(a_bf, w_bf, bias, layer_scale, residual,
                                 *, out_dtype=jnp.float32):
    """residual + layer_scale * (a @ w + bias); a:(M,K) bf16, residual:(M,N) f32."""
    M, K = a_bf.shape
    N = w_bf.shape[1]
    assert K <= 2048
    tm, tn = _pick_m_tile(M), _pick_tile(N, 512)
    Mp, Np = _round_up(M, tm), _round_up(N, tn)
    a_p = _pad2d(a_bf, Mp, K)
    w_p = _pad2d(w_bf, K, Np)
    bias_p = _pad2d(bias.reshape(1, N), 1, Np)
    ls_p = _pad2d(layer_scale.reshape(1, N), 1, Np)
    res_p = _pad2d(residual, Mp, Np)
    grid = (Mp // tm, Np // tn)
    row = pl.BlockSpec((1, tn), lambda i, j: (0, j))
    out = pl.pallas_call(
        _mm_bias_scale_res_kernel,
        out_shape=jax.ShapeDtypeStruct((Mp, Np), out_dtype),
        grid_spec=pltpu.PrefetchScalarGridSpec(
            num_scalar_prefetch=0, grid=grid,
            in_specs=[pl.BlockSpec((tm, K), lambda i, j: (i, 0)),
                      pl.BlockSpec((K, tn), lambda i, j: (0, j)),
                      row, row,
                      pl.BlockSpec((tm, tn), lambda i, j: (i, j))],
            out_specs=pl.BlockSpec((tm, tn), lambda i, j: (i, j))),
        compiler_params=pltpu.CompilerParams(
            dimension_semantics=("parallel", "parallel"),
            vmem_limit_bytes=_vmem_limit()),
        cost_estimate=pl.CostEstimate(
            flops=2 * Mp * Np * K, transcendentals=0,
            bytes_accessed=2 * Mp * K * grid[1] + 2 * K * Np * grid[0] + 8 * Mp * Np),
    )(a_p, w_p, bias_p, ls_p, res_p)
    return out[:M, :N] if (Mp, Np) != (M, N) else out


# ----------------------------------------------------------------------------
# Linear attention on token-major QKV (head split + both einsums on-chip)
# ----------------------------------------------------------------------------
def _linattn_tokens_kernel(qkv_ref, o_ref, *, heads, dim_head):
    hidden = heads * dim_head
    qkv = qkv_ref[0]                               # (L, 3*hidden) bf16
    outs = []
    for h in range(heads):
        lo = h * dim_head
        q = qkv[:, lo:lo + dim_head]                               # (L, D) bf16
        k = qkv[:, hidden + lo:hidden + lo + dim_head].astype(jnp.float32)
        v = qkv[:, 2 * hidden + lo:2 * hidden + lo + dim_head]     # (L, D) bf16
        k = k - jnp.max(k, axis=0, keepdims=True)                  # softmax over
        k = jnp.exp(k)                                             # the token axis
        k = k / jnp.sum(k, axis=0, keepdims=True)
        ctx = jax.lax.dot_general(                                 # (D, D)
            k.astype(jnp.bfloat16), v,
            dimension_numbers=(((0,), (0,)), ((), ())),
            preferred_element_type=jnp.float32)
        out_h = jnp.dot(q, ctx.astype(jnp.bfloat16),               # (L, D)
                        preferred_element_type=jnp.float32)
        outs.append(out_h)
    o_ref[0] = jnp.concatenate(outs, axis=-1).astype(o_ref.dtype)


def pallas_linear_attention_tokens(qkv, heads, dim_head):
    """qkv: (BT, L, 3*heads*dim_head) bf16 -> (BT, L, heads*dim_head) bf16."""
    BT, L, three_h = qkv.shape
    hidden = heads * dim_head
    assert three_h == 3 * hidden
    kern = functools.partial(_linattn_tokens_kernel, heads=heads, dim_head=dim_head)
    return pl.pallas_call(
        kern,
        out_shape=jax.ShapeDtypeStruct((BT, L, hidden), jnp.bfloat16),
        grid_spec=pltpu.PrefetchScalarGridSpec(
            num_scalar_prefetch=0, grid=(BT,),
            in_specs=[pl.BlockSpec((1, L, three_h), lambda i: (i, 0, 0))],
            out_specs=pl.BlockSpec((1, L, hidden), lambda i: (i, 0, 0))),
        compiler_params=pltpu.CompilerParams(
            dimension_semantics=("parallel",),
            vmem_limit_bytes=_vmem_limit()),
    )(qkv)


# ----------------------------------------------------------------------------
# NHWC depthwise conv (reflect padding) with fused residual add
# ----------------------------------------------------------------------------
def _dwconv_nhwc_kernel(x_ref, w_ref, r_ref, o_ref, *, k, H, W):
    x = x_ref[0]                           # (Hp, Wp, C) bf16 — C on the lane axis
    w = w_ref[...]                         # (k*k, C) f32
    acc = r_ref[0].astype(jnp.float32)     # residual fused into the kernel (f32)
    for di in range(k):
        for dj in range(k):
            tap = w[di * k + dj:di * k + dj + 1, :]            # (1, C)
            acc = acc + x[di:di + H, dj:dj + W, :].astype(jnp.float32) * tap
    o_ref[0] = acc.astype(o_ref.dtype)


def pallas_depthwise_conv_residual(x, residual, w, k):
    """x, residual: (N, H, W, C); w: (k*k, C).  Returns residual + dwconv(x)."""
    N, H, W, C = x.shape
    pad = (k - 1) // 2
    x_p = jnp.pad(x, ((0, 0), (pad, pad), (pad, pad), (0, 0)),
                  mode="reflect").astype(jnp.bfloat16)
    Hp, Wp = H + 2 * pad, W + 2 * pad
    kern = functools.partial(_dwconv_nhwc_kernel, k=k, H=H, W=W)
    return pl.pallas_call(
        kern,
        out_shape=jax.ShapeDtypeStruct((N, H, W, C), jnp.float32),
        grid_spec=pltpu.PrefetchScalarGridSpec(
            num_scalar_prefetch=0, grid=(N,),
            in_specs=[pl.BlockSpec((1, Hp, Wp, C), lambda i: (i, 0, 0, 0)),
                      pl.BlockSpec((k * k, C), lambda i: (0, 0)),
                      pl.BlockSpec((1, H, W, C), lambda i: (i, 0, 0, 0))],
            out_specs=pl.BlockSpec((1, H, W, C), lambda i: (i, 0, 0, 0))),
        compiler_params=pltpu.CompilerParams(
            dimension_semantics=("parallel",),
            vmem_limit_bytes=_vmem_limit()),
    )(x_p, w.astype(jnp.float32), residual)


# ----------------------------------------------------------------------------
# Layers (each returns residual + delta; the residual add is fused in-kernel)
# ----------------------------------------------------------------------------
class KeyGen:
    def __init__(self, key):
        self.key = key

    def __call__(self):
        self.key, sub = jax.random.split(self.key)
        return sub


def _dense_init(kg, out_dim, in_dim):
    return (jax.random.normal(kg(), (out_dim, in_dim), jnp.float32)
            / np.sqrt(float(in_dim)))


class DepthwiseConvLayer:
    """Residual depthwise kxk conv (NHWC, reflect padding)."""

    def __init__(self, kg, dim, kernel, H, W):
        self.w = (jax.random.normal(kg(), (kernel * kernel, dim), jnp.float32)
                  / float(kernel))
        self.kernel = kernel
        self.H, self.W = H, W

    def __call__(self, x, residual):
        BT, L, C = x.shape
        xi = x.reshape(BT, self.H, self.W, C)
        ri = residual.reshape(BT, self.H, self.W, C)
        y = pallas_depthwise_conv_residual(xi, ri, self.w, self.kernel)
        return y.reshape(BT, L, C)


class LinearAttentionLayer:
    """Pre-norm image-wise linear attention with LayerScale."""

    def __init__(self, kg, dim, heads, dim_head, initial_scale=0.1):
        hidden = heads * dim_head
        self.heads, self.dim_head, self.hidden = heads, dim_head, hidden
        self.ln_g = jnp.ones((dim,), jnp.float32)
        self.ln_b = jnp.zeros((dim,), jnp.float32)
        self.w_qkv = _dense_init(kg, 3 * hidden, dim)
        self.w_out = _dense_init(kg, dim, hidden)
        self.b_out = jnp.zeros((dim,), jnp.float32)
        self.ls = jnp.full((dim,), initial_scale, jnp.float32)
        # bf16 weight copies for the MXU (cast once at init, not per call)
        self.w_qkv_bf = self.w_qkv.T.astype(jnp.bfloat16)     # (dim, 3*hidden)
        self.w_out_bf = self.w_out.T.astype(jnp.bfloat16)     # (hidden, dim)

    def __call__(self, x, residual):
        BT, L, C = x.shape
        M = BT * L
        # LN fused into the QKV projection; output bf16, token-major
        qkv = pallas_ln_matmul(x.reshape(M, C), self.ln_g, self.ln_b,
                               self.w_qkv_bf)                   # (M, 3*hidden) bf16
        attn = pallas_linear_attention_tokens(
            qkv.reshape(BT, L, 3 * self.hidden), self.heads, self.dim_head)
        out = pallas_matmul_scale_residual(
            attn.reshape(M, self.hidden), self.w_out_bf, self.b_out, self.ls,
            residual.reshape(M, C))
        return out.reshape(BT, L, C)


class FeedForwardLayer:
    """Pre-norm GEGLU feed-forward with LayerScale."""

    def __init__(self, kg, dim, initial_scale=0.1):
        self.ln_g = jnp.ones((dim,), jnp.float32)
        self.ln_b = jnp.zeros((dim,), jnp.float32)
        self.wi = _dense_init(kg, 4 * dim, dim)
        self.bi = jnp.zeros((4 * dim,), jnp.float32)
        self.wo = _dense_init(kg, dim, 2 * dim)
        self.bo = jnp.zeros((dim,), jnp.float32)
        self.ls = jnp.full((dim,), initial_scale, jnp.float32)
        two_d = 2 * dim
        self.w1_bf = self.wi[:two_d].T.astype(jnp.bfloat16)    # (dim, 2*dim)
        self.w2_bf = self.wi[two_d:].T.astype(jnp.bfloat16)    # (dim, 2*dim)
        self.b1 = self.bi[:two_d]
        self.b2 = self.bi[two_d:]
        self.wo_bf = self.wo.T.astype(jnp.bfloat16)            # (2*dim, dim)

    def __call__(self, x, residual):
        BT, L, C = x.shape
        M = BT * L
        # LN + dual matmul + GEGLU fused; only the (M, 2C) bf16 gate hits HBM
        g = pallas_ln_geglu(x.reshape(M, C), self.ln_g, self.ln_b,
                            self.w1_bf, self.w2_bf, self.b1, self.b2)
        out = pallas_matmul_scale_residual(
            g, self.wo_bf, self.bo, self.ls, residual.reshape(M, C))
        return out.reshape(BT, L, C)


# ----------------------------------------------------------------------------
# ResidualSequential / NaiveResidualSequential / RevResidualSequential
# ----------------------------------------------------------------------------
class NaiveResidualSequential:
    """x = x + layer(x); the residual add is fused into each layer's last kernel."""

    def __init__(self, layers):
        self.layers = layers

    def __call__(self, x):
        for layer in self.layers:
            x = layer(x, residual=x)        # == x + layer(x)
        return x


class RevResidualSequential:
    """Reversible variant: x -> cat([x, x]) -> additive couplings -> sigmoid mix.
    cat([x, x]).chunk(2) == (x, x), so the concat/split is elided."""
    # TODO(synk): verify the coupling/swap order matches revlib.ReversibleSequential
    # exactly (forward math only; JAX AD handles gradients without the memory trick).

    def __init__(self, layers, split_dim):
        self.layers = layers
        self.split_dim = split_dim
        self.s = jnp.zeros((1,), jnp.float32)

    def __call__(self, x):
        x1, x2 = x, x
        for layer in self.layers:
            y1 = layer(x2, residual=x1)     # x1 + f(x2)
            x1, x2 = x2, y1
        s = jax.nn.sigmoid(self.s)[0]
        return s * x1 + (1.0 - s) * x2


class ResidualSequential:
    def __init__(self, layers, split_dim, fuse=False, reversible=False):
        # `fuse` (torch memory_efficient_fusion) has no Pallas analogue; jax.jit
        # over the whole forward provides equivalent whole-graph fusion.
        del fuse
        if reversible:
            self.module = RevResidualSequential(layers, split_dim)
        else:
            self.module = NaiveResidualSequential(layers)

    def __call__(self, x):
        return self.module(x)


# ----------------------------------------------------------------------------
# Pure-jnp (f32) reference of the naive path for a correctness check
# ----------------------------------------------------------------------------
def _reference_naive(x_tokens, layers, H, W):
    def ln(x, g, b, eps=1e-5):
        m = jnp.mean(x, axis=-1, keepdims=True)
        v = jnp.mean(jnp.square(x - m), axis=-1, keepdims=True)
        return (x - m) / jnp.sqrt(v + eps) * g + b

    y = x_tokens
    for layer in layers:
        if isinstance(layer, FeedForwardLayer):
            h = ln(y, layer.ln_g, layer.ln_b)
            u = h @ layer.wi.T + layer.bi
            u1, u2 = jnp.split(u, 2, axis=-1)
            g = u1 * jax.nn.gelu(u2, approximate=True)
            y = y + (g @ layer.wo.T + layer.bo) * layer.ls
        elif isinstance(layer, LinearAttentionLayer):
            BT, L, C = y.shape
            h = ln(y, layer.ln_g, layer.ln_b)
            qkv = h @ layer.w_qkv.T
            qkv = qkv.reshape(BT, L, 3, layer.heads, layer.dim_head)
            q, k, v = qkv[:, :, 0], qkv[:, :, 1], qkv[:, :, 2]   # (BT, L, h, D)
            k = jax.nn.softmax(k, axis=1)
            ctx = jnp.einsum("blhd,blhe->bhde", k, v)
            out = jnp.einsum("blhd,bhde->blhe", q, ctx)
            out = out.reshape(BT, L, layer.heads * layer.dim_head)
            y = y + (out @ layer.w_out.T + layer.b_out) * layer.ls
        else:  # DepthwiseConvLayer
            BT, L, C = y.shape
            ks = layer.kernel
            pad = (ks - 1) // 2
            xi = y.reshape(BT, H, W, C)
            xp = jnp.pad(xi, ((0, 0), (pad, pad), (pad, pad), (0, 0)),
                         mode="reflect")
            acc = jnp.zeros_like(xi)
            for di in range(ks):
                for dj in range(ks):
                    acc = acc + xp[:, di:di + H, dj:dj + W, :] * layer.w[di * ks + dj]
            y = y + acc.reshape(BT, L, C)
    return y


# ----------------------------------------------------------------------------
if __name__ == "__main__":
    B, T, C, H, W = 1, 2, 128, 16, 16
    heads, dim_head = 4, 32
    kernel_size = 3
    depth = 1

    kg = KeyGen(jax.random.PRNGKey(0))
    layers = []
    for _ in range(depth):
        layers.append(DepthwiseConvLayer(kg, C, kernel_size, H, W))
        layers.append(LinearAttentionLayer(kg, C, heads, dim_head))
        layers.append(FeedForwardLayer(kg, C))

    model = ResidualSequential(layers, split_dim=2, fuse=False, reversible=False)
    model_rev = ResidualSequential(layers, split_dim=2, fuse=False, reversible=True)

    x = jax.random.normal(kg(), (B, T, C, H, W), jnp.float32)
    # single NCHW -> channels-last conversion at the module boundary
    x_tokens = x.reshape(B * T, C, H * W).transpose(0, 2, 1)      # (BT, L, C)

    fwd = jax.jit(lambda t: model(t))
    y_tokens = jax.block_until_ready(fwd(x_tokens))
    y = y_tokens.transpose(0, 2, 1).reshape(B, T, C, H, W)

    assert y.shape == x.shape, y.shape
    assert bool(jnp.all(jnp.isfinite(y)))

    # numerical check of the Pallas path against a pure-jnp f32 reference
    ref_tokens = _reference_naive(x_tokens, layers, H, W)
    max_err = float(jnp.max(jnp.abs(y_tokens - ref_tokens)))
    assert max_err < 7e-2, f"max abs err vs reference: {max_err}"

    # reversible path (RevResidualSequential) exercises the same Pallas kernels
    y_rev = jax.block_until_ready(jax.jit(lambda t: model_rev(t))(x_tokens))
    assert y_rev.shape == x_tokens.shape
    assert bool(jnp.all(jnp.isfinite(y_rev)))

    print("KERNEL_OK")
</pallas_src>

<mosaic_0001>
module attributes {stable_mosaic.version = 11 : i64} {
  func.func @_dwconv_nhwc_kernel(%arg0: i32, %arg1: memref<1x18x18x128xbf16, #tpu.memory_space<vmem>>, %arg2: memref<9x128xf32, #tpu.memory_space<vmem>>, %arg3: memref<1x16x16x128xf32, #tpu.memory_space<vmem>>, %arg4: memref<1x16x16x128xf32, #tpu.memory_space<vmem>>) attributes {dimension_semantics = [#tpu.dimension_semantics<parallel>], iteration_bounds = array<i64: 2>, scalar_prefetch = 0 : i64, scratch_operands = 0 : i64, tpu.core_type = #tpu.core_type<tc>, window_params = [{transform_indices = @transform_0, window_bounds = array<i64: 1, 18, 18, 128>}, {pipeline_mode = #tpu.pipeline_mode<synchronous>, transform_indices = @transform_1, window_bounds = array<i64: 9, 128>}, {transform_indices = @transform_2, window_bounds = array<i64: 1, 16, 16, 128>}, {transform_indices = @transform_3, window_bounds = array<i64: 1, 16, 16, 128>}]} {
    %c0 = arith.constant 0 : index
    %c0_0 = arith.constant 0 : index
    %c0_1 = arith.constant 0 : index
    %c0_2 = arith.constant 0 : index
    %0 = vector.load %arg1[%c0, %c0_0, %c0_1, %c0_2] : memref<1x18x18x128xbf16, #tpu.memory_space<vmem>>, vector<1x18x18x128xbf16>
    %1 = vector.shape_cast %0 : vector<1x18x18x128xbf16> to vector<18x18x128xbf16>
    %c0_3 = arith.constant 0 : index
    %c0_4 = arith.constant 0 : index
    %2 = vector.load %arg2[%c0_3, %c0_4] : memref<9x128xf32, #tpu.memory_space<vmem>>, vector<9x128xf32>
    %c0_5 = arith.constant 0 : index
    %c0_6 = arith.constant 0 : index
    %c0_7 = arith.constant 0 : index
    %c0_8 = arith.constant 0 : index
    %3 = vector.load %arg3[%c0_5, %c0_6, %c0_7, %c0_8] : memref<1x16x16x128xf32, #tpu.memory_space<vmem>>, vector<1x16x16x128xf32>
    %4 = vector.shape_cast %3 : vector<1x16x16x128xf32> to vector<16x16x128xf32>
    %5 = vector.extract_strided_slice %2 {offsets = [0, 0], sizes = [1, 128], strides = [1, 1]} : vector<9x128xf32> to vector<1x128xf32>
    %6 = vector.extract_strided_slice %1 {offsets = [0, 0, 0], sizes = [16, 16, 128], strides = [1, 1, 1]} : vector<18x18x128xbf16> to vector<16x16x128xbf16>
    %7 = arith.extf %6 : vector<16x16x128xbf16> to vector<16x16x128xf32>
    %8 = vector.shape_cast %5 : vector<1x128xf32> to vector<1x1x128xf32>
    %9 = vector.broadcast %8 : vector<1x1x128xf32> to vector<16x16x128xf32>
    %10 = arith.mulf %7, %9 : vector<16x16x128xf32>
    %11 = arith.addf %4, %10 : vector<16x16x128xf32>
    %12 = vector.extract_strided_slice %2 {offsets = [1, 0], sizes = [1, 128], strides = [1, 1]} : vector<9x128xf32> to vector<1x128xf32>
    %13 = vector.extract_strided_slice %1 {offsets = [0, 1, 0], sizes = [16, 16, 128], strides = [1, 1, 1]} : vector<18x18x128xbf16> to vector<16x16x128xbf16>
    %14 = arith.extf %13 : vector<16x16x128xbf16> to vector<16x16x128xf32>
    %15 = vector.shape_cast %12 : vector<1x128xf32> to vector<1x1x128xf32>
    %16 = vector.broadcast %15 : vector<1x1x128xf32> to vector<16x16x128xf32>
    %17 = arith.mulf %14, %16 : vector<16x16x128xf32>
    %18 = arith.addf %11, %17 : vector<16x16x128xf32>
    %19 = vector.extract_strided_slice %2 {offsets = [2, 0], sizes = [1, 128], strides = [1, 1]} : vector<9x128xf32> to vector<1x128xf32>
    %20 = vector.extract_strided_slice %1 {offsets = [0, 2, 0], sizes = [16, 16, 128], strides = [1, 1, 1]} : vector<18x18x128xbf16> to vector<16x16x128xbf16>
    %21 = arith.extf %20 : vector<16x16x128xbf16> to vector<16x16x128xf32>
    %22 = vector.shape_cast %19 : vector<1x128xf32> to vector<1x1x128xf32>
    %23 = vector.broadcast %22 : vector<1x1x128xf32> to vector<16x16x128xf32>
    %24 = arith.mulf %21, %23 : vector<16x16x128xf32>
    %25 = arith.addf %18, %24 : vector<16x16x128xf32>
    %26 = vector.extract_strided_slice %2 {offsets = [3, 0], sizes = [1, 128], strides = [1, 1]} : vector<9x128xf32> to vector<1x128xf32>
    %27 = vector.extract_strided_slice %1 {offsets = [1, 0, 0], sizes = [16, 16, 128], strides = [1, 1, 1]} : vector<18x18x128xbf16> to vector<16x16x128xbf16>
    %28 = arith.extf %27 : vector<16x16x128xbf16> to vector<16x16x128xf32>
    %29 = vector.shape_cast %26 : vector<1x128xf32> to vector<1x1x128xf32>
    %30 = vector.broadcast %29 : vector<1x1x128xf32> to vector<16x16x128xf32>
    %31 = arith.mulf %28, %30 : vector<16x16x128xf32>
    %32 = arith.addf %25, %31 : vector<16x16x128xf32>
    %33 = vector.extract_strided_slice %2 {offsets = [4, 0], sizes = [1, 128], strides = [1, 1]} : vector<9x128xf32> to vector<1x128xf32>
    %34 = vector.extract_strided_slice %1 {offsets = [1, 1, 0], sizes = [16, 16, 128], strides = [1, 1, 1]} : vector<18x18x128xbf16> to vector<16x16x128xbf16>
    %35 = arith.extf %34 : vector<16x16x128xbf16> to vector<16x16x128xf32>
    %36 = vector.shape_cast %33 : vector<1x128xf32> to vector<1x1x128xf32>
    %37 = vector.broadcast %36 : vector<1x1x128xf32> to vector<16x16x128xf32>
    %38 = arith.mulf %35, %37 : vector<16x16x128xf32>
    %39 = arith.addf %32, %38 : vector<16x16x128xf32>
    %40 = vector.extract_strided_slice %2 {offsets = [5, 0], sizes = [1, 128], strides = [1, 1]} : vector<9x128xf32> to vector<1x128xf32>
    %41 = vector.extract_strided_slice %1 {offsets = [1, 2, 0], sizes = [16, 16, 128], strides = [1, 1, 1]} : vector<18x18x128xbf16> to vector<16x16x128xbf16>
    %42 = arith.extf %41 : vector<16x16x128xbf16> to vector<16x16x128xf32>
    %43 = vector.shape_cast %40 : vector<1x128xf32> to vector<1x1x128xf32>
    %44 = vector.broadcast %43 : vector<1x1x128xf32> to vector<16x16x128xf32>
    %45 = arith.mulf %42, %44 : vector<16x16x128xf32>
    %46 = arith.addf %39, %45 : vector<16x16x128xf32>
    %47 = vector.extract_strided_slice %2 {offsets = [6, 0], sizes = [1, 128], strides = [1, 1]} : vector<9x128xf32> to vector<1x128xf32>
    %48 = vector.extract_strided_slice %1 {offsets = [2, 0, 0], sizes = [16, 16, 128], strides = [1, 1, 1]} : vector<18x18x128xbf16> to vector<16x16x128xbf16>
    %49 = arith.extf %48 : vector<16x16x128xbf16> to vector<16x16x128xf32>
    %50 = vector.shape_cast %47 : vector<1x128xf32> to vector<1x1x128xf32>
    %51 = vector.broadcast %50 : vector<1x1x128xf32> to vector<16x16x128xf32>
    %52 = arith.mulf %49, %51 : vector<16x16x128xf32>
    %53 = arith.addf %46, %52 : vector<16x16x128xf32>
    %54 = vector.extract_strided_slice %2 {offsets = [7, 0], sizes = [1, 128], strides = [1, 1]} : vector<9x128xf32> to vector<1x128xf32>
    %55 = vector.extract_strided_slice %1 {offsets = [2, 1, 0], sizes = [16, 16, 128], strides = [1, 1, 1]} : vector<18x18x128xbf16> to vector<16x16x128xbf16>
    %56 = arith.extf %55 : vector<16x16x128xbf16> to vector<16x16x128xf32>
    %57 = vector.shape_cast %54 : vector<1x128xf32> to vector<1x1x128xf32>
    %58 = vector.broadcast %57 : vector<1x1x128xf32> to vector<16x16x128xf32>
    %59 = arith.mulf %56, %58 : vector<16x16x128xf32>
    %60 = arith.addf %53, %59 : vector<16x16x128xf32>
    %61 = vector.extract_strided_slice %2 {offsets = [8, 0], sizes = [1, 128], strides = [1, 1]} : vector<9x128xf32> to vector<1x128xf32>
    %62 = vector.extract_strided_slice %1 {offsets = [2, 2, 0], sizes = [16, 16, 128], strides = [1, 1, 1]} : vector<18x18x128xbf16> to vector<16x16x128xbf16>
    %63 = arith.extf %62 : vector<16x16x128xbf16> to vector<16x16x128xf32>
    %64 = vector.shape_cast %61 : vector<1x128xf32> to vector<1x1x128xf32>
    %65 = vector.broadcast %64 : vector<1x1x128xf32> to vector<16x16x128xf32>
    %66 = arith.mulf %63, %65 : vector<16x16x128xf32>
    %67 = arith.addf %60, %66 : vector<16x16x128xf32>
    %c0_9 = arith.constant 0 : index
    %c0_10 = arith.constant 0 : index
    %c0_11 = arith.constant 0 : index
    %c0_12 = arith.constant 0 : index
    %68 = vector.load %arg4[%c0_9, %c0_10, %c0_11, %c0_12] : memref<1x16x16x128xf32, #tpu.memory_space<vmem>>, vector<1x16x16x128xf32>
    %69 = vector.shape_cast %68 : vector<1x16x16x128xf32> to vector<16x16x128xf32>
    %70 = vector.shape_cast %67 : vector<16x16x128xf32> to vector<1x16x16x128xf32>
    tpu.vector_store %arg4[%c0_9, %c0_10, %c0_11, %c0_12], %70 {strides = array<i32>} : memref<1x16x16x128xf32, #tpu.memory_space<vmem>>, vector<1x16x16x128xf32>,
    return
  }
  func.func @transform_0(%arg0: i32) -> (i32, i32, i32, i32) {
    %c0_i32 = arith.constant 0 : i32
    %c0_i32_0 = arith.constant 0 : i32
    %c0_i32_1 = arith.constant 0 : i32
    %c0_i32_2 = arith.constant 0 : i32
    return %arg0, %c0_i32, %c0_i32_0, %c0_i32_1 : i32, i32, i32, i32
  }
  func.func @transform_1(%arg0: i32) -> (i32, i32) {
    %c0_i32 = arith.constant 0 : i32
    %c0_i32_0 = arith.constant 0 : i32
    %c0_i32_1 = arith.constant 0 : i32
    return %c0_i32, %c0_i32_0 : i32, i32
  }
  func.func @transform_2(%arg0: i32) -> (i32, i32, i32, i32) {
    %c0_i32 = arith.constant 0 : i32
    %c0_i32_0 = arith.constant 0 : i32
    %c0_i32_1 = arith.constant 0 : i32
    %c0_i32_2 = arith.constant 0 : i32
    return %arg0, %c0_i32, %c0_i32_0, %c0_i32_1 : i32, i32, i32, i32
  }
  func.func @transform_3(%arg0: i32) -> (i32, i32, i32, i32) {
    %c0_i32 = arith.constant 0 : i32
    %c0_i32_0 = arith.constant 0 : i32
    %c0_i32_1 = arith.constant 0 : i32
    %c0_i32_2 = arith.constant 0 : i32
    return %arg0, %c0_i32, %c0_i32_0, %c0_i32_1 : i32, i32, i32, i32
  }
}

module attributes {stable_mosaic.version = 11 : i64} {
  func.func @_ln_mm_kernel(%arg0: i32, %arg1: i32, %arg2: memref<256x128xf32, #tpu.memory_space<vmem>>, %arg3: memref<1x128xf32, #tpu.memory_space<vmem>>, %arg4: memref<1x128xf32, #tpu.memory_space<vmem>>, %arg5: memref<128x384xbf16, #tpu.memory_space<vmem>>, %arg6: memref<256x384xbf16, #tpu.memory_space<vmem>>) attributes {dimension_semantics = [#tpu.dimension_semantics<parallel>, #tpu.dimension_semantics<parallel>], iteration_bounds = array<i64: 2, 1>, scalar_prefetch = 0 : i64, scratch_operands = 0 : i64, tpu.core_type = #tpu.core_type<tc>, window_params = [{transform_indices = @transform_0, window_bounds = array<i64: 256, 128>}, {pipeline_mode = #tpu.pipeline_mode<synchronous>, transform_indices = @transform_1, window_bounds = array<i64: 1, 128>}, {pipeline_mode = #tpu.pipeline_mode<synchronous>, transform_indices = @transform_2, window_bounds = array<i64: 1, 128>}, {transform_indices = @transform_3, window_bounds = array<i64: 128, 384>}, {transform_indices = @transform_4, window_bounds = array<i64: 256, 384>}]} {
    %c0 = arith.constant 0 : index
    %c0_0 = arith.constant 0 : index
    %0 = vector.load %arg2[%c0, %c0_0] : memref<256x128xf32, #tpu.memory_space<vmem>>, vector<256x128xf32>
    %cst = arith.constant dense<0.000000e+00> : vector<256xf32>
    %1 = vector.multi_reduction <add>, %0, %cst [1] : vector<256x128xf32> to vector<256xf32>
    %2 = vector.shape_cast %1 : vector<256xf32> to vector<256x1xf32>
    %cst_1 = arith.constant 1.280000e+02 : f32
    %3 = vector.broadcast %cst_1 : f32 to vector<256x1xf32>
    %4 = arith.divf %2, %3 : vector<256x1xf32>
    %5 = vector.broadcast %4 : vector<256x1xf32> to vector<256x128xf32>
    %6 = arith.subf %0, %5 : vector<256x128xf32>
    %7 = arith.mulf %6, %6 : vector<256x128xf32>
    %cst_2 = arith.constant dense<0.000000e+00> : vector<256xf32>
    %8 = vector.multi_reduction <add>, %7, %cst_2 [1] : vector<256x128xf32> to vector<256xf32>
    %9 = vector.shape_cast %8 : vector<256xf32> to vector<256x1xf32>
    %cst_3 = arith.constant 1.280000e+02 : f32
    %10 = vector.broadcast %cst_3 : f32 to vector<256x1xf32>
    %11 = arith.divf %9, %10 : vector<256x1xf32>
    %12 = vector.broadcast %4 : vector<256x1xf32> to vector<256x128xf32>
    %13 = arith.subf %0, %12 : vector<256x128xf32>
    %cst_4 = arith.constant 9.99999974E-6 : f32
    %14 = vector.broadcast %cst_4 : f32 to vector<256x1xf32>
    %15 = arith.addf %11, %14 : vector<256x1xf32>
    %16 = math.rsqrt %15 : vector<256x1xf32>
    %17 = vector.broadcast %16 : vector<256x1xf32> to vector<256x128xf32>
    %18 = arith.mulf %13, %17 : vector<256x128xf32>
    %c0_5 = arith.constant 0 : index
    %c0_6 = arith.constant 0 : index
    %19 = vector.load %arg3[%c0_5, %c0_6] : memref<1x128xf32, #tpu.memory_space<vmem>>, vector<1x128xf32>
    %20 = vector.broadcast %19 : vector<1x128xf32> to vector<256x128xf32>
    %21 = arith.mulf %18, %20 : vector<256x128xf32>
    %c0_7 = arith.constant 0 : index
    %c0_8 = arith.constant 0 : index
    %22 = vector.load %arg4[%c0_7, %c0_8] : memref<1x128xf32, #tpu.memory_space<vmem>>, vector<1x128xf32>
    %23 = vector.broadcast %22 : vector<1x128xf32> to vector<256x128xf32>
    %24 = arith.addf %21, %23 : vector<256x128xf32>
    %25 = arith.truncf %24 : vector<256x128xf32> to vector<256x128xbf16>
    %c0_9 = arith.constant 0 : index
    %c0_10 = arith.constant 0 : index
    %26 = vector.load %arg5[%c0_9, %c0_10] : memref<128x384xbf16, #tpu.memory_space<vmem>>, vector<128x384xbf16>
    %cst_11 = arith.constant dense<0.000000e+00> : vector<256x384xf32>
    %27 = tpu.matmul %25, %26, %cst_11 {dimension_numbers = #tpu.dot_dimension_numbers<[1], [0], [0], [1], [0, 0, 1, 1], [], []>} : vector<256x128xbf16>, vector<128x384xbf16>, vector<256x384xf32> -> vector<256x384xf32>
    %28 = arith.truncf %27 : vector<256x384xf32> to vector<256x384xbf16>
    %c0_12 = arith.constant 0 : index
    %c0_13 = arith.constant 0 : index
    %29 = vector.load %arg6[%c0_12, %c0_13] : memref<256x384xbf16, #tpu.memory_space<vmem>>, vector<256x384xbf16>
    tpu.vector_store %arg6[%c0_12, %c0_13], %28 {strides = array<i32>} : memref<256x384xbf16, #tpu.memory_space<vmem>>, vector<256x384xbf16>,
    return
  }
  func.func @transform_0(%arg0: i32, %arg1: i32) -> (i32, i32) {
    %c0_i32 = arith.constant 0 : i32
    %c0_i32_0 = arith.constant 0 : i32
    return %arg0, %c0_i32 : i32, i32
  }
  func.func @transform_1(%arg0: i32, %arg1: i32) -> (i32, i32) {
    %c0_i32 = arith.constant 0 : i32
    %c0_i32_0 = arith.constant 0 : i32
    %c0_i32_1 = arith.constant 0 : i32
    return %c0_i32, %c0_i32_0 : i32, i32
  }
  func.func @transform_2(%arg0: i32, %arg1: i32) -> (i32, i32) {
    %c0_i32 = arith.constant 0 : i32
    %c0_i32_0 = arith.constant 0 : i32
    %c0_i32_1 = arith.constant 0 : i32
    return %c0_i32, %c0_i32_0 : i32, i32
  }
  func.func @transform_3(%arg0: i32, %arg1: i32) -> (i32, i32) {
    %c0_i32 = arith.constant 0 : i32
    %c0_i32_0 = arith.constant 0 : i32
    return %c0_i32, %arg1 : i32, i32
  }
  func.func @transform_4(%arg0: i32, %arg1: i32) -> (i32, i32) {
    %c0_i32 = arith.constant 0 : i32
    return %arg0, %arg1 : i32, i32
  }
}

module attributes {stable_mosaic.version = 11 : i64} {
  func.func @_linattn_tokens_kernel(%arg0: i32, %arg1: memref<1x256x384xbf16, #tpu.memory_space<vmem>>, %arg2: memref<1x256x128xbf16, #tpu.memory_space<vmem>>) attributes {dimension_semantics = [#tpu.dimension_semantics<parallel>], iteration_bounds = array<i64: 2>, scalar_prefetch = 0 : i64, scratch_operands = 0 : i64, tpu.core_type = #tpu.core_type<tc>, window_params = [{transform_indices = @transform_0, window_bounds = array<i64: 1, 256, 384>}, {transform_indices = @transform_1, window_bounds = array<i64: 1, 256, 128>}]} {
    %c0 = arith.constant 0 : index
    %c0_0 = arith.constant 0 : index
    %c0_1 = arith.constant 0 : index
    %0 = vector.load %arg1[%c0, %c0_0, %c0_1] : memref<1x256x384xbf16, #tpu.memory_space<vmem>>, vector<1x256x384xbf16>
    %1 = vector.shape_cast %0 : vector<1x256x384xbf16> to vector<256x384xbf16>
    %2 = vector.extract_strided_slice %1 {offsets = [0, 0], sizes = [256, 32], strides = [1, 1]} : vector<256x384xbf16> to vector<256x32xbf16>
    %3 = vector.extract_strided_slice %1 {offsets = [0, 128], sizes = [256, 32], strides = [1, 1]} : vector<256x384xbf16> to vector<256x32xbf16>
    %4 = arith.extf %3 : vector<256x32xbf16> to vector<256x32xf32>
    %5 = vector.extract_strided_slice %1 {offsets = [0, 256], sizes = [256, 32], strides = [1, 1]} : vector<256x384xbf16> to vector<256x32xbf16>
    %cst = arith.constant dense<0xFF800000> : vector<32xf32>
    %6 = vector.multi_reduction <maximumf>, %4, %cst [0] : vector<256x32xf32> to vector<32xf32>
    %7 = vector.shape_cast %6 : vector<32xf32> to vector<1x32xf32>
    %8 = vector.broadcast %7 : vector<1x32xf32> to vector<256x32xf32>
    %9 = arith.subf %4, %8 : vector<256x32xf32>
    %10 = math.exp %9 : vector<256x32xf32>
    %cst_2 = arith.constant dense<0.000000e+00> : vector<32xf32>
    %11 = vector.multi_reduction <add>, %10, %cst_2 [0] : vector<256x32xf32> to vector<32xf32>
    %12 = vector.shape_cast %11 : vector<32xf32> to vector<1x32xf32>
    %13 = vector.broadcast %12 : vector<1x32xf32> to vector<256x32xf32>
    %14 = arith.divf %10, %13 : vector<256x32xf32>
    %15 = arith.truncf %14 : vector<256x32xf32> to vector<256x32xbf16>
    %cst_3 = arith.constant dense<0.000000e+00> : vector<32x32xf32>
    %16 = tpu.matmul %15, %5, %cst_3 {dimension_numbers = #tpu.dot_dimension_numbers<[0], [0], [1], [1], [0, 1, 1, 1], [], []>} : vector<256x32xbf16>, vector<256x32xbf16>, vector<32x32xf32> -> vector<32x32xf32>
    %17 = arith.truncf %16 : vector<32x32xf32> to vector<32x32xbf16>
    %cst_4 = arith.constant dense<0.000000e+00> : vector<256x32xf32>
    %18 = tpu.matmul %2, %17, %cst_4 {dimension_numbers = #tpu.dot_dimension_numbers<[1], [0], [0], [1], [0, 0, 1, 1], [], []>} : vector<256x32xbf16>, vector<32x32xbf16>, vector<256x32xf32> -> vector<256x32xf32>
    %19 = vector.extract_strided_slice %1 {offsets = [0, 32], sizes = [256, 32], strides = [1, 1]} : vector<256x384xbf16> to vector<256x32xbf16>
    %20 = vector.extract_strided_slice %1 {offsets = [0, 160], sizes = [256, 32], strides = [1, 1]} : vector<256x384xbf16> to vector<256x32xbf16>
    %21 = arith.extf %20 : vector<256x32xbf16> to vector<256x32xf32>
    %22 = vector.extract_strided_slice %1 {offsets = [0, 288], sizes = [256, 32], strides = [1, 1]} : vector<256x384xbf16> to vector<256x32xbf16>
    %cst_5 = arith.constant dense<0xFF800000> : vector<32xf32>
    %23 = vector.multi_reduction <maximumf>, %21, %cst_5 [0] : vector<256x32xf32> to vector<32xf32>
    %24 = vector.shape_cast %23 : vector<32xf32> to vector<1x32xf32>
    %25 = vector.broadcast %24 : vector<1x32xf32> to vector<256x32xf32>
    %26 = arith.subf %21, %25 : vector<256x32xf32>
    %27 = math.exp %26 : vector<256x32xf32>
    %cst_6 = arith.constant dense<0.000000e+00> : vector<32xf32>
    %28 = vector.multi_reduction <add>, %27, %cst_6 [0] : vector<256x32xf32> to vector<32xf32>
    %29 = vector.shape_cast %28 : vector<32xf32> to vector<1x32xf32>
    %30 = vector.broadcast %29 : vector<1x32xf32> to vector<256x32xf32>
    %31 = arith.divf %27, %30 : vector<256x32xf32>
    %32 = arith.truncf %31 : vector<256x32xf32> to vector<256x32xbf16>
    %cst_7 = arith.constant dense<0.000000e+00> : vector<32x32xf32>
    %33 = tpu.matmul %32, %22, %cst_7 {dimension_numbers = #tpu.dot_dimension_numbers<[0], [0], [1], [1], [0, 1, 1, 1], [], []>} : vector<256x32xbf16>, vector<256x32xbf16>, vector<32x32xf32> -> vector<32x32xf32>
    %34 = arith.truncf %33 : vector<32x32xf32> to vector<32x32xbf16>
    %cst_8 = arith.constant dense<0.000000e+00> : vector<256x32xf32>
    %35 = tpu.matmul %19, %34, %cst_8 {dimension_numbers = #tpu.dot_dimension_numbers<[1], [0], [0], [1], [0, 0, 1, 1], [], []>} : vector<256x32xbf16>, vector<32x32xbf16>, vector<256x32xf32> -> vector<256x32xf32>
    %36 = vector.extract_strided_slice %1 {offsets = [0, 64], sizes = [256, 32], strides = [1, 1]} : vector<256x384xbf16> to vector<256x32xbf16>
    %37 = vector.extract_strided_slice %1 {offsets = [0, 192], sizes = [256, 32], strides = [1, 1]} : vector<256x384xbf16> to vector<256x32xbf16>
    %38 = arith.extf %37 : vector<256x32xbf16> to vector<256x32xf32>
    %39 = vector.extract_strided_slice %1 {offsets = [0, 320], sizes = [256, 32], strides = [1, 1]} : vector<256x384xbf16> to vector<256x32xbf16>
    %cst_9 = arith.constant dense<0xFF800000> : vector<32xf32>
    %40 = vector.multi_reduction <maximumf>, %38, %cst_9 [0] : vector<256x32xf32> to vector<32xf32>
    %41 = vector.shape_cast %40 : vector<32xf32> to vector<1x32xf32>
    %42 = vector.broadcast %41 : vector<1x32xf32> to vector<256x32xf32>
    %43 = arith.subf %38, %42 : vector<256x32xf32>
    %44 = math.exp %43 : vector<256x32xf32>
    %cst_10 = arith.constant dense<0.000000e+00> : vector<32xf32>
    %45 = vector.multi_reduction <add>, %44, %cst_10 [0] : vector<256x32xf32> to vector<32xf32>
    %46 = vector.shape_cast %45 : vector<32xf32> to vector<1x32xf32>
    %47 = vector.broadcast %46 : vector<1x32xf32> to vector<256x32xf32>
    %48 = arith.divf %44, %47 : vector<256x32xf32>
    %49 = arith.truncf %48 : vector<256x32xf32> to vector<256x32xbf16>
    %cst_11 = arith.constant dense<0.000000e+00> : vector<32x32xf32>
    %50 = tpu.matmul %49, %39, %cst_11 {dimension_numbers = #tpu.dot_dimension_numbers<[0], [0], [1], [1], [0, 1, 1, 1], [], []>} : vector<256x32xbf16>, vector<256x32xbf16>, vector<32x32xf32> -> vector<32x32xf32>
    %51 = arith.truncf %50 : vector<32x32xf32> to vector<32x32xbf16>
    %cst_12 = arith.constant dense<0.000000e+00> : vector<256x32xf32>
    %52 = tpu.matmul %36, %51, %cst_12 {dimension_numbers = #tpu.dot_dimension_numbers<[1], [0], [0], [1], [0, 0, 1, 1], [], []>} : vector<256x32xbf16>, vector<32x32xbf16>, vector<256x32xf32> -> vector<256x32xf32>
    %53 = vector.extract_strided_slice %1 {offsets = [0, 96], sizes = [256, 32], strides = [1, 1]} : vector<256x384xbf16> to vector<256x32xbf16>
    %54 = vector.extract_strided_slice %1 {offsets = [0, 224], sizes = [256, 32], strides = [1, 1]} : vector<256x384xbf16> to vector<256x32xbf16>
    %55 = arith.extf %54 : vector<256x32xbf16> to vector<256x32xf32>
    %56 = vector.extract_strided_slice %1 {offsets = [0, 352], sizes = [256, 32], strides = [1, 1]} : vector<256x384xbf16> to vector<256x32xbf16>
    %cst_13 = arith.constant dense<0xFF800000> : vector<32xf32>
    %57 = vector.multi_reduction <maximumf>, %55, %cst_13 [0] : vector<256x32xf32> to vector<32xf32>
    %58 = vector.shape_cast %57 : vector<32xf32> to vector<1x32xf32>
    %59 = vector.broadcast %58 : vector<1x32xf32> to vector<256x32xf32>
    %60 = arith.subf %55, %59 : vector<256x32xf32>
    %61 = math.exp %60 : vector<256x32xf32>
    %cst_14 = arith.constant dense<0.000000e+00> : vector<32xf32>
    %62 = vector.multi_reduction <add>, %61, %cst_14 [0] : vector<256x32xf32> to vector<32xf32>
    %63 = vector.shape_cast %62 : vector<32xf32> to vector<1x32xf32>
    %64 = vector.broadcast %63 : vector<1x32xf32> to vector<256x32xf32>
    %65 = arith.divf %61, %64 : vector<256x32xf32>
    %66 = arith.truncf %65 : vector<256x32xf32> to vector<256x32xbf16>
    %cst_15 = arith.constant dense<0.000000e+00> : vector<32x32xf32>
    %67 = tpu.matmul %66, %56, %cst_15 {dimension_numbers = #tpu.dot_dimension_numbers<[0], [0], [1], [1], [0, 1, 1, 1], [], []>} : vector<256x32xbf16>, vector<256x32xbf16>, vector<32x32xf32> -> vector<32x32xf32>
    %68 = arith.truncf %67 : vector<32x32xf32> to vector<32x32xbf16>
    %cst_16 = arith.constant dense<0.000000e+00> : vector<256x32xf32>
    %69 = tpu.matmul %53, %68, %cst_16 {dimension_numbers = #tpu.dot_dimension_numbers<[1], [0], [0], [1], [0, 0, 1, 1], [], []>} : vector<256x32xbf16>, vector<32x32xbf16>, vector<256x32xf32> -> vector<256x32xf32>
    %70 = tpu.concatenate %18, %35, %52, %69 in 1 : vector<256x32xf32>, vector<256x32xf32>, vector<256x32xf32>, vector<256x32xf32> -> vector<256x128xf32>
    %71 = arith.truncf %70 : vector<256x128xf32> to vector<256x128xbf16>
    %c0_17 = arith.constant 0 : index
    %c0_18 = arith.constant 0 : index
    %c0_19 = arith.constant 0 : index
    %72 = vector.load %arg2[%c0_17, %c0_18, %c0_19] : memref<1x256x128xbf16, #tpu.memory_space<vmem>>, vector<1x256x128xbf16>
    %73 = vector.shape_cast %72 : vector<1x256x128xbf16> to vector<256x128xbf16>
    %74 = vector.shape_cast %71 : vector<256x128xbf16> to vector<1x256x128xbf16>
    tpu.vector_store %arg2[%c0_17, %c0_18, %c0_19], %74 {strides = array<i32>} : memref<1x256x128xbf16, #tpu.memory_space<vmem>>, vector<1x256x128xbf16>,
    return
  }
  func.func @transform_0(%arg0: i32) -> (i32, i32, i32) {
    %c0_i32 = arith.constant 0 : i32
    %c0_i32_0 = arith.constant 0 : i32
    %c0_i32_1 = arith.constant 0 : i32
    return %arg0, %c0_i32, %c0_i32_0 : i32, i32, i32
  }
  func.func @transform_1(%arg0: i32) -> (i32, i32, i32) {
    %c0_i32 = arith.constant 0 : i32
    %c0_i32_0 = arith.constant 0 : i32
    %c0_i32_1 = arith.constant 0 : i32
    return %arg0, %c0_i32, %c0_i32_0 : i32, i32, i32
  }
}

module attributes {stable_mosaic.version = 11 : i64} {
  func.func @_mm_bias_scale_res_kernel(%arg0: i32, %arg1: i32, %arg2: memref<256x128xbf16, #tpu.memory_space<vmem>>, %arg3: memref<128x128xbf16, #tpu.memory_space<vmem>>, %arg4: memref<1x128xf32, #tpu.memory_space<vmem>>, %arg5: memref<1x128xf32, #tpu.memory_space<vmem>>, %arg6: memref<256x128xf32, #tpu.memory_space<vmem>>, %arg7: memref<256x128xf32, #tpu.memory_space<vmem>>) attributes {dimension_semantics = [#tpu.dimension_semantics<parallel>, #tpu.dimension_semantics<parallel>], iteration_bounds = array<i64: 2, 1>, scalar_prefetch = 0 : i64, scratch_operands = 0 : i64, tpu.core_type = #tpu.core_type<tc>, window_params = [{transform_indices = @transform_0, window_bounds = array<i64: 256, 128>}, {transform_indices = @transform_1, window_bounds = array<i64: 128, 128>}, {transform_indices = @transform_2, window_bounds = array<i64: 1, 128>}, {transform_indices = @transform_3, window_bounds = array<i64: 1, 128>}, {transform_indices = @transform_4, window_bounds = array<i64: 256, 128>}, {transform_indices = @transform_5, window_bounds = array<i64: 256, 128>}]} {
    %c0 = arith.constant 0 : index
    %c0_0 = arith.constant 0 : index
    %0 = vector.load %arg2[%c0, %c0_0] : memref<256x128xbf16, #tpu.memory_space<vmem>>, vector<256x128xbf16>
    %c0_1 = arith.constant 0 : index
    %c0_2 = arith.constant 0 : index
    %1 = vector.load %arg3[%c0_1, %c0_2] : memref<128x128xbf16, #tpu.memory_space<vmem>>, vector<128x128xbf16>
    %cst = arith.constant dense<0.000000e+00> : vector<256x128xf32>
    %2 = tpu.matmul %0, %1, %cst {dimension_numbers = #tpu.dot_dimension_numbers<[1], [0], [0], [1], [0, 0, 1, 1], [], []>} : vector<256x128xbf16>, vector<128x128xbf16>, vector<256x128xf32> -> vector<256x128xf32>
    %c0_3 = arith.constant 0 : index
    %c0_4 = arith.constant 0 : index
    %3 = vector.load %arg6[%c0_3, %c0_4] : memref<256x128xf32, #tpu.memory_space<vmem>>, vector<256x128xf32>
    %c0_5 = arith.constant 0 : index
    %c0_6 = arith.constant 0 : index
    %4 = vector.load %arg4[%c0_5, %c0_6] : memref<1x128xf32, #tpu.memory_space<vmem>>, vector<1x128xf32>
    %5 = vector.broadcast %4 : vector<1x128xf32> to vector<256x128xf32>
    %6 = arith.addf %2, %5 : vector<256x128xf32>
    %c0_7 = arith.constant 0 : index
    %c0_8 = arith.constant 0 : index
    %7 = vector.load %arg5[%c0_7, %c0_8] : memref<1x128xf32, #tpu.memory_space<vmem>>, vector<1x128xf32>
    %8 = vector.broadcast %7 : vector<1x128xf32> to vector<256x128xf32>
    %9 = arith.mulf %6, %8 : vector<256x128xf32>
    %10 = arith.addf %3, %9 : vector<256x128xf32>
    %c0_9 = arith.constant 0 : index
    %c0_10 = arith.constant 0 : index
    %11 = vector.load %arg7[%c0_9, %c0_10] : memref<256x128xf32, #tpu.memory_space<vmem>>, vector<256x128xf32>
    tpu.vector_store %arg7[%c0_9, %c0_10], %10 {strides = array<i32>} : memref<256x128xf32, #tpu.memory_space<vmem>>, vector<256x128xf32>,
    return
  }
  func.func @transform_0(%arg0: i32, %arg1: i32) -> (i32, i32) {
    %c0_i32 = arith.constant 0 : i32
    %c0_i32_0 = arith.constant 0 : i32
    return %arg0, %c0_i32 : i32, i32
  }
  func.func @transform_1(%arg0: i32, %arg1: i32) -> (i32, i32) {
    %c0_i32 = arith.constant 0 : i32
    %c0_i32_0 = arith.constant 0 : i32
    return %c0_i32, %arg1 : i32, i32
  }
  func.func @transform_2(%arg0: i32, %arg1: i32) -> (i32, i32) {
    %c0_i32 = arith.constant 0 : i32
    %c0_i32_0 = arith.constant 0 : i32
    return %c0_i32, %arg1 : i32, i32
  }
  func.func @transform_3(%arg0: i32, %arg1: i32) -> (i32, i32) {
    %c0_i32 = arith.constant 0 : i32
    %c0_i32_0 = arith.constant 0 : i32
    return %c0_i32, %arg1 : i32, i32
  }
  func.func @transform_4(%arg0: i32, %arg1: i32) -> (i32, i32) {
    %c0_i32 = arith.constant 0 : i32
    return %arg0, %arg1 : i32, i32
  }
  func.func @transform_5(%arg0: i32, %arg1: i32) -> (i32, i32) {
    %c0_i32 = arith.constant 0 : i32
    return %arg0, %arg1 : i32, i32
  }
}

module attributes {stable_mosaic.version = 11 : i64} {
  func.func @_mm_bias_scale_res_kernel(%arg0: i32, %arg1: i32, %arg2: memref<256x256xbf16, #tpu.memory_space<vmem>>, %arg3: memref<256x128xbf16, #tpu.memory_space<vmem>>, %arg4: memref<1x128xf32, #tpu.memory_space<vmem>>, %arg5: memref<1x128xf32, #tpu.memory_space<vmem>>, %arg6: memref<256x128xf32, #tpu.memory_space<vmem>>, %arg7: memref<256x128xf32, #tpu.memory_space<vmem>>) attributes {dimension_semantics = [#tpu.dimension_semantics<parallel>, #tpu.dimension_semantics<parallel>], iteration_bounds = array<i64: 2, 1>, scalar_prefetch = 0 : i64, scratch_operands = 0 : i64, tpu.core_type = #tpu.core_type<tc>, window_params = [{transform_indices = @transform_0, window_bounds = array<i64: 256, 256>}, {transform_indices = @transform_1, window_bounds = array<i64: 256, 128>}, {transform_indices = @transform_2, window_bounds = array<i64: 1, 128>}, {transform_indices = @transform_3, window_bounds = array<i64: 1, 128>}, {transform_indices = @transform_4, window_bounds = array<i64: 256, 128>}, {transform_indices = @transform_5, window_bounds = array<i64: 256, 128>}]} {
    %c0 = arith.constant 0 : index
    %c0_0 = arith.constant 0 : index
    %0 = vector.load %arg2[%c0, %c0_0] : memref<256x256xbf16, #tpu.memory_space<vmem>>, vector<256x256xbf16>
    %c0_1 = arith.constant 0 : index
    %c0_2 = arith.constant 0 : index
    %1 = vector.load %arg3[%c0_1, %c0_2] : memref<256x128xbf16, #tpu.memory_space<vmem>>, vector<256x128xbf16>
    %cst = arith.constant dense<0.000000e+00> : vector<256x128xf32>
    %2 = tpu.matmul %0, %1, %cst {dimension_numbers = #tpu.dot_dimension_numbers<[1], [0], [0], [1], [0, 0, 1, 1], [], []>} : vector<256x256xbf16>, vector<256x128xbf16>, vector<256x128xf32> -> vector<256x128xf32>
    %c0_3 = arith.constant 0 : index
    %c0_4 = arith.constant 0 : index
    %3 = vector.load %arg6[%c0_3, %c0_4] : memref<256x128xf32, #tpu.memory_space<vmem>>, vector<256x128xf32>
    %c0_5 = arith.constant 0 : index
    %c0_6 = arith.constant 0 : index
    %4 = vector.load %arg4[%c0_5, %c0_6] : memref<1x128xf32, #tpu.memory_space<vmem>>, vector<1x128xf32>
    %5 = vector.broadcast %4 : vector<1x128xf32> to vector<256x128xf32>
    %6 = arith.addf %2, %5 : vector<256x128xf32>
    %c0_7 = arith.constant 0 : index
    %c0_8 = arith.constant 0 : index
    %7 = vector.load %arg5[%c0_7, %c0_8] : memref<1x128xf32, #tpu.memory_space<vmem>>, vector<1x128xf32>
    %8 = vector.broadcast %7 : vector<1x128xf32> to vector<256x128xf32>
    %9 = arith.mulf %6, %8 : vector<256x128xf32>
    %10 = arith.addf %3, %9 : vector<256x128xf32>
    %c0_9 = arith.constant 0 : index
    %c0_10 = arith.constant 0 : index
    %11 = vector.load %arg7[%c0_9, %c0_10] : memref<256x128xf32, #tpu.memory_space<vmem>>, vector<256x128xf32>
    tpu.vector_store %arg7[%c0_9, %c0_10], %10 {strides = array<i32>} : memref<256x128xf32, #tpu.memory_space<vmem>>, vector<256x128xf32>,
    return
  }
  func.func @transform_0(%arg0: i32, %arg1: i32) -> (i32, i32) {
    %c0_i32 = arith.constant 0 : i32
    %c0_i32_0 = arith.constant 0 : i32
    return %arg0, %c0_i32 : i32, i32
  }
  func.func @transform_1(%arg0: i32, %arg1: i32) -> (i32, i32) {
    %c0_i32 = arith.constant 0 : i32
    %c0_i32_0 = arith.constant 0 : i32
    return %c0_i32, %arg1 : i32, i32
  }
  func.func @transform_2(%arg0: i32, %arg1: i32) -> (i32, i32) {
    %c0_i32 = arith.constant 0 : i32
    %c0_i32_0 = arith.constant 0 : i32
    return %c0_i32, %arg1 : i32, i32
  }
  func.func @transform_3(%arg0: i32, %arg1: i32) -> (i32, i32) {
    %c0_i32 = arith.constant 0 : i32
    %c0_i32_0 = arith.constant 0 : i32
    return %c0_i32, %arg1 : i32, i32
  }
  func.func @transform_4(%arg0: i32, %arg1: i32) -> (i32, i32) {
    %c0_i32 = arith.constant 0 : i32
    return %arg0, %arg1 : i32, i32
  }
  func.func @transform_5(%arg0: i32, %arg1: i32) -> (i32, i32) {
    %c0_i32 = arith.constant 0 : i32
    return %arg0, %arg1 : i32, i32
  }
}

module attributes {stable_mosaic.version = 11 : i64} {
  func.func @_ln_mm_geglu_kernel(%arg0: i32, %arg1: i32, %arg2: memref<256x128xf32, #tpu.memory_space<vmem>>, %arg3: memref<1x128xf32, #tpu.memory_space<vmem>>, %arg4: memref<1x128xf32, #tpu.memory_space<vmem>>, %arg5: memref<128x256xbf16, #tpu.memory_space<vmem>>, %arg6: memref<128x256xbf16, #tpu.memory_space<vmem>>, %arg7: memref<1x256xf32, #tpu.memory_space<vmem>>, %arg8: memref<1x256xf32, #tpu.memory_space<vmem>>, %arg9: memref<256x256xbf16, #tpu.memory_space<vmem>>) attributes {dimension_semantics = [#tpu.dimension_semantics<parallel>, #tpu.dimension_semantics<parallel>], iteration_bounds = array<i64: 2, 1>, scalar_prefetch = 0 : i64, scratch_operands = 0 : i64, tpu.core_type = #tpu.core_type<tc>, window_params = [{transform_indices = @transform_0, window_bounds = array<i64: 256, 128>}, {pipeline_mode = #tpu.pipeline_mode<synchronous>, transform_indices = @transform_1, window_bounds = array<i64: 1, 128>}, {pipeline_mode = #tpu.pipeline_mode<synchronous>, transform_indices = @transform_2, window_bounds = array<i64: 1, 128>}, {transform_indices = @transform_3, window_bounds = array<i64: 128, 256>}, {transform_indices = @transform_4, window_bounds = array<i64: 128, 256>}, {transform_indices = @transform_5, window_bounds = array<i64: 1, 256>}, {transform_indices = @transform_6, window_bounds = array<i64: 1, 256>}, {transform_indices = @transform_7, window_bounds = array<i64: 256, 256>}]} {
    %c0 = arith.constant 0 : index
    %c0_0 = arith.constant 0 : index
    %0 = vector.load %arg2[%c0, %c0_0] : memref<256x128xf32, #tpu.memory_space<vmem>>, vector<256x128xf32>
    %cst = arith.constant dense<0.000000e+00> : vector<256xf32>
    %1 = vector.multi_reduction <add>, %0, %cst [1] : vector<256x128xf32> to vector<256xf32>
    %2 = vector.shape_cast %1 : vector<256xf32> to vector<256x1xf32>
    %cst_1 = arith.constant 1.280000e+02 : f32
    %3 = vector.broadcast %cst_1 : f32 to vector<256x1xf32>
    %4 = arith.divf %2, %3 : vector<256x1xf32>
    %5 = vector.broadcast %4 : vector<256x1xf32> to vector<256x128xf32>
    %6 = arith.subf %0, %5 : vector<256x128xf32>
    %7 = arith.mulf %6, %6 : vector<256x128xf32>
    %cst_2 = arith.constant dense<0.000000e+00> : vector<256xf32>
    %8 = vector.multi_reduction <add>, %7, %cst_2 [1] : vector<256x128xf32> to vector<256xf32>
    %9 = vector.shape_cast %8 : vector<256xf32> to vector<256x1xf32>
    %cst_3 = arith.constant 1.280000e+02 : f32
    %10 = vector.broadcast %cst_3 : f32 to vector<256x1xf32>
    %11 = arith.divf %9, %10 : vector<256x1xf32>
    %12 = vector.broadcast %4 : vector<256x1xf32> to vector<256x128xf32>
    %13 = arith.subf %0, %12 : vector<256x128xf32>
    %cst_4 = arith.constant 9.99999974E-6 : f32
    %14 = vector.broadcast %cst_4 : f32 to vector<256x1xf32>
    %15 = arith.addf %11, %14 : vector<256x1xf32>
    %16 = math.rsqrt %15 : vector<256x1xf32>
    %17 = vector.broadcast %16 : vector<256x1xf32> to vector<256x128xf32>
    %18 = arith.mulf %13, %17 : vector<256x128xf32>
    %c0_5 = arith.constant 0 : index
    %c0_6 = arith.constant 0 : index
    %19 = vector.load %arg3[%c0_5, %c0_6] : memref<1x128xf32, #tpu.memory_space<vmem>>, vector<1x128xf32>
    %20 = vector.broadcast %19 : vector<1x128xf32> to vector<256x128xf32>
    %21 = arith.mulf %18, %20 : vector<256x128xf32>
    %c0_7 = arith.constant 0 : index
    %c0_8 = arith.constant 0 : index
    %22 = vector.load %arg4[%c0_7, %c0_8] : memref<1x128xf32, #tpu.memory_space<vmem>>, vector<1x128xf32>
    %23 = vector.broadcast %22 : vector<1x128xf32> to vector<256x128xf32>
    %24 = arith.addf %21, %23 : vector<256x128xf32>
    %25 = arith.truncf %24 : vector<256x128xf32> to vector<256x128xbf16>
    %c0_9 = arith.constant 0 : index
    %c0_10 = arith.constant 0 : index
    %26 = vector.load %arg5[%c0_9, %c0_10] : memref<128x256xbf16, #tpu.memory_space<vmem>>, vector<128x256xbf16>
    %cst_11 = arith.constant dense<0.000000e+00> : vector<256x256xf32>
    %27 = tpu.matmul %25, %26, %cst_11 {dimension_numbers = #tpu.dot_dimension_numbers<[1], [0], [0], [1], [0, 0, 1, 1], [], []>} : vector<256x128xbf16>, vector<128x256xbf16>, vector<256x256xf32> -> vector<256x256xf32>
    %c0_12 = arith.constant 0 : index
    %c0_13 = arith.constant 0 : index
    %28 = vector.load %arg7[%c0_12, %c0_13] : memref<1x256xf32, #tpu.memory_space<vmem>>, vector<1x256xf32>
    %29 = vector.broadcast %28 : vector<1x256xf32> to vector<256x256xf32>
    %30 = arith.addf %27, %29 : vector<256x256xf32>
    %c0_14 = arith.constant 0 : index
    %c0_15 = arith.constant 0 : index
    %31 = vector.load %arg6[%c0_14, %c0_15] : memref<128x256xbf16, #tpu.memory_space<vmem>>, vector<128x256xbf16>
    %cst_16 = arith.constant dense<0.000000e+00> : vector<256x256xf32>
    %32 = tpu.matmul %25, %31, %cst_16 {dimension_numbers = #tpu.dot_dimension_numbers<[1], [0], [0], [1], [0, 0, 1, 1], [], []>} : vector<256x128xbf16>, vector<128x256xbf16>, vector<256x256xf32> -> vector<256x256xf32>
    %c0_17 = arith.constant 0 : index
    %c0_18 = arith.constant 0 : index
    %33 = vector.load %arg8[%c0_17, %c0_18] : memref<1x256xf32, #tpu.memory_space<vmem>>, vector<1x256xf32>
    %34 = vector.broadcast %33 : vector<1x256xf32> to vector<256x256xf32>
    %35 = arith.addf %32, %34 : vector<256x256xf32>
    %36 = arith.mulf %35, %35 : vector<256x256xf32>
    %37 = arith.mulf %35, %36 : vector<256x256xf32>
    %cst_19 = arith.constant 4.471500e-02 : f32
    %38 = vector.broadcast %cst_19 : f32 to vector<256x256xf32>
    %39 = arith.mulf %38, %37 : vector<256x256xf32>
    %40 = arith.addf %35, %39 : vector<256x256xf32>
    %cst_20 = arith.constant 0.797884583 : f32
    %41 = vector.broadcast %cst_20 : f32 to vector<256x256xf32>
    %42 = arith.mulf %41, %40 : vector<256x256xf32>
    %43 = math.tanh %42 : vector<256x256xf32>
    %cst_21 = arith.constant 1.000000e+00 : f32
    %44 = vector.broadcast %cst_21 : f32 to vector<256x256xf32>
    %45 = arith.addf %44, %43 : vector<256x256xf32>
    %cst_22 = arith.constant 5.000000e-01 : f32
    %46 = vector.broadcast %cst_22 : f32 to vector<256x256xf32>
    %47 = arith.mulf %46, %45 : vector<256x256xf32>
    %48 = arith.mulf %35, %47 : vector<256x256xf32>
    %49 = arith.mulf %30, %48 : vector<256x256xf32>
    %50 = arith.truncf %49 : vector<256x256xf32> to vector<256x256xbf16>
    %c0_23 = arith.constant 0 : index
    %c0_24 = arith.constant 0 : index
    %51 = vector.load %arg9[%c0_23, %c0_24] : memref<256x256xbf16, #tpu.memory_space<vmem>>, vector<256x256xbf16>
    tpu.vector_store %arg9[%c0_23, %c0_24], %50 {strides = array<i32>} : memref<256x256xbf16, #tpu.memory_space<vmem>>, vector<256x256xbf16>,
    return
  }
  func.func @transform_0(%arg0: i32, %arg1: i32) -> (i32, i32) {
    %c0_i32 = arith.constant 0 : i32
    %c0_i32_0 = arith.constant 0 : i32
    return %arg0, %c0_i32 : i32, i32
  }
  func.func @transform_1(%arg0: i32, %arg1: i32) -> (i32, i32) {
    %c0_i32 = arith.constant 0 : i32
    %c0_i32_0 = arith.constant 0 : i32
    %c0_i32_1 = arith.constant 0 : i32
    return %c0_i32, %c0_i32_0 : i32, i32
  }
  func.func @transform_2(%arg0: i32, %arg1: i32) -> (i32, i32) {
    %c0_i32 = arith.constant 0 : i32
    %c0_i32_0 = arith.constant 0 : i32
    %c0_i32_1 = arith.constant 0 : i32
    return %c0_i32, %c0_i32_0 : i32, i32
  }
  func.func @transform_3(%arg0: i32, %arg1: i32) -> (i32, i32) {
    %c0_i32 = arith.constant 0 : i32
    %c0_i32_0 = arith.constant 0 : i32
    return %c0_i32, %arg1 : i32, i32
  }
  func.func @transform_4(%arg0: i32, %arg1: i32) -> (i32, i32) {
    %c0_i32 = arith.constant 0 : i32
    %c0_i32_0 = arith.constant 0 : i32
    return %c0_i32, %arg1 : i32, i32
  }
  func.func @transform_5(%arg0: i32, %arg1: i32) -> (i32, i32) {
    %c0_i32 = arith.constant 0 : i32
    %c0_i32_0 = arith.constant 0 : i32
    return %c0_i32, %arg1 : i32, i32
  }
  func.func @transform_6(%arg0: i32, %arg1: i32) -> (i32, i32) {
    %c0_i32 = arith.constant 0 : i32
    %c0_i32_0 = arith.constant 0 : i32
    return %c0_i32, %arg1 : i32, i32
  }
  func.func @transform_7(%arg0: i32, %arg1: i32) -> (i32, i32) {
    %c0_i32 = arith.constant 0 : i32
    return %arg0, %arg1 : i32, i32
  }
}

</mosaic_0001>

<llo_original>
// kernel: _lambda_.9
$region0: #{_lambda_.9}
  #allocation0 [shape = 'u32[]', space=smem, size = 0x4, offset = 0x4, fixed_abs, tag = 'smem constant byte address 0x4 - core index']
  #allocation1 [shape = 'u32[144,128]{1,0:T(1,128)}', space=vmem, size = 0x12000, scoped, tag = 'internal scratch']
  %s0 = inlined_call_operand.vmem [shape: bf16[512,128], index: 0, kind: input, shape index: {}]
  %s1 = inlined_call_operand.vmem [shape: bf16[128,128], index: 1, kind: input, shape index: {}]
  %s2 = inlined_call_operand.vmem [shape: f32[1,128], index: 2, kind: input, shape index: {}]
  %s3 = inlined_call_operand.vmem [shape: f32[1,128], index: 3, kind: input, shape index: {}]
  %s4 = inlined_call_operand.vmem [shape: f32[512,128], index: 4, kind: input, shape index: {}]
  %s5 = inlined_call_operand.vmem [shape: f32[512,128], index: 5, kind: output, shape index: {}]
  %s6 = sld [smem:[#allocation0]]
  $region53: #{_lambda_.9} parent=0
    _
  %s8 = ssub.s32 1, %s6
  %s9 = scalar_select 0, %s8, %s6
  loop: start=0, step=1, limit=4
  $region2: #{_lambda_.9} parent=0 // loop_pre_header
    _
  $region3: #{_lambda_.9} parent=0 // loop_header
    %s11 = sphi 0, %s15
    %p12 = scmp.ge.s32.totalorder %s11, 4
    %s18 = sphi 0, %s30
    %s19 = sphi 0, %s26
    %s20 = sphi 0, %s18
    %s21 = sphi 0, %s19
    %s22 = sphi 0, %s20
    %s23 = sphi 0, %s21
    %s33 = sphi 0, %s35
    %s36 = sphi 0, %s33
    %s37 = sphi 0, %s36
    %s53 = sphi 0, %s37
    %s59 = sphi 0, %s61
    %s62 = sphi 0, %s59
    %s63 = sphi 0, %s62
    %s79 = sphi 0, %s63
    %s85 = sphi 0, %s87
    %s88 = sphi 0, %s85
    %s89 = sphi 0, %s88
    %s105 = sphi 0, %s89
    %s111 = sphi 0, %s113
    %s114 = sphi 0, %s111
    %s115 = sphi 0, %s114
    %s131 = sphi 0, %s115
    %s139 = sphi 0, %s141
    %s142 = sphi 0, %s139
    %s143 = sphi 0, %s142
    %s159 = sphi 0, %s143
    %s167 = sphi 0, %s169
    %s170 = sphi 0, %s167
    %s171 = sphi 0, %s170
    %s187 = sphi 0, %s171
  $region4: #{_lambda_.9} parent=0 // loop_header_branch
    %14 = sbr.rel (%p12) target = $region8
  $region5: #{_lambda_.9} parent=0 // loop_body
    %s16 = ssub.s32 %s11, 1
    %s17 = ssub.s32 %s11, 2
    %s24 = sadd.s32 1, %s19
    %p25 = scmp.ge.s32.totalorder %s24, 1
    %s26 = scalar_select %p25, 0, %s24
    %s27 = sadd.s32 1, %s18
    %s28 = scalar_select %p25, %s27, %s18
    %p29 = scmp.ge.s32.totalorder %s28, 2
    %s30 = scalar_select %p29, 0, %s28
    %s31 = ssub.s32 %s18, %s30
    %p32 = scmp.eq.s32.totalorder %s31, 0
    %s34 = sadd.s32 %s33, 1
    %s35 = scalar_select %p32, %s33, %s34
    %p38 = pneg %p32
    %p39 = scmp.eq.s32.totalorder %s11, 1
    %p40 = por %p38, %p39
    %p41 = scmp.ne.s32.totalorder %s33, %s36
    %p42 = scmp.eq.s32.totalorder %s11, 0
    %p43 = por %p41, %p42
    %p44 = scmp.ne.s32.totalorder %s33, %s36
    %p45 = scmp.eq.s32.totalorder %s16, 1
    %p46 = por %p44, %p45
    %p47 = scmp.ne.s32.totalorder %s36, %s37
    %p48 = scmp.eq.s32.totalorder %s16, 0
    %p49 = por %p47, %p48
    %p50 = scmp.ne.s32.totalorder %s36, %s37
    %p51 = scmp.eq.s32.totalorder %s17, 1
    %p52 = por %p50, %p51
    %p54 = scmp.ne.s32.totalorder %s37, %s53
    %p55 = scmp.eq.s32.totalorder %s17, 0
    %p56 = por %p54, %p55
    %s57 = ssub.s32 %s19, %s26
    %p58 = scmp.eq.s32.totalorder %s57, 0
    %s60 = sadd.s32 %s59, 1
    %s61 = scalar_select %p58, %s59, %s60
    %p64 = pneg %p58
    %p65 = scmp.eq.s32.totalorder %s11, 1
    %p66 = por %p64, %p65
    %p67 = scmp.ne.s32.totalorder %s59, %s62
    %p68 = scmp.eq.s32.totalorder %s11, 0
    %p69 = por %p67, %p68
    %p70 = scmp.ne.s32.totalorder %s59, %s62
    %p71 = scmp.eq.s32.totalorder %s16, 1
    %p72 = por %p70, %p71
    %p73 = scmp.ne.s32.totalorder %s62, %s63
    %p74 = scmp.eq.s32.totalorder %s16, 0
    %p75 = por %p73, %p74
    %p76 = scmp.ne.s32.totalorder %s62, %s63
    %p77 = scmp.eq.s32.totalorder %s17, 1
    %p78 = por %p76, %p77
    %p80 = scmp.ne.s32.totalorder %s63, %s79
    %p81 = scmp.eq.s32.totalorder %s17, 0
    %p82 = por %p80, %p81
    %s83 = ssub.s32 %s19, %s26
    %p84 = scmp.eq.s32.totalorder %s83, 0
    %s86 = sadd.s32 %s85, 1
    %s87 = scalar_select %p84, %s85, %s86
    %p90 = pneg %p84
    %p91 = scmp.eq.s32.totalorder %s11, 1
    %p92 = por %p90, %p91
    %p93 = scmp.ne.s32.totalorder %s85, %s88
    %p94 = scmp.eq.s32.totalorder %s11, 0
    %p95 = por %p93, %p94
    %p96 = scmp.ne.s32.totalorder %s85, %s88
    %p97 = scmp.eq.s32.totalorder %s16, 1
    %p98 = por %p96, %p97
    %p99 = scmp.ne.s32.totalorder %s88, %s89
    %p100 = scmp.eq.s32.totalorder %s16, 0
    %p101 = por %p99, %p100
    %p102 = scmp.ne.s32.totalorder %s88, %s89
    %p103 = scmp.eq.s32.totalorder %s17, 1
    %p104 = por %p102, %p103
    %p106 = scmp.ne.s32.totalorder %s89, %s105
    %p107 = scmp.eq.s32.totalorder %s17, 0
    %p108 = por %p106, %p107
    %s109 = ssub.s32 %s19, %s26
    %p110 = scmp.eq.s32.totalorder %s109, 0
    %s112 = sadd.s32 %s111, 1
    %s113 = scalar_select %p110, %s111, %s112
    %p116 = pneg %p110
    %p117 = scmp.eq.s32.totalorder %s11, 1
    %p118 = por %p116, %p117
    %p119 = scmp.ne.s32.totalorder %s111, %s114
    %p120 = scmp.eq.s32.totalorder %s11, 0
    %p121 = por %p119, %p120
    %p122 = scmp.ne.s32.totalorder %s111, %s114
    %p123 = scmp.eq.s32.totalorder %s16, 1
    %p124 = por %p122, %p123
    %p125 = scmp.ne.s32.totalorder %s114, %s115
    %p126 = scmp.eq.s32.totalorder %s16, 0
    %p127 = por %p125, %p126
    %p128 = scmp.ne.s32.totalorder %s114, %s115
    %p129 = scmp.eq.s32.totalorder %s17, 1
    %p130 = por %p128, %p129
    %p132 = scmp.ne.s32.totalorder %s115, %s131
    %p133 = scmp.eq.s32.totalorder %s17, 0
    %p134 = por %p132, %p133
    %s135 = ssub.s32 %s18, %s30
    %s136 = ssub.s32 %s19, %s26
    %s137 = sor.u32 %s135, %s136
    %p138 = scmp.eq.s32.totalorder %s137, 0
    %s140 = sadd.s32 %s139, 1
    %s141 = scalar_select %p138, %s139, %s140
    %p144 = pneg %p138
    %p145 = scmp.eq.s32.totalorder %s11, 1
    %p146 = por %p144, %p145
    %p147 = scmp.ne.s32.totalorder %s139, %s142
    %p148 = scmp.eq.s32.totalorder %s11, 0
    %p149 = por %p147, %p148
    %p150 = scmp.ne.s32.totalorder %s139, %s142
    %p151 = scmp.eq.s32.totalorder %s16, 1
    %p152 = por %p150, %p151
    %p153 = scmp.ne.s32.totalorder %s142, %s143
    %p154 = scmp.eq.s32.totalorder %s16, 0
    %p155 = por %p153, %p154
    %p156 = scmp.ne.s32.totalorder %s142, %s143
    %p157 = scmp.eq.s32.totalorder %s17, 1
    %p158 = por %p156, %p157
    %p160 = scmp.ne.s32.totalorder %s143, %s159
    %p161 = scmp.eq.s32.totalorder %s17, 0
    %p162 = por %p160, %p161
    %s163 = ssub.s32 %s18, %s30
    %s164 = ssub.s32 %s19, %s26
    %s165 = sor.u32 %s163, %s164
    %p166 = scmp.eq.s32.totalorder %s165, 0
    %s168 = sadd.s32 %s167, 1
    %s169 = scalar_select %p166, %s167, %s168
    %p172 = pneg %p166
    %p173 = scmp.eq.s32.totalorder %s11, 1
    %p174 = por %p172, %p173
    %p175 = scmp.ne.s32.totalorder %s167, %s170
    %p176 = scmp.eq.s32.totalorder %s11, 0
    %p177 = por %p175, %p176
    %p178 = scmp.ne.s32.totalorder %s167, %s170
    %p179 = scmp.eq.s32.totalorder %s16, 1
    %p180 = por %p178, %p179
    %p181 = scmp.ne.s32.totalorder %s170, %s171
    %p182 = scmp.eq.s32.totalorder %s16, 0
    %p183 = por %p181, %p182
    %p184 = scmp.ne.s32.totalorder %s170, %s171
    %p185 = scmp.eq.s32.totalorder %s17, 1
    %p186 = por %p184, %p185
    %p188 = scmp.ne.s32.totalorder %s171, %s187
    %p189 = scmp.eq.s32.totalorder %s17, 0
    %p190 = por %p188, %p189
    %p191 = scmp.le.s32.totalorder 1, %s11
    %p192 = scmp.lt.s32.totalorder %s11, 3
    %p193 = pnand %p191, %p192
    %p194 = pneg %p193
    // Predicated region
    $region9: #{_lambda_.9} parent=5 // pred_check
      _
    $region10: #{_lambda_.9} parent=5 // pred_check_branch
      %196 = sbr.rel (%p193) target = $region12
    $region11: #{_lambda_.9} parent=5 // pred_region
      %s197 = ssub.s32 %s11, 1
      // Predicated region
      $region13: #{_lambda_.9} parent=11 // pred_check
        %p198 = pneg %p75
      $region14: #{_lambda_.9} parent=11 // pred_check_branch
        %200 = sbr.rel (%p198) target = $region16
      $region15: #{_lambda_.9} parent=11 // pred_region
        %p201 = scmp.lt.s32.totalorder %s21, 0
        %s202 = scalar_select %p201, %s21, 0
        %s203 = smul.addr %s202, 4
        %s204 = scalar_lea.vmem %s1, %s203
      $region16: #{_lambda_.9} parent=11 // pred_fallthru
        _
      // Predicated region
      $region17: #{_lambda_.9} parent=11 // pred_check
        %p205 = pneg %p101
      $region18: #{_lambda_.9} parent=11 // pred_check_branch
        %207 = sbr.rel (%p205) target = $region20
      $region19: #{_lambda_.9} parent=11 // pred_region
        %p208 = scmp.lt.s32.totalorder %s21, 0
        %s209 = scalar_select %p208, %s21, 0
        %s210 = scalar_lea.vmem %s2, %s209
      $region20: #{_lambda_.9} parent=11 // pred_fallthru
        _
      // Predicated region
      $region21: #{_lambda_.9} parent=11 // pred_check
        %p211 = pneg %p127
      $region22: #{_lambda_.9} parent=11 // pred_check_branch
        %213 = sbr.rel (%p211) target = $region24
      $region23: #{_lambda_.9} parent=11 // pred_region
        %p214 = scmp.lt.s32.totalorder %s21, 0
        %s215 = scalar_select %p214, %s21, 0
        %s216 = scalar_lea.vmem %s3, %s215
      $region24: #{_lambda_.9} parent=11 // pred_fallthru
        _
    $region12: #{_lambda_.9} parent=5 // pred_fallthru
      _
    %p217 = scmp.lt.s32.totalorder %s11, 2
    // Predicated region
    $region25: #{_lambda_.9} parent=5 // pred_check
      %p218 = pneg %p217
    $region26: #{_lambda_.9} parent=5 // pred_check_branch
      %220 = sbr.rel (%p218) target = $region28
    $region27: #{_lambda_.9} parent=5 // pred_region
      // Predicated region
      $region29: #{_lambda_.9} parent=27 // pred_check
        %p221 = pneg %p43
      $region30: #{_lambda_.9} parent=27 // pred_check_branch
        %223 = sbr.rel (%p221) target = $region32
      $region31: #{_lambda_.9} parent=27 // pred_region
        %s224 = smul.u32 32, %s18
        %p225 = scmp.lt.s32.totalorder %s224, 63
        %s226 = scalar_select %p225, %s224, 63
        %s227 = smul.addr %s226, 4
        %s228 = scalar_lea.vmem %s0, %s227
        %s229 = smul.u32 32, %s18
      $region32: #{_lambda_.9} parent=27 // pred_fallthru
        _
      // Predicated region
      $region33: #{_lambda_.9} parent=27 // pred_check
        %p230 = pneg %p149
      $region34: #{_lambda_.9} parent=27 // pred_check_branch
        %232 = sbr.rel (%p230) target = $region36
      $region35: #{_lambda_.9} parent=27 // pred_region
        %s233 = smul.u32 32, %s18
        %p234 = scmp.lt.s32.totalorder %s233, 63
        %s235 = scalar_select %p234, %s233, 63
        %p236 = scmp.lt.s32.totalorder %s19, 0
        %s237 = scalar_select %p236, %s19, 0
        %s238 = sadd.s32 %s237, %s235
        %s239 = smul.addr %s238, 8
        %s240 = scalar_lea.vmem %s4, %s239
        %s241 = smul.u32 32, %s18
      $region36: #{_lambda_.9} parent=27 // pred_fallthru
        _
    $region28: #{_lambda_.9} parent=5 // pred_fallthru
      _
    %p242 = scmp.le.s32.totalorder 1, %s11
    %p243 = scmp.lt.s32.totalorder %s11, 3
    %p244 = pnand %p242, %p243
    %p245 = pneg %p244
    // Predicated region
    $region37: #{_lambda_.9} parent=5 // pred_check
      _
    $region38: #{_lambda_.9} parent=5 // pred_check_branch
      %247 = sbr.rel (%p244) target = $region40
    $region39: #{_lambda_.9} parent=5 // pred_region
      %s248 = ssub.s32 %s11, 1
      %s249 = smul.u32 32, %s20
      %p250 = scmp.lt.s32.totalorder %s249, 63
      %s251 = scalar_select %p250, %s249, 63
      %s252 = smul.addr %s251, 4
      %s253 = scalar_lea.vmem %s0, %s252
      %p254 = pneg %p49
      %p255 = pneg %p46
      %p256 = scmp.lt.s32.totalorder %s21, 0
      %s257 = scalar_select %p256, %s21, 0
      %s258 = smul.addr %s257, 4
      %s259 = scalar_lea.vmem %s1, %s258
      %p260 = pneg %p75
      %p261 = pneg %p72
      %p262 = scmp.lt.s32.totalorder %s21, 0
      %s263 = scalar_select %p262, %s21, 0
      %s264 = scalar_lea.vmem %s2, %s263
      %p265 = pneg %p101
      %p266 = pneg %p98
      %p267 = scmp.lt.s32.totalorder %s21, 0
      %s268 = scalar_select %p267, %s21, 0
      %s269 = scalar_lea.vmem %s3, %s268
      %p270 = pneg %p127
      %p271 = pneg %p124
      %s272 = smul.u32 32, %s20
      %p273 = scmp.lt.s32.totalorder %s272, 63
      %s274 = scalar_select %p273, %s272, 63
      %p275 = scmp.lt.s32.totalorder %s21, 0
      %s276 = scalar_select %p275, %s21, 0
      %s277 = sadd.s32 %s276, %s274
      %s278 = smul.addr %s277, 8
      %s279 = scalar_lea.vmem %s4, %s278
      %p280 = pneg %p155
      %p281 = pneg %p152
      %p282 = pneg %p183
      %p283 = pneg %p180
      %s284 = smul.u32 32, %s20
      %p285 = scmp.lt.s32.totalorder %s284, 63
      %s286 = scalar_select %p285, %s284, 63
      %p287 = scmp.lt.s32.totalorder %s21, 0
      %s288 = scalar_select %p287, %s21, 0
      %s289 = sadd.s32 %s288, %s286
      %s290 = smul.addr %s289, 8
      %s291 = scalar_lea.vmem %s5, %s290
      %s292 = smul.u32 32, %s20
      %p293 = scmp.lt.s32.totalorder %s292, 63
      %s294 = scalar_select %p293, %s292, 63
      %s295 = smul.addr %s294, 4
      %s296 = scalar_lea.vmem %s0, %s295
      %s297 = smul.u32 32, %s20
      %p298 = scmp.lt.s32.totalorder %s21, 0
      %s299 = scalar_select %p298, %s21, 0
      %s300 = smul.addr %s299, 4
      %s301 = scalar_lea.vmem %s1, %s300
      %p302 = scmp.lt.s32.totalorder %s21, 0
      %s303 = scalar_select %p302, %s21, 0
      %s304 = scalar_lea.vmem %s2, %s303
      %p305 = scmp.lt.s32.totalorder %s21, 0
      %s306 = scalar_select %p305, %s21, 0
      %s307 = scalar_lea.vmem %s3, %s306
      %s308 = smul.u32 32, %s20
      %p309 = scmp.lt.s32.totalorder %s308, 63
      %s310 = scalar_select %p309, %s308, 63
      %p311 = scmp.lt.s32.totalorder %s21, 0
      %s312 = scalar_select %p311, %s21, 0
      %s313 = sadd.s32 %s312, %s310
      %s314 = smul.addr %s313, 8
      %s315 = scalar_lea.vmem %s4, %s314
      %s316 = smul.u32 32, %s20
      %s317 = smul.u32 32, %s20
      %p318 = scmp.lt.s32.totalorder %s317, 63
      %s319 = scalar_select %p318, %s317, 63
      %p320 = scmp.lt.s32.totalorder %s21, 0
      %s321 = scalar_select %p320, %s21, 0
      %s322 = sadd.s32 %s321, %s319
      %s323 = smul.addr %s322, 8
      %s324 = scalar_lea.vmem %s5, %s323
      %s325 = smul.u32 32, %s20
      %v327 = vld [vmem:[%s296] sm:$0xf]
      %v328 = vld [vmem:[%s296 + $0x4] sm:$0xf]
      %v329 = vld [vmem:[%s296 + $0x8] sm:$0xf]
      %v330 = vld [vmem:[%s296 + $0xc] sm:$0xf]
      %v331 = vld [vmem:[%s296 + $0x10] sm:$0xf]
      %v332 = vld [vmem:[%s296 + $0x14] sm:$0xf]
      %v333 = vld [vmem:[%s296 + $0x18] sm:$0xf]
      %v334 = vld [vmem:[%s296 + $0x1c] sm:$0xf]
      %v335 = vld [vmem:[%s296 + $0x20] sm:$0xf]
      %v336 = vld [vmem:[%s296 + $0x24] sm:$0xf]
      %v337 = vld [vmem:[%s296 + $0x28] sm:$0xf]
      %v338 = vld [vmem:[%s296 + $0x2c] sm:$0xf]
      %v339 = vld [vmem:[%s296 + $0x30] sm:$0xf]
      %v340 = vld [vmem:[%s296 + $0x34] sm:$0xf]
      %v341 = vld [vmem:[%s296 + $0x38] sm:$0xf]
      %v342 = vld [vmem:[%s296 + $0x3c] sm:$0xf]
      %v343 = vld [vmem:[%s296 + $0x40] sm:$0xf]
      %v344 = vld [vmem:[%s296 + $0x44] sm:$0xf]
      %v345 = vld [vmem:[%s296 + $0x48] sm:$0xf]
      %v346 = vld [vmem:[%s296 + $0x4c] sm:$0xf]
      %v347 = vld [vmem:[%s296 + $0x50] sm:$0xf]
      %v348 = vld [vmem:[%s296 + $0x54] sm:$0xf]
      %v349 = vld [vmem:[%s296 + $0x58] sm:$0xf]
      %v350 = vld [vmem:[%s296 + $0x5c] sm:$0xf]
      %v351 = vld [vmem:[%s296 + $0x60] sm:$0xf]
      %v352 = vld [vmem:[%s296 + $0x64] sm:$0xf]
      %v353 = vld [vmem:[%s296 + $0x68] sm:$0xf]
      %v354 = vld [vmem:[%s296 + $0x6c] sm:$0xf]
      %v355 = vld [vmem:[%s296 + $0x70] sm:$0xf]
      %v356 = vld [vmem:[%s296 + $0x74] sm:$0xf]
      %v357 = vld [vmem:[%s296 + $0x78] sm:$0xf]
      %v358 = vld [vmem:[%s296 + $0x7c] sm:$0xf]
      %v359 = vld [vmem:[%s301] sm:$0xf]
      %v360 = vld [vmem:[%s301 + $0x4] sm:$0xf]
      %v361 = vld [vmem:[%s301 + $0x8] sm:$0xf]
      %v362 = vld [vmem:[%s301 + $0xc] sm:$0xf]
      %v363 = vld [vmem:[%s301 + $0x10] sm:$0xf]
      %v364 = vld [vmem:[%s301 + $0x14] sm:$0xf]
      %v365 = vld [vmem:[%s301 + $0x18] sm:$0xf]
      %v366 = vld [vmem:[%s301 + $0x1c] sm:$0xf]
      %v367 = vld [vmem:[%s301 + $0x20] sm:$0xf]
      %v368 = vld [vmem:[%s301 + $0x24] sm:$0xf]
      %v369 = vld [vmem:[%s301 + $0x28] sm:$0xf]
      %v370 = vld [vmem:[%s301 + $0x2c] sm:$0xf]
      %v371 = vld [vmem:[%s301 + $0x30] sm:$0xf]
      %v372 = vld [vmem:[%s301 + $0x34] sm:$0xf]
      %v373 = vld [vmem:[%s301 + $0x38] sm:$0xf]
      %v374 = vld [vmem:[%s301 + $0x3c] sm:$0xf]
      %v375 = vld [vmem:[%s315] sm:$0xff]
      %v376 = vld [vmem:[%s315 + $0x8] sm:$0xff]
      %v377 = vld [vmem:[%s315 + $0x10] sm:$0xff]
      %v378 = vld [vmem:[%s315 + $0x18] sm:$0xff]
      %v379 = vld [vmem:[%s315 + $0x20] sm:$0xff]
      %v380 = vld [vmem:[%s315 + $0x28] sm:$0xff]
      %v381 = vld [vmem:[%s315 + $0x30] sm:$0xff]
      %v382 = vld [vmem:[%s315 + $0x38] sm:$0xff]
      %v383 = vld [vmem:[%s315 + $0x40] sm:$0xff]
      %v384 = vld [vmem:[%s315 + $0x48] sm:$0xff]
      %v385 = vld [vmem:[%s315 + $0x50] sm:$0xff]
      %v386 = vld [vmem:[%s315 + $0x58] sm:$0xff]
      %v387 = vld [vmem:[%s315 + $0x60] sm:$0xff]
      %v388 = vld [vmem:[%s315 + $0x68] sm:$0xff]
      %v389 = vld [vmem:[%s315 + $0x70] sm:$0xff]
      %v390 = vld [vmem:[%s315 + $0x78] sm:$0xff]
      %v391 = vld [vmem:[%s315 + $0x80] sm:$0xff]
      %v392 = vld [vmem:[%s315 + $0x88] sm:$0xff]
      %v393 = vld [vmem:[%s315 + $0x90] sm:$0xff]
      %v394 = vld [vmem:[%s315 + $0x98] sm:$0xff]
      %v395 = vld [vmem:[%s315 + $0xa0] sm:$0xff]
      %v396 = vld [vmem:[%s315 + $0xa8] sm:$0xff]
      %v397 = vld [vmem:[%s315 + $0xb0] sm:$0xff]
      %v398 = vld [vmem:[%s315 + $0xb8] sm:$0xff]
      %v399 = vld [vmem:[%s315 + $0xc0] sm:$0xff]
      %v400 = vld [vmem:[%s315 + $0xc8] sm:$0xff]
      %v401 = vld [vmem:[%s315 + $0xd0] sm:$0xff]
      %v402 = vld [vmem:[%s315 + $0xd8] sm:$0xff]
      %v403 = vld [vmem:[%s315 + $0xe0] sm:$0xff]
      %v404 = vld [vmem:[%s315 + $0xe8] sm:$0xff]
      %v405 = vld [vmem:[%s315 + $0xf0] sm:$0xff]
      %v406 = vld [vmem:[%s315 + $0xf8] sm:$0xff]
      %v407 = vld [vmem:[%s304] sm:$0x1]
      %v409 = vlaneseq
      %v410 = vshrl.u32 %v409, 7
      %v411 = vsub.s32 0, %v410
      %v412 = vrot.slane %v407, %v411
      %v446 = vunpack.c.l.b16 %v327
      %v447 = vunpack.c.l.b16 %v328
      %v448 = vunpack.c.l.b16 %v329
      %v449 = vunpack.c.l.b16 %v330
      %v450 = vunpack.c.l.b16 %v331
      %v451 = vunpack.c.l.b16 %v332
      %v452 = vunpack.c.l.b16 %v333
      %v453 = vunpack.c.l.b16 %v334
      %v454 = vunpack.c.l.b16 %v335
      %v455 = vunpack.c.l.b16 %v336
      %v456 = vunpack.c.l.b16 %v337
      %v457 = vunpack.c.l.b16 %v338
      %v458 = vunpack.c.l.b16 %v339
      %v459 = vunpack.c.l.b16 %v340
      %v460 = vunpack.c.l.b16 %v341
      %v461 = vunpack.c.l.b16 %v342
      %v462 = vunpack.c.l.b16 %v343
      %v463 = vunpack.c.l.b16 %v344
      %v464 = vunpack.c.l.b16 %v345
      %v465 = vunpack.c.l.b16 %v346
      %v466 = vunpack.c.l.b16 %v347
      %v467 = vunpack.c.l.b16 %v348
      %v468 = vunpack.c.l.b16 %v349
      %v469 = vunpack.c.l.b16 %v350
      %v470 = vunpack.c.l.b16 %v351
      %v471 = vunpack.c.l.b16 %v352
      %v472 = vunpack.c.l.b16 %v353
      %v473 = vunpack.c.l.b16 %v354
      %v474 = vunpack.c.l.b16 %v355
      %v475 = vunpack.c.l.b16 %v356
      %v476 = vunpack.c.l.b16 %v357
      %v477 = vunpack.c.l.b16 %v358
      %v478 = vpack.c.b16 %v447, %v446
      %v479 = vpack.c.b16 %v449, %v448
      %v480 = vpack.c.b16 %v451, %v450
      %v481 = vpack.c.b16 %v453, %v452
      %v482 = vpack.c.b16 %v455, %v454
      %v483 = vpack.c.b16 %v457, %v456
      %v484 = vpack.c.b16 %v459, %v458
      %v485 = vpack.c.b16 %v461, %v460
      %v486 = vpack.c.b16 %v463, %v462
      %v487 = vpack.c.b16 %v465, %v464
      %v488 = vpack.c.b16 %v467, %v466
      %v489 = vpack.c.b16 %v469, %v468
      %v490 = vpack.c.b16 %v471, %v470
      %v491 = vpack.c.b16 %v473, %v472
      %v492 = vpack.c.b16 %v475, %v474
      %v493 = vpack.c.b16 %v477, %v476
      %v526 = vunpack.c.l.b16 %v359
      %v527 = vunpack.c.l.b16 %v360
      %v528 = vunpack.c.l.b16 %v361
      %v529 = vunpack.c.l.b16 %v362
      %v530 = vunpack.c.l.b16 %v363
      %v531 = vunpack.c.l.b16 %v364
      %v532 = vunpack.c.l.b16 %v365
      %v533 = vunpack.c.l.b16 %v366
      %v534 = vunpack.c.l.b16 %v367
      %v535 = vunpack.c.l.b16 %v368
      %v536 = vunpack.c.l.b16 %v369
      %v537 = vunpack.c.l.b16 %v370
      %v538 = vunpack.c.l.b16 %v371
      %v539 = vunpack.c.l.b16 %v372
      %v540 = vunpack.c.l.b16 %v373
      %v541 = vunpack.c.l.b16 %v374
      %v542 = vpack.c.b16 %v527, %v526
      %v543 = vpack.c.b16 %v529, %v528
      %v544 = vpack.c.b16 %v531, %v530
      %v545 = vpack.c.b16 %v533, %v532
      %v546 = vpack.c.b16 %v535, %v534
      %v547 = vpack.c.b16 %v537, %v536
      %v548 = vpack.c.b16 %v539, %v538
      %v549 = vpack.c.b16 %v541, %v540
      %558 = vmatprep.subr.bf16.mxu0 0
      %559 = vmatpush1.bf16.msra.mxu0 %v549
      %560 = vmatprep.subr.bf16.mxu0 0
      %561 = vmatpush1.bf16.msra.mxu0 %v548
      %562 = vmatprep.subr.bf16.mxu0 0
      %563 = vmatpush1.bf16.msra.mxu0 %v547
      %564 = vmatprep.subr.bf16.mxu0 0
      %565 = vmatpush1.bf16.msra.mxu0 %v546
      %566 = vmatprep.subr.bf16.mxu0 0
      %567 = vmatpush1.bf16.msra.mxu0 %v545
      %568 = vmatprep.subr.bf16.mxu0 0
      %569 = vmatpush1.bf16.msra.mxu0 %v544
      %570 = vmatprep.subr.bf16.mxu0 0
      %571 = vmatpush1.bf16.msra.mxu0 %v543
      %572 = vmatprep.subr.bf16.mxu0 0
      %573 = vmatpush1.bf16.msra.mxu0 %v542
      %574 = vmatprep.subr.bf16.mxu0 0
      %575 = vmatpush2.bf16.msra.mxu0 0
      %576 = vmatprep.subr.bf16.mxu0 0
      %577 = vmatpush2.bf16.msra.mxu0 0
      %578 = vmatprep.subr.bf16.mxu0 0
      %579 = vmatpush2.bf16.msra.mxu0 0
      %580 = vmatprep.subr.bf16.mxu0 0
      %581 = vmatpush2.bf16.msra.mxu0 0
      %582 = vmatprep.subr.bf16.mxu0 0
      %583 = vmatpush2.bf16.msra.mxu0 0
      %584 = vmatprep.subr.bf16.mxu0 0
      %585 = vmatpush2.bf16.msra.mxu0 0
      %586 = vmatprep.subr.bf16.mxu0 0
      %587 = vmatpush2.bf16.msra.mxu0 0
      %588 = vmatprep.subr.bf16.mxu0 0
      %589 = vmatpush2.bf16.msra.mxu0 0
      %590 = vmatprep.mubr.bf16.mxu0 0
      %591 = vmatmul.mubr.bf16.gmra.mxu0 %v478
      %v592 = vpop.f32.mrf.mxu0
      %v593 = vadd.f32 %v412, %v592
      %v594 = vpop.f32.mrf.mxu0
      %v595 = vpop.f32.mrf.mxu0
      %v596 = vadd.f32 %v412, %v595
      %v597 = vpop.f32.mrf.mxu0
      %598 = vmatprep.mubr.bf16.mxu0 0
      %599 = vmatmul.mubr.bf16.gmra.mxu0 %v479
      %v600 = vpop.f32.mrf.mxu0
      %v601 = vadd.f32 %v412, %v600
      %v602 = vpop.f32.mrf.mxu0
      %v603 = vpop.f32.mrf.mxu0
      %v604 = vadd.f32 %v412, %v603
      %v605 = vpop.f32.mrf.mxu0
      %606 = vmatprep.mubr.bf16.mxu0 0
      %607 = vmatmul.mubr.bf16.gmra.mxu0 %v480
      %v608 = vpop.f32.mrf.mxu0
      %v609 = vadd.f32 %v412, %v608
      %v610 = vpop.f32.mrf.mxu0
      %v611 = vpop.f32.mrf.mxu0
      %v612 = vadd.f32 %v412, %v611
      %v613 = vpop.f32.mrf.mxu0
      %614 = vmatprep.mubr.bf16.mxu0 0
      %615 = vmatmul.mubr.bf16.gmra.mxu0 %v481
      %v616 = vpop.f32.mrf.mxu0
      %v617 = vadd.f32 %v412, %v616
      %v618 = vpop.f32.mrf.mxu0
      %v619 = vpop.f32.mrf.mxu0
      %v620 = vadd.f32 %v412, %v619
      %v621 = vpop.f32.mrf.mxu0
      %622 = vmatprep.mubr.bf16.mxu0 0
      %623 = vmatmul.mubr.bf16.gmra.mxu0 %v482
      %v624 = vpop.f32.mrf.mxu0
      %v625 = vadd.f32 %v412, %v624
      %v626 = vpop.f32.mrf.mxu0
      %v627 = vpop.f32.mrf.mxu0
      %v628 = vadd.f32 %v412, %v627
      %v629 = vpop.f32.mrf.mxu0
      %630 = vmatprep.mubr.bf16.mxu0 0
      %631 = vmatmul.mubr.bf16.gmra.mxu0 %v483
      %v632 = vpop.f32.mrf.mxu0
      %v633 = vadd.f32 %v412, %v632
      %v634 = vpop.f32.mrf.mxu0
      %v635 = vpop.f32.mrf.mxu0
      %v636 = vadd.f32 %v412, %v635
      %v637 = vpop.f32.mrf.mxu0
      %638 = vmatprep.mubr.bf16.mxu0 0
      %639 = vmatmul.mubr.bf16.gmra.mxu0 %v484
      %v640 = vpop.f32.mrf.mxu0
      %v641 = vadd.f32 %v412, %v640
      %v642 = vpop.f32.mrf.mxu0
      %v643 = vpop.f32.mrf.mxu0
      %v644 = vadd.f32 %v412, %v643
      %v645 = vpop.f32.mrf.mxu0
      %646 = vmatprep.mubr.bf16.mxu0 0
      %647 = vmatmul.mubr.bf16.gmra.mxu0 %v485
      %v648 = vpop.f32.mrf.mxu0
      %v649 = vadd.f32 %v412, %v648
      %v650 = vpop.f32.mrf.mxu0
      %v651 = vpop.f32.mrf.mxu0
      %v652 = vadd.f32 %v412, %v651
      %v653 = vpop.f32.mrf.mxu0
      %654 = vmatprep.mubr.bf16.mxu0 0
      %655 = vmatmul.mubr.bf16.gmra.mxu0 %v486
      %v656 = vpop.f32.mrf.mxu0
      %v657 = vadd.f32 %v412, %v656
      %v658 = vpop.f32.mrf.mxu0
      %v659 = vpop.f32.mrf.mxu0
      %v660 = vadd.f32 %v412, %v659
      %v661 = vpop.f32.mrf.mxu0
      %662 = vmatprep.mubr.bf16.mxu0 0
      %663 = vmatmul.mubr.bf16.gmra.mxu0 %v487
      %v664 = vpop.f32.mrf.mxu0
      %v665 = vadd.f32 %v412, %v664
      %v666 = vpop.f32.mrf.mxu0
      %v667 = vpop.f32.mrf.mxu0
      %v668 = vadd.f32 %v412, %v667
      %v669 = vpop.f32.mrf.mxu0
      %670 = vmatprep.mubr.bf16.mxu0 0
      %671 = vmatmul.mubr.bf16.gmra.mxu0 %v488
      %v672 = vpop.f32.mrf.mxu0
      %v673 = vadd.f32 %v412, %v672
      %v674 = vpop.f32.mrf.mxu0
      %v675 = vpop.f32.mrf.mxu0
      %v676 = vadd.f32 %v412, %v675
      %v677 = vpop.f32.mrf.mxu0
      %678 = vmatprep.mubr.bf16.mxu0 0
      %679 = vmatmul.mubr.bf16.gmra.mxu0 %v489
      %v680 = vpop.f32.mrf.mxu0
      %v681 = vadd.f32 %v412, %v680
      %v682 = vpop.f32.mrf.mxu0
      %v683 = vpop.f32.mrf.mxu0
      %v684 = vadd.f32 %v412, %v683
      %v685 = vpop.f32.mrf.mxu0
      %686 = vmatprep.mubr.bf16.mxu0 0
      %687 = vmatmul.mubr.bf16.gmra.mxu0 %v490
      %v688 = vpop.f32.mrf.mxu0
      %v689 = vadd.f32 %v412, %v688
      %v690 = vpop.f32.mrf.mxu0
      %v691 = vpop.f32.mrf.mxu0
      %v692 = vadd.f32 %v412, %v691
      %v693 = vpop.f32.mrf.mxu0
      %694 = vmatprep.mubr.bf16.mxu0 0
      %695 = vmatmul.mubr.bf16.gmra.mxu0 %v491
      %v696 = vpop.f32.mrf.mxu0
      %v697 = vadd.f32 %v412, %v696
      %v698 = vpop.f32.mrf.mxu0
      %v699 = vpop.f32.mrf.mxu0
      %v700 = vadd.f32 %v412, %v699
      %v701 = vpop.f32.mrf.mxu0
      %702 = vmatprep.mubr.bf16.mxu0 0
      %703 = vmatmul.mubr.bf16.gmra.mxu0 %v492
      %v704 = vpop.f32.mrf.mxu0
      %v705 = vadd.f32 %v412, %v704
      %v706 = vpop.f32.mrf.mxu0
      %v707 = vpop.f32.mrf.mxu0
      %v708 = vadd.f32 %v412, %v707
      %v709 = vpop.f32.mrf.mxu0
      %710 = vmatprep.mubr.bf16.mxu0 0
      %711 = vmatmul.mubr.bf16.gmra.mxu0 %v493
      %v712 = vpop.f32.mrf.mxu0
      %v713 = vadd.f32 %v412, %v712
      %v714 = vpop.f32.mrf.mxu0
      %v715 = vpop.f32.mrf.mxu0
      %v716 = vadd.f32 %v412, %v715
      %v717 = vpop.f32.mrf.mxu0
      %718 = vdwg.mxu0
      %v719 = vld [vmem:[%s307] sm:$0x1]
      %v721 = vlaneseq
      %v722 = vshrl.u32 %v721, 7
      %v723 = vsub.s32 0, %v722
      %v724 = vrot.slane %v719, %v723
      %v726 = vmul.f32 %v593, %v724
      %v727 = vmul.f32 %v596, %v724
      %v728 = vmul.f32 %v601, %v724
      %v729 = vmul.f32 %v604, %v724
      %v730 = vmul.f32 %v609, %v724
      %v731 = vmul.f32 %v612, %v724
      %v732 = vmul.f32 %v617, %v724
      %v733 = vmul.f32 %v620, %v724
      %v734 = vmul.f32 %v625, %v724
      %v735 = vmul.f32 %v628, %v724
      %v736 = vmul.f32 %v633, %v724
      %v737 = vmul.f32 %v636, %v724
      %v738 = vmul.f32 %v641, %v724
      %v739 = vmul.f32 %v644, %v724
      %v740 = vmul.f32 %v649, %v724
      %v741 = vmul.f32 %v652, %v724
      %v742 = vmul.f32 %v657, %v724
      %v743 = vmul.f32 %v660, %v724
      %v744 = vmul.f32 %v665, %v724
      %v745 = vmul.f32 %v668, %v724
      %v746 = vmul.f32 %v673, %v724
      %v747 = vmul.f32 %v676, %v724
      %v748 = vmul.f32 %v681, %v724
      %v749 = vmul.f32 %v684, %v724
      %v750 = vmul.f32 %v689, %v724
      %v751 = vmul.f32 %v692, %v724
      %v752 = vmul.f32 %v697, %v724
      %v753 = vmul.f32 %v700, %v724
      %v754 = vmul.f32 %v705, %v724
      %v755 = vmul.f32 %v708, %v724
      %v756 = vmul.f32 %v713, %v724
      %v757 = vmul.f32 %v716, %v724
      %v758 = vadd.f32 %v375, %v726
      %v759 = vadd.f32 %v376, %v727
      %v760 = vadd.f32 %v377, %v728
      %v761 = vadd.f32 %v378, %v729
      %v762 = vadd.f32 %v379, %v730
      %v763 = vadd.f32 %v380, %v731
      %v764 = vadd.f32 %v381, %v732
      %v765 = vadd.f32 %v382, %v733
      %v766 = vadd.f32 %v383, %v734
      %v767 = vadd.f32 %v384, %v735
      %v768 = vadd.f32 %v385, %v736
      %v769 = vadd.f32 %v386, %v737
      %v770 = vadd.f32 %v387, %v738
      %v771 = vadd.f32 %v388, %v739
      %v772 = vadd.f32 %v389, %v740
      %v773 = vadd.f32 %v390, %v741
      %v774 = vadd.f32 %v391, %v742
      %v775 = vadd.f32 %v392, %v743
      %v776 = vadd.f32 %v393, %v744
      %v777 = vadd.f32 %v394, %v745
      %v778 = vadd.f32 %v395, %v746
      %v779 = vadd.f32 %v396, %v747
      %v780 = vadd.f32 %v397, %v748
      %v781 = vadd.f32 %v398, %v749
      %v782 = vadd.f32 %v399, %v750
      %v783 = vadd.f32 %v400, %v751
      %v784 = vadd.f32 %v401, %v752
      %v785 = vadd.f32 %v402, %v753
      %v786 = vadd.f32 %v403, %v754
      %v787 = vadd.f32 %v404, %v755
      %v788 = vadd.f32 %v405, %v756
      %v789 = vadd.f32 %v406, %v757
      %790 = vst [vmem:[%s324] sm:$0xff] %v758
      %791 = vst [vmem:[%s324 + $0x8] sm:$0xff] %v759
      %792 = vst [vmem:[%s324 + $0x10] sm:$0xff] %v760
      %793 = vst [vmem:[%s324 + $0x18] sm:$0xff] %v761
      %794 = vst [vmem:[%s324 + $0x20] sm:$0xff] %v762
      %795 = vst [vmem:[%s324 + $0x28] sm:$0xff] %v763
      %796 = vst [vmem:[%s324 + $0x30] sm:$0xff] %v764
      %797 = vst [vmem:[%s324 + $0x38] sm:$0xff] %v765
      %798 = vst [vmem:[%s324 + $0x40] sm:$0xff] %v766
      %799 = vst [vmem:[%s324 + $0x48] sm:$0xff] %v767
      %800 = vst [vmem:[%s324 + $0x50] sm:$0xff] %v768
      %801 = vst [vmem:[%s324 + $0x58] sm:$0xff] %v769
      %802 = vst [vmem:[%s324 + $0x60] sm:$0xff] %v770
      %803 = vst [vmem:[%s324 + $0x68] sm:$0xff] %v771
      %804 = vst [vmem:[%s324 + $0x70] sm:$0xff] %v772
      %805 = vst [vmem:[%s324 + $0x78] sm:$0xff] %v773
      %806 = vst [vmem:[%s324 + $0x80] sm:$0xff] %v774
      %807 = vst [vmem:[%s324 + $0x88] sm:$0xff] %v775
      %808 = vst [vmem:[%s324 + $0x90] sm:$0xff] %v776
      %809 = vst [vmem:[%s324 + $0x98] sm:$0xff] %v777
      %810 = vst [vmem:[%s324 + $0xa0] sm:$0xff] %v778
      %811 = vst [vmem:[%s324 + $0xa8] sm:$0xff] %v779
      %812 = vst [vmem:[%s324 + $0xb0] sm:$0xff] %v780
      %813 = vst [vmem:[%s324 + $0xb8] sm:$0xff] %v781
      %814 = vst [vmem:[%s324 + $0xc0] sm:$0xff] %v782
      %815 = vst [vmem:[%s324 + $0xc8] sm:$0xff] %v783
      %816 = vst [vmem:[%s324 + $0xd0] sm:$0xff] %v784
      %817 = vst [vmem:[%s324 + $0xd8] sm:$0xff] %v785
      %818 = vst [vmem:[%s324 + $0xe0] sm:$0xff] %v786
      %819 = vst [vmem:[%s324 + $0xe8] sm:$0xff] %v787
      %820 = vst [vmem:[%s324 + $0xf0] sm:$0xff] %v788
      %821 = vst [vmem:[%s324 + $0xf8] sm:$0xff] %v789
      %s822 = smul.u32 32, %s20
      %p823 = scmp.lt.s32.totalorder %s822, 63
      %s824 = scalar_select %p823, %s822, 63
      %p825 = scmp.lt.s32.totalorder %s21, 0
      %s826 = scalar_select %p825, %s21, 0
      %s827 = sadd.s32 %s826, %s824
      %s828 = smul.addr %s827, 8
      %s829 = scalar_lea.vmem %s5, %s828
      // Predicated region
      $region41: #{_lambda_.9} parent=39 // pred_check
        %p830 = pneg %p180
      $region42: #{_lambda_.9} parent=39 // pred_check_branch
        %832 = sbr.rel (%p830) target = $region44
      $region43: #{_lambda_.9} parent=39 // pred_region
        %s833 = smul.u32 32, %s20
      $region44: #{_lambda_.9} parent=39 // pred_fallthru
        _
    $region40: #{_lambda_.9} parent=5 // pred_fallthru
      _
    %p834 = scmp.le.s32.totalorder 2, %s11
    // Predicated region
    $region45: #{_lambda_.9} parent=5 // pred_check
      %p835 = pneg %p834
    $region46: #{_lambda_.9} parent=5 // pred_check_branch
      %837 = sbr.rel (%p835) target = $region48
    $region47: #{_lambda_.9} parent=5 // pred_region
      %s838 = ssub.s32 %s11, 2
      // Predicated region
      $region49: #{_lambda_.9} parent=47 // pred_check
        %p839 = pneg %p186
      $region50: #{_lambda_.9} parent=47 // pred_check_branch
        %841 = sbr.rel (%p839) target = $region52
      $region51: #{_lambda_.9} parent=47 // pred_region
        %s842 = smul.u32 32, %s22
        %p843 = scmp.lt.s32.totalorder %s842, 63
        %s844 = scalar_select %p843, %s842, 63
        %p845 = scmp.lt.s32.totalorder %s23, 0
        %s846 = scalar_select %p845, %s23, 0
        %s847 = sadd.s32 %s846, %s844
        %s848 = smul.addr %s847, 8
        %s849 = scalar_lea.vmem %s5, %s848
      $region52: #{_lambda_.9} parent=47 // pred_fallthru
        _
    $region48: #{_lambda_.9} parent=5 // pred_fallthru
      _
  $region6: #{_lambda_.9} parent=0 // loop_footer
    %s15 = sadd.s32 1, %s11
  $region7: #{_lambda_.9} parent=0 // loop_footer_branch
    %10 = sbr.rel target = $region3
  $region8: #{_lambda_.9} parent=0 // loop_exit
    _

// kernel: _lambda_.7
$region0: #{_lambda_.7}
  #allocation0 [shape = 'u32[]', space=smem, size = 0x4, offset = 0x4, fixed_abs, tag = 'smem constant byte address 0x4 - core index']
  #allocation1 [shape = 'u32[144,128]{1,0:T(1,128)}', space=vmem, size = 0x12000, scoped, tag = 'internal scratch']
  %s0 = inlined_call_operand.vmem [shape: f32[512,128], index: 0, kind: input, shape index: {}]
  %s1 = inlined_call_operand.vmem [shape: f32[1,128], index: 1, kind: input, shape index: {}]
  %s2 = inlined_call_operand.vmem [shape: f32[1,128], index: 2, kind: input, shape index: {}]
  %s3 = inlined_call_operand.vmem [shape: bf16[128,384], index: 3, kind: input, shape index: {}]
  %s4 = inlined_call_operand.vmem [shape: bf16[512,384], index: 4, kind: output, shape index: {}]
  %s5 = sld [smem:[#allocation0]]
  $region49: #{_lambda_.7} parent=0
    _
  %s7 = ssub.s32 1, %s5
  %s8 = scalar_select 0, %s7, %s5
  loop: start=0, step=1, limit=4
  $region2: #{_lambda_.7} parent=0 // loop_pre_header
    _
  $region3: #{_lambda_.7} parent=0 // loop_header
    %s10 = sphi 0, %s14
    %p11 = scmp.ge.s32.totalorder %s10, 4
    %s17 = sphi 0, %s29
    %s18 = sphi 0, %s25
    %s19 = sphi 0, %s17
    %s20 = sphi 0, %s18
    %s21 = sphi 0, %s19
    %s22 = sphi 0, %s20
    %s32 = sphi 0, %s34
    %s35 = sphi 0, %s32
    %s36 = sphi 0, %s35
    %s52 = sphi 0, %s36
    %s56 = sphi 0, %s56
    %s58 = sphi 0, %s56
    %s59 = sphi 0, %s58
    %s73 = sphi 0, %s59
    %s77 = sphi 0, %s77
    %s79 = sphi 0, %s77
    %s80 = sphi 0, %s79
    %s94 = sphi 0, %s80
    %s100 = sphi 0, %s102
    %s103 = sphi 0, %s100
    %s104 = sphi 0, %s103
    %s120 = sphi 0, %s104
    %s128 = sphi 0, %s130
    %s131 = sphi 0, %s128
    %s132 = sphi 0, %s131
    %s148 = sphi 0, %s132
  $region4: #{_lambda_.7} parent=0 // loop_header_branch
    %13 = sbr.rel (%p11) target = $region8
  $region5: #{_lambda_.7} parent=0 // loop_body
    %s15 = ssub.s32 %s10, 1
    %s16 = ssub.s32 %s10, 2
    %s23 = sadd.s32 1, %s18
    %p24 = scmp.ge.s32.totalorder %s23, 1
    %s25 = scalar_select %p24, 0, %s23
    %s26 = sadd.s32 1, %s17
    %s27 = scalar_select %p24, %s26, %s17
    %p28 = scmp.ge.s32.totalorder %s27, 2
    %s29 = scalar_select %p28, 0, %s27
    %s30 = ssub.s32 %s17, %s29
    %p31 = scmp.eq.s32.totalorder %s30, 0
    %s33 = sadd.s32 %s32, 1
    %s34 = scalar_select %p31, %s32, %s33
    %p37 = pneg %p31
    %p38 = scmp.eq.s32.totalorder %s10, 1
    %p39 = por %p37, %p38
    %p40 = scmp.ne.s32.totalorder %s32, %s35
    %p41 = scmp.eq.s32.totalorder %s10, 0
    %p42 = por %p40, %p41
    %p43 = scmp.ne.s32.totalorder %s32, %s35
    %p44 = scmp.eq.s32.totalorder %s15, 1
    %p45 = por %p43, %p44
    %p46 = scmp.ne.s32.totalorder %s35, %s36
    %p47 = scmp.eq.s32.totalorder %s15, 0
    %p48 = por %p46, %p47
    %p49 = scmp.ne.s32.totalorder %s35, %s36
    %p50 = scmp.eq.s32.totalorder %s16, 1
    %p51 = por %p49, %p50
    %p53 = scmp.ne.s32.totalorder %s36, %s52
    %p54 = scmp.eq.s32.totalorder %s16, 0
    %p55 = por %p53, %p54
    %s57 = sadd.s32 %s56, 1
    %p60 = scmp.eq.s32.totalorder %s10, 1
    %p61 = scmp.ne.s32.totalorder %s56, %s58
    %p62 = scmp.eq.s32.totalorder %s10, 0
    %p63 = por %p61, %p62
    %p64 = scmp.ne.s32.totalorder %s56, %s58
    %p65 = scmp.eq.s32.totalorder %s15, 1
    %p66 = por %p64, %p65
    %p67 = scmp.ne.s32.totalorder %s58, %s59
    %p68 = scmp.eq.s32.totalorder %s15, 0
    %p69 = por %p67, %p68
    %p70 = scmp.ne.s32.totalorder %s58, %s59
    %p71 = scmp.eq.s32.totalorder %s16, 1
    %p72 = por %p70, %p71
    %p74 = scmp.ne.s32.totalorder %s59, %s73
    %p75 = scmp.eq.s32.totalorder %s16, 0
    %p76 = por %p74, %p75
    %s78 = sadd.s32 %s77, 1
    %p81 = scmp.eq.s32.totalorder %s10, 1
    %p82 = scmp.ne.s32.totalorder %s77, %s79
    %p83 = scmp.eq.s32.totalorder %s10, 0
    %p84 = por %p82, %p83
    %p85 = scmp.ne.s32.totalorder %s77, %s79
    %p86 = scmp.eq.s32.totalorder %s15, 1
    %p87 = por %p85, %p86
    %p88 = scmp.ne.s32.totalorder %s79, %s80
    %p89 = scmp.eq.s32.totalorder %s15, 0
    %p90 = por %p88, %p89
    %p91 = scmp.ne.s32.totalorder %s79, %s80
    %p92 = scmp.eq.s32.totalorder %s16, 1
    %p93 = por %p91, %p92
    %p95 = scmp.ne.s32.totalorder %s80, %s94
    %p96 = scmp.eq.s32.totalorder %s16, 0
    %p97 = por %p95, %p96
    %s98 = ssub.s32 %s18, %s25
    %p99 = scmp.eq.s32.totalorder %s98, 0
    %s101 = sadd.s32 %s100, 1
    %s102 = scalar_select %p99, %s100, %s101
    %p105 = pneg %p99
    %p106 = scmp.eq.s32.totalorder %s10, 1
    %p107 = por %p105, %p106
    %p108 = scmp.ne.s32.totalorder %s100, %s103
    %p109 = scmp.eq.s32.totalorder %s10, 0
    %p110 = por %p108, %p109
    %p111 = scmp.ne.s32.totalorder %s100, %s103
    %p112 = scmp.eq.s32.totalorder %s15, 1
    %p113 = por %p111, %p112
    %p114 = scmp.ne.s32.totalorder %s103, %s104
    %p115 = scmp.eq.s32.totalorder %s15, 0
    %p116 = por %p114, %p115
    %p117 = scmp.ne.s32.totalorder %s103, %s104
    %p118 = scmp.eq.s32.totalorder %s16, 1
    %p119 = por %p117, %p118
    %p121 = scmp.ne.s32.totalorder %s104, %s120
    %p122 = scmp.eq.s32.totalorder %s16, 0
    %p123 = por %p121, %p122
    %s124 = ssub.s32 %s17, %s29
    %s125 = ssub.s32 %s18, %s25
    %s126 = sor.u32 %s124, %s125
    %p127 = scmp.eq.s32.totalorder %s126, 0
    %s129 = sadd.s32 %s128, 1
    %s130 = scalar_select %p127, %s128, %s129
    %p133 = pneg %p127
    %p134 = scmp.eq.s32.totalorder %s10, 1
    %p135 = por %p133, %p134
    %p136 = scmp.ne.s32.totalorder %s128, %s131
    %p137 = scmp.eq.s32.totalorder %s10, 0
    %p138 = por %p136, %p137
    %p139 = scmp.ne.s32.totalorder %s128, %s131
    %p140 = scmp.eq.s32.totalorder %s15, 1
    %p141 = por %p139, %p140
    %p142 = scmp.ne.s32.totalorder %s131, %s132
    %p143 = scmp.eq.s32.totalorder %s15, 0
    %p144 = por %p142, %p143
    %p145 = scmp.ne.s32.totalorder %s131, %s132
    %p146 = scmp.eq.s32.totalorder %s16, 1
    %p147 = por %p145, %p146
    %p149 = scmp.ne.s32.totalorder %s132, %s148
    %p150 = scmp.eq.s32.totalorder %s16, 0
    %p151 = por %p149, %p150
    %p152 = scmp.le.s32.totalorder 1, %s10
    %p153 = scmp.lt.s32.totalorder %s10, 3
    %p154 = pnand %p152, %p153
    %p155 = pneg %p154
    // Predicated region
    $region9: #{_lambda_.7} parent=5 // pred_check
      _
    $region10: #{_lambda_.7} parent=5 // pred_check_branch
      %157 = sbr.rel (%p154) target = $region12
    $region11: #{_lambda_.7} parent=5 // pred_region
      %s158 = ssub.s32 %s10, 1
      // Predicated region
      $region13: #{_lambda_.7} parent=11 // pred_check
        %p159 = pneg %p69
      $region14: #{_lambda_.7} parent=11 // pred_check_branch
        %161 = sbr.rel (%p159) target = $region16
      $region15: #{_lambda_.7} parent=11 // pred_region
        _
      $region16: #{_lambda_.7} parent=11 // pred_fallthru
        _
      // Predicated region
      $region17: #{_lambda_.7} parent=11 // pred_check
        %p162 = pneg %p90
      $region18: #{_lambda_.7} parent=11 // pred_check_branch
        %164 = sbr.rel (%p162) target = $region20
      $region19: #{_lambda_.7} parent=11 // pred_region
        _
      $region20: #{_lambda_.7} parent=11 // pred_fallthru
        _
      // Predicated region
      $region21: #{_lambda_.7} parent=11 // pred_check
        %p165 = pneg %p116
      $region22: #{_lambda_.7} parent=11 // pred_check_branch
        %167 = sbr.rel (%p165) target = $region24
      $region23: #{_lambda_.7} parent=11 // pred_region
        %s168 = smul.u32 3, %s20
        %p169 = scmp.lt.s32.totalorder %s168, 2
        %s170 = scalar_select %p169, %s168, 2
        %s171 = smul.addr %s170, 4
        %s172 = scalar_lea.vmem %s3, %s171
        %s173 = smul.u32 3, %s20
      $region24: #{_lambda_.7} parent=11 // pred_fallthru
        _
    $region12: #{_lambda_.7} parent=5 // pred_fallthru
      _
    %p174 = scmp.lt.s32.totalorder %s10, 2
    // Predicated region
    $region25: #{_lambda_.7} parent=5 // pred_check
      %p175 = pneg %p174
    $region26: #{_lambda_.7} parent=5 // pred_check_branch
      %177 = sbr.rel (%p175) target = $region28
    $region27: #{_lambda_.7} parent=5 // pred_region
      // Predicated region
      $region29: #{_lambda_.7} parent=27 // pred_check
        %p178 = pneg %p42
      $region30: #{_lambda_.7} parent=27 // pred_check_branch
        %180 = sbr.rel (%p178) target = $region32
      $region31: #{_lambda_.7} parent=27 // pred_region
        %s181 = smul.u32 32, %s17
        %p182 = scmp.lt.s32.totalorder %s181, 63
        %s183 = scalar_select %p182, %s181, 63
        %s184 = smul.addr %s183, 8
        %s185 = scalar_lea.vmem %s0, %s184
        %s186 = smul.u32 32, %s17
      $region32: #{_lambda_.7} parent=27 // pred_fallthru
        _
    $region28: #{_lambda_.7} parent=5 // pred_fallthru
      _
    %p187 = scmp.le.s32.totalorder 1, %s10
    %p188 = scmp.lt.s32.totalorder %s10, 3
    %p189 = pnand %p187, %p188
    %p190 = pneg %p189
    // Predicated region
    $region33: #{_lambda_.7} parent=5 // pred_check
      _
    $region34: #{_lambda_.7} parent=5 // pred_check_branch
      %192 = sbr.rel (%p189) target = $region36
    $region35: #{_lambda_.7} parent=5 // pred_region
      %s193 = ssub.s32 %s10, 1
      %s194 = smul.u32 32, %s19
      %p195 = scmp.lt.s32.totalorder %s194, 63
      %s196 = scalar_select %p195, %s194, 63
      %s197 = smul.addr %s196, 8
      %s198 = scalar_lea.vmem %s0, %s197
      %p199 = pneg %p48
      %p200 = pneg %p45
      %p201 = pneg %p69
      %p202 = pneg %p66
      %p203 = pneg %p90
      %p204 = pneg %p87
      %s205 = smul.u32 3, %s20
      %p206 = scmp.lt.s32.totalorder %s205, 2
      %s207 = scalar_select %p206, %s205, 2
      %s208 = smul.addr %s207, 4
      %s209 = scalar_lea.vmem %s3, %s208
      %p210 = pneg %p116
      %p211 = pneg %p113
      %p212 = pneg %p144
      %p213 = pneg %p141
      %s214 = smul.u32 32, %s19
      %s215 = smul.u32 3, %s20
      %p216 = scmp.lt.s32.totalorder %s214, 63
      %s217 = scalar_select %p216, %s214, 63
      %p218 = scmp.lt.s32.totalorder %s215, 2
      %s219 = scalar_select %p218, %s215, 2
      %s220 = smul.addr %s217, 3
      %s221 = sadd.s32 %s219, %s220
      %s222 = smul.addr %s221, 4
      %s223 = scalar_lea.vmem %s4, %s222
      %s224 = smul.u32 32, %s19
      %p225 = scmp.lt.s32.totalorder %s224, 63
      %s226 = scalar_select %p225, %s224, 63
      %s227 = smul.addr %s226, 8
      %s228 = scalar_lea.vmem %s0, %s227
      %s229 = smul.u32 32, %s19
      %s230 = smul.u32 3, %s20
      %p231 = scmp.lt.s32.totalorder %s230, 2
      %s232 = scalar_select %p231, %s230, 2
      %s233 = smul.addr %s232, 4
      %s234 = scalar_lea.vmem %s3, %s233
      %s235 = smul.u32 3, %s20
      %s236 = smul.u32 32, %s19
      %s237 = smul.u32 3, %s20
      %p238 = scmp.lt.s32.totalorder %s236, 63
      %s239 = scalar_select %p238, %s236, 63
      %p240 = scmp.lt.s32.totalorder %s237, 2
      %s241 = scalar_select %p240, %s237, 2
      %s242 = smul.addr %s239, 3
      %s243 = sadd.s32 %s241, %s242
      %s244 = smul.addr %s243, 4
      %s245 = scalar_lea.vmem %s4, %s244
      %s246 = smul.u32 32, %s19
      %s247 = smul.u32 3, %s20
      %v249 = vld [vmem:[%s228] sm:$0xff]
      %v250 = vld [vmem:[%s228 + $0x8] sm:$0xff]
      %v251 = vld [vmem:[%s228 + $0x10] sm:$0xff]
      %v252 = vld [vmem:[%s228 + $0x18] sm:$0xff]
      %v253 = vld [vmem:[%s228 + $0x20] sm:$0xff]
      %v254 = vld [vmem:[%s228 + $0x28] sm:$0xff]
      %v255 = vld [vmem:[%s228 + $0x30] sm:$0xff]
      %v256 = vld [vmem:[%s228 + $0x38] sm:$0xff]
      %v257 = vld [vmem:[%s228 + $0x40] sm:$0xff]
      %v258 = vld [vmem:[%s228 + $0x48] sm:$0xff]
      %v259 = vld [vmem:[%s228 + $0x50] sm:$0xff]
      %v260 = vld [vmem:[%s228 + $0x58] sm:$0xff]
      %v261 = vld [vmem:[%s228 + $0x60] sm:$0xff]
      %v262 = vld [vmem:[%s228 + $0x68] sm:$0xff]
      %v263 = vld [vmem:[%s228 + $0x70] sm:$0xff]
      %v264 = vld [vmem:[%s228 + $0x78] sm:$0xff]
      %v265 = vld [vmem:[%s228 + $0x80] sm:$0xff]
      %v266 = vld [vmem:[%s228 + $0x88] sm:$0xff]
      %v267 = vld [vmem:[%s228 + $0x90] sm:$0xff]
      %v268 = vld [vmem:[%s228 + $0x98] sm:$0xff]
      %v269 = vld [vmem:[%s228 + $0xa0] sm:$0xff]
      %v270 = vld [vmem:[%s228 + $0xa8] sm:$0xff]
      %v271 = vld [vmem:[%s228 + $0xb0] sm:$0xff]
      %v272 = vld [vmem:[%s228 + $0xb8] sm:$0xff]
      %v273 = vld [vmem:[%s228 + $0xc0] sm:$0xff]
      %v274 = vld [vmem:[%s228 + $0xc8] sm:$0xff]
      %v275 = vld [vmem:[%s228 + $0xd0] sm:$0xff]
      %v276 = vld [vmem:[%s228 + $0xd8] sm:$0xff]
      %v277 = vld [vmem:[%s228 + $0xe0] sm:$0xff]
      %v278 = vld [vmem:[%s228 + $0xe8] sm:$0xff]
      %v279 = vld [vmem:[%s228 + $0xf0] sm:$0xff]
      %v280 = vld [vmem:[%s228 + $0xf8] sm:$0xff]
      %281 = vadd.xlane.f32.xlu0 %v249
      %v282 = vpop.xlane.xlu0 %281
      %283 = vadd.xlane.f32.xlu0 %v250
      %v284 = vpop.xlane.xlu0 %283
      %285 = vadd.xlane.f32.xlu0 %v251
      %v286 = vpop.xlane.xlu0 %285
      %287 = vadd.xlane.f32.xlu0 %v252
      %v288 = vpop.xlane.xlu0 %287
      %289 = vadd.xlane.f32.xlu0 %v253
      %v290 = vpop.xlane.xlu0 %289
      %291 = vadd.xlane.f32.xlu0 %v254
      %v292 = vpop.xlane.xlu0 %291
      %293 = vadd.xlane.f32.xlu0 %v255
      %v294 = vpop.xlane.xlu0 %293
      %295 = vadd.xlane.f32.xlu0 %v256
      %v296 = vpop.xlane.xlu0 %295
      %297 = vadd.xlane.f32.xlu0 %v257
      %v298 = vpop.xlane.xlu0 %297
      %299 = vadd.xlane.f32.xlu0 %v258
      %v300 = vpop.xlane.xlu0 %299
      %301 = vadd.xlane.f32.xlu0 %v259
      %v302 = vpop.xlane.xlu0 %301
      %303 = vadd.xlane.f32.xlu0 %v260
      %v304 = vpop.xlane.xlu0 %303
      %305 = vadd.xlane.f32.xlu0 %v261
      %v306 = vpop.xlane.xlu0 %305
      %307 = vadd.xlane.f32.xlu0 %v262
      %v308 = vpop.xlane.xlu0 %307
      %309 = vadd.xlane.f32.xlu0 %v263
      %v310 = vpop.xlane.xlu0 %309
      %311 = vadd.xlane.f32.xlu0 %v264
      %v312 = vpop.xlane.xlu0 %311
      %313 = vadd.xlane.f32.xlu0 %v265
      %v314 = vpop.xlane.xlu0 %313
      %315 = vadd.xlane.f32.xlu0 %v266
      %v316 = vpop.xlane.xlu0 %315
      %317 = vadd.xlane.f32.xlu0 %v267
      %v318 = vpop.xlane.xlu0 %317
      %319 = vadd.xlane.f32.xlu0 %v268
      %v320 = vpop.xlane.xlu0 %319
      %321 = vadd.xlane.f32.xlu0 %v269
      %v322 = vpop.xlane.xlu0 %321
      %323 = vadd.xlane.f32.xlu0 %v270
      %v324 = vpop.xlane.xlu0 %323
      %325 = vadd.xlane.f32.xlu0 %v271
      %v326 = vpop.xlane.xlu0 %325
      %327 = vadd.xlane.f32.xlu0 %v272
      %v328 = vpop.xlane.xlu0 %327
      %329 = vadd.xlane.f32.xlu0 %v273
      %v330 = vpop.xlane.xlu0 %329
      %331 = vadd.xlane.f32.xlu0 %v274
      %v332 = vpop.xlane.xlu0 %331
      %333 = vadd.xlane.f32.xlu0 %v275
      %v334 = vpop.xlane.xlu0 %333
      %335 = vadd.xlane.f32.xlu0 %v276
      %v336 = vpop.xlane.xlu0 %335
      %337 = vadd.xlane.f32.xlu0 %v277
      %v338 = vpop.xlane.xlu0 %337
      %339 = vadd.xlane.f32.xlu0 %v278
      %v340 = vpop.xlane.xlu0 %339
      %341 = vadd.xlane.f32.xlu0 %v279
      %v342 = vpop.xlane.xlu0 %341
      %343 = vadd.xlane.f32.xlu0 %v280
      %v344 = vpop.xlane.xlu0 %343
      %v345 = vrcp.pop 128.0
      %v346 = vmul.f32 %v282, %v345
      %v347 = vmul.f32 %v284, %v345
      %v348 = vmul.f32 %v286, %v345
      %v349 = vmul.f32 %v288, %v345
      %v350 = vmul.f32 %v290, %v345
      %v351 = vmul.f32 %v292, %v345
      %v352 = vmul.f32 %v294, %v345
      %v353 = vmul.f32 %v296, %v345
      %v354 = vmul.f32 %v298, %v345
      %v355 = vmul.f32 %v300, %v345
      %v356 = vmul.f32 %v302, %v345
      %v357 = vmul.f32 %v304, %v345
      %v358 = vmul.f32 %v306, %v345
      %v359 = vmul.f32 %v308, %v345
      %v360 = vmul.f32 %v310, %v345
      %v361 = vmul.f32 %v312, %v345
      %v362 = vmul.f32 %v314, %v345
      %v363 = vmul.f32 %v316, %v345
      %v364 = vmul.f32 %v318, %v345
      %v365 = vmul.f32 %v320, %v345
      %v366 = vmul.f32 %v322, %v345
      %v367 = vmul.f32 %v324, %v345
      %v368 = vmul.f32 %v326, %v345
      %v369 = vmul.f32 %v328, %v345
      %v370 = vmul.f32 %v330, %v345
      %v371 = vmul.f32 %v332, %v345
      %v372 = vmul.f32 %v334, %v345
      %v373 = vmul.f32 %v336, %v345
      %v374 = vmul.f32 %v338, %v345
      %v375 = vmul.f32 %v340, %v345
      %v376 = vmul.f32 %v342, %v345
      %v377 = vmul.f32 %v344, %v345
      %v378 = vsub.f32 %v249, %v346
      %v379 = vsub.f32 %v250, %v347
      %v380 = vsub.f32 %v251, %v348
      %v381 = vsub.f32 %v252, %v349
      %v382 = vsub.f32 %v253, %v350
      %v383 = vsub.f32 %v254, %v351
      %v384 = vsub.f32 %v255, %v352
      %v385 = vsub.f32 %v256, %v353
      %v386 = vsub.f32 %v257, %v354
      %v387 = vsub.f32 %v258, %v355
      %v388 = vsub.f32 %v259, %v356
      %v389 = vsub.f32 %v260, %v357
      %v390 = vsub.f32 %v261, %v358
      %v391 = vsub.f32 %v262, %v359
      %v392 = vsub.f32 %v263, %v360
      %v393 = vsub.f32 %v264, %v361
      %v394 = vsub.f32 %v265, %v362
      %v395 = vsub.f32 %v266, %v363
      %v396 = vsub.f32 %v267, %v364
      %v397 = vsub.f32 %v268, %v365
      %v398 = vsub.f32 %v269, %v366
      %v399 = vsub.f32 %v270, %v367
      %v400 = vsub.f32 %v271, %v368
      %v401 = vsub.f32 %v272, %v369
      %v402 = vsub.f32 %v273, %v370
      %v403 = vsub.f32 %v274, %v371
      %v404 = vsub.f32 %v275, %v372
      %v405 = vsub.f32 %v276, %v373
      %v406 = vsub.f32 %v277, %v374
      %v407 = vsub.f32 %v278, %v375
      %v408 = vsub.f32 %v279, %v376
      %v409 = vsub.f32 %v280, %v377
      %v410 = vmul.f32 %v378, %v378
      %v411 = vmul.f32 %v379, %v379
      %v412 = vmul.f32 %v380, %v380
      %v413 = vmul.f32 %v381, %v381
      %v414 = vmul.f32 %v382, %v382
      %v415 = vmul.f32 %v383, %v383
      %v416 = vmul.f32 %v384, %v384
      %v417 = vmul.f32 %v385, %v385
      %v418 = vmul.f32 %v386, %v386
      %v419 = vmul.f32 %v387, %v387
      %v420 = vmul.f32 %v388, %v388
      %v421 = vmul.f32 %v389, %v389
      %v422 = vmul.f32 %v390, %v390
      %v423 = vmul.f32 %v391, %v391
      %v424 = vmul.f32 %v392, %v392
      %v425 = vmul.f32 %v393, %v393
      %v426 = vmul.f32 %v394, %v394
      %v427 = vmul.f32 %v395, %v395
      %v428 = vmul.f32 %v396, %v396
      %v429 = vmul.f32 %v397, %v397
      %v430 = vmul.f32 %v398, %v398
      %v431 = vmul.f32 %v399, %v399
      %v432 = vmul.f32 %v400, %v400
      %v433 = vmul.f32 %v401, %v401
      %v434 = vmul.f32 %v402, %v402
      %v435 = vmul.f32 %v403, %v403
      %v436 = vmul.f32 %v404, %v404
      %v437 = vmul.f32 %v405, %v405
      %v438 = vmul.f32 %v406, %v406
      %v439 = vmul.f32 %v407, %v407
      %v440 = vmul.f32 %v408, %v408
      %v441 = vmul.f32 %v409, %v409
      %442 = vadd.xlane.f32.xlu0 %v410
      %v443 = vpop.xlane.xlu0 %442
      %444 = vadd.xlane.f32.xlu0 %v411
      %v445 = vpop.xlane.xlu0 %444
      %446 = vadd.xlane.f32.xlu0 %v412
      %v447 = vpop.xlane.xlu0 %446
      %448 = vadd.xlane.f32.xlu0 %v413
      %v449 = vpop.xlane.xlu0 %448
      %450 = vadd.xlane.f32.xlu0 %v414
      %v451 = vpop.xlane.xlu0 %450
      %452 = vadd.xlane.f32.xlu0 %v415
      %v453 = vpop.xlane.xlu0 %452
      %454 = vadd.xlane.f32.xlu0 %v416
      %v455 = vpop.xlane.xlu0 %454
      %456 = vadd.xlane.f32.xlu0 %v417
      %v457 = vpop.xlane.xlu0 %456
      %458 = vadd.xlane.f32.xlu0 %v418
      %v459 = vpop.xlane.xlu0 %458
      %460 = vadd.xlane.f32.xlu0 %v419
      %v461 = vpop.xlane.xlu0 %460
      %462 = vadd.xlane.f32.xlu0 %v420
      %v463 = vpop.xlane.xlu0 %462
      %464 = vadd.xlane.f32.xlu0 %v421
      %v465 = vpop.xlane.xlu0 %464
      %466 = vadd.xlane.f32.xlu0 %v422
      %v467 = vpop.xlane.xlu0 %466
      %468 = vadd.xlane.f32.xlu0 %v423
      %v469 = vpop.xlane.xlu0 %468
      %470 = vadd.xlane.f32.xlu0 %v424
      %v471 = vpop.xlane.xlu0 %470
      %472 = vadd.xlane.f32.xlu0 %v425
      %v473 = vpop.xlane.xlu0 %472
      %474 = vadd.xlane.f32.xlu0 %v426
      %v475 = vpop.xlane.xlu0 %474
      %476 = vadd.xlane.f32.xlu0 %v427
      %v477 = vpop.xlane.xlu0 %476
      %478 = vadd.xlane.f32.xlu0 %v428
      %v479 = vpop.xlane.xlu0 %478
      %480 = vadd.xlane.f32.xlu0 %v429
      %v481 = vpop.xlane.xlu0 %480
      %482 = vadd.xlane.f32.xlu0 %v430
      %v483 = vpop.xlane.xlu0 %482
      %484 = vadd.xlane.f32.xlu0 %v431
      %v485 = vpop.xlane.xlu0 %484
      %486 = vadd.xlane.f32.xlu0 %v432
      %v487 = vpop.xlane.xlu0 %486
      %488 = vadd.xlane.f32.xlu0 %v433
      %v489 = vpop.xlane.xlu0 %488
      %490 = vadd.xlane.f32.xlu0 %v434
      %v491 = vpop.xlane.xlu0 %490
      %492 = vadd.xlane.f32.xlu0 %v435
      %v493 = vpop.xlane.xlu0 %492
      %494 = vadd.xlane.f32.xlu0 %v436
      %v495 = vpop.xlane.xlu0 %494
      %496 = vadd.xlane.f32.xlu0 %v437
      %v497 = vpop.xlane.xlu0 %496
      %498 = vadd.xlane.f32.xlu0 %v438
      %v499 = vpop.xlane.xlu0 %498
      %500 = vadd.xlane.f32.xlu0 %v439
      %v501 = vpop.xlane.xlu0 %500
      %502 = vadd.xlane.f32.xlu0 %v440
      %v503 = vpop.xlane.xlu0 %502
      %504 = vadd.xlane.f32.xlu0 %v441
      %v505 = vpop.xlane.xlu0 %504
      %v506 = vmul.f32 %v443, %v345
      %v507 = vmul.f32 %v445, %v345
      %v508 = vmul.f32 %v447, %v345
      %v509 = vmul.f32 %v449, %v345
      %v510 = vmul.f32 %v451, %v345
      %v511 = vmul.f32 %v453, %v345
      %v512 = vmul.f32 %v455, %v345
      %v513 = vmul.f32 %v457, %v345
      %v514 = vmul.f32 %v459, %v345
      %v515 = vmul.f32 %v461, %v345
      %v516 = vmul.f32 %v463, %v345
      %v517 = vmul.f32 %v465, %v345
      %v518 = vmul.f32 %v467, %v345
      %v519 = vmul.f32 %v469, %v345
      %v520 = vmul.f32 %v471, %v345
      %v521 = vmul.f32 %v473, %v345
      %v522 = vmul.f32 %v475, %v345
      %v523 = vmul.f32 %v477, %v345
      %v524 = vmul.f32 %v479, %v345
      %v525 = vmul.f32 %v481, %v345
      %v526 = vmul.f32 %v483, %v345
      %v527 = vmul.f32 %v485, %v345
      %v528 = vmul.f32 %v487, %v345
      %v529 = vmul.f32 %v489, %v345
      %v530 = vmul.f32 %v491, %v345
      %v531 = vmul.f32 %v493, %v345
      %v532 = vmul.f32 %v495, %v345
      %v533 = vmul.f32 %v497, %v345
      %v534 = vmul.f32 %v499, %v345
      %v535 = vmul.f32 %v501, %v345
      %v536 = vmul.f32 %v503, %v345
      %v537 = vmul.f32 %v505, %v345
      %v538 = vadd.f32 %v506, 1e-05
      %v539 = vadd.f32 %v507, 1e-05
      %v540 = vadd.f32 %v508, 1e-05
      %v541 = vadd.f32 %v509, 1e-05
      %v542 = vadd.f32 %v510, 1e-05
      %v543 = vadd.f32 %v511, 1e-05
      %v544 = vadd.f32 %v512, 1e-05
      %v545 = vadd.f32 %v513, 1e-05
      %v546 = vadd.f32 %v514, 1e-05
      %v547 = vadd.f32 %v515, 1e-05
      %v548 = vadd.f32 %v516, 1e-05
      %v549 = vadd.f32 %v517, 1e-05
      %v550 = vadd.f32 %v518, 1e-05
      %v551 = vadd.f32 %v519, 1e-05
      %v552 = vadd.f32 %v520, 1e-05
      %v553 = vadd.f32 %v521, 1e-05
      %v554 = vadd.f32 %v522, 1e-05
      %v555 = vadd.f32 %v523, 1e-05
      %v556 = vadd.f32 %v524, 1e-05
      %v557 = vadd.f32 %v525, 1e-05
      %v558 = vadd.f32 %v526, 1e-05
      %v559 = vadd.f32 %v527, 1e-05
      %v560 = vadd.f32 %v528, 1e-05
      %v561 = vadd.f32 %v529, 1e-05
      %v562 = vadd.f32 %v530, 1e-05
      %v563 = vadd.f32 %v531, 1e-05
      %v564 = vadd.f32 %v532, 1e-05
      %v565 = vadd.f32 %v533, 1e-05
      %v566 = vadd.f32 %v534, 1e-05
      %v567 = vadd.f32 %v535, 1e-05
      %v568 = vadd.f32 %v536, 1e-05
      %v569 = vadd.f32 %v537, 1e-05
      %v570 = vrsqrt.pop %v538
      %v571 = vrsqrt.pop %v539
      %v572 = vrsqrt.pop %v540
      %v573 = vrsqrt.pop %v541
      %v574 = vrsqrt.pop %v542
      %v575 = vrsqrt.pop %v543
      %v576 = vrsqrt.pop %v544
      %v577 = vrsqrt.pop %v545
      %v578 = vrsqrt.pop %v546
      %v579 = vrsqrt.pop %v547
      %v580 = vrsqrt.pop %v548
      %v581 = vrsqrt.pop %v549
      %v582 = vrsqrt.pop %v550
      %v583 = vrsqrt.pop %v551
      %v584 = vrsqrt.pop %v552
      %v585 = vrsqrt.pop %v553
      %v586 = vrsqrt.pop %v554
      %v587 = vrsqrt.pop %v555
      %v588 = vrsqrt.pop %v556
      %v589 = vrsqrt.pop %v557
      %v590 = vrsqrt.pop %v558
      %v591 = vrsqrt.pop %v559
      %v592 = vrsqrt.pop %v560
      %v593 = vrsqrt.pop %v561
      %v594 = vrsqrt.pop %v562
      %v595 = vrsqrt.pop %v563
      %v596 = vrsqrt.pop %v564
      %v597 = vrsqrt.pop %v565
      %v598 = vrsqrt.pop %v566
      %v599 = vrsqrt.pop %v567
      %v600 = vrsqrt.pop %v568
      %v601 = vrsqrt.pop %v569
      %v602 = vmul.f32 %v378, %v570
      %v603 = vmul.f32 %v379, %v571
      %v604 = vmul.f32 %v380, %v572
      %v605 = vmul.f32 %v381, %v573
      %v606 = vmul.f32 %v382, %v574
      %v607 = vmul.f32 %v383, %v575
      %v608 = vmul.f32 %v384, %v576
      %v609 = vmul.f32 %v385, %v577
      %v610 = vmul.f32 %v386, %v578
      %v611 = vmul.f32 %v387, %v579
      %v612 = vmul.f32 %v388, %v580
      %v613 = vmul.f32 %v389, %v581
      %v614 = vmul.f32 %v390, %v582
      %v615 = vmul.f32 %v391, %v583
      %v616 = vmul.f32 %v392, %v584
      %v617 = vmul.f32 %v393, %v585
      %v618 = vmul.f32 %v394, %v586
      %v619 = vmul.f32 %v395, %v587
      %v620 = vmul.f32 %v396, %v588
      %v621 = vmul.f32 %v397, %v589
      %v622 = vmul.f32 %v398, %v590
      %v623 = vmul.f32 %v399, %v591
      %v624 = vmul.f32 %v400, %v592
      %v625 = vmul.f32 %v401, %v593
      %v626 = vmul.f32 %v402, %v594
      %v627 = vmul.f32 %v403, %v595
      %v628 = vmul.f32 %v404, %v596
      %v629 = vmul.f32 %v405, %v597
      %v630 = vmul.f32 %v406, %v598
      %v631 = vmul.f32 %v407, %v599
      %v632 = vmul.f32 %v408, %v600
      %v633 = vmul.f32 %v409, %v601
      %v634 = vld [vmem:[%s1] sm:$0x1]
      %v636 = vlaneseq
      %v637 = vshrl.u32 %v636, 7
      %v638 = vsub.s32 0, %v637
      %v639 = vrot.slane %v634, %v638
      %v641 = vmul.f32 %v602, %v639
      %v642 = vmul.f32 %v603, %v639
      %v643 = vmul.f32 %v604, %v639
      %v644 = vmul.f32 %v605, %v639
      %v645 = vmul.f32 %v606, %v639
      %v646 = vmul.f32 %v607, %v639
      %v647 = vmul.f32 %v608, %v639
      %v648 = vmul.f32 %v609, %v639
      %v649 = vmul.f32 %v610, %v639
      %v650 = vmul.f32 %v611, %v639
      %v651 = vmul.f32 %v612, %v639
      %v652 = vmul.f32 %v613, %v639
      %v653 = vmul.f32 %v614, %v639
      %v654 = vmul.f32 %v615, %v639
      %v655 = vmul.f32 %v616, %v639
      %v656 = vmul.f32 %v617, %v639
      %v657 = vmul.f32 %v618, %v639
      %v658 = vmul.f32 %v619, %v639
      %v659 = vmul.f32 %v620, %v639
      %v660 = vmul.f32 %v621, %v639
      %v661 = vmul.f32 %v622, %v639
      %v662 = vmul.f32 %v623, %v639
      %v663 = vmul.f32 %v624, %v639
      %v664 = vmul.f32 %v625, %v639
      %v665 = vmul.f32 %v626, %v639
      %v666 = vmul.f32 %v627, %v639
      %v667 = vmul.f32 %v628, %v639
      %v668 = vmul.f32 %v629, %v639
      %v669 = vmul.f32 %v630, %v639
      %v670 = vmul.f32 %v631, %v639
      %v671 = vmul.f32 %v632, %v639
      %v672 = vmul.f32 %v633, %v639
      %v673 = vld [vmem:[%s2] sm:$0x1]
      %v675 = vlaneseq
      %v676 = vshrl.u32 %v675, 7
      %v677 = vsub.s32 0, %v676
      %v678 = vrot.slane %v673, %v677
      %v680 = vadd.f32 %v641, %v678
      %v681 = vadd.f32 %v642, %v678
      %v682 = vadd.f32 %v643, %v678
      %v683 = vadd.f32 %v644, %v678
      %v684 = vadd.f32 %v645, %v678
      %v685 = vadd.f32 %v646, %v678
      %v686 = vadd.f32 %v647, %v678
      %v687 = vadd.f32 %v648, %v678
      %v688 = vadd.f32 %v649, %v678
      %v689 = vadd.f32 %v650, %v678
      %v690 = vadd.f32 %v651, %v678
      %v691 = vadd.f32 %v652, %v678
      %v692 = vadd.f32 %v653, %v678
      %v693 = vadd.f32 %v654, %v678
      %v694 = vadd.f32 %v655, %v678
      %v695 = vadd.f32 %v656, %v678
      %v696 = vadd.f32 %v657, %v678
      %v697 = vadd.f32 %v658, %v678
      %v698 = vadd.f32 %v659, %v678
      %v699 = vadd.f32 %v660, %v678
      %v700 = vadd.f32 %v661, %v678
      %v701 = vadd.f32 %v662, %v678
      %v702 = vadd.f32 %v663, %v678
      %v703 = vadd.f32 %v664, %v678
      %v704 = vadd.f32 %v665, %v678
      %v705 = vadd.f32 %v666, %v678
      %v706 = vadd.f32 %v667, %v678
      %v707 = vadd.f32 %v668, %v678
      %v708 = vadd.f32 %v669, %v678
      %v709 = vadd.f32 %v670, %v678
      %v710 = vadd.f32 %v671, %v678
      %v711 = vadd.f32 %v672, %v678
      %v712 = vpack.c.bf16 %v681, %v680
      %v713 = vpack.c.bf16 %v683, %v682
      %v714 = vpack.c.bf16 %v685, %v684
      %v715 = vpack.c.bf16 %v687, %v686
      %v716 = vpack.c.bf16 %v689, %v688
      %v717 = vpack.c.bf16 %v691, %v690
      %v718 = vpack.c.bf16 %v693, %v692
      %v719 = vpack.c.bf16 %v695, %v694
      %v720 = vpack.c.bf16 %v697, %v696
      %v721 = vpack.c.bf16 %v699, %v698
      %v722 = vpack.c.bf16 %v701, %v700
      %v723 = vpack.c.bf16 %v703, %v702
      %v724 = vpack.c.bf16 %v705, %v704
      %v725 = vpack.c.bf16 %v707, %v706
      %v726 = vpack.c.bf16 %v709, %v708
      %v727 = vpack.c.bf16 %v711, %v710
      %v728 = vld [vmem:[%s234] sm:$0xff]
      %v729 = vld [vmem:[%s234 + $0x8] sm:$0xf]
      %v730 = vld [vmem:[%s234 + $0xc] sm:$0xff]
      %v731 = vld [vmem:[%s234 + $0x14] sm:$0xf]
      %v732 = vld [vmem:[%s234 + $0x18] sm:$0xff]
      %v733 = vld [vmem:[%s234 + $0x20] sm:$0xf]
      %v734 = vld [vmem:[%s234 + $0x24] sm:$0xff]
      %v735 = vld [vmem:[%s234 + $0x2c] sm:$0xf]
      %v736 = vld [vmem:[%s234 + $0x30] sm:$0xff]
      %v737 = vld [vmem:[%s234 + $0x38] sm:$0xf]
      %v738 = vld [vmem:[%s234 + $0x3c] sm:$0xff]
      %v739 = vld [vmem:[%s234 + $0x44] sm:$0xf]
      %v740 = vld [vmem:[%s234 + $0x48] sm:$0xff]
      %v741 = vld [vmem:[%s234 + $0x50] sm:$0xf]
      %v742 = vld [vmem:[%s234 + $0x54] sm:$0xff]
      %v743 = vld [vmem:[%s234 + $0x5c] sm:$0xf]
      %v744 = vld [vmem:[%s234 + $0x60] sm:$0xff]
      %v745 = vld [vmem:[%s234 + $0x68] sm:$0xf]
      %v746 = vld [vmem:[%s234 + $0x6c] sm:$0xff]
      %v747 = vld [vmem:[%s234 + $0x74] sm:$0xf]
      %v748 = vld [vmem:[%s234 + $0x78] sm:$0xff]
      %v749 = vld [vmem:[%s234 + $0x80] sm:$0xf]
      %v750 = vld [vmem:[%s234 + $0x84] sm:$0xff]
      %v751 = vld [vmem:[%s234 + $0x8c] sm:$0xf]
      %v752 = vld [vmem:[%s234 + $0x90] sm:$0xff]
      %v753 = vld [vmem:[%s234 + $0x98] sm:$0xf]
      %v754 = vld [vmem:[%s234 + $0x9c] sm:$0xff]
      %v755 = vld [vmem:[%s234 + $0xa4] sm:$0xf]
      %v756 = vld [vmem:[%s234 + $0xa8] sm:$0xff]
      %v757 = vld [vmem:[%s234 + $0xb0] sm:$0xf]
      %v758 = vld [vmem:[%s234 + $0xb4] sm:$0xff]
      %v759 = vld [vmem:[%s234 + $0xbc] sm:$0xf]
      %v792 = vunpack.c.l.b16 %v728
      %v793 = vunpack.c.h.b16 %v728
      %v794 = vunpack.c.l.b16 %v729
      %v795 = vunpack.c.l.b16 %v730
      %v796 = vunpack.c.h.b16 %v730
      %v797 = vunpack.c.l.b16 %v731
      %v798 = vunpack.c.l.b16 %v732
      %v799 = vunpack.c.h.b16 %v732
      %v800 = vunpack.c.l.b16 %v733
      %v801 = vunpack.c.l.b16 %v734
      %v802 = vunpack.c.h.b16 %v734
      %v803 = vunpack.c.l.b16 %v735
      %v804 = vunpack.c.l.b16 %v736
      %v805 = vunpack.c.h.b16 %v736
      %v806 = vunpack.c.l.b16 %v737
      %v807 = vunpack.c.l.b16 %v738
      %v808 = vunpack.c.h.b16 %v738
      %v809 = vunpack.c.l.b16 %v739
      %v810 = vunpack.c.l.b16 %v740
      %v811 = vunpack.c.h.b16 %v740
      %v812 = vunpack.c.l.b16 %v741
      %v813 = vunpack.c.l.b16 %v742
      %v814 = vunpack.c.h.b16 %v742
      %v815 = vunpack.c.l.b16 %v743
      %v816 = vunpack.c.l.b16 %v744
      %v817 = vunpack.c.h.b16 %v744
      %v818 = vunpack.c.l.b16 %v745
      %v819 = vunpack.c.l.b16 %v746
      %v820 = vunpack.c.h.b16 %v746
      %v821 = vunpack.c.l.b16 %v747
      %v822 = vunpack.c.l.b16 %v748
      %v823 = vunpack.c.h.b16 %v748
      %v824 = vunpack.c.l.b16 %v749
      %v825 = vunpack.c.l.b16 %v750
      %v826 = vunpack.c.h.b16 %v750
      %v827 = vunpack.c.l.b16 %v751
      %v828 = vunpack.c.l.b16 %v752
      %v829 = vunpack.c.h.b16 %v752
      %v830 = vunpack.c.l.b16 %v753
      %v831 = vunpack.c.l.b16 %v754
      %v832 = vunpack.c.h.b16 %v754
      %v833 = vunpack.c.l.b16 %v755
      %v834 = vunpack.c.l.b16 %v756
      %v835 = vunpack.c.h.b16 %v756
      %v836 = vunpack.c.l.b16 %v757
      %v837 = vunpack.c.l.b16 %v758
      %v838 = vunpack.c.h.b16 %v758
      %v839 = vunpack.c.l.b16 %v759
      %v840 = vpack.c.b16 %v795, %v792
      %v841 = vpack.c.b16 %v796, %v793
      %v842 = vpack.c.b16 %v797, %v794
      %v843 = vpack.c.b16 %v801, %v798
      %v844 = vpack.c.b16 %v802, %v799
      %v845 = vpack.c.b16 %v803, %v800
      %v846 = vpack.c.b16 %v807, %v804
      %v847 = vpack.c.b16 %v808, %v805
      %v848 = vpack.c.b16 %v809, %v806
      %v849 = vpack.c.b16 %v813, %v810
      %v850 = vpack.c.b16 %v814, %v811
      %v851 = vpack.c.b16 %v815, %v812
      %v852 = vpack.c.b16 %v819, %v816
      %v853 = vpack.c.b16 %v820, %v817
      %v854 = vpack.c.b16 %v821, %v818
      %v855 = vpack.c.b16 %v825, %v822
      %v856 = vpack.c.b16 %v826, %v823
      %v857 = vpack.c.b16 %v827, %v824
      %v858 = vpack.c.b16 %v831, %v828
      %v859 = vpack.c.b16 %v832, %v829
      %v860 = vpack.c.b16 %v833, %v830
      %v861 = vpack.c.b16 %v837, %v834
      %v862 = vpack.c.b16 %v838, %v835
      %v863 = vpack.c.b16 %v839, %v836
      %888 = vmatprep.subr.bf16.mxu0 %v862
      %889 = vmatpush1.bf16.msra.mxu0 %v861
      %890 = vmatprep.subr.bf16.mxu0 %v859
      %891 = vmatpush1.bf16.msra.mxu0 %v858
      %892 = vmatprep.subr.bf16.mxu0 %v856
      %893 = vmatpush1.bf16.msra.mxu0 %v855
      %894 = vmatprep.subr.bf16.mxu0 %v853
      %895 = vmatpush1.bf16.msra.mxu0 %v852
      %896 = vmatprep.subr.bf16.mxu0 %v850
      %897 = vmatpush1.bf16.msra.mxu0 %v849
      %898 = vmatprep.subr.bf16.mxu0 %v847
      %899 = vmatpush1.bf16.msra.mxu0 %v846
      %900 = vmatprep.subr.bf16.mxu0 %v844
      %901 = vmatpush1.bf16.msra.mxu0 %v843
      %902 = vmatprep.subr.bf16.mxu0 %v841
      %903 = vmatpush1.bf16.msra.mxu0 %v840
      %904 = vmatprep.subr.bf16.mxu0 0
      %905 = vmatpush2.bf16.msra.mxu0 0
      %906 = vmatprep.subr.bf16.mxu0 0
      %907 = vmatpush2.bf16.msra.mxu0 0
      %908 = vmatprep.subr.bf16.mxu0 0
      %909 = vmatpush2.bf16.msra.mxu0 0
      %910 = vmatprep.subr.bf16.mxu0 0
      %911 = vmatpush2.bf16.msra.mxu0 0
      %912 = vmatprep.subr.bf16.mxu0 0
      %913 = vmatpush2.bf16.msra.mxu0 0
      %914 = vmatprep.subr.bf16.mxu0 0
      %915 = vmatpush2.bf16.msra.mxu0 0
      %916 = vmatprep.subr.bf16.mxu0 0
      %917 = vmatpush2.bf16.msra.mxu0 0
      %918 = vmatprep.subr.bf16.mxu0 0
      %919 = vmatpush2.bf16.msra.mxu0 0
      %920 = vmatprep.mubr.bf16.mxu0 0
      %921 = vmatmul.mubr.bf16.gmra.mxu0 %v712
      %v922 = vpop.f32.mrf.mxu0
      %v923 = vadd.f32 0.0, %v922
      %v924 = vpop.f32.mrf.mxu0
      %v925 = vadd.f32 0.0, %v924
      %v926 = vpop.f32.mrf.mxu0
      %v927 = vadd.f32 0.0, %v926
      %v928 = vpop.f32.mrf.mxu0
      %v929 = vadd.f32 0.0, %v928
      %930 = vmatprep.mubr.bf16.mxu0 0
      %931 = vmatmul.mubr.bf16.gmra.mxu0 %v713
      %v932 = vpop.f32.mrf.mxu0
      %v933 = vadd.f32 0.0, %v932
      %v934 = vpop.f32.mrf.mxu0
      %v935 = vadd.f32 0.0, %v934
      %v936 = vpop.f32.mrf.mxu0
      %v937 = vadd.f32 0.0, %v936
      %v938 = vpop.f32.mrf.mxu0
      %v939 = vadd.f32 0.0, %v938
      %940 = vmatprep.mubr.bf16.mxu0 0
      %941 = vmatmul.mubr.bf16.gmra.mxu0 %v714
      %v942 = vpop.f32.mrf.mxu0
      %v943 = vadd.f32 0.0, %v942
      %v944 = vpop.f32.mrf.mxu0
      %v945 = vadd.f32 0.0, %v944
      %v946 = vpop.f32.mrf.mxu0
      %v947 = vadd.f32 0.0, %v946
      %v948 = vpop.f32.mrf.mxu0
      %v949 = vadd.f32 0.0, %v948
      %950 = vmatprep.mubr.bf16.mxu0 0
      %951 = vmatmul.mubr.bf16.gmra.mxu0 %v715
      %v952 = vpop.f32.mrf.mxu0
      %v953 = vadd.f32 0.0, %v952
      %v954 = vpop.f32.mrf.mxu0
      %v955 = vadd.f32 0.0, %v954
      %v956 = vpop.f32.mrf.mxu0
      %v957 = vadd.f32 0.0, %v956
      %v958 = vpop.f32.mrf.mxu0
      %v959 = vadd.f32 0.0, %v958
      %960 = vmatprep.mubr.bf16.mxu0 0
      %961 = vmatmul.mubr.bf16.gmra.mxu0 %v716
      %v962 = vpop.f32.mrf.mxu0
      %v963 = vadd.f32 0.0, %v962
      %v964 = vpop.f32.mrf.mxu0
      %v965 = vadd.f32 0.0, %v964
      %v966 = vpop.f32.mrf.mxu0
      %v967 = vadd.f32 0.0, %v966
      %v968 = vpop.f32.mrf.mxu0
      %v969 = vadd.f32 0.0, %v968
      %970 = vmatprep.mubr.bf16.mxu0 0
      %971 = vmatmul.mubr.bf16.gmra.mxu0 %v717
      %v972 = vpop.f32.mrf.mxu0
      %v973 = vadd.f32 0.0, %v972
      %v974 = vpop.f32.mrf.mxu0
      %v975 = vadd.f32 0.0, %v974
      %v976 = vpop.f32.mrf.mxu0
      %v977 = vadd.f32 0.0, %v976
      %v978 = vpop.f32.mrf.mxu0
      %v979 = vadd.f32 0.0, %v978
      %980 = vmatprep.mubr.bf16.mxu0 0
      %981 = vmatmul.mubr.bf16.gmra.mxu0 %v718
      %v982 = vpop.f32.mrf.mxu0
      %v983 = vadd.f32 0.0, %v982
      %v984 = vpop.f32.mrf.mxu0
      %v985 = vadd.f32 0.0, %v984
      %v986 = vpop.f32.mrf.mxu0
      %v987 = vadd.f32 0.0, %v986
      %v988 = vpop.f32.mrf.mxu0
      %v989 = vadd.f32 0.0, %v988
      %990 = vmatprep.mubr.bf16.mxu0 0
      %991 = vmatmul.mubr.bf16.gmra.mxu0 %v719
      %v992 = vpop.f32.mrf.mxu0
      %v993 = vadd.f32 0.0, %v992
      %v994 = vpop.f32.mrf.mxu0
      %v995 = vadd.f32 0.0, %v994
      %v996 = vpop.f32.mrf.mxu0
      %v997 = vadd.f32 0.0, %v996
      %v998 = vpop.f32.mrf.mxu0
      %v999 = vadd.f32 0.0, %v998
      %1000 = vmatprep.mubr.bf16.mxu0 0
      %1001 = vmatmul.mubr.bf16.gmra.mxu0 %v720
      %v1002 = vpop.f32.mrf.mxu0
      %v1003 = vadd.f32 0.0, %v1002
      %v1004 = vpop.f32.mrf.mxu0
      %v1005 = vadd.f32 0.0, %v1004
      %v1006 = vpop.f32.mrf.mxu0
      %v1007 = vadd.f32 0.0, %v1006
      %v1008 = vpop.f32.mrf.mxu0
      %v1009 = vadd.f32 0.0, %v1008
      %1010 = vmatprep.mubr.bf16.mxu0 0
      %1011 = vmatmul.mubr.bf16.gmra.mxu0 %v721
      %v1012 = vpop.f32.mrf.mxu0
      %v1013 = vadd.f32 0.0, %v1012
      %v1014 = vpop.f32.mrf.mxu0
      %v1015 = vadd.f32 0.0, %v1014
      %v1016 = vpop.f32.mrf.mxu0
      %v1017 = vadd.f32 0.0, %v1016
      %v1018 = vpop.f32.mrf.mxu0
      %v1019 = vadd.f32 0.0, %v1018
      %1020 = vmatprep.mubr.bf16.mxu0 0
      %1021 = vmatmul.mubr.bf16.gmra.mxu0 %v722
      %v1022 = vpop.f32.mrf.mxu0
      %v1023 = vadd.f32 0.0, %v1022
      %v1024 = vpop.f32.mrf.mxu0
      %v1025 = vadd.f32 0.0, %v1024
      %v1026 = vpop.f32.mrf.mxu0
      %v1027 = vadd.f32 0.0, %v1026
      %v1028 = vpop.f32.mrf.mxu0
      %v1029 = vadd.f32 0.0, %v1028
      %1030 = vmatprep.mubr.bf16.mxu0 0
      %1031 = vmatmul.mubr.bf16.gmra.mxu0 %v723
      %v1032 = vpop.f32.mrf.mxu0
      %v1033 = vadd.f32 0.0, %v1032
      %v1034 = vpop.f32.mrf.mxu0
      %v1035 = vadd.f32 0.0, %v1034
      %v1036 = vpop.f32.mrf.mxu0
      %v1037 = vadd.f32 0.0, %v1036
      %v1038 = vpop.f32.mrf.mxu0
      %v1039 = vadd.f32 0.0, %v1038
      %1040 = vmatprep.mubr.bf16.mxu0 0
      %1041 = vmatmul.mubr.bf16.gmra.mxu0 %v724
      %v1042 = vpop.f32.mrf.mxu0
      %v1043 = vadd.f32 0.0, %v1042
      %v1044 = vpop.f32.mrf.mxu0
      %v1045 = vadd.f32 0.0, %v1044
      %v1046 = vpop.f32.mrf.mxu0
      %v1047 = vadd.f32 0.0, %v1046
      %v1048 = vpop.f32.mrf.mxu0
      %v1049 = vadd.f32 0.0, %v1048
      %1050 = vmatprep.mubr.bf16.mxu0 0
      %1051 = vmatmul.mubr.bf16.gmra.mxu0 %v725
      %v1052 = vpop.f32.mrf.mxu0
      %v1053 = vadd.f32 0.0, %v1052
      %v1054 = vpop.f32.mrf.mxu0
      %v1055 = vadd.f32 0.0, %v1054
      %v1056 = vpop.f32.mrf.mxu0
      %v1057 = vadd.f32 0.0, %v1056
      %v1058 = vpop.f32.mrf.mxu0
      %v1059 = vadd.f32 0.0, %v1058
      %1060 = vmatprep.mubr.bf16.mxu0 0
      %1061 = vmatmul.mubr.bf16.gmra.mxu0 %v726
      %v1062 = vpop.f32.mrf.mxu0
      %v1063 = vadd.f32 0.0, %v1062
      %v1064 = vpop.f32.mrf.mxu0
      %v1065 = vadd.f32 0.0, %v1064
      %v1066 = vpop.f32.mrf.mxu0
      %v1067 = vadd.f32 0.0, %v1066
      %v1068 = vpop.f32.mrf.mxu0
      %v1069 = vadd.f32 0.0, %v1068
      %1070 = vmatprep.mubr.bf16.mxu0 0
      %1071 = vmatmul.mubr.bf16.gmra.mxu0 %v727
      %v1072 = vpop.f32.mrf.mxu0
      %v1073 = vadd.f32 0.0, %v1072
      %v1074 = vpop.f32.mrf.mxu0
      %v1075 = vadd.f32 0.0, %v1074
      %v1076 = vpop.f32.mrf.mxu0
      %v1077 = vadd.f32 0.0, %v1076
      %v1078 = vpop.f32.mrf.mxu0
      %v1079 = vadd.f32 0.0, %v1078
      %1080 = vdwg.mxu0
      %1081 = vmatprep.subr.bf16.mxu0 0
      %1082 = vmatpush1.bf16.msra.mxu0 %v863
      %1083 = vmatprep.subr.bf16.mxu0 0
      %1084 = vmatpush1.bf16.msra.mxu0 %v860
      %1085 = vmatprep.subr.bf16.mxu0 0
      %1086 = vmatpush1.bf16.msra.mxu0 %v857
      %1087 = vmatprep.subr.bf16.mxu0 0
      %1088 = vmatpush1.bf16.msra.mxu0 %v854
      %1089 = vmatprep.subr.bf16.mxu0 0
      %1090 = vmatpush1.bf16.msra.mxu0 %v851
      %1091 = vmatprep.subr.bf16.mxu0 0
      %1092 = vmatpush1.bf16.msra.mxu0 %v848
      %1093 = vmatprep.subr.bf16.mxu0 0
      %1094 = vmatpush1.bf16.msra.mxu0 %v845
      %1095 = vmatprep.subr.bf16.mxu0 0
      %1096 = vmatpush1.bf16.msra.mxu0 %v842
      %1097 = vmatprep.subr.bf16.mxu0 0
      %1098 = vmatpush2.bf16.msra.mxu0 0
      %1099 = vmatprep.subr.bf16.mxu0 0
      %1100 = vmatpush2.bf16.msra.mxu0 0
      %1101 = vmatprep.subr.bf16.mxu0 0
      %1102 = vmatpush2.bf16.msra.mxu0 0
      %1103 = vmatprep.subr.bf16.mxu0 0
      %1104 = vmatpush2.bf16.msra.mxu0 0
      %1105 = vmatprep.subr.bf16.mxu0 0
      %1106 = vmatpush2.bf16.msra.mxu0 0
      %1107 = vmatprep.subr.bf16.mxu0 0
      %1108 = vmatpush2.bf16.msra.mxu0 0
      %1109 = vmatprep.subr.bf16.mxu0 0
      %1110 = vmatpush2.bf16.msra.mxu0 0
      %1111 = vmatprep.subr.bf16.mxu0 0
      %1112 = vmatpush2.bf16.msra.mxu0 0
      %1113 = vmatprep.mubr.bf16.mxu0 0
      %1114 = vmatmul.mubr.bf16.gmra.mxu0 %v712
      %v1115 = vpop.f32.mrf.mxu0
      %v1116 = vadd.f32 0.0, %v1115
      %v1117 = vpop.f32.mrf.mxu0
      %v1118 = vpop.f32.mrf.mxu0
      %v1119 = vadd.f32 0.0, %v1118
      %v1120 = vpop.f32.mrf.mxu0
      %1121 = vmatprep.mubr.bf16.mxu0 0
      %1122 = vmatmul.mubr.bf16.gmra.mxu0 %v713
      %v1123 = vpop.f32.mrf.mxu0
      %v1124 = vadd.f32 0.0, %v1123
      %v1125 = vpop.f32.mrf.mxu0
      %v1126 = vpop.f32.mrf.mxu0
      %v1127 = vadd.f32 0.0, %v1126
      %v1128 = vpop.f32.mrf.mxu0
      %1129 = vmatprep.mubr.bf16.mxu0 0
      %1130 = vmatmul.mubr.bf16.gmra.mxu0 %v714
      %v1131 = vpop.f32.mrf.mxu0
      %v1132 = vadd.f32 0.0, %v1131
      %v1133 = vpop.f32.mrf.mxu0
      %v1134 = vpop.f32.mrf.mxu0
      %v1135 = vadd.f32 0.0, %v1134
      %v1136 = vpop.f32.mrf.mxu0
      %1137 = vmatprep.mubr.bf16.mxu0 0
      %1138 = vmatmul.mubr.bf16.gmra.mxu0 %v715
      %v1139 = vpop.f32.mrf.mxu0
      %v1140 = vadd.f32 0.0, %v1139
      %v1141 = vpop.f32.mrf.mxu0
      %v1142 = vpop.f32.mrf.mxu0
      %v1143 = vadd.f32 0.0, %v1142
      %v1144 = vpop.f32.mrf.mxu0
      %1145 = vmatprep.mubr.bf16.mxu0 0
      %1146 = vmatmul.mubr.bf16.gmra.mxu0 %v716
      %v1147 = vpop.f32.mrf.mxu0
      %v1148 = vadd.f32 0.0, %v1147
      %v1149 = vpop.f32.mrf.mxu0
      %v1150 = vpop.f32.mrf.mxu0
      %v1151 = vadd.f32 0.0, %v1150
      %v1152 = vpop.f32.mrf.mxu0
      %1153 = vmatprep.mubr.bf16.mxu0 0
      %1154 = vmatmul.mubr.bf16.gmra.mxu0 %v717
      %v1155 = vpop.f32.mrf.mxu0
      %v1156 = vadd.f32 0.0, %v1155
      %v1157 = vpop.f32.mrf.mxu0
      %v1158 = vpop.f32.mrf.mxu0
      %v1159 = vadd.f32 0.0, %v1158
      %v1160 = vpop.f32.mrf.mxu0
      %1161 = vmatprep.mubr.bf16.mxu0 0
      %1162 = vmatmul.mubr.bf16.gmra.mxu0 %v718
      %v1163 = vpop.f32.mrf.mxu0
      %v1164 = vadd.f32 0.0, %v1163
      %v1165 = vpop.f32.mrf.mxu0
      %v1166 = vpop.f32.mrf.mxu0
      %v1167 = vadd.f32 0.0, %v1166
      %v1168 = vpop.f32.mrf.mxu0
      %1169 = vmatprep.mubr.bf16.mxu0 0
      %1170 = vmatmul.mubr.bf16.gmra.mxu0 %v719
      %v1171 = vpop.f32.mrf.mxu0
      %v1172 = vadd.f32 0.0, %v1171
      %v1173 = vpop.f32.mrf.mxu0
      %v1174 = vpop.f32.mrf.mxu0
      %v1175 = vadd.f32 0.0, %v1174
      %v1176 = vpop.f32.mrf.mxu0
      %1177 = vmatprep.mubr.bf16.mxu0 0
      %1178 = vmatmul.mubr.bf16.gmra.mxu0 %v720
      %v1179 = vpop.f32.mrf.mxu0
      %v1180 = vadd.f32 0.0, %v1179
      %v1181 = vpop.f32.mrf.mxu0
      %v1182 = vpop.f32.mrf.mxu0
      %v1183 = vadd.f32 0.0, %v1182
      %v1184 = vpop.f32.mrf.mxu0
      %1185 = vmatprep.mubr.bf16.mxu0 0
      %1186 = vmatmul.mubr.bf16.gmra.mxu0 %v721
      %v1187 = vpop.f32.mrf.mxu0
      %v1188 = vadd.f32 0.0, %v1187
      %v1189 = vpop.f32.mrf.mxu0
      %v1190 = vpop.f32.mrf.mxu0
      %v1191 = vadd.f32 0.0, %v1190
      %v1192 = vpop.f32.mrf.mxu0
      %1193 = vmatprep.mubr.bf16.mxu0 0
      %1194 = vmatmul.mubr.bf16.gmra.mxu0 %v722
      %v1195 = vpop.f32.mrf.mxu0
      %v1196 = vadd.f32 0.0, %v1195
      %v1197 = vpop.f32.mrf.mxu0
      %v1198 = vpop.f32.mrf.mxu0
      %v1199 = vadd.f32 0.0, %v1198
      %v1200 = vpop.f32.mrf.mxu0
      %1201 = vmatprep.mubr.bf16.mxu0 0
      %1202 = vmatmul.mubr.bf16.gmra.mxu0 %v723
      %v1203 = vpop.f32.mrf.mxu0
      %v1204 = vadd.f32 0.0, %v1203
      %v1205 = vpop.f32.mrf.mxu0
      %v1206 = vpop.f32.mrf.mxu0
      %v1207 = vadd.f32 0.0, %v1206
      %v1208 = vpop.f32.mrf.mxu0
      %1209 = vmatprep.mubr.bf16.mxu0 0
      %1210 = vmatmul.mubr.bf16.gmra.mxu0 %v724
      %v1211 = vpop.f32.mrf.mxu0
      %v1212 = vadd.f32 0.0, %v1211
      %v1213 = vpop.f32.mrf.mxu0
      %v1214 = vpop.f32.mrf.mxu0
      %v1215 = vadd.f32 0.0, %v1214
      %v1216 = vpop.f32.mrf.mxu0
      %1217 = vmatprep.mubr.bf16.mxu0 0
      %1218 = vmatmul.mubr.bf16.gmra.mxu0 %v725
      %v1219 = vpop.f32.mrf.mxu0
      %v1220 = vadd.f32 0.0, %v1219
      %v1221 = vpop.f32.mrf.mxu0
      %v1222 = vpop.f32.mrf.mxu0
      %v1223 = vadd.f32 0.0, %v1222
      %v1224 = vpop.f32.mrf.mxu0
      %1225 = vmatprep.mubr.bf16.mxu0 0
      %1226 = vmatmul.mubr.bf16.gmra.mxu0 %v726
      %v1227 = vpop.f32.mrf.mxu0
      %v1228 = vadd.f32 0.0, %v1227
      %v1229 = vpop.f32.mrf.mxu0
      %v1230 = vpop.f32.mrf.mxu0
      %v1231 = vadd.f32 0.0, %v1230
      %v1232 = vpop.f32.mrf.mxu0
      %1233 = vmatprep.mubr.bf16.mxu0 0
      %1234 = vmatmul.mubr.bf16.gmra.mxu0 %v727
      %v1235 = vpop.f32.mrf.mxu0
      %v1236 = vadd.f32 0.0, %v1235
      %v1237 = vpop.f32.mrf.mxu0
      %v1238 = vpop.f32.mrf.mxu0
      %v1239 = vadd.f32 0.0, %v1238
      %v1240 = vpop.f32.mrf.mxu0
      %1241 = vdwg.mxu0
      %v1242 = vpack.c.bf16 %v927, %v923
      %v1243 = vpack.c.bf16 %v929, %v925
      %v1244 = vpack.c.bf16 %v1119, %v1116
      %v1245 = vpack.c.bf16 %v937, %v933
      %v1246 = vpack.c.bf16 %v939, %v935
      %v1247 = vpack.c.bf16 %v1127, %v1124
      %v1248 = vpack.c.bf16 %v947, %v943
      %v1249 = vpack.c.bf16 %v949, %v945
      %v1250 = vpack.c.bf16 %v1135, %v1132
      %v1251 = vpack.c.bf16 %v957, %v953
      %v1252 = vpack.c.bf16 %v959, %v955
      %v1253 = vpack.c.bf16 %v1143, %v1140
      %v1254 = vpack.c.bf16 %v967, %v963
      %v1255 = vpack.c.bf16 %v969, %v965
      %v1256 = vpack.c.bf16 %v1151, %v1148
      %v1257 = vpack.c.bf16 %v977, %v973
      %v1258 = vpack.c.bf16 %v979, %v975
      %v1259 = vpack.c.bf16 %v1159, %v1156
      %v1260 = vpack.c.bf16 %v987, %v983
      %v1261 = vpack.c.bf16 %v989, %v985
      %v1262 = vpack.c.bf16 %v1167, %v1164
      %v1263 = vpack.c.bf16 %v997, %v993
      %v1264 = vpack.c.bf16 %v999, %v995
      %v1265 = vpack.c.bf16 %v1175, %v1172
      %v1266 = vpack.c.bf16 %v1007, %v1003
      %v1267 = vpack.c.bf16 %v1009, %v1005
      %v1268 = vpack.c.bf16 %v1183, %v1180
      %v1269 = vpack.c.bf16 %v1017, %v1013
      %v1270 = vpack.c.bf16 %v1019, %v1015
      %v1271 = vpack.c.bf16 %v1191, %v1188
      %v1272 = vpack.c.bf16 %v1027, %v1023
      %v1273 = vpack.c.bf16 %v1029, %v1025
      %v1274 = vpack.c.bf16 %v1199, %v1196
      %v1275 = vpack.c.bf16 %v1037, %v1033
      %v1276 = vpack.c.bf16 %v1039, %v1035
      %v1277 = vpack.c.bf16 %v1207, %v1204
      %v1278 = vpack.c.bf16 %v1047, %v1043
      %v1279 = vpack.c.bf16 %v1049, %v1045
      %v1280 = vpack.c.bf16 %v1215, %v1212
      %v1281 = vpack.c.bf16 %v1057, %v1053
      %v1282 = vpack.c.bf16 %v1059, %v1055
      %v1283 = vpack.c.bf16 %v1223, %v1220
      %v1284 = vpack.c.bf16 %v1067, %v1063
      %v1285 = vpack.c.bf16 %v1069, %v1065
      %v1286 = vpack.c.bf16 %v1231, %v1228
      %v1287 = vpack.c.bf16 %v1077, %v1073
      %v1288 = vpack.c.bf16 %v1079, %v1075
      %v1289 = vpack.c.bf16 %v1239, %v1236
      %v1338 = vunpack.c.l.b16 %v1242
      %v1339 = vunpack.c.l.b16 %v1243
      %v1340 = vunpack.c.l.b16 %v1244
      %v1341 = vunpack.c.h.b16 %v1242
      %v1342 = vunpack.c.h.b16 %v1243
      %v1343 = vunpack.c.h.b16 %v1244
      %v1344 = vunpack.c.l.b16 %v1245
      %v1345 = vunpack.c.l.b16 %v1246
      %v1346 = vunpack.c.l.b16 %v1247
      %v1347 = vunpack.c.h.b16 %v1245
      %v1348 = vunpack.c.h.b16 %v1246
      %v1349 = vunpack.c.h.b16 %v1247
      %v1350 = vunpack.c.l.b16 %v1248
      %v1351 = vunpack.c.l.b16 %v1249
      %v1352 = vunpack.c.l.b16 %v1250
      %v1353 = vunpack.c.h.b16 %v1248
      %v1354 = vunpack.c.h.b16 %v1249
      %v1355 = vunpack.c.h.b16 %v1250
      %v1356 = vunpack.c.l.b16 %v1251
      %v1357 = vunpack.c.l.b16 %v1252
      %v1358 = vunpack.c.l.b16 %v1253
      %v1359 = vunpack.c.h.b16 %v1251
      %v1360 = vunpack.c.h.b16 %v1252
      %v1361 = vunpack.c.h.b16 %v1253
      %v1362 = vunpack.c.l.b16 %v1254
      %v1363 = vunpack.c.l.b16 %v1255
      %v1364 = vunpack.c.l.b16 %v1256
      %v1365 = vunpack.c.h.b16 %v1254
      %v1366 = vunpack.c.h.b16 %v1255
      %v1367 = vunpack.c.h.b16 %v1256
      %v1368 = vunpack.c.l.b16 %v1257
      %v1369 = vunpack.c.l.b16 %v1258
      %v1370 = vunpack.c.l.b16 %v1259
      %v1371 = vunpack.c.h.b16 %v1257
      %v1372 = vunpack.c.h.b16 %v1258
      %v1373 = vunpack.c.h.b16 %v1259
      %v1374 = vunpack.c.l.b16 %v1260
      %v1375 = vunpack.c.l.b16 %v1261
      %v1376 = vunpack.c.l.b16 %v1262
      %v1377 = vunpack.c.h.b16 %v1260
      %v1378 = vunpack.c.h.b16 %v1261
      %v1379 = vunpack.c.h.b16 %v1262
      %v1380 = vunpack.c.l.b16 %v1263
      %v1381 = vunpack.c.l.b16 %v1264
      %v1382 = vunpack.c.l.b16 %v1265
      %v1383 = vunpack.c.h.b16 %v1263
      %v1384 = vunpack.c.h.b16 %v1264
      %v1385 = vunpack.c.h.b16 %v1265
      %v1386 = vunpack.c.l.b16 %v1266
      %v1387 = vunpack.c.l.b16 %v1267
      %v1388 = vunpack.c.l.b16 %v1268
      %v1389 = vunpack.c.h.b16 %v1266
      %v1390 = vunpack.c.h.b16 %v1267
      %v1391 = vunpack.c.h.b16 %v1268
      %v1392 = vunpack.c.l.b16 %v1269
      %v1393 = vunpack.c.l.b16 %v1270
      %v1394 = vunpack.c.l.b16 %v1271
      %v1395 = vunpack.c.h.b16 %v1269
      %v1396 = vunpack.c.h.b16 %v1270
      %v1397 = vunpack.c.h.b16 %v1271
      %v1398 = vunpack.c.l.b16 %v1272
      %v1399 = vunpack.c.l.b16 %v1273
      %v1400 = vunpack.c.l.b16 %v1274
      %v1401 = vunpack.c.h.b16 %v1272
      %v1402 = vunpack.c.h.b16 %v1273
      %v1403 = vunpack.c.h.b16 %v1274
      %v1404 = vunpack.c.l.b16 %v1275
      %v1405 = vunpack.c.l.b16 %v1276
      %v1406 = vunpack.c.l.b16 %v1277
      %v1407 = vunpack.c.h.b16 %v1275
      %v1408 = vunpack.c.h.b16 %v1276
      %v1409 = vunpack.c.h.b16 %v1277
      %v1410 = vunpack.c.l.b16 %v1278
      %v1411 = vunpack.c.l.b16 %v1279
      %v1412 = vunpack.c.l.b16 %v1280
      %v1413 = vunpack.c.h.b16 %v1278
      %v1414 = vunpack.c.h.b16 %v1279
      %v1415 = vunpack.c.h.b16 %v1280
      %v1416 = vunpack.c.l.b16 %v1281
      %v1417 = vunpack.c.l.b16 %v1282
      %v1418 = vunpack.c.l.b16 %v1283
      %v1419 = vunpack.c.h.b16 %v1281
      %v1420 = vunpack.c.h.b16 %v1282
      %v1421 = vunpack.c.h.b16 %v1283
      %v1422 = vunpack.c.l.b16 %v1284
      %v1423 = vunpack.c.l.b16 %v1285
      %v1424 = vunpack.c.l.b16 %v1286
      %v1425 = vunpack.c.h.b16 %v1284
      %v1426 = vunpack.c.h.b16 %v1285
      %v1427 = vunpack.c.h.b16 %v1286
      %v1428 = vunpack.c.l.b16 %v1287
      %v1429 = vunpack.c.l.b16 %v1288
      %v1430 = vunpack.c.l.b16 %v1289
      %v1431 = vunpack.c.h.b16 %v1287
      %v1432 = vunpack.c.h.b16 %v1288
      %v1433 = vunpack.c.h.b16 %v1289
      %v1434 = vpack.c.b16 %v1339, %v1338
      %v1435 = vpack.c.b16 %v1340, %v1340
      %v1436 = vpack.c.b16 %v1342, %v1341
      %v1437 = vpack.c.b16 %v1343, %v1343
      %v1438 = vpack.c.b16 %v1345, %v1344
      %v1439 = vpack.c.b16 %v1346, %v1346
      %v1440 = vpack.c.b16 %v1348, %v1347
      %v1441 = vpack.c.b16 %v1349, %v1349
      %v1442 = vpack.c.b16 %v1351, %v1350
      %v1443 = vpack.c.b16 %v1352, %v1352
      %v1444 = vpack.c.b16 %v1354, %v1353
      %v1445 = vpack.c.b16 %v1355, %v1355
      %v1446 = vpack.c.b16 %v1357, %v1356
      %v1447 = vpack.c.b16 %v1358, %v1358
      %v1448 = vpack.c.b16 %v1360, %v1359
      %v1449 = vpack.c.b16 %v1361, %v1361
      %v1450 = vpack.c.b16 %v1363, %v1362
      %v1451 = vpack.c.b16 %v1364, %v1364
      %v1452 = vpack.c.b16 %v1366, %v1365
      %v1453 = vpack.c.b16 %v1367, %v1367
      %v1454 = vpack.c.b16 %v1369, %v1368
      %v1455 = vpack.c.b16 %v1370, %v1370
      %v1456 = vpack.c.b16 %v1372, %v1371
      %v1457 = vpack.c.b16 %v1373, %v1373
      %v1458 = vpack.c.b16 %v1375, %v1374
      %v1459 = vpack.c.b16 %v1376, %v1376
      %v1460 = vpack.c.b16 %v1378, %v1377
      %v1461 = vpack.c.b16 %v1379, %v1379
      %v1462 = vpack.c.b16 %v1381, %v1380
      %v1463 = vpack.c.b16 %v1382, %v1382
      %v1464 = vpack.c.b16 %v1384, %v1383
      %v1465 = vpack.c.b16 %v1385, %v1385
      %v1466 = vpack.c.b16 %v1387, %v1386
      %v1467 = vpack.c.b16 %v1388, %v1388
      %v1468 = vpack.c.b16 %v1390, %v1389
      %v1469 = vpack.c.b16 %v1391, %v1391
      %v1470 = vpack.c.b16 %v1393, %v1392
      %v1471 = vpack.c.b16 %v1394, %v1394
      %v1472 = vpack.c.b16 %v1396, %v1395
      %v1473 = vpack.c.b16 %v1397, %v1397
      %v1474 = vpack.c.b16 %v1399, %v1398
      %v1475 = vpack.c.b16 %v1400, %v1400
      %v1476 = vpack.c.b16 %v1402, %v1401
      %v1477 = vpack.c.b16 %v1403, %v1403
      %v1478 = vpack.c.b16 %v1405, %v1404
      %v1479 = vpack.c.b16 %v1406, %v1406
      %v1480 = vpack.c.b16 %v1408, %v1407
      %v1481 = vpack.c.b16 %v1409, %v1409
      %v1482 = vpack.c.b16 %v1411, %v1410
      %v1483 = vpack.c.b16 %v1412, %v1412
      %v1484 = vpack.c.b16 %v1414, %v1413
      %v1485 = vpack.c.b16 %v1415, %v1415
      %v1486 = vpack.c.b16 %v1417, %v1416
      %v1487 = vpack.c.b16 %v1418, %v1418
      %v1488 = vpack.c.b16 %v1420, %v1419
      %v1489 = vpack.c.b16 %v1421, %v1421
      %v1490 = vpack.c.b16 %v1423, %v1422
      %v1491 = vpack.c.b16 %v1424, %v1424
      %v1492 = vpack.c.b16 %v1426, %v1425
      %v1493 = vpack.c.b16 %v1427, %v1427
      %v1494 = vpack.c.b16 %v1429, %v1428
      %v1495 = vpack.c.b16 %v1430, %v1430
      %v1496 = vpack.c.b16 %v1432, %v1431
      %v1497 = vpack.c.b16 %v1433, %v1433
      %1562 = vst [vmem:[%s245] sm:$0xff] %v1434
      %1563 = vst [vmem:[%s245 + $0x8] sm:$0xf] %v1435
      %1564 = vst [vmem:[%s245 + $0xc] sm:$0xff] %v1436
      %1565 = vst [vmem:[%s245 + $0x14] sm:$0xf] %v1437
      %1566 = vst [vmem:[%s245 + $0x18] sm:$0xff] %v1438
      %1567 = vst [vmem:[%s245 + $0x20] sm:$0xf] %v1439
      %1568 = vst [vmem:[%s245 + $0x24] sm:$0xff] %v1440
      %1569 = vst [vmem:[%s245 + $0x2c] sm:$0xf] %v1441
      %1570 = vst [vmem:[%s245 + $0x30] sm:$0xff] %v1442
      %1571 = vst [vmem:[%s245 + $0x38] sm:$0xf] %v1443
      %1572 = vst [vmem:[%s245 + $0x3c] sm:$0xff] %v1444
      %1573 = vst [vmem:[%s245 + $0x44] sm:$0xf] %v1445
      %1574 = vst [vmem:[%s245 + $0x48] sm:$0xff] %v1446
      %1575 = vst [vmem:[%s245 + $0x50] sm:$0xf] %v1447
      %1576 = vst [vmem:[%s245 + $0x54] sm:$0xff] %v1448
      %1577 = vst [vmem:[%s245 + $0x5c] sm:$0xf] %v1449
      %1578 = vst [vmem:[%s245 + $0x60] sm:$0xff] %v1450
      %1579 = vst [vmem:[%s245 + $0x68] sm:$0xf] %v1451
      %1580 = vst [vmem:[%s245 + $0x6c] sm:$0xff] %v1452
      %1581 = vst [vmem:[%s245 + $0x74] sm:$0xf] %v1453
      %1582 = vst [vmem:[%s245 + $0x78] sm:$0xff] %v1454
      %1583 = vst [vmem:[%s245 + $0x80] sm:$0xf] %v1455
      %1584 = vst [vmem:[%s245 + $0x84] sm:$0xff] %v1456
      %1585 = vst [vmem:[%s245 + $0x8c] sm:$0xf] %v1457
      %1586 = vst [vmem:[%s245 + $0x90] sm:$0xff] %v1458
      %1587 = vst [vmem:[%s245 + $0x98] sm:$0xf] %v1459
      %1588 = vst [vmem:[%s245 + $0x9c] sm:$0xff] %v1460
      %1589 = vst [vmem:[%s245 + $0xa4] sm:$0xf] %v1461
      %1590 = vst [vmem:[%s245 + $0xa8] sm:$0xff] %v1462
      %1591 = vst [vmem:[%s245 + $0xb0] sm:$0xf] %v1463
      %1592 = vst [vmem:[%s245 + $0xb4] sm:$0xff] %v1464
      %1593 = vst [vmem:[%s245 + $0xbc] sm:$0xf] %v1465
      %1594 = vst [vmem:[%s245 + $0xc0] sm:$0xff] %v1466
      %1595 = vst [vmem:[%s245 + $0xc8] sm:$0xf] %v1467
      %1596 = vst [vmem:[%s245 + $0xcc] sm:$0xff] %v1468
      %1597 = vst [vmem:[%s245 + $0xd4] sm:$0xf] %v1469
      %1598 = vst [vmem:[%s245 + $0xd8] sm:$0xff] %v1470
      %1599 = vst [vmem:[%s245 + $0xe0] sm:$0xf] %v1471
      %1600 = vst [vmem:[%s245 + $0xe4] sm:$0xff] %v1472
      %1601 = vst [vmem:[%s245 + $0xec] sm:$0xf] %v1473
      %1602 = vst [vmem:[%s245 + $0xf0] sm:$0xff] %v1474
      %1603 = vst [vmem:[%s245 + $0xf8] sm:$0xf] %v1475
      %1604 = vst [vmem:[%s245 + $0xfc] sm:$0xff] %v1476
      %1605 = vst [vmem:[%s245 + $0x104] sm:$0xf] %v1477
      %1606 = vst [vmem:[%s245 + $0x108] sm:$0xff] %v1478
      %1607 = vst [vmem:[%s245 + $0x110] sm:$0xf] %v1479
      %1608 = vst [vmem:[%s245 + $0x114] sm:$0xff] %v1480
      %1609 = vst [vmem:[%s245 + $0x11c] sm:$0xf] %v1481
      %1610 = vst [vmem:[%s245 + $0x120] sm:$0xff] %v1482
      %1611 = vst [vmem:[%s245 + $0x128] sm:$0xf] %v1483
      %1612 = vst [vmem:[%s245 + $0x12c] sm:$0xff] %v1484
      %1613 = vst [vmem:[%s245 + $0x134] sm:$0xf] %v1485
      %1614 = vst [vmem:[%s245 + $0x138] sm:$0xff] %v1486
      %1615 = vst [vmem:[%s245 + $0x140] sm:$0xf] %v1487
      %1616 = vst [vmem:[%s245 + $0x144] sm:$0xff] %v1488
      %1617 = vst [vmem:[%s245 + $0x14c] sm:$0xf] %v1489
      %1618 = vst [vmem:[%s245 + $0x150] sm:$0xff] %v1490
      %1619 = vst [vmem:[%s245 + $0x158] sm:$0xf] %v1491
      %1620 = vst [vmem:[%s245 + $0x15c] sm:$0xff] %v1492
      %1621 = vst [vmem:[%s245 + $0x164] sm:$0xf] %v1493
      %1622 = vst [vmem:[%s245 + $0x168] sm:$0xff] %v1494
      %1623 = vst [vmem:[%s245 + $0x170] sm:$0xf] %v1495
      %1624 = vst [vmem:[%s245 + $0x174] sm:$0xff] %v1496
      %1625 = vst [vmem:[%s245 + $0x17c] sm:$0xf] %v1497
      %s1626 = smul.u32 32, %s19
      %s1627 = smul.u32 3, %s20
      %p1628 = scmp.lt.s32.totalorder %s1626, 63
      %s1629 = scalar_select %p1628, %s1626, 63
      %p1630 = scmp.lt.s32.totalorder %s1627, 2
      %s1631 = scalar_select %p1630, %s1627, 2
      %s1632 = smul.addr %s1629, 3
      %s1633 = sadd.s32 %s1631, %s1632
      %s1634 = smul.addr %s1633, 4
      %s1635 = scalar_lea.vmem %s4, %s1634
      // Predicated region
      $region37: #{_lambda_.7} parent=35 // pred_check
        %p1636 = pneg %p141
      $region38: #{_lambda_.7} parent=35 // pred_check_branch
        %1638 = sbr.rel (%p1636) target = $region40
      $region39: #{_lambda_.7} parent=35 // pred_region
        %s1639 = smul.u32 32, %s19
        %s1640 = smul.u32 3, %s20
      $region40: #{_lambda_.7} parent=35 // pred_fallthru
        _
    $region36: #{_lambda_.7} parent=5 // pred_fallthru
      _
    %p1641 = scmp.le.s32.totalorder 2, %s10
    // Predicated region
    $region41: #{_lambda_.7} parent=5 // pred_check
      %p1642 = pneg %p1641
    $region42: #{_lambda_.7} parent=5 // pred_check_branch
      %1644 = sbr.rel (%p1642) target = $region44
    $region43: #{_lambda_.7} parent=5 // pred_region
      %s1645 = ssub.s32 %s10, 2
      // Predicated region
      $region45: #{_lambda_.7} parent=43 // pred_check
        %p1646 = pneg %p147
      $region46: #{_lambda_.7} parent=43 // pred_check_branch
        %1648 = sbr.rel (%p1646) target = $region48
      $region47: #{_lambda_.7} parent=43 // pred_region
        %s1649 = smul.u32 32, %s21
        %s1650 = smul.u32 3, %s22
        %p1651 = scmp.lt.s32.totalorder %s1649, 63
        %s1652 = scalar_select %p1651, %s1649, 63
        %p1653 = scmp.lt.s32.totalorder %s1650, 2
        %s1654 = scalar_select %p1653, %s1650, 2
        %s1655 = smul.addr %s1652, 3
        %s1656 = sadd.s32 %s1654, %s1655
        %s1657 = smul.addr %s1656, 4
        %s1658 = scalar_lea.vmem %s4, %s1657
      $region48: #{_lambda_.7} parent=43 // pred_fallthru
        _
    $region44: #{_lambda_.7} parent=5 // pred_fallthru
      _
  $region6: #{_lambda_.7} parent=0 // loop_footer
    %s14 = sadd.s32 1, %s10
  $region7: #{_lambda_.7} parent=0 // loop_footer_branch
    %9 = sbr.rel target = $region3
  $region8: #{_lambda_.7} parent=0 // loop_exit
    _

// kernel: _lambda_.6
$region0: #{_lambda_.6}
  #allocation0 [shape = 'u32[]', space=smem, size = 0x4, offset = 0x4, fixed_abs, tag = 'smem constant byte address 0x4 - core index']
  #allocation1 [shape = 'u32[144,128]{1,0:T(1,128)}', space=vmem, size = 0x12000, scoped, tag = 'internal scratch']
  %s0 = inlined_call_operand.vmem [shape: bf16[2,18,18,128], index: 0, kind: input, shape index: {}]
  %s1 = inlined_call_operand.vmem [shape: f32[9,128], index: 1, kind: input, shape index: {}]
  %s2 = inlined_call_operand.vmem [shape: f32[2,16,16,128], index: 2, kind: input, shape index: {}]
  %s3 = inlined_call_operand.vmem [shape: f32[2,16,16,128], index: 3, kind: output, shape index: {}]
  %s4 = sld [smem:[#allocation0]]
  $region45: #{_lambda_.6} parent=0
    _
  %s6 = ssub.s32 1, %s4
  %s7 = scalar_select 0, %s6, %s4
  loop: start=0, step=1, limit=4
  $region2: #{_lambda_.6} parent=0 // loop_pre_header
    _
  $region3: #{_lambda_.6} parent=0 // loop_header
    %s9 = sphi 0, %s13
    %p10 = scmp.ge.s32.totalorder %s9, 4
    %s19 = sphi 0, %s21
    %s22 = sphi 0, %s19
    %s23 = sphi 0, %s22
    %s39 = sphi 0, %s23
    %s43 = sphi 0, %s43
    %s45 = sphi 0, %s43
    %s46 = sphi 0, %s45
    %s60 = sphi 0, %s46
    %s66 = sphi 0, %s68
    %s69 = sphi 0, %s66
    %s70 = sphi 0, %s69
    %s86 = sphi 0, %s70
    %s92 = sphi 0, %s94
    %s95 = sphi 0, %s92
    %s96 = sphi 0, %s95
    %s112 = sphi 0, %s96
  $region4: #{_lambda_.6} parent=0 // loop_header_branch
    %12 = sbr.rel (%p10) target = $region8
  $region5: #{_lambda_.6} parent=0 // loop_body
    %s14 = ssub.s32 %s9, 1
    %s15 = ssub.s32 %s9, 2
    %s16 = sadd.s32 %s9, 1
    %s17 = ssub.s32 %s9, %s16
    %p18 = scmp.eq.s32.totalorder %s17, 0
    %s20 = sadd.s32 %s19, 1
    %s21 = scalar_select %p18, %s19, %s20
    %p24 = pneg %p18
    %p25 = scmp.eq.s32.totalorder %s9, 1
    %p26 = por %p24, %p25
    %p27 = scmp.ne.s32.totalorder %s19, %s22
    %p28 = scmp.eq.s32.totalorder %s9, 0
    %p29 = por %p27, %p28
    %p30 = scmp.ne.s32.totalorder %s19, %s22
    %p31 = scmp.eq.s32.totalorder %s14, 1
    %p32 = por %p30, %p31
    %p33 = scmp.ne.s32.totalorder %s22, %s23
    %p34 = scmp.eq.s32.totalorder %s14, 0
    %p35 = por %p33, %p34
    %p36 = scmp.ne.s32.totalorder %s22, %s23
    %p37 = scmp.eq.s32.totalorder %s15, 1
    %p38 = por %p36, %p37
    %p40 = scmp.ne.s32.totalorder %s23, %s39
    %p41 = scmp.eq.s32.totalorder %s15, 0
    %p42 = por %p40, %p41
    %s44 = sadd.s32 %s43, 1
    %p47 = scmp.eq.s32.totalorder %s9, 1
    %p48 = scmp.ne.s32.totalorder %s43, %s45
    %p49 = scmp.eq.s32.totalorder %s9, 0
    %p50 = por %p48, %p49
    %p51 = scmp.ne.s32.totalorder %s43, %s45
    %p52 = scmp.eq.s32.totalorder %s14, 1
    %p53 = por %p51, %p52
    %p54 = scmp.ne.s32.totalorder %s45, %s46
    %p55 = scmp.eq.s32.totalorder %s14, 0
    %p56 = por %p54, %p55
    %p57 = scmp.ne.s32.totalorder %s45, %s46
    %p58 = scmp.eq.s32.totalorder %s15, 1
    %p59 = por %p57, %p58
    %p61 = scmp.ne.s32.totalorder %s46, %s60
    %p62 = scmp.eq.s32.totalorder %s15, 0
    %p63 = por %p61, %p62
    %s64 = ssub.s32 %s9, %s16
    %p65 = scmp.eq.s32.totalorder %s64, 0
    %s67 = sadd.s32 %s66, 1
    %s68 = scalar_select %p65, %s66, %s67
    %p71 = pneg %p65
    %p72 = scmp.eq.s32.totalorder %s9, 1
    %p73 = por %p71, %p72
    %p74 = scmp.ne.s32.totalorder %s66, %s69
    %p75 = scmp.eq.s32.totalorder %s9, 0
    %p76 = por %p74, %p75
    %p77 = scmp.ne.s32.totalorder %s66, %s69
    %p78 = scmp.eq.s32.totalorder %s14, 1
    %p79 = por %p77, %p78
    %p80 = scmp.ne.s32.totalorder %s69, %s70
    %p81 = scmp.eq.s32.totalorder %s14, 0
    %p82 = por %p80, %p81
    %p83 = scmp.ne.s32.totalorder %s69, %s70
    %p84 = scmp.eq.s32.totalorder %s15, 1
    %p85 = por %p83, %p84
    %p87 = scmp.ne.s32.totalorder %s70, %s86
    %p88 = scmp.eq.s32.totalorder %s15, 0
    %p89 = por %p87, %p88
    %s90 = ssub.s32 %s9, %s16
    %p91 = scmp.eq.s32.totalorder %s90, 0
    %s93 = sadd.s32 %s92, 1
    %s94 = scalar_select %p91, %s92, %s93
    %p97 = pneg %p91
    %p98 = scmp.eq.s32.totalorder %s9, 1
    %p99 = por %p97, %p98
    %p100 = scmp.ne.s32.totalorder %s92, %s95
    %p101 = scmp.eq.s32.totalorder %s9, 0
    %p102 = por %p100, %p101
    %p103 = scmp.ne.s32.totalorder %s92, %s95
    %p104 = scmp.eq.s32.totalorder %s14, 1
    %p105 = por %p103, %p104
    %p106 = scmp.ne.s32.totalorder %s95, %s96
    %p107 = scmp.eq.s32.totalorder %s14, 0
    %p108 = por %p106, %p107
    %p109 = scmp.ne.s32.totalorder %s95, %s96
    %p110 = scmp.eq.s32.totalorder %s15, 1
    %p111 = por %p109, %p110
    %p113 = scmp.ne.s32.totalorder %s96, %s112
    %p114 = scmp.eq.s32.totalorder %s15, 0
    %p115 = por %p113, %p114
    %p116 = scmp.le.s32.totalorder 1, %s9
    %p117 = scmp.lt.s32.totalorder %s9, 3
    %p118 = pnand %p116, %p117
    %p119 = pneg %p118
    // Predicated region
    $region9: #{_lambda_.6} parent=5 // pred_check
      _
    $region10: #{_lambda_.6} parent=5 // pred_check_branch
      %121 = sbr.rel (%p118) target = $region12
    $region11: #{_lambda_.6} parent=5 // pred_region
      %s122 = ssub.s32 %s9, 1
      // Predicated region
      $region13: #{_lambda_.6} parent=11 // pred_check
        %p123 = pneg %p56
      $region14: #{_lambda_.6} parent=11 // pred_check_branch
        %125 = sbr.rel (%p123) target = $region16
      $region15: #{_lambda_.6} parent=11 // pred_region
        _
      $region16: #{_lambda_.6} parent=11 // pred_fallthru
        _
    $region12: #{_lambda_.6} parent=5 // pred_fallthru
      _
    %p126 = scmp.lt.s32.totalorder %s9, 2
    // Predicated region
    $region17: #{_lambda_.6} parent=5 // pred_check
      %p127 = pneg %p126
    $region18: #{_lambda_.6} parent=5 // pred_check_branch
      %129 = sbr.rel (%p127) target = $region20
    $region19: #{_lambda_.6} parent=5 // pred_region
      // Predicated region
      $region21: #{_lambda_.6} parent=19 // pred_check
        %p130 = pneg %p29
      $region22: #{_lambda_.6} parent=19 // pred_check_branch
        %132 = sbr.rel (%p130) target = $region24
      $region23: #{_lambda_.6} parent=19 // pred_region
        %p133 = scmp.lt.s32.totalorder %s9, 1
        %s134 = scalar_select %p133, %s9, 1
        %s135 = smul.addr %s134, 54
        %s136 = smul.addr %s135, 4
        %s137 = scalar_lea.vmem %s0, %s136
      $region24: #{_lambda_.6} parent=19 // pred_fallthru
        _
      // Predicated region
      $region25: #{_lambda_.6} parent=19 // pred_check
        %p138 = pneg %p76
      $region26: #{_lambda_.6} parent=19 // pred_check_branch
        %140 = sbr.rel (%p138) target = $region28
      $region27: #{_lambda_.6} parent=19 // pred_region
        %p141 = scmp.lt.s32.totalorder %s9, 1
        %s142 = scalar_select %p141, %s9, 1
        %s143 = smul.addr %s142, 32
        %s144 = smul.addr %s143, 8
        %s145 = scalar_lea.vmem %s2, %s144
      $region28: #{_lambda_.6} parent=19 // pred_fallthru
        _
    $region20: #{_lambda_.6} parent=5 // pred_fallthru
      _
    %p146 = scmp.le.s32.totalorder 1, %s9
    %p147 = scmp.lt.s32.totalorder %s9, 3
    %p148 = pnand %p146, %p147
    %p149 = pneg %p148
    // Predicated region
    $region29: #{_lambda_.6} parent=5 // pred_check
      _
    $region30: #{_lambda_.6} parent=5 // pred_check_branch
      %151 = sbr.rel (%p148) target = $region32
    $region31: #{_lambda_.6} parent=5 // pred_region
      %s152 = ssub.s32 %s9, 1
      %p153 = scmp.lt.s32.totalorder %s14, 1
      %s154 = scalar_select %p153, %s14, 1
      %s155 = smul.addr %s154, 54
      %s156 = smul.addr %s155, 4
      %s157 = scalar_lea.vmem %s0, %s156
      %p158 = pneg %p35
      %p159 = pneg %p32
      %p160 = pneg %p56
      %p161 = pneg %p53
      %p162 = scmp.lt.s32.totalorder %s14, 1
      %s163 = scalar_select %p162, %s14, 1
      %s164 = smul.addr %s163, 32
      %s165 = smul.addr %s164, 8
      %s166 = scalar_lea.vmem %s2, %s165
      %p167 = pneg %p82
      %p168 = pneg %p79
      %p169 = pneg %p108
      %p170 = pneg %p105
      %p171 = scmp.lt.s32.totalorder %s14, 1
      %s172 = scalar_select %p171, %s14, 1
      %s173 = smul.addr %s172, 32
      %s174 = smul.addr %s173, 8
      %s175 = scalar_lea.vmem %s3, %s174
      %p176 = scmp.lt.s32.totalorder %s14, 1
      %s177 = scalar_select %p176, %s14, 1
      %s178 = smul.addr %s177, 54
      %s179 = smul.addr %s178, 4
      %s180 = scalar_lea.vmem %s0, %s179
      %p181 = scmp.lt.s32.totalorder %s14, 1
      %s182 = scalar_select %p181, %s14, 1
      %s183 = smul.addr %s182, 32
      %s184 = smul.addr %s183, 8
      %s185 = scalar_lea.vmem %s2, %s184
      %p186 = scmp.lt.s32.totalorder %s14, 1
      %s187 = scalar_select %p186, %s14, 1
      %s188 = smul.addr %s187, 32
      %s189 = smul.addr %s188, 8
      %s190 = scalar_lea.vmem %s3, %s189
      %v191 = vld [vmem:[%s180] sm:$0xf]
      %v192 = vld [vmem:[%s180 + $0x4] sm:$0xf]
      %v193 = vld [vmem:[%s180 + $0x8] sm:$0x1]
      %v194 = vld [vmem:[%s180 + $0xc] sm:$0xf]
      %v195 = vld [vmem:[%s180 + $0x10] sm:$0xf]
      %v196 = vld [vmem:[%s180 + $0x14] sm:$0x1]
      %v197 = vld [vmem:[%s180 + $0x18] sm:$0xf]
      %v198 = vld [vmem:[%s180 + $0x1c] sm:$0xf]
      %v199 = vld [vmem:[%s180 + $0x20] sm:$0x1]
      %v200 = vld [vmem:[%s180 + $0x24] sm:$0xf]
      %v201 = vld [vmem:[%s180 + $0x28] sm:$0xf]
      %v202 = vld [vmem:[%s180 + $0x2c] sm:$0x1]
      %v203 = vld [vmem:[%s180 + $0x30] sm:$0xf]
      %v204 = vld [vmem:[%s180 + $0x34] sm:$0xf]
      %v205 = vld [vmem:[%s180 + $0x38] sm:$0x1]
      %v206 = vld [vmem:[%s180 + $0x3c] sm:$0xf]
      %v207 = vld [vmem:[%s180 + $0x40] sm:$0xf]
      %v208 = vld [vmem:[%s180 + $0x44] sm:$0x1]
      %v209 = vld [vmem:[%s180 + $0x48] sm:$0xf]
      %v210 = vld [vmem:[%s180 + $0x4c] sm:$0xf]
      %v211 = vld [vmem:[%s180 + $0x50] sm:$0x1]
      %v212 = vld [vmem:[%s180 + $0x54] sm:$0xf]
      %v213 = vld [vmem:[%s180 + $0x58] sm:$0xf]
      %v214 = vld [vmem:[%s180 + $0x5c] sm:$0x1]
      %v215 = vld [vmem:[%s180 + $0x60] sm:$0xf]
      %v216 = vld [vmem:[%s180 + $0x64] sm:$0xf]
      %v217 = vld [vmem:[%s180 + $0x68] sm:$0x1]
      %v218 = vld [vmem:[%s180 + $0x6c] sm:$0xf]
      %v219 = vld [vmem:[%s180 + $0x70] sm:$0xf]
      %v220 = vld [vmem:[%s180 + $0x74] sm:$0x1]
      %v221 = vld [vmem:[%s180 + $0x78] sm:$0xf]
      %v222 = vld [vmem:[%s180 + $0x7c] sm:$0xf]
      %v223 = vld [vmem:[%s180 + $0x80] sm:$0x1]
      %v224 = vld [vmem:[%s180 + $0x84] sm:$0xf]
      %v225 = vld [vmem:[%s180 + $0x88] sm:$0xf]
      %v226 = vld [vmem:[%s180 + $0x8c] sm:$0x1]
      %v227 = vld [vmem:[%s180 + $0x90] sm:$0xf]
      %v228 = vld [vmem:[%s180 + $0x94] sm:$0xf]
      %v229 = vld [vmem:[%s180 + $0x98] sm:$0x1]
      %v230 = vld [vmem:[%s180 + $0x9c] sm:$0xf]
      %v231 = vld [vmem:[%s180 + $0xa0] sm:$0xf]
      %v232 = vld [vmem:[%s180 + $0xa4] sm:$0x1]
      %v233 = vld [vmem:[%s180 + $0xa8] sm:$0xf]
      %v234 = vld [vmem:[%s180 + $0xac] sm:$0xf]
      %v235 = vld [vmem:[%s180 + $0xb0] sm:$0x1]
      %v236 = vld [vmem:[%s180 + $0xb4] sm:$0xf]
      %v237 = vld [vmem:[%s180 + $0xb8] sm:$0xf]
      %v238 = vld [vmem:[%s180 + $0xbc] sm:$0x1]
      %v239 = vld [vmem:[%s180 + $0xc0] sm:$0xf]
      %v240 = vld [vmem:[%s180 + $0xc4] sm:$0xf]
      %v241 = vld [vmem:[%s180 + $0xc8] sm:$0x1]
      %v242 = vld [vmem:[%s180 + $0xcc] sm:$0xf]
      %v243 = vld [vmem:[%s180 + $0xd0] sm:$0xf]
      %v244 = vld [vmem:[%s180 + $0xd4] sm:$0x1]
      %v245 = vld [vmem:[%s1] sm:$0xff]
      %v246 = vld [vmem:[%s1 + $0x8] sm:$0x1]
      %v247 = vld [vmem:[%s185] sm:$0xff]
      %v248 = vld [vmem:[%s185 + $0x8] sm:$0xff]
      %v249 = vld [vmem:[%s185 + $0x10] sm:$0xff]
      %v250 = vld [vmem:[%s185 + $0x18] sm:$0xff]
      %v251 = vld [vmem:[%s185 + $0x20] sm:$0xff]
      %v252 = vld [vmem:[%s185 + $0x28] sm:$0xff]
      %v253 = vld [vmem:[%s185 + $0x30] sm:$0xff]
      %v254 = vld [vmem:[%s185 + $0x38] sm:$0xff]
      %v255 = vld [vmem:[%s185 + $0x40] sm:$0xff]
      %v256 = vld [vmem:[%s185 + $0x48] sm:$0xff]
      %v257 = vld [vmem:[%s185 + $0x50] sm:$0xff]
      %v258 = vld [vmem:[%s185 + $0x58] sm:$0xff]
      %v259 = vld [vmem:[%s185 + $0x60] sm:$0xff]
      %v260 = vld [vmem:[%s185 + $0x68] sm:$0xff]
      %v261 = vld [vmem:[%s185 + $0x70] sm:$0xff]
      %v262 = vld [vmem:[%s185 + $0x78] sm:$0xff]
      %v263 = vld [vmem:[%s185 + $0x80] sm:$0xff]
      %v264 = vld [vmem:[%s185 + $0x88] sm:$0xff]
      %v265 = vld [vmem:[%s185 + $0x90] sm:$0xff]
      %v266 = vld [vmem:[%s185 + $0x98] sm:$0xff]
      %v267 = vld [vmem:[%s185 + $0xa0] sm:$0xff]
      %v268 = vld [vmem:[%s185 + $0xa8] sm:$0xff]
      %v269 = vld [vmem:[%s185 + $0xb0] sm:$0xff]
      %v270 = vld [vmem:[%s185 + $0xb8] sm:$0xff]
      %v271 = vld [vmem:[%s185 + $0xc0] sm:$0xff]
      %v272 = vld [vmem:[%s185 + $0xc8] sm:$0xff]
      %v273 = vld [vmem:[%s185 + $0xd0] sm:$0xff]
      %v274 = vld [vmem:[%s185 + $0xd8] sm:$0xff]
      %v275 = vld [vmem:[%s185 + $0xe0] sm:$0xff]
      %v276 = vld [vmem:[%s185 + $0xe8] sm:$0xff]
      %v277 = vld [vmem:[%s185 + $0xf0] sm:$0xff]
      %v278 = vld [vmem:[%s185 + $0xf8] sm:$0xff]
      %v279 = vunpack.c.l.bf16 %v191
      %v280 = vunpack.c.l.bf16 %v192
      %v281 = vunpack.c.l.bf16 %v194
      %v282 = vunpack.c.l.bf16 %v195
      %v283 = vunpack.c.l.bf16 %v197
      %v284 = vunpack.c.l.bf16 %v198
      %v285 = vunpack.c.l.bf16 %v200
      %v286 = vunpack.c.l.bf16 %v201
      %v287 = vunpack.c.l.bf16 %v203
      %v288 = vunpack.c.l.bf16 %v204
      %v289 = vunpack.c.l.bf16 %v206
      %v290 = vunpack.c.l.bf16 %v207
      %v291 = vunpack.c.l.bf16 %v209
      %v292 = vunpack.c.l.bf16 %v210
      %v293 = vunpack.c.l.bf16 %v212
      %v294 = vunpack.c.l.bf16 %v213
      %v295 = vunpack.c.l.bf16 %v215
      %v296 = vunpack.c.l.bf16 %v216
      %v297 = vunpack.c.l.bf16 %v218
      %v298 = vunpack.c.l.bf16 %v219
      %v299 = vunpack.c.l.bf16 %v221
      %v300 = vunpack.c.l.bf16 %v222
      %v301 = vunpack.c.l.bf16 %v224
      %v302 = vunpack.c.l.bf16 %v225
      %v303 = vunpack.c.l.bf16 %v227
      %v304 = vunpack.c.l.bf16 %v228
      %v305 = vunpack.c.l.bf16 %v230
      %v306 = vunpack.c.l.bf16 %v231
      %v307 = vunpack.c.l.bf16 %v233
      %v308 = vunpack.c.l.bf16 %v234
      %v309 = vunpack.c.l.bf16 %v236
      %v310 = vunpack.c.l.bf16 %v237
      %v311 = vlaneseq
      %v312 = vshrl.u32 %v311, 7
      %v313 = vsub.s32 0, %v312
      %v314 = vrot.slane %v245, %v313
      %v315 = vmul.f32 %v279, %v314
      %v316 = vmul.f32 %v280, %v314
      %v317 = vmul.f32 %v281, %v314
      %v318 = vmul.f32 %v282, %v314
      %v319 = vmul.f32 %v283, %v314
      %v320 = vmul.f32 %v284, %v314
      %v321 = vmul.f32 %v285, %v314
      %v322 = vmul.f32 %v286, %v314
      %v323 = vmul.f32 %v287, %v314
      %v324 = vmul.f32 %v288, %v314
      %v325 = vmul.f32 %v289, %v314
      %v326 = vmul.f32 %v290, %v314
      %v327 = vmul.f32 %v291, %v314
      %v328 = vmul.f32 %v292, %v314
      %v329 = vmul.f32 %v293, %v314
      %v330 = vmul.f32 %v294, %v314
      %v331 = vmul.f32 %v295, %v314
      %v332 = vmul.f32 %v296, %v314
      %v333 = vmul.f32 %v297, %v314
      %v334 = vmul.f32 %v298, %v314
      %v335 = vmul.f32 %v299, %v314
      %v336 = vmul.f32 %v300, %v314
      %v337 = vmul.f32 %v301, %v314
      %v338 = vmul.f32 %v302, %v314
      %v339 = vmul.f32 %v303, %v314
      %v340 = vmul.f32 %v304, %v314
      %v341 = vmul.f32 %v305, %v314
      %v342 = vmul.f32 %v306, %v314
      %v343 = vmul.f32 %v307, %v314
      %v344 = vmul.f32 %v308, %v314
      %v345 = vmul.f32 %v309, %v314
      %v346 = vmul.f32 %v310, %v314
      %v347 = vadd.f32 %v247, %v315
      %v348 = vadd.f32 %v248, %v316
      %v349 = vadd.f32 %v249, %v317
      %v350 = vadd.f32 %v250, %v318
      %v351 = vadd.f32 %v251, %v319
      %v352 = vadd.f32 %v252, %v320
      %v353 = vadd.f32 %v253, %v321
      %v354 = vadd.f32 %v254, %v322
      %v355 = vadd.f32 %v255, %v323
      %v356 = vadd.f32 %v256, %v324
      %v357 = vadd.f32 %v257, %v325
      %v358 = vadd.f32 %v258, %v326
      %v359 = vadd.f32 %v259, %v327
      %v360 = vadd.f32 %v260, %v328
      %v361 = vadd.f32 %v261, %v329
      %v362 = vadd.f32 %v262, %v330
      %v363 = vadd.f32 %v263, %v331
      %v364 = vadd.f32 %v264, %v332
      %v365 = vadd.f32 %v265, %v333
      %v366 = vadd.f32 %v266, %v334
      %v367 = vadd.f32 %v267, %v335
      %v368 = vadd.f32 %v268, %v336
      %v369 = vadd.f32 %v269, %v337
      %v370 = vadd.f32 %v270, %v338
      %v371 = vadd.f32 %v271, %v339
      %v372 = vadd.f32 %v272, %v340
      %v373 = vadd.f32 %v273, %v341
      %v374 = vadd.f32 %v274, %v342
      %v375 = vadd.f32 %v275, %v343
      %v376 = vadd.f32 %v276, %v344
      %v377 = vadd.f32 %v277, %v345
      %v378 = vadd.f32 %v278, %v346
      %v379 = vunpack.c.l.bf16 %v193
      %v380 = vunpack.c.l.bf16 %v196
      %v381 = vunpack.c.l.bf16 %v199
      %v382 = vunpack.c.l.bf16 %v202
      %v383 = vunpack.c.l.bf16 %v205
      %v384 = vunpack.c.l.bf16 %v208
      %v385 = vunpack.c.l.bf16 %v211
      %v386 = vunpack.c.l.bf16 %v214
      %v387 = vunpack.c.l.bf16 %v217
      %v388 = vunpack.c.l.bf16 %v220
      %v389 = vunpack.c.l.bf16 %v223
      %v390 = vunpack.c.l.bf16 %v226
      %v391 = vunpack.c.l.bf16 %v229
      %v392 = vunpack.c.l.bf16 %v232
      %v393 = vunpack.c.l.bf16 %v235
      %v394 = vunpack.c.l.bf16 %v238
      %v395 = vlaneseq
      %v396 = vshrl.u32 %v395, 7
      %v397 = vsub.s32 1, %v396
      %v398 = vrot.slane %v245, %v397
      %v399 = vmul.f32 %v279, %v398
      %v400 = vmul.f32 %v280, %v398
      %v401 = vmul.f32 %v379, %v398
      %v402 = vmul.f32 %v281, %v398
      %v403 = vmul.f32 %v282, %v398
      %v404 = vmul.f32 %v380, %v398
      %v405 = vmul.f32 %v283, %v398
      %v406 = vmul.f32 %v284, %v398
      %v407 = vmul.f32 %v381, %v398
      %v408 = vmul.f32 %v285, %v398
      %v409 = vmul.f32 %v286, %v398
      %v410 = vmul.f32 %v382, %v398
      %v411 = vmul.f32 %v287, %v398
      %v412 = vmul.f32 %v288, %v398
      %v413 = vmul.f32 %v383, %v398
      %v414 = vmul.f32 %v289, %v398
      %v415 = vmul.f32 %v290, %v398
      %v416 = vmul.f32 %v384, %v398
      %v417 = vmul.f32 %v291, %v398
      %v418 = vmul.f32 %v292, %v398
      %v419 = vmul.f32 %v385, %v398
      %v420 = vmul.f32 %v293, %v398
      %v421 = vmul.f32 %v294, %v398
      %v422 = vmul.f32 %v386, %v398
      %v423 = vmul.f32 %v295, %v398
      %v424 = vmul.f32 %v296, %v398
      %v425 = vmul.f32 %v387, %v398
      %v426 = vmul.f32 %v297, %v398
      %v427 = vmul.f32 %v298, %v398
      %v428 = vmul.f32 %v388, %v398
      %v429 = vmul.f32 %v299, %v398
      %v430 = vmul.f32 %v300, %v398
      %v431 = vmul.f32 %v389, %v398
      %v432 = vmul.f32 %v301, %v398
      %v433 = vmul.f32 %v302, %v398
      %v434 = vmul.f32 %v390, %v398
      %v435 = vmul.f32 %v303, %v398
      %v436 = vmul.f32 %v304, %v398
      %v437 = vmul.f32 %v391, %v398
      %v438 = vmul.f32 %v305, %v398
      %v439 = vmul.f32 %v306, %v398
      %v440 = vmul.f32 %v392, %v398
      %v441 = vmul.f32 %v307, %v398
      %v442 = vmul.f32 %v308, %v398
      %v443 = vmul.f32 %v393, %v398
      %v444 = vmul.f32 %v309, %v398
      %v445 = vmul.f32 %v310, %v398
      %v446 = vmul.f32 %v394, %v398
      %vm495 = vcmask 1046528
      %v496 = vrot.slane %v399, 1
      %v497 = vrot.slane %v400, 1
      %v498 = vsel %vm495, %v496, %v497
      %v499 = vrot.slane %v401, 1
      %v500 = vsel %vm495, %v497, %v499
      %v501 = vrot.slane %v402, 1
      %v502 = vrot.slane %v403, 1
      %v503 = vsel %vm495, %v501, %v502
      %v504 = vrot.slane %v404, 1
      %v505 = vsel %vm495, %v502, %v504
      %v506 = vrot.slane %v405, 1
      %v507 = vrot.slane %v406, 1
      %v508 = vsel %vm495, %v506, %v507
      %v509 = vrot.slane %v407, 1
      %v510 = vsel %vm495, %v507, %v509
      %v511 = vrot.slane %v408, 1
      %v512 = vrot.slane %v409, 1
      %v513 = vsel %vm495, %v511, %v512
      %v514 = vrot.slane %v410, 1
      %v515 = vsel %vm495, %v512, %v514
      %v516 = vrot.slane %v411, 1
      %v517 = vrot.slane %v412, 1
      %v518 = vsel %vm495, %v516, %v517
      %v519 = vrot.slane %v413, 1
      %v520 = vsel %vm495, %v517, %v519
      %v521 = vrot.slane %v414, 1
      %v522 = vrot.slane %v415, 1
      %v523 = vsel %vm495, %v521, %v522
      %v524 = vrot.slane %v416, 1
      %v525 = vsel %vm495, %v522, %v524
      %v526 = vrot.slane %v417, 1
      %v527 = vrot.slane %v418, 1
      %v528 = vsel %vm495, %v526, %v527
      %v529 = vrot.slane %v419, 1
      %v530 = vsel %vm495, %v527, %v529
      %v531 = vrot.slane %v420, 1
      %v532 = vrot.slane %v421, 1
      %v533 = vsel %vm495, %v531, %v532
      %v534 = vrot.slane %v422, 1
      %v535 = vsel %vm495, %v532, %v534
      %v536 = vrot.slane %v423, 1
      %v537 = vrot.slane %v424, 1
      %v538 = vsel %vm495, %v536, %v537
      %v539 = vrot.slane %v425, 1
      %v540 = vsel %vm495, %v537, %v539
      %v541 = vrot.slane %v426, 1
      %v542 = vrot.slane %v427, 1
      %v543 = vsel %vm495, %v541, %v542
      %v544 = vrot.slane %v428, 1
      %v545 = vsel %vm495, %v542, %v544
      %v546 = vrot.slane %v429, 1
      %v547 = vrot.slane %v430, 1
      %v548 = vsel %vm495, %v546, %v547
      %v549 = vrot.slane %v431, 1
      %v550 = vsel %vm495, %v547, %v549
      %v551 = vrot.slane %v432, 1
      %v552 = vrot.slane %v433, 1
      %v553 = vsel %vm495, %v551, %v552
      %v554 = vrot.slane %v434, 1
      %v555 = vsel %vm495, %v552, %v554
      %v556 = vrot.slane %v435, 1
      %v557 = vrot.slane %v436, 1
      %v558 = vsel %vm495, %v556, %v557
      %v559 = vrot.slane %v437, 1
      %v560 = vsel %vm495, %v557, %v559
      %v561 = vrot.slane %v438, 1
      %v562 = vrot.slane %v439, 1
      %v563 = vsel %vm495, %v561, %v562
      %v564 = vrot.slane %v440, 1
      %v565 = vsel %vm495, %v562, %v564
      %v566 = vrot.slane %v441, 1
      %v567 = vrot.slane %v442, 1
      %v568 = vsel %vm495, %v566, %v567
      %v569 = vrot.slane %v443, 1
      %v570 = vsel %vm495, %v567, %v569
      %v571 = vrot.slane %v444, 1
      %v572 = vrot.slane %v445, 1
      %v573 = vsel %vm495, %v571, %v572
      %v574 = vrot.slane %v446, 1
      %v575 = vsel %vm495, %v572, %v574
      %v608 = vadd.f32 %v347, %v498
      %v609 = vadd.f32 %v348, %v500
      %v610 = vadd.f32 %v349, %v503
      %v611 = vadd.f32 %v350, %v505
      %v612 = vadd.f32 %v351, %v508
      %v613 = vadd.f32 %v352, %v510
      %v614 = vadd.f32 %v353, %v513
      %v615 = vadd.f32 %v354, %v515
      %v616 = vadd.f32 %v355, %v518
      %v617 = vadd.f32 %v356, %v520
      %v618 = vadd.f32 %v357, %v523
      %v619 = vadd.f32 %v358, %v525
      %v620 = vadd.f32 %v359, %v528
      %v621 = vadd.f32 %v360, %v530
      %v622 = vadd.f32 %v361, %v533
      %v623 = vadd.f32 %v362, %v535
      %v624 = vadd.f32 %v363, %v538
      %v625 = vadd.f32 %v364, %v540
      %v626 = vadd.f32 %v365, %v543
      %v627 = vadd.f32 %v366, %v545
      %v628 = vadd.f32 %v367, %v548
      %v629 = vadd.f32 %v368, %v550
      %v630 = vadd.f32 %v369, %v553
      %v631 = vadd.f32 %v370, %v555
      %v632 = vadd.f32 %v371, %v558
      %v633 = vadd.f32 %v372, %v560
      %v634 = vadd.f32 %v373, %v563
      %v635 = vadd.f32 %v374, %v565
      %v636 = vadd.f32 %v375, %v568
      %v637 = vadd.f32 %v376, %v570
      %v638 = vadd.f32 %v377, %v573
      %v639 = vadd.f32 %v378, %v575
      %v640 = vlaneseq
      %v641 = vshrl.u32 %v640, 7
      %v642 = vsub.s32 2, %v641
      %v643 = vrot.slane %v245, %v642
      %v644 = vmul.f32 %v279, %v643
      %v645 = vmul.f32 %v280, %v643
      %v646 = vmul.f32 %v379, %v643
      %v647 = vmul.f32 %v281, %v643
      %v648 = vmul.f32 %v282, %v643
      %v649 = vmul.f32 %v380, %v643
      %v650 = vmul.f32 %v283, %v643
      %v651 = vmul.f32 %v284, %v643
      %v652 = vmul.f32 %v381, %v643
      %v653 = vmul.f32 %v285, %v643
      %v654 = vmul.f32 %v286, %v643
      %v655 = vmul.f32 %v382, %v643
      %v656 = vmul.f32 %v287, %v643
      %v657 = vmul.f32 %v288, %v643
      %v658 = vmul.f32 %v383, %v643
      %v659 = vmul.f32 %v289, %v643
      %v660 = vmul.f32 %v290, %v643
      %v661 = vmul.f32 %v384, %v643
      %v662 = vmul.f32 %v291, %v643
      %v663 = vmul.f32 %v292, %v643
      %v664 = vmul.f32 %v385, %v643
      %v665 = vmul.f32 %v293, %v643
      %v666 = vmul.f32 %v294, %v643
      %v667 = vmul.f32 %v386, %v643
      %v668 = vmul.f32 %v295, %v643
      %v669 = vmul.f32 %v296, %v643
      %v670 = vmul.f32 %v387, %v643
      %v671 = vmul.f32 %v297, %v643
      %v672 = vmul.f32 %v298, %v643
      %v673 = vmul.f32 %v388, %v643
      %v674 = vmul.f32 %v299, %v643
      %v675 = vmul.f32 %v300, %v643
      %v676 = vmul.f32 %v389, %v643
      %v677 = vmul.f32 %v301, %v643
      %v678 = vmul.f32 %v302, %v643
      %v679 = vmul.f32 %v390, %v643
      %v680 = vmul.f32 %v303, %v643
      %v681 = vmul.f32 %v304, %v643
      %v682 = vmul.f32 %v391, %v643
      %v683 = vmul.f32 %v305, %v643
      %v684 = vmul.f32 %v306, %v643
      %v685 = vmul.f32 %v392, %v643
      %v686 = vmul.f32 %v307, %v643
      %v687 = vmul.f32 %v308, %v643
      %v688 = vmul.f32 %v393, %v643
      %v689 = vmul.f32 %v309, %v643
      %v690 = vmul.f32 %v310, %v643
      %v691 = vmul.f32 %v394, %v643
      %vm740 = vcmask 1045504
      %v741 = vrot.slane %v644, 2
      %v742 = vrot.slane %v645, 2
      %v743 = vsel %vm740, %v741, %v742
      %v744 = vrot.slane %v646, 2
      %v745 = vsel %vm740, %v742, %v744
      %v746 = vrot.slane %v647, 2
      %v747 = vrot.slane %v648, 2
      %v748 = vsel %vm740, %v746, %v747
      %v749 = vrot.slane %v649, 2
      %v750 = vsel %vm740, %v747, %v749
      %v751 = vrot.slane %v650, 2
      %v752 = vrot.slane %v651, 2
      %v753 = vsel %vm740, %v751, %v752
      %v754 = vrot.slane %v652, 2
      %v755 = vsel %vm740, %v752, %v754
      %v756 = vrot.slane %v653, 2
      %v757 = vrot.slane %v654, 2
      %v758 = vsel %vm740, %v756, %v757
      %v759 = vrot.slane %v655, 2
      %v760 = vsel %vm740, %v757, %v759
      %v761 = vrot.slane %v656, 2
      %v762 = vrot.slane %v657, 2
      %v763 = vsel %vm740, %v761, %v762
      %v764 = vrot.slane %v658, 2
      %v765 = vsel %vm740, %v762, %v764
      %v766 = vrot.slane %v659, 2
      %v767 = vrot.slane %v660, 2
      %v768 = vsel %vm740, %v766, %v767
      %v769 = vrot.slane %v661, 2
      %v770 = vsel %vm740, %v767, %v769
      %v771 = vrot.slane %v662, 2
      %v772 = vrot.slane %v663, 2
      %v773 = vsel %vm740, %v771, %v772
      %v774 = vrot.slane %v664, 2
      %v775 = vsel %vm740, %v772, %v774
      %v776 = vrot.slane %v665, 2
      %v777 = vrot.slane %v666, 2
      %v778 = vsel %vm740, %v776, %v777
      %v779 = vrot.slane %v667, 2
      %v780 = vsel %vm740, %v777, %v779
      %v781 = vrot.slane %v668, 2
      %v782 = vrot.slane %v669, 2
      %v783 = vsel %vm740, %v781, %v782
      %v784 = vrot.slane %v670, 2
      %v785 = vsel %vm740, %v782, %v784
      %v786 = vrot.slane %v671, 2
      %v787 = vrot.slane %v672, 2
      %v788 = vsel %vm740, %v786, %v787
      %v789 = vrot.slane %v673, 2
      %v790 = vsel %vm740, %v787, %v789
      %v791 = vrot.slane %v674, 2
      %v792 = vrot.slane %v675, 2
      %v793 = vsel %vm740, %v791, %v792
      %v794 = vrot.slane %v676, 2
      %v795 = vsel %vm740, %v792, %v794
      %v796 = vrot.slane %v677, 2
      %v797 = vrot.slane %v678, 2
      %v798 = vsel %vm740, %v796, %v797
      %v799 = vrot.slane %v679, 2
      %v800 = vsel %vm740, %v797, %v799
      %v801 = vrot.slane %v680, 2
      %v802 = vrot.slane %v681, 2
      %v803 = vsel %vm740, %v801, %v802
      %v804 = vrot.slane %v682, 2
      %v805 = vsel %vm740, %v802, %v804
      %v806 = vrot.slane %v683, 2
      %v807 = vrot.slane %v684, 2
      %v808 = vsel %vm740, %v806, %v807
      %v809 = vrot.slane %v685, 2
      %v810 = vsel %vm740, %v807, %v809
      %v811 = vrot.slane %v686, 2
      %v812 = vrot.slane %v687, 2
      %v813 = vsel %vm740, %v811, %v812
      %v814 = vrot.slane %v688, 2
      %v815 = vsel %vm740, %v812, %v814
      %v816 = vrot.slane %v689, 2
      %v817 = vrot.slane %v690, 2
      %v818 = vsel %vm740, %v816, %v817
      %v819 = vrot.slane %v691, 2
      %v820 = vsel %vm740, %v817, %v819
      %v853 = vadd.f32 %v608, %v743
      %v854 = vadd.f32 %v609, %v745
      %v855 = vadd.f32 %v610, %v748
      %v856 = vadd.f32 %v611, %v750
      %v857 = vadd.f32 %v612, %v753
      %v858 = vadd.f32 %v613, %v755
      %v859 = vadd.f32 %v614, %v758
      %v860 = vadd.f32 %v615, %v760
      %v861 = vadd.f32 %v616, %v763
      %v862 = vadd.f32 %v617, %v765
      %v863 = vadd.f32 %v618, %v768
      %v864 = vadd.f32 %v619, %v770
      %v865 = vadd.f32 %v620, %v773
      %v866 = vadd.f32 %v621, %v775
      %v867 = vadd.f32 %v622, %v778
      %v868 = vadd.f32 %v623, %v780
      %v869 = vadd.f32 %v624, %v783
      %v870 = vadd.f32 %v625, %v785
      %v871 = vadd.f32 %v626, %v788
      %v872 = vadd.f32 %v627, %v790
      %v873 = vadd.f32 %v628, %v793
      %v874 = vadd.f32 %v629, %v795
      %v875 = vadd.f32 %v630, %v798
      %v876 = vadd.f32 %v631, %v800
      %v877 = vadd.f32 %v632, %v803
      %v878 = vadd.f32 %v633, %v805
      %v879 = vadd.f32 %v634, %v808
      %v880 = vadd.f32 %v635, %v810
      %v881 = vadd.f32 %v636, %v813
      %v882 = vadd.f32 %v637, %v815
      %v883 = vadd.f32 %v638, %v818
      %v884 = vadd.f32 %v639, %v820
      %v885 = vunpack.c.l.bf16 %v239
      %v886 = vunpack.c.l.bf16 %v240
      %v887 = vlaneseq
      %v888 = vshrl.u32 %v887, 7
      %v889 = vsub.s32 3, %v888
      %v890 = vrot.slane %v245, %v889
      %v891 = vmul.f32 %v281, %v890
      %v892 = vmul.f32 %v282, %v890
      %v893 = vmul.f32 %v283, %v890
      %v894 = vmul.f32 %v284, %v890
      %v895 = vmul.f32 %v285, %v890
      %v896 = vmul.f32 %v286, %v890
      %v897 = vmul.f32 %v287, %v890
      %v898 = vmul.f32 %v288, %v890
      %v899 = vmul.f32 %v289, %v890
      %v900 = vmul.f32 %v290, %v890
      %v901 = vmul.f32 %v291, %v890
      %v902 = vmul.f32 %v292, %v890
      %v903 = vmul.f32 %v293, %v890
      %v904 = vmul.f32 %v294, %v890
      %v905 = vmul.f32 %v295, %v890
      %v906 = vmul.f32 %v296, %v890
      %v907 = vmul.f32 %v297, %v890
      %v908 = vmul.f32 %v298, %v890
      %v909 = vmul.f32 %v299, %v890
      %v910 = vmul.f32 %v300, %v890
      %v911 = vmul.f32 %v301, %v890
      %v912 = vmul.f32 %v302, %v890
      %v913 = vmul.f32 %v303, %v890
      %v914 = vmul.f32 %v304, %v890
      %v915 = vmul.f32 %v305, %v890
      %v916 = vmul.f32 %v306, %v890
      %v917 = vmul.f32 %v307, %v890
      %v918 = vmul.f32 %v308, %v890
      %v919 = vmul.f32 %v309, %v890
      %v920 = vmul.f32 %v310, %v890
      %v921 = vmul.f32 %v885, %v890
      %v922 = vmul.f32 %v886, %v890
      %v923 = vadd.f32 %v853, %v891
      %v924 = vadd.f32 %v854, %v892
      %v925 = vadd.f32 %v855, %v893
      %v926 = vadd.f32 %v856, %v894
      %v927 = vadd.f32 %v857, %v895
      %v928 = vadd.f32 %v858, %v896
      %v929 = vadd.f32 %v859, %v897
      %v930 = vadd.f32 %v860, %v898
      %v931 = vadd.f32 %v861, %v899
      %v932 = vadd.f32 %v862, %v900
      %v933 = vadd.f32 %v863, %v901
      %v934 = vadd.f32 %v864, %v902
      %v935 = vadd.f32 %v865, %v903
      %v936 = vadd.f32 %v866, %v904
      %v937 = vadd.f32 %v867, %v905
      %v938 = vadd.f32 %v868, %v906
      %v939 = vadd.f32 %v869, %v907
      %v940 = vadd.f32 %v870, %v908
      %v941 = vadd.f32 %v871, %v909
      %v942 = vadd.f32 %v872, %v910
      %v943 = vadd.f32 %v873, %v911
      %v944 = vadd.f32 %v874, %v912
      %v945 = vadd.f32 %v875, %v913
      %v946 = vadd.f32 %v876, %v914
      %v947 = vadd.f32 %v877, %v915
      %v948 = vadd.f32 %v878, %v916
      %v949 = vadd.f32 %v879, %v917
      %v950 = vadd.f32 %v880, %v918
      %v951 = vadd.f32 %v881, %v919
      %v952 = vadd.f32 %v882, %v920
      %v953 = vadd.f32 %v883, %v921
      %v954 = vadd.f32 %v884, %v922
      %v955 = vunpack.c.l.bf16 %v241
      %v956 = vlaneseq
      %v957 = vshrl.u32 %v956, 7
      %v958 = vsub.s32 4, %v957
      %v959 = vrot.slane %v245, %v958
      %v960 = vmul.f32 %v281, %v959
      %v961 = vmul.f32 %v282, %v959
      %v962 = vmul.f32 %v380, %v959
      %v963 = vmul.f32 %v283, %v959
      %v964 = vmul.f32 %v284, %v959
      %v965 = vmul.f32 %v381, %v959
      %v966 = vmul.f32 %v285, %v959
      %v967 = vmul.f32 %v286, %v959
      %v968 = vmul.f32 %v382, %v959
      %v969 = vmul.f32 %v287, %v959
      %v970 = vmul.f32 %v288, %v959
      %v971 = vmul.f32 %v383, %v959
      %v972 = vmul.f32 %v289, %v959
      %v973 = vmul.f32 %v290, %v959
      %v974 = vmul.f32 %v384, %v959
      %v975 = vmul.f32 %v291, %v959
      %v976 = vmul.f32 %v292, %v959
      %v977 = vmul.f32 %v385, %v959
      %v978 = vmul.f32 %v293, %v959
      %v979 = vmul.f32 %v294, %v959
      %v980 = vmul.f32 %v386, %v959
      %v981 = vmul.f32 %v295, %v959
      %v982 = vmul.f32 %v296, %v959
      %v983 = vmul.f32 %v387, %v959
      %v984 = vmul.f32 %v297, %v959
      %v985 = vmul.f32 %v298, %v959
      %v986 = vmul.f32 %v388, %v959
      %v987 = vmul.f32 %v299, %v959
      %v988 = vmul.f32 %v300, %v959
      %v989 = vmul.f32 %v389, %v959
      %v990 = vmul.f32 %v301, %v959
      %v991 = vmul.f32 %v302, %v959
      %v992 = vmul.f32 %v390, %v959
      %v993 = vmul.f32 %v303, %v959
      %v994 = vmul.f32 %v304, %v959
      %v995 = vmul.f32 %v391, %v959
      %v996 = vmul.f32 %v305, %v959
      %v997 = vmul.f32 %v306, %v959
      %v998 = vmul.f32 %v392, %v959
      %v999 = vmul.f32 %v307, %v959
      %v1000 = vmul.f32 %v308, %v959
      %v1001 = vmul.f32 %v393, %v959
      %v1002 = vmul.f32 %v309, %v959
      %v1003 = vmul.f32 %v310, %v959
      %v1004 = vmul.f32 %v394, %v959
      %v1005 = vmul.f32 %v885, %v959
      %v1006 = vmul.f32 %v886, %v959
      %v1007 = vmul.f32 %v955, %v959
      %v1056 = vrot.slane %v960, 1
      %v1057 = vrot.slane %v961, 1
      %v1058 = vsel %vm495, %v1056, %v1057
      %v1059 = vrot.slane %v962, 1
      %v1060 = vsel %vm495, %v1057, %v1059
      %v1061 = vrot.slane %v963, 1
      %v1062 = vrot.slane %v964, 1
      %v1063 = vsel %vm495, %v1061, %v1062
      %v1064 = vrot.slane %v965, 1
      %v1065 = vsel %vm495, %v1062, %v1064
      %v1066 = vrot.slane %v966, 1
      %v1067 = vrot.slane %v967, 1
      %v1068 = vsel %vm495, %v1066, %v1067
      %v1069 = vrot.slane %v968, 1
      %v1070 = vsel %vm495, %v1067, %v1069
      %v1071 = vrot.slane %v969, 1
      %v1072 = vrot.slane %v970, 1
      %v1073 = vsel %vm495, %v1071, %v1072
      %v1074 = vrot.slane %v971, 1
      %v1075 = vsel %vm495, %v1072, %v1074
      %v1076 = vrot.slane %v972, 1
      %v1077 = vrot.slane %v973, 1
      %v1078 = vsel %vm495, %v1076, %v1077
      %v1079 = vrot.slane %v974, 1
      %v1080 = vsel %vm495, %v1077, %v1079
      %v1081 = vrot.slane %v975, 1
      %v1082 = vrot.slane %v976, 1
      %v1083 = vsel %vm495, %v1081, %v1082
      %v1084 = vrot.slane %v977, 1
      %v1085 = vsel %vm495, %v1082, %v1084
      %v1086 = vrot.slane %v978, 1
      %v1087 = vrot.slane %v979, 1
      %v1088 = vsel %vm495, %v1086, %v1087
      %v1089 = vrot.slane %v980, 1
      %v1090 = vsel %vm495, %v1087, %v1089
      %v1091 = vrot.slane %v981, 1
      %v1092 = vrot.slane %v982, 1
      %v1093 = vsel %vm495, %v1091, %v1092
      %v1094 = vrot.slane %v983, 1
      %v1095 = vsel %vm495, %v1092, %v1094
      %v1096 = vrot.slane %v984, 1
      %v1097 = vrot.slane %v985, 1
      %v1098 = vsel %vm495, %v1096, %v1097
      %v1099 = vrot.slane %v986, 1
      %v1100 = vsel %vm495, %v1097, %v1099
      %v1101 = vrot.slane %v987, 1
      %v1102 = vrot.slane %v988, 1
      %v1103 = vsel %vm495, %v1101, %v1102
      %v1104 = vrot.slane %v989, 1
      %v1105 = vsel %vm495, %v1102, %v1104
      %v1106 = vrot.slane %v990, 1
      %v1107 = vrot.slane %v991, 1
      %v1108 = vsel %vm495, %v1106, %v1107
      %v1109 = vrot.slane %v992, 1
      %v1110 = vsel %vm495, %v1107, %v1109
      %v1111 = vrot.slane %v993, 1
      %v1112 = vrot.slane %v994, 1
      %v1113 = vsel %vm495, %v1111, %v1112
      %v1114 = vrot.slane %v995, 1
      %v1115 = vsel %vm495, %v1112, %v1114
      %v1116 = vrot.slane %v996, 1
      %v1117 = vrot.slane %v997, 1
      %v1118 = vsel %vm495, %v1116, %v1117
      %v1119 = vrot.slane %v998, 1
      %v1120 = vsel %vm495, %v1117, %v1119
      %v1121 = vrot.slane %v999, 1
      %v1122 = vrot.slane %v1000, 1
      %v1123 = vsel %vm495, %v1121, %v1122
      %v1124 = vrot.slane %v1001, 1
      %v1125 = vsel %vm495, %v1122, %v1124
      %v1126 = vrot.slane %v1002, 1
      %v1127 = vrot.slane %v1003, 1
      %v1128 = vsel %vm495, %v1126, %v1127
      %v1129 = vrot.slane %v1004, 1
      %v1130 = vsel %vm495, %v1127, %v1129
      %v1131 = vrot.slane %v1005, 1
      %v1132 = vrot.slane %v1006, 1
      %v1133 = vsel %vm495, %v1131, %v1132
      %v1134 = vrot.slane %v1007, 1
      %v1135 = vsel %vm495, %v1132, %v1134
      %v1168 = vadd.f32 %v923, %v1058
      %v1169 = vadd.f32 %v924, %v1060
      %v1170 = vadd.f32 %v925, %v1063
      %v1171 = vadd.f32 %v926, %v1065
      %v1172 = vadd.f32 %v927, %v1068
      %v1173 = vadd.f32 %v928, %v1070
      %v1174 = vadd.f32 %v929, %v1073
      %v1175 = vadd.f32 %v930, %v1075
      %v1176 = vadd.f32 %v931, %v1078
      %v1177 = vadd.f32 %v932, %v1080
      %v1178 = vadd.f32 %v933, %v1083
      %v1179 = vadd.f32 %v934, %v1085
      %v1180 = vadd.f32 %v935, %v1088
      %v1181 = vadd.f32 %v936, %v1090
      %v1182 = vadd.f32 %v937, %v1093
      %v1183 = vadd.f32 %v938, %v1095
      %v1184 = vadd.f32 %v939, %v1098
      %v1185 = vadd.f32 %v940, %v1100
      %v1186 = vadd.f32 %v941, %v1103
      %v1187 = vadd.f32 %v942, %v1105
      %v1188 = vadd.f32 %v943, %v1108
      %v1189 = vadd.f32 %v944, %v1110
      %v1190 = vadd.f32 %v945, %v1113
      %v1191 = vadd.f32 %v946, %v1115
      %v1192 = vadd.f32 %v947, %v1118
      %v1193 = vadd.f32 %v948, %v1120
      %v1194 = vadd.f32 %v949, %v1123
      %v1195 = vadd.f32 %v950, %v1125
      %v1196 = vadd.f32 %v951, %v1128
      %v1197 = vadd.f32 %v952, %v1130
      %v1198 = vadd.f32 %v953, %v1133
      %v1199 = vadd.f32 %v954, %v1135
      %v1200 = vlaneseq
      %v1201 = vshrl.u32 %v1200, 7
      %v1202 = vsub.s32 5, %v1201
      %v1203 = vrot.slane %v245, %v1202
      %v1204 = vmul.f32 %v281, %v1203
      %v1205 = vmul.f32 %v282, %v1203
      %v1206 = vmul.f32 %v380, %v1203
      %v1207 = vmul.f32 %v283, %v1203
      %v1208 = vmul.f32 %v284, %v1203
      %v1209 = vmul.f32 %v381, %v1203
      %v1210 = vmul.f32 %v285, %v1203
      %v1211 = vmul.f32 %v286, %v1203
      %v1212 = vmul.f32 %v382, %v1203
      %v1213 = vmul.f32 %v287, %v1203
      %v1214 = vmul.f32 %v288, %v1203
      %v1215 = vmul.f32 %v383, %v1203
      %v1216 = vmul.f32 %v289, %v1203
      %v1217 = vmul.f32 %v290, %v1203
      %v1218 = vmul.f32 %v384, %v1203
      %v1219 = vmul.f32 %v291, %v1203
      %v1220 = vmul.f32 %v292, %v1203
      %v1221 = vmul.f32 %v385, %v1203
      %v1222 = vmul.f32 %v293, %v1203
      %v1223 = vmul.f32 %v294, %v1203
      %v1224 = vmul.f32 %v386, %v1203
      %v1225 = vmul.f32 %v295, %v1203
      %v1226 = vmul.f32 %v296, %v1203
      %v1227 = vmul.f32 %v387, %v1203
      %v1228 = vmul.f32 %v297, %v1203
      %v1229 = vmul.f32 %v298, %v1203
      %v1230 = vmul.f32 %v388, %v1203
      %v1231 = vmul.f32 %v299, %v1203
      %v1232 = vmul.f32 %v300, %v1203
      %v1233 = vmul.f32 %v389, %v1203
      %v1234 = vmul.f32 %v301, %v1203
      %v1235 = vmul.f32 %v302, %v1203
      %v1236 = vmul.f32 %v390, %v1203
      %v1237 = vmul.f32 %v303, %v1203
      %v1238 = vmul.f32 %v304, %v1203
      %v1239 = vmul.f32 %v391, %v1203
      %v1240 = vmul.f32 %v305, %v1203
      %v1241 = vmul.f32 %v306, %v1203
      %v1242 = vmul.f32 %v392, %v1203
      %v1243 = vmul.f32 %v307, %v1203
      %v1244 = vmul.f32 %v308, %v1203
      %v1245 = vmul.f32 %v393, %v1203
      %v1246 = vmul.f32 %v309, %v1203
      %v1247 = vmul.f32 %v310, %v1203
      %v1248 = vmul.f32 %v394, %v1203
      %v1249 = vmul.f32 %v885, %v1203
      %v1250 = vmul.f32 %v886, %v1203
      %v1251 = vmul.f32 %v955, %v1203
      %v1300 = vrot.slane %v1204, 2
      %v1301 = vrot.slane %v1205, 2
      %v1302 = vsel %vm740, %v1300, %v1301
      %v1303 = vrot.slane %v1206, 2
      %v1304 = vsel %vm740, %v1301, %v1303
      %v1305 = vrot.slane %v1207, 2
      %v1306 = vrot.slane %v1208, 2
      %v1307 = vsel %vm740, %v1305, %v1306
      %v1308 = vrot.slane %v1209, 2
      %v1309 = vsel %vm740, %v1306, %v1308
      %v1310 = vrot.slane %v1210, 2
      %v1311 = vrot.slane %v1211, 2
      %v1312 = vsel %vm740, %v1310, %v1311
      %v1313 = vrot.slane %v1212, 2
      %v1314 = vsel %vm740, %v1311, %v1313
      %v1315 = vrot.slane %v1213, 2
      %v1316 = vrot.slane %v1214, 2
      %v1317 = vsel %vm740, %v1315, %v1316
      %v1318 = vrot.slane %v1215, 2
      %v1319 = vsel %vm740, %v1316, %v1318
      %v1320 = vrot.slane %v1216, 2
      %v1321 = vrot.slane %v1217, 2
      %v1322 = vsel %vm740, %v1320, %v1321
      %v1323 = vrot.slane %v1218, 2
      %v1324 = vsel %vm740, %v1321, %v1323
      %v1325 = vrot.slane %v1219, 2
      %v1326 = vrot.slane %v1220, 2
      %v1327 = vsel %vm740, %v1325, %v1326
      %v1328 = vrot.slane %v1221, 2
      %v1329 = vsel %vm740, %v1326, %v1328
      %v1330 = vrot.slane %v1222, 2
      %v1331 = vrot.slane %v1223, 2
      %v1332 = vsel %vm740, %v1330, %v1331
      %v1333 = vrot.slane %v1224, 2
      %v1334 = vsel %vm740, %v1331, %v1333
      %v1335 = vrot.slane %v1225, 2
      %v1336 = vrot.slane %v1226, 2
      %v1337 = vsel %vm740, %v1335, %v1336
      %v1338 = vrot.slane %v1227, 2
      %v1339 = vsel %vm740, %v1336, %v1338
      %v1340 = vrot.slane %v1228, 2
      %v1341 = vrot.slane %v1229, 2
      %v1342 = vsel %vm740, %v1340, %v1341
      %v1343 = vrot.slane %v1230, 2
      %v1344 = vsel %vm740, %v1341, %v1343
      %v1345 = vrot.slane %v1231, 2
      %v1346 = vrot.slane %v1232, 2
      %v1347 = vsel %vm740, %v1345, %v1346
      %v1348 = vrot.slane %v1233, 2
      %v1349 = vsel %vm740, %v1346, %v1348
      %v1350 = vrot.slane %v1234, 2
      %v1351 = vrot.slane %v1235, 2
      %v1352 = vsel %vm740, %v1350, %v1351
      %v1353 = vrot.slane %v1236, 2
      %v1354 = vsel %vm740, %v1351, %v1353
      %v1355 = vrot.slane %v1237, 2
      %v1356 = vrot.slane %v1238, 2
      %v1357 = vsel %vm740, %v1355, %v1356
      %v1358 = vrot.slane %v1239, 2
      %v1359 = vsel %vm740, %v1356, %v1358
      %v1360 = vrot.slane %v1240, 2
      %v1361 = vrot.slane %v1241, 2
      %v1362 = vsel %vm740, %v1360, %v1361
      %v1363 = vrot.slane %v1242, 2
      %v1364 = vsel %vm740, %v1361, %v1363
      %v1365 = vrot.slane %v1243, 2
      %v1366 = vrot.slane %v1244, 2
      %v1367 = vsel %vm740, %v1365, %v1366
      %v1368 = vrot.slane %v1245, 2
      %v1369 = vsel %vm740, %v1366, %v1368
      %v1370 = vrot.slane %v1246, 2
      %v1371 = vrot.slane %v1247, 2
      %v1372 = vsel %vm740, %v1370, %v1371
      %v1373 = vrot.slane %v1248, 2
      %v1374 = vsel %vm740, %v1371, %v1373
      %v1375 = vrot.slane %v1249, 2
      %v1376 = vrot.slane %v1250, 2
      %v1377 = vsel %vm740, %v1375, %v1376
      %v1378 = vrot.slane %v1251, 2
      %v1379 = vsel %vm740, %v1376, %v1378
      %v1412 = vadd.f32 %v1168, %v1302
      %v1413 = vadd.f32 %v1169, %v1304
      %v1414 = vadd.f32 %v1170, %v1307
      %v1415 = vadd.f32 %v1171, %v1309
      %v1416 = vadd.f32 %v1172, %v1312
      %v1417 = vadd.f32 %v1173, %v1314
      %v1418 = vadd.f32 %v1174, %v1317
      %v1419 = vadd.f32 %v1175, %v1319
      %v1420 = vadd.f32 %v1176, %v1322
      %v1421 = vadd.f32 %v1177, %v1324
      %v1422 = vadd.f32 %v1178, %v1327
      %v1423 = vadd.f32 %v1179, %v1329
      %v1424 = vadd.f32 %v1180, %v1332
      %v1425 = vadd.f32 %v1181, %v1334
      %v1426 = vadd.f32 %v1182, %v1337
      %v1427 = vadd.f32 %v1183, %v1339
      %v1428 = vadd.f32 %v1184, %v1342
      %v1429 = vadd.f32 %v1185, %v1344
      %v1430 = vadd.f32 %v1186, %v1347
      %v1431 = vadd.f32 %v1187, %v1349
      %v1432 = vadd.f32 %v1188, %v1352
      %v1433 = vadd.f32 %v1189, %v1354
      %v1434 = vadd.f32 %v1190, %v1357
      %v1435 = vadd.f32 %v1191, %v1359
      %v1436 = vadd.f32 %v1192, %v1362
      %v1437 = vadd.f32 %v1193, %v1364
      %v1438 = vadd.f32 %v1194, %v1367
      %v1439 = vadd.f32 %v1195, %v1369
      %v1440 = vadd.f32 %v1196, %v1372
      %v1441 = vadd.f32 %v1197, %v1374
      %v1442 = vadd.f32 %v1198, %v1377
      %v1443 = vadd.f32 %v1199, %v1379
      %v1444 = vunpack.c.l.bf16 %v242
      %v1445 = vunpack.c.l.bf16 %v243
      %v1446 = vlaneseq
      %v1447 = vshrl.u32 %v1446, 7
      %v1448 = vsub.s32 6, %v1447
      %v1449 = vrot.slane %v245, %v1448
      %v1450 = vmul.f32 %v283, %v1449
      %v1451 = vmul.f32 %v284, %v1449
      %v1452 = vmul.f32 %v285, %v1449
      %v1453 = vmul.f32 %v286, %v1449
      %v1454 = vmul.f32 %v287, %v1449
      %v1455 = vmul.f32 %v288, %v1449
      %v1456 = vmul.f32 %v289, %v1449
      %v1457 = vmul.f32 %v290, %v1449
      %v1458 = vmul.f32 %v291, %v1449
      %v1459 = vmul.f32 %v292, %v1449
      %v1460 = vmul.f32 %v293, %v1449
      %v1461 = vmul.f32 %v294, %v1449
      %v1462 = vmul.f32 %v295, %v1449
      %v1463 = vmul.f32 %v296, %v1449
      %v1464 = vmul.f32 %v297, %v1449
      %v1465 = vmul.f32 %v298, %v1449
      %v1466 = vmul.f32 %v299, %v1449
      %v1467 = vmul.f32 %v300, %v1449
      %v1468 = vmul.f32 %v301, %v1449
      %v1469 = vmul.f32 %v302, %v1449
      %v1470 = vmul.f32 %v303, %v1449
      %v1471 = vmul.f32 %v304, %v1449
      %v1472 = vmul.f32 %v305, %v1449
      %v1473 = vmul.f32 %v306, %v1449
      %v1474 = vmul.f32 %v307, %v1449
      %v1475 = vmul.f32 %v308, %v1449
      %v1476 = vmul.f32 %v309, %v1449
      %v1477 = vmul.f32 %v310, %v1449
      %v1478 = vmul.f32 %v885, %v1449
      %v1479 = vmul.f32 %v886, %v1449
      %v1480 = vmul.f32 %v1444, %v1449
      %v1481 = vmul.f32 %v1445, %v1449
      %v1482 = vadd.f32 %v1412, %v1450
      %v1483 = vadd.f32 %v1413, %v1451
      %v1484 = vadd.f32 %v1414, %v1452
      %v1485 = vadd.f32 %v1415, %v1453
      %v1486 = vadd.f32 %v1416, %v1454
      %v1487 = vadd.f32 %v1417, %v1455
      %v1488 = vadd.f32 %v1418, %v1456
      %v1489 = vadd.f32 %v1419, %v1457
      %v1490 = vadd.f32 %v1420, %v1458
      %v1491 = vadd.f32 %v1421, %v1459
      %v1492 = vadd.f32 %v1422, %v1460
      %v1493 = vadd.f32 %v1423, %v1461
      %v1494 = vadd.f32 %v1424, %v1462
      %v1495 = vadd.f32 %v1425, %v1463
      %v1496 = vadd.f32 %v1426, %v1464
      %v1497 = vadd.f32 %v1427, %v1465
      %v1498 = vadd.f32 %v1428, %v1466
      %v1499 = vadd.f32 %v1429, %v1467
      %v1500 = vadd.f32 %v1430, %v1468
      %v1501 = vadd.f32 %v1431, %v1469
      %v1502 = vadd.f32 %v1432, %v1470
      %v1503 = vadd.f32 %v1433, %v1471
      %v1504 = vadd.f32 %v1434, %v1472
      %v1505 = vadd.f32 %v1435, %v1473
      %v1506 = vadd.f32 %v1436, %v1474
      %v1507 = vadd.f32 %v1437, %v1475
      %v1508 = vadd.f32 %v1438, %v1476
      %v1509 = vadd.f32 %v1439, %v1477
      %v1510 = vadd.f32 %v1440, %v1478
      %v1511 = vadd.f32 %v1441, %v1479
      %v1512 = vadd.f32 %v1442, %v1480
      %v1513 = vadd.f32 %v1443, %v1481
      %v1514 = vunpack.c.l.bf16 %v244
      %v1515 = vlaneseq
      %v1516 = vshrl.u32 %v1515, 7
      %v1517 = vsub.s32 7, %v1516
      %v1518 = vrot.slane %v245, %v1517
      %v1519 = vmul.f32 %v283, %v1518
      %v1520 = vmul.f32 %v284, %v1518
      %v1521 = vmul.f32 %v381, %v1518
      %v1522 = vmul.f32 %v285, %v1518
      %v1523 = vmul.f32 %v286, %v1518
      %v1524 = vmul.f32 %v382, %v1518
      %v1525 = vmul.f32 %v287, %v1518
      %v1526 = vmul.f32 %v288, %v1518
      %v1527 = vmul.f32 %v383, %v1518
      %v1528 = vmul.f32 %v289, %v1518
      %v1529 = vmul.f32 %v290, %v1518
      %v1530 = vmul.f32 %v384, %v1518
      %v1531 = vmul.f32 %v291, %v1518
      %v1532 = vmul.f32 %v292, %v1518
      %v1533 = vmul.f32 %v385, %v1518
      %v1534 = vmul.f32 %v293, %v1518
      %v1535 = vmul.f32 %v294, %v1518
      %v1536 = vmul.f32 %v386, %v1518
      %v1537 = vmul.f32 %v295, %v1518
      %v1538 = vmul.f32 %v296, %v1518
      %v1539 = vmul.f32 %v387, %v1518
      %v1540 = vmul.f32 %v297, %v1518
      %v1541 = vmul.f32 %v298, %v1518
      %v1542 = vmul.f32 %v388, %v1518
      %v1543 = vmul.f32 %v299, %v1518
      %v1544 = vmul.f32 %v300, %v1518
      %v1545 = vmul.f32 %v389, %v1518
      %v1546 = vmul.f32 %v301, %v1518
      %v1547 = vmul.f32 %v302, %v1518
      %v1548 = vmul.f32 %v390, %v1518
      %v1549 = vmul.f32 %v303, %v1518
      %v1550 = vmul.f32 %v304, %v1518
      %v1551 = vmul.f32 %v391, %v1518
      %v1552 = vmul.f32 %v305, %v1518
      %v1553 = vmul.f32 %v306, %v1518
      %v1554 = vmul.f32 %v392, %v1518
      %v1555 = vmul.f32 %v307, %v1518
      %v1556 = vmul.f32 %v308, %v1518
      %v1557 = vmul.f32 %v393, %v1518
      %v1558 = vmul.f32 %v309, %v1518
      %v1559 = vmul.f32 %v310, %v1518
      %v1560 = vmul.f32 %v394, %v1518
      %v1561 = vmul.f32 %v885, %v1518
      %v1562 = vmul.f32 %v886, %v1518
      %v1563 = vmul.f32 %v955, %v1518
      %v1564 = vmul.f32 %v1444, %v1518
      %v1565 = vmul.f32 %v1445, %v1518
      %v1566 = vmul.f32 %v1514, %v1518
      %v1615 = vrot.slane %v1519, 1
      %v1616 = vrot.slane %v1520, 1
      %v1617 = vsel %vm495, %v1615, %v1616
      %v1618 = vrot.slane %v1521, 1
      %v1619 = vsel %vm495, %v1616, %v1618
      %v1620 = vrot.slane %v1522, 1
      %v1621 = vrot.slane %v1523, 1
      %v1622 = vsel %vm495, %v1620, %v1621
      %v1623 = vrot.slane %v1524, 1
      %v1624 = vsel %vm495, %v1621, %v1623
      %v1625 = vrot.slane %v1525, 1
      %v1626 = vrot.slane %v1526, 1
      %v1627 = vsel %vm495, %v1625, %v1626
      %v1628 = vrot.slane %v1527, 1
      %v1629 = vsel %vm495, %v1626, %v1628
      %v1630 = vrot.slane %v1528, 1
      %v1631 = vrot.slane %v1529, 1
      %v1632 = vsel %vm495, %v1630, %v1631
      %v1633 = vrot.slane %v1530, 1
      %v1634 = vsel %vm495, %v1631, %v1633
      %v1635 = vrot.slane %v1531, 1
      %v1636 = vrot.slane %v1532, 1
      %v1637 = vsel %vm495, %v1635, %v1636
      %v1638 = vrot.slane %v1533, 1
      %v1639 = vsel %vm495, %v1636, %v1638
      %v1640 = vrot.slane %v1534, 1
      %v1641 = vrot.slane %v1535, 1
      %v1642 = vsel %vm495, %v1640, %v1641
      %v1643 = vrot.slane %v1536, 1
      %v1644 = vsel %vm495, %v1641, %v1643
      %v1645 = vrot.slane %v1537, 1
      %v1646 = vrot.slane %v1538, 1
      %v1647 = vsel %vm495, %v1645, %v1646
      %v1648 = vrot.slane %v1539, 1
      %v1649 = vsel %vm495, %v1646, %v1648
      %v1650 = vrot.slane %v1540, 1
      %v1651 = vrot.slane %v1541, 1
      %v1652 = vsel %vm495, %v1650, %v1651
      %v1653 = vrot.slane %v1542, 1
      %v1654 = vsel %vm495, %v1651, %v1653
      %v1655 = vrot.slane %v1543, 1
      %v1656 = vrot.slane %v1544, 1
      %v1657 = vsel %vm495, %v1655, %v1656
      %v1658 = vrot.slane %v1545, 1
      %v1659 = vsel %vm495, %v1656, %v1658
      %v1660 = vrot.slane %v1546, 1
      %v1661 = vrot.slane %v1547, 1
      %v1662 = vsel %vm495, %v1660, %v1661
      %v1663 = vrot.slane %v1548, 1
      %v1664 = vsel %vm495, %v1661, %v1663
      %v1665 = vrot.slane %v1549, 1
      %v1666 = vrot.slane %v1550, 1
      %v1667 = vsel %vm495, %v1665, %v1666
      %v1668 = vrot.slane %v1551, 1
      %v1669 = vsel %vm495, %v1666, %v1668
      %v1670 = vrot.slane %v1552, 1
      %v1671 = vrot.slane %v1553, 1
      %v1672 = vsel %vm495, %v1670, %v1671
      %v1673 = vrot.slane %v1554, 1
      %v1674 = vsel %vm495, %v1671, %v1673
      %v1675 = vrot.slane %v1555, 1
      %v1676 = vrot.slane %v1556, 1
      %v1677 = vsel %vm495, %v1675, %v1676
      %v1678 = vrot.slane %v1557, 1
      %v1679 = vsel %vm495, %v1676, %v1678
      %v1680 = vrot.slane %v1558, 1
      %v1681 = vrot.slane %v1559, 1
      %v1682 = vsel %vm495, %v1680, %v1681
      %v1683 = vrot.slane %v1560, 1
      %v1684 = vsel %vm495, %v1681, %v1683
      %v1685 = vrot.slane %v1561, 1
      %v1686 = vrot.slane %v1562, 1
      %v1687 = vsel %vm495, %v1685, %v1686
      %v1688 = vrot.slane %v1563, 1
      %v1689 = vsel %vm495, %v1686, %v1688
      %v1690 = vrot.slane %v1564, 1
      %v1691 = vrot.slane %v1565, 1
      %v1692 = vsel %vm495, %v1690, %v1691
      %v1693 = vrot.slane %v1566, 1
      %v1694 = vsel %vm495, %v1691, %v1693
      %v1727 = vadd.f32 %v1482, %v1617
      %v1728 = vadd.f32 %v1483, %v1619
      %v1729 = vadd.f32 %v1484, %v1622
      %v1730 = vadd.f32 %v1485, %v1624
      %v1731 = vadd.f32 %v1486, %v1627
      %v1732 = vadd.f32 %v1487, %v1629
      %v1733 = vadd.f32 %v1488, %v1632
      %v1734 = vadd.f32 %v1489, %v1634
      %v1735 = vadd.f32 %v1490, %v1637
      %v1736 = vadd.f32 %v1491, %v1639
      %v1737 = vadd.f32 %v1492, %v1642
      %v1738 = vadd.f32 %v1493, %v1644
      %v1739 = vadd.f32 %v1494, %v1647
      %v1740 = vadd.f32 %v1495, %v1649
      %v1741 = vadd.f32 %v1496, %v1652
      %v1742 = vadd.f32 %v1497, %v1654
      %v1743 = vadd.f32 %v1498, %v1657
      %v1744 = vadd.f32 %v1499, %v1659
      %v1745 = vadd.f32 %v1500, %v1662
      %v1746 = vadd.f32 %v1501, %v1664
      %v1747 = vadd.f32 %v1502, %v1667
      %v1748 = vadd.f32 %v1503, %v1669
      %v1749 = vadd.f32 %v1504, %v1672
      %v1750 = vadd.f32 %v1505, %v1674
      %v1751 = vadd.f32 %v1506, %v1677
      %v1752 = vadd.f32 %v1507, %v1679
      %v1753 = vadd.f32 %v1508, %v1682
      %v1754 = vadd.f32 %v1509, %v1684
      %v1755 = vadd.f32 %v1510, %v1687
      %v1756 = vadd.f32 %v1511, %v1689
      %v1757 = vadd.f32 %v1512, %v1692
      %v1758 = vadd.f32 %v1513, %v1694
      %v1759 = vlaneseq
      %v1760 = vshrl.u32 %v1759, 7
      %v1761 = vsub.s32 0, %v1760
      %v1762 = vrot.slane %v246, %v1761
      %v1763 = vmul.f32 %v283, %v1762
      %v1764 = vmul.f32 %v284, %v1762
      %v1765 = vmul.f32 %v381, %v1762
      %v1766 = vmul.f32 %v285, %v1762
      %v1767 = vmul.f32 %v286, %v1762
      %v1768 = vmul.f32 %v382, %v1762
      %v1769 = vmul.f32 %v287, %v1762
      %v1770 = vmul.f32 %v288, %v1762
      %v1771 = vmul.f32 %v383, %v1762
      %v1772 = vmul.f32 %v289, %v1762
      %v1773 = vmul.f32 %v290, %v1762
      %v1774 = vmul.f32 %v384, %v1762
      %v1775 = vmul.f32 %v291, %v1762
      %v1776 = vmul.f32 %v292, %v1762
      %v1777 = vmul.f32 %v385, %v1762
      %v1778 = vmul.f32 %v293, %v1762
      %v1779 = vmul.f32 %v294, %v1762
      %v1780 = vmul.f32 %v386, %v1762
      %v1781 = vmul.f32 %v295, %v1762
      %v1782 = vmul.f32 %v296, %v1762
      %v1783 = vmul.f32 %v387, %v1762
      %v1784 = vmul.f32 %v297, %v1762
      %v1785 = vmul.f32 %v298, %v1762
      %v1786 = vmul.f32 %v388, %v1762
      %v1787 = vmul.f32 %v299, %v1762
      %v1788 = vmul.f32 %v300, %v1762
      %v1789 = vmul.f32 %v389, %v1762
      %v1790 = vmul.f32 %v301, %v1762
      %v1791 = vmul.f32 %v302, %v1762
      %v1792 = vmul.f32 %v390, %v1762
      %v1793 = vmul.f32 %v303, %v1762
      %v1794 = vmul.f32 %v304, %v1762
      %v1795 = vmul.f32 %v391, %v1762
      %v1796 = vmul.f32 %v305, %v1762
      %v1797 = vmul.f32 %v306, %v1762
      %v1798 = vmul.f32 %v392, %v1762
      %v1799 = vmul.f32 %v307, %v1762
      %v1800 = vmul.f32 %v308, %v1762
      %v1801 = vmul.f32 %v393, %v1762
      %v1802 = vmul.f32 %v309, %v1762
      %v1803 = vmul.f32 %v310, %v1762
      %v1804 = vmul.f32 %v394, %v1762
      %v1805 = vmul.f32 %v885, %v1762
      %v1806 = vmul.f32 %v886, %v1762
      %v1807 = vmul.f32 %v955, %v1762
      %v1808 = vmul.f32 %v1444, %v1762
      %v1809 = vmul.f32 %v1445, %v1762
      %v1810 = vmul.f32 %v1514, %v1762
      %v1859 = vrot.slane %v1763, 2
      %v1860 = vrot.slane %v1764, 2
      %v1861 = vsel %vm740, %v1859, %v1860
      %v1862 = vrot.slane %v1765, 2
      %v1863 = vsel %vm740, %v1860, %v1862
      %v1864 = vrot.slane %v1766, 2
      %v1865 = vrot.slane %v1767, 2
      %v1866 = vsel %vm740, %v1864, %v1865
      %v1867 = vrot.slane %v1768, 2
      %v1868 = vsel %vm740, %v1865, %v1867
      %v1869 = vrot.slane %v1769, 2
      %v1870 = vrot.slane %v1770, 2
      %v1871 = vsel %vm740, %v1869, %v1870
      %v1872 = vrot.slane %v1771, 2
      %v1873 = vsel %vm740, %v1870, %v1872
      %v1874 = vrot.slane %v1772, 2
      %v1875 = vrot.slane %v1773, 2
      %v1876 = vsel %vm740, %v1874, %v1875
      %v1877 = vrot.slane %v1774, 2
      %v1878 = vsel %vm740, %v1875, %v1877
      %v1879 = vrot.slane %v1775, 2
      %v1880 = vrot.slane %v1776, 2
      %v1881 = vsel %vm740, %v1879, %v1880
      %v1882 = vrot.slane %v1777, 2
      %v1883 = vsel %vm740, %v1880, %v1882
      %v1884 = vrot.slane %v1778, 2
      %v1885 = vrot.slane %v1779, 2
      %v1886 = vsel %vm740, %v1884, %v1885
      %v1887 = vrot.slane %v1780, 2
      %v1888 = vsel %vm740, %v1885, %v1887
      %v1889 = vrot.slane %v1781, 2
      %v1890 = vrot.slane %v1782, 2
      %v1891 = vsel %vm740, %v1889, %v1890
      %v1892 = vrot.slane %v1783, 2
      %v1893 = vsel %vm740, %v1890, %v1892
      %v1894 = vrot.slane %v1784, 2
      %v1895 = vrot.slane %v1785, 2
      %v1896 = vsel %vm740, %v1894, %v1895
      %v1897 = vrot.slane %v1786, 2
      %v1898 = vsel %vm740, %v1895, %v1897
      %v1899 = vrot.slane %v1787, 2
      %v1900 = vrot.slane %v1788, 2
      %v1901 = vsel %vm740, %v1899, %v1900
      %v1902 = vrot.slane %v1789, 2
      %v1903 = vsel %vm740, %v1900, %v1902
      %v1904 = vrot.slane %v1790, 2
      %v1905 = vrot.slane %v1791, 2
      %v1906 = vsel %vm740, %v1904, %v1905
      %v1907 = vrot.slane %v1792, 2
      %v1908 = vsel %vm740, %v1905, %v1907
      %v1909 = vrot.slane %v1793, 2
      %v1910 = vrot.slane %v1794, 2
      %v1911 = vsel %vm740, %v1909, %v1910
      %v1912 = vrot.slane %v1795, 2
      %v1913 = vsel %vm740, %v1910, %v1912
      %v1914 = vrot.slane %v1796, 2
      %v1915 = vrot.slane %v1797, 2
      %v1916 = vsel %vm740, %v1914, %v1915
      %v1917 = vrot.slane %v1798, 2
      %v1918 = vsel %vm740, %v1915, %v1917
      %v1919 = vrot.slane %v1799, 2
      %v1920 = vrot.slane %v1800, 2
      %v1921 = vsel %vm740, %v1919, %v1920
      %v1922 = vrot.slane %v1801, 2
      %v1923 = vsel %vm740, %v1920, %v1922
      %v1924 = vrot.slane %v1802, 2
      %v1925 = vrot.slane %v1803, 2
      %v1926 = vsel %vm740, %v1924, %v1925
      %v1927 = vrot.slane %v1804, 2
      %v1928 = vsel %vm740, %v1925, %v1927
      %v1929 = vrot.slane %v1805, 2
      %v1930 = vrot.slane %v1806, 2
      %v1931 = vsel %vm740, %v1929, %v1930
      %v1932 = vrot.slane %v1807, 2
      %v1933 = vsel %vm740, %v1930, %v1932
      %v1934 = vrot.slane %v1808, 2
      %v1935 = vrot.slane %v1809, 2
      %v1936 = vsel %vm740, %v1934, %v1935
      %v1937 = vrot.slane %v1810, 2
      %v1938 = vsel %vm740, %v1935, %v1937
      %v1971 = vadd.f32 %v1727, %v1861
      %v1972 = vadd.f32 %v1728, %v1863
      %v1973 = vadd.f32 %v1729, %v1866
      %v1974 = vadd.f32 %v1730, %v1868
      %v1975 = vadd.f32 %v1731, %v1871
      %v1976 = vadd.f32 %v1732, %v1873
      %v1977 = vadd.f32 %v1733, %v1876
      %v1978 = vadd.f32 %v1734, %v1878
      %v1979 = vadd.f32 %v1735, %v1881
      %v1980 = vadd.f32 %v1736, %v1883
      %v1981 = vadd.f32 %v1737, %v1886
      %v1982 = vadd.f32 %v1738, %v1888
      %v1983 = vadd.f32 %v1739, %v1891
      %v1984 = vadd.f32 %v1740, %v1893
      %v1985 = vadd.f32 %v1741, %v1896
      %v1986 = vadd.f32 %v1742, %v1898
      %v1987 = vadd.f32 %v1743, %v1901
      %v1988 = vadd.f32 %v1744, %v1903
      %v1989 = vadd.f32 %v1745, %v1906
      %v1990 = vadd.f32 %v1746, %v1908
      %v1991 = vadd.f32 %v1747, %v1911
      %v1992 = vadd.f32 %v1748, %v1913
      %v1993 = vadd.f32 %v1749, %v1916
      %v1994 = vadd.f32 %v1750, %v1918
      %v1995 = vadd.f32 %v1751, %v1921
      %v1996 = vadd.f32 %v1752, %v1923
      %v1997 = vadd.f32 %v1753, %v1926
      %v1998 = vadd.f32 %v1754, %v1928
      %v1999 = vadd.f32 %v1755, %v1931
      %v2000 = vadd.f32 %v1756, %v1933
      %v2001 = vadd.f32 %v1757, %v1936
      %v2002 = vadd.f32 %v1758, %v1938
      %2003 = vst [vmem:[%s190] sm:$0xff] %v1971
      %2004 = vst [vmem:[%s190 + $0x8] sm:$0xff] %v1972
      %2005 = vst [vmem:[%s190 + $0x10] sm:$0xff] %v1973
      %2006 = vst [vmem:[%s190 + $0x18] sm:$0xff] %v1974
      %2007 = vst [vmem:[%s190 + $0x20] sm:$0xff] %v1975
      %2008 = vst [vmem:[%s190 + $0x28] sm:$0xff] %v1976
      %2009 = vst [vmem:[%s190 + $0x30] sm:$0xff] %v1977
      %2010 = vst [vmem:[%s190 + $0x38] sm:$0xff] %v1978
      %2011 = vst [vmem:[%s190 + $0x40] sm:$0xff] %v1979
      %2012 = vst [vmem:[%s190 + $0x48] sm:$0xff] %v1980
      %2013 = vst [vmem:[%s190 + $0x50] sm:$0xff] %v1981
      %2014 = vst [vmem:[%s190 + $0x58] sm:$0xff] %v1982
      %2015 = vst [vmem:[%s190 + $0x60] sm:$0xff] %v1983
      %2016 = vst [vmem:[%s190 + $0x68] sm:$0xff] %v1984
      %2017 = vst [vmem:[%s190 + $0x70] sm:$0xff] %v1985
      %2018 = vst [vmem:[%s190 + $0x78] sm:$0xff] %v1986
      %2019 = vst [vmem:[%s190 + $0x80] sm:$0xff] %v1987
      %2020 = vst [vmem:[%s190 + $0x88] sm:$0xff] %v1988
      %2021 = vst [vmem:[%s190 + $0x90] sm:$0xff] %v1989
      %2022 = vst [vmem:[%s190 + $0x98] sm:$0xff] %v1990
      %2023 = vst [vmem:[%s190 + $0xa0] sm:$0xff] %v1991
      %2024 = vst [vmem:[%s190 + $0xa8] sm:$0xff] %v1992
      %2025 = vst [vmem:[%s190 + $0xb0] sm:$0xff] %v1993
      %2026 = vst [vmem:[%s190 + $0xb8] sm:$0xff] %v1994
      %2027 = vst [vmem:[%s190 + $0xc0] sm:$0xff] %v1995
      %2028 = vst [vmem:[%s190 + $0xc8] sm:$0xff] %v1996
      %2029 = vst [vmem:[%s190 + $0xd0] sm:$0xff] %v1997
      %2030 = vst [vmem:[%s190 + $0xd8] sm:$0xff] %v1998
      %2031 = vst [vmem:[%s190 + $0xe0] sm:$0xff] %v1999
      %2032 = vst [vmem:[%s190 + $0xe8] sm:$0xff] %v2000
      %2033 = vst [vmem:[%s190 + $0xf0] sm:$0xff] %v2001
      %2034 = vst [vmem:[%s190 + $0xf8] sm:$0xff] %v2002
      %p2035 = scmp.lt.s32.totalorder %s14, 1
      %s2036 = scalar_select %p2035, %s14, 1
      %s2037 = smul.addr %s2036, 32
      %s2038 = smul.addr %s2037, 8
      %s2039 = scalar_lea.vmem %s3, %s2038
      // Predicated region
      $region33: #{_lambda_.6} parent=31 // pred_check
        %p2040 = pneg %p105
      $region34: #{_lambda_.6} parent=31 // pred_check_branch
        %2042 = sbr.rel (%p2040) target = $region36
      $region35: #{_lambda_.6} parent=31 // pred_region
        _
      $region36: #{_lambda_.6} parent=31 // pred_fallthru
        _
    $region32: #{_lambda_.6} parent=5 // pred_fallthru
      _
    %p2043 = scmp.le.s32.totalorder 2, %s9
    // Predicated region
    $region37: #{_lambda_.6} parent=5 // pred_check
      %p2044 = pneg %p2043
    $region38: #{_lambda_.6} parent=5 // pred_check_branch
      %2046 = sbr.rel (%p2044) target = $region40
    $region39: #{_lambda_.6} parent=5 // pred_region
      %s2047 = ssub.s32 %s9, 2
      // Predicated region
      $region41: #{_lambda_.6} parent=39 // pred_check
        %p2048 = pneg %p111
      $region42: #{_lambda_.6} parent=39 // pred_check_branch
        %2050 = sbr.rel (%p2048) target = $region44
      $region43: #{_lambda_.6} parent=39 // pred_region
        %p2051 = scmp.lt.s32.totalorder %s15, 1
        %s2052 = scalar_select %p2051, %s15, 1
        %s2053 = smul.addr %s2052, 32
        %s2054 = smul.addr %s2053, 8
        %s2055 = scalar_lea.vmem %s3, %s2054
      $region44: #{_lambda_.6} parent=39 // pred_fallthru
        _
    $region40: #{_lambda_.6} parent=5 // pred_fallthru
      _
  $region6: #{_lambda_.6} parent=0 // loop_footer
    %s13 = sadd.s32 1, %s9
  $region7: #{_lambda_.6} parent=0 // loop_footer_branch
    %8 = sbr.rel target = $region3
  $region8: #{_lambda_.6} parent=0 // loop_exit
    _

// kernel: _lambda_.8
$region0: #{_lambda_.8}
  #allocation0 [shape = 'u32[]', space=smem, size = 0x4, offset = 0x4, fixed_abs, tag = 'smem constant byte address 0x4 - core index']
  #allocation1 [shape = 'u32[144,128]{1,0:T(1,128)}', space=vmem, size = 0x12000, scoped, tag = 'internal scratch']
  %s0 = inlined_call_operand.vmem [shape: bf16[2,256,384], index: 0, kind: input, shape index: {}]
  %s1 = inlined_call_operand.vmem [shape: bf16[2,256,128], index: 1, kind: output, shape index: {}]
  %s2 = sld [smem:[#allocation0]]
  $region37: #{_lambda_.8} parent=0
    _
  %s4 = ssub.s32 1, %s2
  %s5 = scalar_select 0, %s4, %s2
  loop: start=0, step=1, limit=4
  $region2: #{_lambda_.8} parent=0 // loop_pre_header
    _
  $region3: #{_lambda_.8} parent=0 // loop_header
    %s7 = sphi 0, %s11
    %p8 = scmp.ge.s32.totalorder %s7, 4
    %s17 = sphi 0, %s19
    %s20 = sphi 0, %s17
    %s21 = sphi 0, %s20
    %s37 = sphi 0, %s21
    %s43 = sphi 0, %s45
    %s46 = sphi 0, %s43
    %s47 = sphi 0, %s46
    %s63 = sphi 0, %s47
  $region4: #{_lambda_.8} parent=0 // loop_header_branch
    %10 = sbr.rel (%p8) target = $region8
  $region5: #{_lambda_.8} parent=0 // loop_body
    %s12 = ssub.s32 %s7, 1
    %s13 = ssub.s32 %s7, 2
    %s14 = sadd.s32 %s7, 1
    %s15 = ssub.s32 %s7, %s14
    %p16 = scmp.eq.s32.totalorder %s15, 0
    %s18 = sadd.s32 %s17, 1
    %s19 = scalar_select %p16, %s17, %s18
    %p22 = pneg %p16
    %p23 = scmp.eq.s32.totalorder %s7, 1
    %p24 = por %p22, %p23
    %p25 = scmp.ne.s32.totalorder %s17, %s20
    %p26 = scmp.eq.s32.totalorder %s7, 0
    %p27 = por %p25, %p26
    %p28 = scmp.ne.s32.totalorder %s17, %s20
    %p29 = scmp.eq.s32.totalorder %s12, 1
    %p30 = por %p28, %p29
    %p31 = scmp.ne.s32.totalorder %s20, %s21
    %p32 = scmp.eq.s32.totalorder %s12, 0
    %p33 = por %p31, %p32
    %p34 = scmp.ne.s32.totalorder %s20, %s21
    %p35 = scmp.eq.s32.totalorder %s13, 1
    %p36 = por %p34, %p35
    %p38 = scmp.ne.s32.totalorder %s21, %s37
    %p39 = scmp.eq.s32.totalorder %s13, 0
    %p40 = por %p38, %p39
    %s41 = ssub.s32 %s7, %s14
    %p42 = scmp.eq.s32.totalorder %s41, 0
    %s44 = sadd.s32 %s43, 1
    %s45 = scalar_select %p42, %s43, %s44
    %p48 = pneg %p42
    %p49 = scmp.eq.s32.totalorder %s7, 1
    %p50 = por %p48, %p49
    %p51 = scmp.ne.s32.totalorder %s43, %s46
    %p52 = scmp.eq.s32.totalorder %s7, 0
    %p53 = por %p51, %p52
    %p54 = scmp.ne.s32.totalorder %s43, %s46
    %p55 = scmp.eq.s32.totalorder %s12, 1
    %p56 = por %p54, %p55
    %p57 = scmp.ne.s32.totalorder %s46, %s47
    %p58 = scmp.eq.s32.totalorder %s12, 0
    %p59 = por %p57, %p58
    %p60 = scmp.ne.s32.totalorder %s46, %s47
    %p61 = scmp.eq.s32.totalorder %s13, 1
    %p62 = por %p60, %p61
    %p64 = scmp.ne.s32.totalorder %s47, %s63
    %p65 = scmp.eq.s32.totalorder %s13, 0
    %p66 = por %p64, %p65
    %p67 = scmp.le.s32.totalorder 1, %s7
    %p68 = scmp.lt.s32.totalorder %s7, 3
    %p69 = pnand %p67, %p68
    %p70 = pneg %p69
    // Predicated region
    $region9: #{_lambda_.8} parent=5 // pred_check
      _
    $region10: #{_lambda_.8} parent=5 // pred_check_branch
      %72 = sbr.rel (%p69) target = $region12
    $region11: #{_lambda_.8} parent=5 // pred_region
      %s73 = ssub.s32 %s7, 1
    $region12: #{_lambda_.8} parent=5 // pred_fallthru
      _
    %p74 = scmp.lt.s32.totalorder %s7, 2
    // Predicated region
    $region13: #{_lambda_.8} parent=5 // pred_check
      %p75 = pneg %p74
    $region14: #{_lambda_.8} parent=5 // pred_check_branch
      %77 = sbr.rel (%p75) target = $region16
    $region15: #{_lambda_.8} parent=5 // pred_region
      // Predicated region
      $region17: #{_lambda_.8} parent=15 // pred_check
        %p78 = pneg %p27
      $region18: #{_lambda_.8} parent=15 // pred_check_branch
        %80 = sbr.rel (%p78) target = $region20
      $region19: #{_lambda_.8} parent=15 // pred_region
        %p81 = scmp.lt.s32.totalorder %s7, 1
        %s82 = scalar_select %p81, %s7, 1
        %s83 = smul.addr %s82, 96
        %s84 = smul.addr %s83, 4
        %s85 = scalar_lea.vmem %s0, %s84
      $region20: #{_lambda_.8} parent=15 // pred_fallthru
        _
    $region16: #{_lambda_.8} parent=5 // pred_fallthru
      _
    %p86 = scmp.le.s32.totalorder 1, %s7
    %p87 = scmp.lt.s32.totalorder %s7, 3
    %p88 = pnand %p86, %p87
    %p89 = pneg %p88
    // Predicated region
    $region21: #{_lambda_.8} parent=5 // pred_check
      _
    $region22: #{_lambda_.8} parent=5 // pred_check_branch
      %91 = sbr.rel (%p88) target = $region24
    $region23: #{_lambda_.8} parent=5 // pred_region
      %s92 = ssub.s32 %s7, 1
      %p93 = scmp.lt.s32.totalorder %s12, 1
      %s94 = scalar_select %p93, %s12, 1
      %s95 = smul.addr %s94, 96
      %s96 = smul.addr %s95, 4
      %s97 = scalar_lea.vmem %s0, %s96
      %p98 = pneg %p33
      %p99 = pneg %p30
      %p100 = pneg %p59
      %p101 = pneg %p56
      %p102 = scmp.lt.s32.totalorder %s12, 1
      %s103 = scalar_select %p102, %s12, 1
      %s104 = smul.addr %s103, 32
      %s105 = smul.addr %s104, 4
      %s106 = scalar_lea.vmem %s1, %s105
      %p107 = scmp.lt.s32.totalorder %s12, 1
      %s108 = scalar_select %p107, %s12, 1
      %s109 = smul.addr %s108, 96
      %s110 = smul.addr %s109, 4
      %s111 = scalar_lea.vmem %s0, %s110
      %p112 = scmp.lt.s32.totalorder %s12, 1
      %s113 = scalar_select %p112, %s12, 1
      %s114 = smul.addr %s113, 32
      %s115 = smul.addr %s114, 4
      %s116 = scalar_lea.vmem %s1, %s115
      %v118 = vld [vmem:[%s111] sm:$0xff]
      %v119 = vld [vmem:[%s111 + $0x8] sm:$0xf]
      %v120 = vld [vmem:[%s111 + $0xc] sm:$0xff]
      %v121 = vld [vmem:[%s111 + $0x14] sm:$0xf]
      %v122 = vld [vmem:[%s111 + $0x18] sm:$0xff]
      %v123 = vld [vmem:[%s111 + $0x20] sm:$0xf]
      %v124 = vld [vmem:[%s111 + $0x24] sm:$0xff]
      %v125 = vld [vmem:[%s111 + $0x2c] sm:$0xf]
      %v126 = vld [vmem:[%s111 + $0x30] sm:$0xff]
      %v127 = vld [vmem:[%s111 + $0x38] sm:$0xf]
      %v128 = vld [vmem:[%s111 + $0x3c] sm:$0xff]
      %v129 = vld [vmem:[%s111 + $0x44] sm:$0xf]
      %v130 = vld [vmem:[%s111 + $0x48] sm:$0xff]
      %v131 = vld [vmem:[%s111 + $0x50] sm:$0xf]
      %v132 = vld [vmem:[%s111 + $0x54] sm:$0xff]
      %v133 = vld [vmem:[%s111 + $0x5c] sm:$0xf]
      %v134 = vld [vmem:[%s111 + $0x60] sm:$0xff]
      %v135 = vld [vmem:[%s111 + $0x68] sm:$0xf]
      %v136 = vld [vmem:[%s111 + $0x6c] sm:$0xff]
      %v137 = vld [vmem:[%s111 + $0x74] sm:$0xf]
      %v138 = vld [vmem:[%s111 + $0x78] sm:$0xff]
      %v139 = vld [vmem:[%s111 + $0x80] sm:$0xf]
      %v140 = vld [vmem:[%s111 + $0x84] sm:$0xff]
      %v141 = vld [vmem:[%s111 + $0x8c] sm:$0xf]
      %v142 = vld [vmem:[%s111 + $0x90] sm:$0xff]
      %v143 = vld [vmem:[%s111 + $0x98] sm:$0xf]
      %v144 = vld [vmem:[%s111 + $0x9c] sm:$0xff]
      %v145 = vld [vmem:[%s111 + $0xa4] sm:$0xf]
      %v146 = vld [vmem:[%s111 + $0xa8] sm:$0xff]
      %v147 = vld [vmem:[%s111 + $0xb0] sm:$0xf]
      %v148 = vld [vmem:[%s111 + $0xb4] sm:$0xff]
      %v149 = vld [vmem:[%s111 + $0xbc] sm:$0xf]
      %v150 = vld [vmem:[%s111 + $0xc0] sm:$0xff]
      %v151 = vld [vmem:[%s111 + $0xc8] sm:$0xf]
      %v152 = vld [vmem:[%s111 + $0xcc] sm:$0xff]
      %v153 = vld [vmem:[%s111 + $0xd4] sm:$0xf]
      %v154 = vld [vmem:[%s111 + $0xd8] sm:$0xff]
      %v155 = vld [vmem:[%s111 + $0xe0] sm:$0xf]
      %v156 = vld [vmem:[%s111 + $0xe4] sm:$0xff]
      %v157 = vld [vmem:[%s111 + $0xec] sm:$0xf]
      %v158 = vld [vmem:[%s111 + $0xf0] sm:$0xff]
      %v159 = vld [vmem:[%s111 + $0xf8] sm:$0xf]
      %v160 = vld [vmem:[%s111 + $0xfc] sm:$0xff]
      %v161 = vld [vmem:[%s111 + $0x104] sm:$0xf]
      %v162 = vld [vmem:[%s111 + $0x108] sm:$0xff]
      %v163 = vld [vmem:[%s111 + $0x110] sm:$0xf]
      %v164 = vld [vmem:[%s111 + $0x114] sm:$0xff]
      %v165 = vld [vmem:[%s111 + $0x11c] sm:$0xf]
      %v166 = vld [vmem:[%s111 + $0x120] sm:$0xff]
      %v167 = vld [vmem:[%s111 + $0x128] sm:$0xf]
      %v168 = vld [vmem:[%s111 + $0x12c] sm:$0xff]
      %v169 = vld [vmem:[%s111 + $0x134] sm:$0xf]
      %v170 = vld [vmem:[%s111 + $0x138] sm:$0xff]
      %v171 = vld [vmem:[%s111 + $0x140] sm:$0xf]
      %v172 = vld [vmem:[%s111 + $0x144] sm:$0xff]
      %v173 = vld [vmem:[%s111 + $0x14c] sm:$0xf]
      %v174 = vld [vmem:[%s111 + $0x150] sm:$0xff]
      %v175 = vld [vmem:[%s111 + $0x158] sm:$0xf]
      %v176 = vld [vmem:[%s111 + $0x15c] sm:$0xff]
      %v177 = vld [vmem:[%s111 + $0x164] sm:$0xf]
      %v178 = vld [vmem:[%s111 + $0x168] sm:$0xff]
      %v179 = vld [vmem:[%s111 + $0x170] sm:$0xf]
      %v180 = vld [vmem:[%s111 + $0x174] sm:$0xff]
      %v181 = vld [vmem:[%s111 + $0x17c] sm:$0xf]
      %v214 = vrot.slane %v118, 4
      %v215 = vrot.slane %v120, 4
      %v216 = vrot.slane %v122, 4
      %v217 = vrot.slane %v124, 4
      %v218 = vrot.slane %v126, 4
      %v219 = vrot.slane %v128, 4
      %v220 = vrot.slane %v130, 4
      %v221 = vrot.slane %v132, 4
      %v222 = vrot.slane %v134, 4
      %v223 = vrot.slane %v136, 4
      %v224 = vrot.slane %v138, 4
      %v225 = vrot.slane %v140, 4
      %v226 = vrot.slane %v142, 4
      %v227 = vrot.slane %v144, 4
      %v228 = vrot.slane %v146, 4
      %v229 = vrot.slane %v148, 4
      %v230 = vrot.slane %v150, 4
      %v231 = vrot.slane %v152, 4
      %v232 = vrot.slane %v154, 4
      %v233 = vrot.slane %v156, 4
      %v234 = vrot.slane %v158, 4
      %v235 = vrot.slane %v160, 4
      %v236 = vrot.slane %v162, 4
      %v237 = vrot.slane %v164, 4
      %v238 = vrot.slane %v166, 4
      %v239 = vrot.slane %v168, 4
      %v240 = vrot.slane %v170, 4
      %v241 = vrot.slane %v172, 4
      %v242 = vrot.slane %v174, 4
      %v243 = vrot.slane %v176, 4
      %v244 = vrot.slane %v178, 4
      %v245 = vrot.slane %v180, 4
      %v278 = vunpack.c.l.bf16 %v214
      %v279 = vunpack.c.l.bf16 %v215
      %v280 = vunpack.c.l.bf16 %v216
      %v281 = vunpack.c.l.bf16 %v217
      %v282 = vunpack.c.l.bf16 %v218
      %v283 = vunpack.c.l.bf16 %v219
      %v284 = vunpack.c.l.bf16 %v220
      %v285 = vunpack.c.l.bf16 %v221
      %v286 = vunpack.c.l.bf16 %v222
      %v287 = vunpack.c.l.bf16 %v223
      %v288 = vunpack.c.l.bf16 %v224
      %v289 = vunpack.c.l.bf16 %v225
      %v290 = vunpack.c.l.bf16 %v226
      %v291 = vunpack.c.l.bf16 %v227
      %v292 = vunpack.c.l.bf16 %v228
      %v293 = vunpack.c.l.bf16 %v229
      %v294 = vunpack.c.l.bf16 %v230
      %v295 = vunpack.c.l.bf16 %v231
      %v296 = vunpack.c.l.bf16 %v232
      %v297 = vunpack.c.l.bf16 %v233
      %v298 = vunpack.c.l.bf16 %v234
      %v299 = vunpack.c.l.bf16 %v235
      %v300 = vunpack.c.l.bf16 %v236
      %v301 = vunpack.c.l.bf16 %v237
      %v302 = vunpack.c.l.bf16 %v238
      %v303 = vunpack.c.l.bf16 %v239
      %v304 = vunpack.c.l.bf16 %v240
      %v305 = vunpack.c.l.bf16 %v241
      %v306 = vunpack.c.l.bf16 %v242
      %v307 = vunpack.c.l.bf16 %v243
      %v308 = vunpack.c.l.bf16 %v244
      %v309 = vunpack.c.l.bf16 %v245
      %vm310 = vcmask 261120
      %v311 = vsel %vm310, %v278, -inf
      %v312 = vsel %vm310, %v279, -inf
      %v313 = vsel %vm310, %v280, -inf
      %v314 = vsel %vm310, %v281, -inf
      %v315 = vsel %vm310, %v282, -inf
      %v316 = vmax.f32 %v311, %v315
      %v317 = vsel %vm310, %v283, -inf
      %v318 = vmax.f32 %v312, %v317
      %v319 = vsel %vm310, %v284, -inf
      %v320 = vmax.f32 %v313, %v319
      %v321 = vsel %vm310, %v285, -inf
      %v322 = vmax.f32 %v314, %v321
      %v323 = vsel %vm310, %v286, -inf
      %v324 = vmax.f32 %v316, %v323
      %v325 = vsel %vm310, %v287, -inf
      %v326 = vmax.f32 %v318, %v325
      %v327 = vsel %vm310, %v288, -inf
      %v328 = vmax.f32 %v320, %v327
      %v329 = vsel %vm310, %v289, -inf
      %v330 = vmax.f32 %v322, %v329
      %v331 = vsel %vm310, %v290, -inf
      %v332 = vmax.f32 %v324, %v331
      %v333 = vsel %vm310, %v291, -inf
      %v334 = vmax.f32 %v326, %v333
      %v335 = vsel %vm310, %v292, -inf
      %v336 = vmax.f32 %v328, %v335
      %v337 = vsel %vm310, %v293, -inf
      %v338 = vmax.f32 %v330, %v337
      %v339 = vsel %vm310, %v294, -inf
      %v340 = vmax.f32 %v332, %v339
      %v341 = vsel %vm310, %v295, -inf
      %v342 = vmax.f32 %v334, %v341
      %v343 = vsel %vm310, %v296, -inf
      %v344 = vmax.f32 %v336, %v343
      %v345 = vsel %vm310, %v297, -inf
      %v346 = vmax.f32 %v338, %v345
      %v347 = vsel %vm310, %v298, -inf
      %v348 = vmax.f32 %v340, %v347
      %v349 = vsel %vm310, %v299, -inf
      %v350 = vmax.f32 %v342, %v349
      %v351 = vsel %vm310, %v300, -inf
      %v352 = vmax.f32 %v344, %v351
      %v353 = vsel %vm310, %v301, -inf
      %v354 = vmax.f32 %v346, %v353
      %v355 = vsel %vm310, %v302, -inf
      %v356 = vmax.f32 %v348, %v355
      %v357 = vsel %vm310, %v303, -inf
      %v358 = vmax.f32 %v350, %v357
      %v359 = vsel %vm310, %v304, -inf
      %v360 = vmax.f32 %v352, %v359
      %v361 = vsel %vm310, %v305, -inf
      %v362 = vmax.f32 %v354, %v361
      %v363 = vsel %vm310, %v306, -inf
      %v364 = vmax.f32 %v356, %v363
      %v365 = vsel %vm310, %v307, -inf
      %v366 = vmax.f32 %v358, %v365
      %v367 = vsel %vm310, %v308, -inf
      %v368 = vmax.f32 %v360, %v367
      %v369 = vsel %vm310, %v309, -inf
      %v370 = vmax.f32 %v362, %v369
      %v371 = vmax.f32 %v364, %v366
      %v372 = vmax.f32 %v368, %v370
      %v373 = vmax.f32 %v371, %v372
      %v374 = vrot.slane %v373, 4
      %v375 = vmax.f32 %v373, %v374
      %v376 = vrot.slane %v375, 2
      %v377 = vmax.f32 %v375, %v376
      %v378 = vrot.slane %v377, 1
      %v379 = vmax.f32 %v377, %v378
      %v380 = vsub.f32 %v278, %v379
      %v381 = vsub.f32 %v279, %v379
      %v382 = vsub.f32 %v280, %v379
      %v383 = vsub.f32 %v281, %v379
      %v384 = vsub.f32 %v282, %v379
      %v385 = vsub.f32 %v283, %v379
      %v386 = vsub.f32 %v284, %v379
      %v387 = vsub.f32 %v285, %v379
      %v388 = vsub.f32 %v286, %v379
      %v389 = vsub.f32 %v287, %v379
      %v390 = vsub.f32 %v288, %v379
      %v391 = vsub.f32 %v289, %v379
      %v392 = vsub.f32 %v290, %v379
      %v393 = vsub.f32 %v291, %v379
      %v394 = vsub.f32 %v292, %v379
      %v395 = vsub.f32 %v293, %v379
      %v396 = vsub.f32 %v294, %v379
      %v397 = vsub.f32 %v295, %v379
      %v398 = vsub.f32 %v296, %v379
      %v399 = vsub.f32 %v297, %v379
      %v400 = vsub.f32 %v298, %v379
      %v401 = vsub.f32 %v299, %v379
      %v402 = vsub.f32 %v300, %v379
      %v403 = vsub.f32 %v301, %v379
      %v404 = vsub.f32 %v302, %v379
      %v405 = vsub.f32 %v303, %v379
      %v406 = vsub.f32 %v304, %v379
      %v407 = vsub.f32 %v305, %v379
      %v408 = vsub.f32 %v306, %v379
      %v409 = vsub.f32 %v307, %v379
      %v410 = vsub.f32 %v308, %v379
      %v411 = vsub.f32 %v309, %v379
      %v412 = vmul.f32 %v380, 1.442695
      %v413 = vpow.pop %v412
      %v414 = vmul.f32 %v381, 1.442695
      %v415 = vpow.pop %v414
      %v416 = vmul.f32 %v382, 1.442695
      %v417 = vpow.pop %v416
      %v418 = vmul.f32 %v383, 1.442695
      %v419 = vpow.pop %v418
      %v420 = vmul.f32 %v384, 1.442695
      %v421 = vpow.pop %v420
      %v422 = vmul.f32 %v385, 1.442695
      %v423 = vpow.pop %v422
      %v424 = vmul.f32 %v386, 1.442695
      %v425 = vpow.pop %v424
      %v426 = vmul.f32 %v387, 1.442695
      %v427 = vpow.pop %v426
      %v428 = vmul.f32 %v388, 1.442695
      %v429 = vpow.pop %v428
      %v430 = vmul.f32 %v389, 1.442695
      %v431 = vpow.pop %v430
      %v432 = vmul.f32 %v390, 1.442695
      %v433 = vpow.pop %v432
      %v434 = vmul.f32 %v391, 1.442695
      %v435 = vpow.pop %v434
      %v436 = vmul.f32 %v392, 1.442695
      %v437 = vpow.pop %v436
      %v438 = vmul.f32 %v393, 1.442695
      %v439 = vpow.pop %v438
      %v440 = vmul.f32 %v394, 1.442695
      %v441 = vpow.pop %v440
      %v442 = vmul.f32 %v395, 1.442695
      %v443 = vpow.pop %v442
      %v444 = vmul.f32 %v396, 1.442695
      %v445 = vpow.pop %v444
      %v446 = vmul.f32 %v397, 1.442695
      %v447 = vpow.pop %v446
      %v448 = vmul.f32 %v398, 1.442695
      %v449 = vpow.pop %v448
      %v450 = vmul.f32 %v399, 1.442695
      %v451 = vpow.pop %v450
      %v452 = vmul.f32 %v400, 1.442695
      %v453 = vpow.pop %v452
      %v454 = vmul.f32 %v401, 1.442695
      %v455 = vpow.pop %v454
      %v456 = vmul.f32 %v402, 1.442695
      %v457 = vpow.pop %v456
      %v458 = vmul.f32 %v403, 1.442695
      %v459 = vpow.pop %v458
      %v460 = vmul.f32 %v404, 1.442695
      %v461 = vpow.pop %v460
      %v462 = vmul.f32 %v405, 1.442695
      %v463 = vpow.pop %v462
      %v464 = vmul.f32 %v406, 1.442695
      %v465 = vpow.pop %v464
      %v466 = vmul.f32 %v407, 1.442695
      %v467 = vpow.pop %v466
      %v468 = vmul.f32 %v408, 1.442695
      %v469 = vpow.pop %v468
      %v470 = vmul.f32 %v409, 1.442695
      %v471 = vpow.pop %v470
      %v472 = vmul.f32 %v410, 1.442695
      %v473 = vpow.pop %v472
      %v474 = vmul.f32 %v411, 1.442695
      %v475 = vpow.pop %v474
      %v476 = vsel %vm310, %v413, 0.0
      %v477 = vsel %vm310, %v415, 0.0
      %v478 = vadd.f32 %v476, %v477
      %v479 = vsel %vm310, %v417, 0.0
      %v480 = vadd.f32 %v478, %v479
      %v481 = vsel %vm310, %v419, 0.0
      %v482 = vadd.f32 %v480, %v481
      %v483 = vsel %vm310, %v421, 0.0
      %v484 = vadd.f32 %v482, %v483
      %v485 = vsel %vm310, %v423, 0.0
      %v486 = vadd.f32 %v484, %v485
      %v487 = vsel %vm310, %v425, 0.0
      %v488 = vadd.f32 %v486, %v487
      %v489 = vsel %vm310, %v427, 0.0
      %v490 = vadd.f32 %v488, %v489
      %v491 = vsel %vm310, %v429, 0.0
      %v492 = vadd.f32 %v490, %v491
      %v493 = vsel %vm310, %v431, 0.0
      %v494 = vadd.f32 %v492, %v493
      %v495 = vsel %vm310, %v433, 0.0
      %v496 = vadd.f32 %v494, %v495
      %v497 = vsel %vm310, %v435, 0.0
      %v498 = vadd.f32 %v496, %v497
      %v499 = vsel %vm310, %v437, 0.0
      %v500 = vadd.f32 %v498, %v499
      %v501 = vsel %vm310, %v439, 0.0
      %v502 = vadd.f32 %v500, %v501
      %v503 = vsel %vm310, %v441, 0.0
      %v504 = vadd.f32 %v502, %v503
      %v505 = vsel %vm310, %v443, 0.0
      %v506 = vadd.f32 %v504, %v505
      %v507 = vsel %vm310, %v445, 0.0
      %v508 = vadd.f32 %v506, %v507
      %v509 = vsel %vm310, %v447, 0.0
      %v510 = vadd.f32 %v508, %v509
      %v511 = vsel %vm310, %v449, 0.0
      %v512 = vadd.f32 %v510, %v511
      %v513 = vsel %vm310, %v451, 0.0
      %v514 = vadd.f32 %v512, %v513
      %v515 = vsel %vm310, %v453, 0.0
      %v516 = vadd.f32 %v514, %v515
      %v517 = vsel %vm310, %v455, 0.0
      %v518 = vadd.f32 %v516, %v517
      %v519 = vsel %vm310, %v457, 0.0
      %v520 = vadd.f32 %v518, %v519
      %v521 = vsel %vm310, %v459, 0.0
      %v522 = vadd.f32 %v520, %v521
      %v523 = vsel %vm310, %v461, 0.0
      %v524 = vadd.f32 %v522, %v523
      %v525 = vsel %vm310, %v463, 0.0
      %v526 = vadd.f32 %v524, %v525
      %v527 = vsel %vm310, %v465, 0.0
      %v528 = vadd.f32 %v526, %v527
      %v529 = vsel %vm310, %v467, 0.0
      %v530 = vadd.f32 %v528, %v529
      %v531 = vsel %vm310, %v469, 0.0
      %v532 = vadd.f32 %v530, %v531
      %v533 = vsel %vm310, %v471, 0.0
      %v534 = vadd.f32 %v532, %v533
      %v535 = vsel %vm310, %v473, 0.0
      %v536 = vadd.f32 %v534, %v535
      %v537 = vsel %vm310, %v475, 0.0
      %v538 = vadd.f32 %v536, %v537
      %v539 = vrot.slane %v538, 4
      %v540 = vadd.f32 %v538, %v539
      %v541 = vrot.slane %v540, 2
      %v542 = vadd.f32 %v540, %v541
      %v543 = vrot.slane %v542, 1
      %v544 = vadd.f32 %v542, %v543
      %v545 = vrcp.pop %v544
      %v546 = vmul.f32 %v413, %v545
      %v547 = vmul.f32 %v415, %v545
      %v548 = vmul.f32 %v417, %v545
      %v549 = vmul.f32 %v419, %v545
      %v550 = vmul.f32 %v421, %v545
      %v551 = vmul.f32 %v423, %v545
      %v552 = vmul.f32 %v425, %v545
      %v553 = vmul.f32 %v427, %v545
      %v554 = vmul.f32 %v429, %v545
      %v555 = vmul.f32 %v431, %v545
      %v556 = vmul.f32 %v433, %v545
      %v557 = vmul.f32 %v435, %v545
      %v558 = vmul.f32 %v437, %v545
      %v559 = vmul.f32 %v439, %v545
      %v560 = vmul.f32 %v441, %v545
      %v561 = vmul.f32 %v443, %v545
      %v562 = vmul.f32 %v445, %v545
      %v563 = vmul.f32 %v447, %v545
      %v564 = vmul.f32 %v449, %v545
      %v565 = vmul.f32 %v451, %v545
      %v566 = vmul.f32 %v453, %v545
      %v567 = vmul.f32 %v455, %v545
      %v568 = vmul.f32 %v457, %v545
      %v569 = vmul.f32 %v459, %v545
      %v570 = vmul.f32 %v461, %v545
      %v571 = vmul.f32 %v463, %v545
      %v572 = vmul.f32 %v465, %v545
      %v573 = vmul.f32 %v467, %v545
      %v574 = vmul.f32 %v469, %v545
      %v575 = vmul.f32 %v471, %v545
      %v576 = vmul.f32 %v473, %v545
      %v577 = vmul.f32 %v475, %v545
      %v578 = vpack.c.bf16 %v547, %v546
      %v579 = vpack.c.bf16 %v549, %v548
      %v580 = vpack.c.bf16 %v551, %v550
      %v581 = vpack.c.bf16 %v553, %v552
      %v582 = vpack.c.bf16 %v555, %v554
      %v583 = vpack.c.bf16 %v557, %v556
      %v584 = vpack.c.bf16 %v559, %v558
      %v585 = vpack.c.bf16 %v561, %v560
      %v586 = vpack.c.bf16 %v563, %v562
      %v587 = vpack.c.bf16 %v565, %v564
      %v588 = vpack.c.bf16 %v567, %v566
      %v589 = vpack.c.bf16 %v569, %v568
      %v590 = vpack.c.bf16 %v571, %v570
      %v591 = vpack.c.bf16 %v573, %v572
      %v592 = vpack.c.bf16 %v575, %v574
      %v593 = vpack.c.bf16 %v577, %v576
      %594 = vxpose.xlu0.c.b16.start [1/8] %v578, 128
      %595 = vxpose.xlu0.c.b16.cont [2/8] %v579, 128
      %596 = vxpose.xlu0.c.b16.cont [3/8] %v580, 128
      %597 = vxpose.xlu0.c.b16.cont [4/8] %v581, 128
      %598 = vxpose.xlu0.c.b16.cont [5/8] %v582, 128
      %599 = vxpose.xlu0.c.b16.cont [6/8] %v583, 128
      %600 = vxpose.xlu0.c.b16.cont [7/8] %v584, 128
      %601 = vxpose.xlu0.c.b16.end [8/8] %v585, 128
      %v602 = vpop.trf.xlu0
      %v603 = vpop.trf.xlu0
      %v604 = vpop.trf.xlu0
      %v605 = vpop.trf.xlu0
      %v606 = vpop.trf.xlu0
      %v607 = vpop.trf.xlu0
      %v608 = vpop.trf.xlu0
      %v609 = vpop.trf.xlu0
      %610 = vxpose.xlu0.c.b16.start [1/8] %v586, 128
      %611 = vxpose.xlu0.c.b16.cont [2/8] %v587, 128
      %612 = vxpose.xlu0.c.b16.cont [3/8] %v588, 128
      %613 = vxpose.xlu0.c.b16.cont [4/8] %v589, 128
      %614 = vxpose.xlu0.c.b16.cont [5/8] %v590, 128
      %615 = vxpose.xlu0.c.b16.cont [6/8] %v591, 128
      %616 = vxpose.xlu0.c.b16.cont [7/8] %v592, 128
      %617 = vxpose.xlu0.c.b16.end [8/8] %v593, 128
      %v618 = vpop.trf.xlu0
      %v619 = vpop.trf.xlu0
      %v620 = vpop.trf.xlu0
      %v621 = vpop.trf.xlu0
      %v622 = vpop.trf.xlu0
      %v623 = vpop.trf.xlu0
      %v624 = vpop.trf.xlu0
      %v625 = vpop.trf.xlu0
      %v658 = vunpack.c.l.b16 %v119
      %v659 = vunpack.c.l.b16 %v121
      %v660 = vunpack.c.l.b16 %v123
      %v661 = vunpack.c.l.b16 %v125
      %v662 = vunpack.c.l.b16 %v127
      %v663 = vunpack.c.l.b16 %v129
      %v664 = vunpack.c.l.b16 %v131
      %v665 = vunpack.c.l.b16 %v133
      %v666 = vunpack.c.l.b16 %v135
      %v667 = vunpack.c.l.b16 %v137
      %v668 = vunpack.c.l.b16 %v139
      %v669 = vunpack.c.l.b16 %v141
      %v670 = vunpack.c.l.b16 %v143
      %v671 = vunpack.c.l.b16 %v145
      %v672 = vunpack.c.l.b16 %v147
      %v673 = vunpack.c.l.b16 %v149
      %v674 = vunpack.c.l.b16 %v151
      %v675 = vunpack.c.l.b16 %v153
      %v676 = vunpack.c.l.b16 %v155
      %v677 = vunpack.c.l.b16 %v157
      %v678 = vunpack.c.l.b16 %v159
      %v679 = vunpack.c.l.b16 %v161
      %v680 = vunpack.c.l.b16 %v163
      %v681 = vunpack.c.l.b16 %v165
      %v682 = vunpack.c.l.b16 %v167
      %v683 = vunpack.c.l.b16 %v169
      %v684 = vunpack.c.l.b16 %v171
      %v685 = vunpack.c.l.b16 %v173
      %v686 = vunpack.c.l.b16 %v175
      %v687 = vunpack.c.l.b16 %v177
      %v688 = vunpack.c.l.b16 %v179
      %v689 = vunpack.c.l.b16 %v181
      %v690 = vpack.c.b16 %v659, %v658
      %v691 = vpack.c.b16 %v661, %v660
      %v692 = vpack.c.b16 %v663, %v662
      %v693 = vpack.c.b16 %v665, %v664
      %v694 = vpack.c.b16 %v667, %v666
      %v695 = vpack.c.b16 %v669, %v668
      %v696 = vpack.c.b16 %v671, %v670
      %v697 = vpack.c.b16 %v673, %v672
      %v698 = vpack.c.b16 %v675, %v674
      %v699 = vpack.c.b16 %v677, %v676
      %v700 = vpack.c.b16 %v679, %v678
      %v701 = vpack.c.b16 %v681, %v680
      %v702 = vpack.c.b16 %v683, %v682
      %v703 = vpack.c.b16 %v685, %v684
      %v704 = vpack.c.b16 %v687, %v686
      %v705 = vpack.c.b16 %v689, %v688
      %722 = vmatprep.subr.bf16.mxu0 0
      %723 = vmatpush1.bf16.msra.mxu0 %v697
      %724 = vmatprep.subr.bf16.mxu0 0
      %725 = vmatpush1.bf16.msra.mxu0 %v696
      %726 = vmatprep.subr.bf16.mxu0 0
      %727 = vmatpush1.bf16.msra.mxu0 %v695
      %728 = vmatprep.subr.bf16.mxu0 0
      %729 = vmatpush1.bf16.msra.mxu0 %v694
      %730 = vmatprep.subr.bf16.mxu0 0
      %731 = vmatpush1.bf16.msra.mxu0 %v693
      %732 = vmatprep.subr.bf16.mxu0 0
      %733 = vmatpush1.bf16.msra.mxu0 %v692
      %734 = vmatprep.subr.bf16.mxu0 0
      %735 = vmatpush1.bf16.msra.mxu0 %v691
      %736 = vmatprep.subr.bf16.mxu0 0
      %737 = vmatpush1.bf16.msra.mxu0 %v690
      %738 = vmatprep.subr.bf16.mxu0 0
      %739 = vmatpush2.bf16.msra.mxu0 %v705
      %740 = vmatprep.subr.bf16.mxu0 0
      %741 = vmatpush2.bf16.msra.mxu0 %v704
      %742 = vmatprep.subr.bf16.mxu0 0
      %743 = vmatpush2.bf16.msra.mxu0 %v703
      %744 = vmatprep.subr.bf16.mxu0 0
      %745 = vmatpush2.bf16.msra.mxu0 %v702
      %746 = vmatprep.subr.bf16.mxu0 0
      %747 = vmatpush2.bf16.msra.mxu0 %v701
      %748 = vmatprep.subr.bf16.mxu0 0
      %749 = vmatpush2.bf16.msra.mxu0 %v700
      %750 = vmatprep.subr.bf16.mxu0 0
      %751 = vmatpush2.bf16.msra.mxu0 %v699
      %752 = vmatprep.subr.bf16.mxu0 0
      %753 = vmatpush2.bf16.msra.mxu0 %v698
      %754 = vmatprep.mubr.bf16.mxu0 %v618
      %755 = vmatmul.mubr.bf16.gmra.mxu0 %v602
      %v756 = vpop.f32.mrf.mxu0
      %v757 = vadd.f32 0.0, %v756
      %v758 = vpop.f32.mrf.mxu0
      %v759 = vpop.f32.mrf.mxu0
      %v760 = vadd.f32 0.0, %v759
      %v761 = vpop.f32.mrf.mxu0
      %762 = vmatprep.mubr.bf16.mxu0 %v619
      %763 = vmatmul.mubr.bf16.gmra.mxu0 %v603
      %v764 = vpop.f32.mrf.mxu0
      %v765 = vadd.f32 0.0, %v764
      %v766 = vpop.f32.mrf.mxu0
      %v767 = vpop.f32.mrf.mxu0
      %v768 = vadd.f32 0.0, %v767
      %v769 = vpop.f32.mrf.mxu0
      %770 = vdwg.mxu0
      %v771 = vpack.c.bf16 %v760, %v757
      %v772 = vpack.c.bf16 %v768, %v765
      %v773 = vunpack.c.l.b16 %v118
      %v774 = vunpack.c.l.b16 %v120
      %v775 = vunpack.c.l.b16 %v122
      %v776 = vunpack.c.l.b16 %v124
      %v777 = vunpack.c.l.b16 %v126
      %v778 = vunpack.c.l.b16 %v128
      %v779 = vunpack.c.l.b16 %v130
      %v780 = vunpack.c.l.b16 %v132
      %v781 = vunpack.c.l.b16 %v134
      %v782 = vunpack.c.l.b16 %v136
      %v783 = vunpack.c.l.b16 %v138
      %v784 = vunpack.c.l.b16 %v140
      %v785 = vunpack.c.l.b16 %v142
      %v786 = vunpack.c.l.b16 %v144
      %v787 = vunpack.c.l.b16 %v146
      %v788 = vunpack.c.l.b16 %v148
      %v789 = vunpack.c.l.b16 %v150
      %v790 = vunpack.c.l.b16 %v152
      %v791 = vunpack.c.l.b16 %v154
      %v792 = vunpack.c.l.b16 %v156
      %v793 = vunpack.c.l.b16 %v158
      %v794 = vunpack.c.l.b16 %v160
      %v795 = vunpack.c.l.b16 %v162
      %v796 = vunpack.c.l.b16 %v164
      %v797 = vunpack.c.l.b16 %v166
      %v798 = vunpack.c.l.b16 %v168
      %v799 = vunpack.c.l.b16 %v170
      %v800 = vunpack.c.l.b16 %v172
      %v801 = vunpack.c.l.b16 %v174
      %v802 = vunpack.c.l.b16 %v176
      %v803 = vunpack.c.l.b16 %v178
      %v804 = vunpack.c.l.b16 %v180
      %v805 = vpack.c.b16 %v774, %v773
      %v806 = vpack.c.b16 %v776, %v775
      %v807 = vpack.c.b16 %v778, %v777
      %v808 = vpack.c.b16 %v780, %v779
      %v809 = vpack.c.b16 %v782, %v781
      %v810 = vpack.c.b16 %v784, %v783
      %v811 = vpack.c.b16 %v786, %v785
      %v812 = vpack.c.b16 %v788, %v787
      %v813 = vpack.c.b16 %v790, %v789
      %v814 = vpack.c.b16 %v792, %v791
      %v815 = vpack.c.b16 %v794, %v793
      %v816 = vpack.c.b16 %v796, %v795
      %v817 = vpack.c.b16 %v798, %v797
      %v818 = vpack.c.b16 %v800, %v799
      %v819 = vpack.c.b16 %v802, %v801
      %v820 = vpack.c.b16 %v804, %v803
      %v822 = vsel %vm310, %v805, 0
      %v825 = vsel %vm310, %v806, 0
      %v828 = vsel %vm310, %v807, 0
      %v831 = vsel %vm310, %v808, 0
      %v834 = vsel %vm310, %v809, 0
      %v837 = vsel %vm310, %v810, 0
      %v840 = vsel %vm310, %v811, 0
      %v843 = vsel %vm310, %v812, 0
      %v846 = vsel %vm310, %v813, 0
      %v849 = vsel %vm310, %v814, 0
      %v852 = vsel %vm310, %v815, 0
      %v855 = vsel %vm310, %v816, 0
      %v858 = vsel %vm310, %v817, 0
      %v861 = vsel %vm310, %v818, 0
      %v864 = vsel %vm310, %v819, 0
      %v867 = vsel %vm310, %v820, 0
      %869 = vmatprep.subr.bf16.mxu0 0
      %870 = vmatpush1.bf16.msra.mxu0 0
      %871 = vmatprep.subr.bf16.mxu0 0
      %872 = vmatpush1.bf16.msra.mxu0 0
      %873 = vmatprep.subr.bf16.mxu0 0
      %874 = vmatpush1.bf16.msra.mxu0 0
      %875 = vmatprep.subr.bf16.mxu0 0
      %876 = vmatpush1.bf16.msra.mxu0 0
      %877 = vmatprep.subr.bf16.mxu0 0
      %878 = vmatpush1.bf16.msra.mxu0 0
      %879 = vmatprep.subr.bf16.mxu0 0
      %880 = vmatpush1.bf16.msra.mxu0 0
      %881 = vmatprep.subr.bf16.mxu0 0
      %882 = vmatpush1.bf16.msra.mxu0 %v772
      %883 = vmatprep.subr.bf16.mxu0 0
      %884 = vmatpush1.bf16.msra.mxu0 %v771
      %885 = vmatprep.subr.bf16.mxu0 0
      %886 = vmatpush2.bf16.msra.mxu0 0
      %887 = vmatprep.subr.bf16.mxu0 0
      %888 = vmatpush2.bf16.msra.mxu0 0
      %889 = vmatprep.subr.bf16.mxu0 0
      %890 = vmatpush2.bf16.msra.mxu0 0
      %891 = vmatprep.subr.bf16.mxu0 0
      %892 = vmatpush2.bf16.msra.mxu0 0
      %893 = vmatprep.subr.bf16.mxu0 0
      %894 = vmatpush2.bf16.msra.mxu0 0
      %895 = vmatprep.subr.bf16.mxu0 0
      %896 = vmatpush2.bf16.msra.mxu0 0
      %897 = vmatprep.subr.bf16.mxu0 0
      %898 = vmatpush2.bf16.msra.mxu0 0
      %899 = vmatprep.subr.bf16.mxu0 0
      %900 = vmatpush2.bf16.msra.mxu0 0
      %901 = vmatprep.mubr.bf16.mxu0 0
      %902 = vmatmul.mubr.bf16.gmra.mxu0 %v822
      %v903 = vpop.f32.mrf.mxu0
      %v904 = vadd.f32 0.0, %v903
      %v905 = vpop.f32.mrf.mxu0
      %v906 = vpop.f32.mrf.mxu0
      %v907 = vadd.f32 0.0, %v906
      %v908 = vpop.f32.mrf.mxu0
      %909 = vmatprep.mubr.bf16.mxu0 0
      %910 = vmatmul.mubr.bf16.gmra.mxu0 %v825
      %v911 = vpop.f32.mrf.mxu0
      %v912 = vadd.f32 0.0, %v911
      %v913 = vpop.f32.mrf.mxu0
      %v914 = vpop.f32.mrf.mxu0
      %v915 = vadd.f32 0.0, %v914
      %v916 = vpop.f32.mrf.mxu0
      %917 = vmatprep.mubr.bf16.mxu0 0
      %918 = vmatmul.mubr.bf16.gmra.mxu0 %v828
      %v919 = vpop.f32.mrf.mxu0
      %v920 = vadd.f32 0.0, %v919
      %v921 = vpop.f32.mrf.mxu0
      %v922 = vpop.f32.mrf.mxu0
      %v923 = vadd.f32 0.0, %v922
      %v924 = vpop.f32.mrf.mxu0
      %925 = vmatprep.mubr.bf16.mxu0 0
      %926 = vmatmul.mubr.bf16.gmra.mxu0 %v831
      %v927 = vpop.f32.mrf.mxu0
      %v928 = vadd.f32 0.0, %v927
      %v929 = vpop.f32.mrf.mxu0
      %v930 = vpop.f32.mrf.mxu0
      %v931 = vadd.f32 0.0, %v930
      %v932 = vpop.f32.mrf.mxu0
      %933 = vmatprep.mubr.bf16.mxu0 0
      %934 = vmatmul.mubr.bf16.gmra.mxu0 %v834
      %v935 = vpop.f32.mrf.mxu0
      %v936 = vadd.f32 0.0, %v935
      %v937 = vpop.f32.mrf.mxu0
      %v938 = vpop.f32.mrf.mxu0
      %v939 = vadd.f32 0.0, %v938
      %v940 = vpop.f32.mrf.mxu0
      %941 = vmatprep.mubr.bf16.mxu0 0
      %942 = vmatmul.mubr.bf16.gmra.mxu0 %v837
      %v943 = vpop.f32.mrf.mxu0
      %v944 = vadd.f32 0.0, %v943
      %v945 = vpop.f32.mrf.mxu0
      %v946 = vpop.f32.mrf.mxu0
      %v947 = vadd.f32 0.0, %v946
      %v948 = vpop.f32.mrf.mxu0
      %949 = vmatprep.mubr.bf16.mxu0 0
      %950 = vmatmul.mubr.bf16.gmra.mxu0 %v840
      %v951 = vpop.f32.mrf.mxu0
      %v952 = vadd.f32 0.0, %v951
      %v953 = vpop.f32.mrf.mxu0
      %v954 = vpop.f32.mrf.mxu0
      %v955 = vadd.f32 0.0, %v954
      %v956 = vpop.f32.mrf.mxu0
      %957 = vmatprep.mubr.bf16.mxu0 0
      %958 = vmatmul.mubr.bf16.gmra.mxu0 %v843
      %v959 = vpop.f32.mrf.mxu0
      %v960 = vadd.f32 0.0, %v959
      %v961 = vpop.f32.mrf.mxu0
      %v962 = vpop.f32.mrf.mxu0
      %v963 = vadd.f32 0.0, %v962
      %v964 = vpop.f32.mrf.mxu0
      %965 = vmatprep.mubr.bf16.mxu0 0
      %966 = vmatmul.mubr.bf16.gmra.mxu0 %v846
      %v967 = vpop.f32.mrf.mxu0
      %v968 = vadd.f32 0.0, %v967
      %v969 = vpop.f32.mrf.mxu0
      %v970 = vpop.f32.mrf.mxu0
      %v971 = vadd.f32 0.0, %v970
      %v972 = vpop.f32.mrf.mxu0
      %973 = vmatprep.mubr.bf16.mxu0 0
      %974 = vmatmul.mubr.bf16.gmra.mxu0 %v849
      %v975 = vpop.f32.mrf.mxu0
      %v976 = vadd.f32 0.0, %v975
      %v977 = vpop.f32.mrf.mxu0
      %v978 = vpop.f32.mrf.mxu0
      %v979 = vadd.f32 0.0, %v978
      %v980 = vpop.f32.mrf.mxu0
      %981 = vmatprep.mubr.bf16.mxu0 0
      %982 = vmatmul.mubr.bf16.gmra.mxu0 %v852
      %v983 = vpop.f32.mrf.mxu0
      %v984 = vadd.f32 0.0, %v983
      %v985 = vpop.f32.mrf.mxu0
      %v986 = vpop.f32.mrf.mxu0
      %v987 = vadd.f32 0.0, %v986
      %v988 = vpop.f32.mrf.mxu0
      %989 = vmatprep.mubr.bf16.mxu0 0
      %990 = vmatmul.mubr.bf16.gmra.mxu0 %v855
      %v991 = vpop.f32.mrf.mxu0
      %v992 = vadd.f32 0.0, %v991
      %v993 = vpop.f32.mrf.mxu0
      %v994 = vpop.f32.mrf.mxu0
      %v995 = vadd.f32 0.0, %v994
      %v996 = vpop.f32.mrf.mxu0
      %997 = vmatprep.mubr.bf16.mxu0 0
      %998 = vmatmul.mubr.bf16.gmra.mxu0 %v858
      %v999 = vpop.f32.mrf.mxu0
      %v1000 = vadd.f32 0.0, %v999
      %v1001 = vpop.f32.mrf.mxu0
      %v1002 = vpop.f32.mrf.mxu0
      %v1003 = vadd.f32 0.0, %v1002
      %v1004 = vpop.f32.mrf.mxu0
      %1005 = vmatprep.mubr.bf16.mxu0 0
      %1006 = vmatmul.mubr.bf16.gmra.mxu0 %v861
      %v1007 = vpop.f32.mrf.mxu0
      %v1008 = vadd.f32 0.0, %v1007
      %v1009 = vpop.f32.mrf.mxu0
      %v1010 = vpop.f32.mrf.mxu0
      %v1011 = vadd.f32 0.0, %v1010
      %v1012 = vpop.f32.mrf.mxu0
      %1013 = vmatprep.mubr.bf16.mxu0 0
      %1014 = vmatmul.mubr.bf16.gmra.mxu0 %v864
      %v1015 = vpop.f32.mrf.mxu0
      %v1016 = vadd.f32 0.0, %v1015
      %v1017 = vpop.f32.mrf.mxu0
      %v1018 = vpop.f32.mrf.mxu0
      %v1019 = vadd.f32 0.0, %v1018
      %v1020 = vpop.f32.mrf.mxu0
      %1021 = vmatprep.mubr.bf16.mxu0 0
      %1022 = vmatmul.mubr.bf16.gmra.mxu0 %v867
      %v1023 = vpop.f32.mrf.mxu0
      %v1024 = vadd.f32 0.0, %v1023
      %v1025 = vpop.f32.mrf.mxu0
      %v1026 = vpop.f32.mrf.mxu0
      %v1027 = vadd.f32 0.0, %v1026
      %v1028 = vpop.f32.mrf.mxu0
      %1029 = vdwg.mxu0
      %1030 = vrot.lane.b32.xlu0 %v118, 96
      %v1031 = vpop.permute.xlu0 %1030
      %1032 = vrot.lane.b32.xlu0 %v120, 96
      %v1033 = vpop.permute.xlu0 %1032
      %1034 = vrot.lane.b32.xlu0 %v122, 96
      %v1035 = vpop.permute.xlu0 %1034
      %1036 = vrot.lane.b32.xlu0 %v124, 96
      %v1037 = vpop.permute.xlu0 %1036
      %1038 = vrot.lane.b32.xlu0 %v126, 96
      %v1039 = vpop.permute.xlu0 %1038
      %1040 = vrot.lane.b32.xlu0 %v128, 96
      %v1041 = vpop.permute.xlu0 %1040
      %1042 = vrot.lane.b32.xlu0 %v130, 96
      %v1043 = vpop.permute.xlu0 %1042
      %1044 = vrot.lane.b32.xlu0 %v132, 96
      %v1045 = vpop.permute.xlu0 %1044
      %1046 = vrot.lane.b32.xlu0 %v134, 96
      %v1047 = vpop.permute.xlu0 %1046
      %1048 = vrot.lane.b32.xlu0 %v136, 96
      %v1049 = vpop.permute.xlu0 %1048
      %1050 = vrot.lane.b32.xlu0 %v138, 96
      %v1051 = vpop.permute.xlu0 %1050
      %1052 = vrot.lane.b32.xlu0 %v140, 96
      %v1053 = vpop.permute.xlu0 %1052
      %1054 = vrot.lane.b32.xlu0 %v142, 96
      %v1055 = vpop.permute.xlu0 %1054
      %1056 = vrot.lane.b32.xlu0 %v144, 96
      %v1057 = vpop.permute.xlu0 %1056
      %1058 = vrot.lane.b32.xlu0 %v146, 96
      %v1059 = vpop.permute.xlu0 %1058
      %1060 = vrot.lane.b32.xlu0 %v148, 96
      %v1061 = vpop.permute.xlu0 %1060
      %1062 = vrot.lane.b32.xlu0 %v150, 96
      %v1063 = vpop.permute.xlu0 %1062
      %1064 = vrot.lane.b32.xlu0 %v152, 96
      %v1065 = vpop.permute.xlu0 %1064
      %1066 = vrot.lane.b32.xlu0 %v154, 96
      %v1067 = vpop.permute.xlu0 %1066
      %1068 = vrot.lane.b32.xlu0 %v156, 96
      %v1069 = vpop.permute.xlu0 %1068
      %1070 = vrot.lane.b32.xlu0 %v158, 96
      %v1071 = vpop.permute.xlu0 %1070
      %1072 = vrot.lane.b32.xlu0 %v160, 96
      %v1073 = vpop.permute.xlu0 %1072
      %1074 = vrot.lane.b32.xlu0 %v162, 96
      %v1075 = vpop.permute.xlu0 %1074
      %1076 = vrot.lane.b32.xlu0 %v164, 96
      %v1077 = vpop.permute.xlu0 %1076
      %1078 = vrot.lane.b32.xlu0 %v166, 96
      %v1079 = vpop.permute.xlu0 %1078
      %1080 = vrot.lane.b32.xlu0 %v168, 96
      %v1081 = vpop.permute.xlu0 %1080
      %1082 = vrot.lane.b32.xlu0 %v170, 96
      %v1083 = vpop.permute.xlu0 %1082
      %1084 = vrot.lane.b32.xlu0 %v172, 96
      %v1085 = vpop.permute.xlu0 %1084
      %1086 = vrot.lane.b32.xlu0 %v174, 96
      %v1087 = vpop.permute.xlu0 %1086
      %1088 = vrot.lane.b32.xlu0 %v176, 96
      %v1089 = vpop.permute.xlu0 %1088
      %1090 = vrot.lane.b32.xlu0 %v178, 96
      %v1091 = vpop.permute.xlu0 %1090
      %1092 = vrot.lane.b32.xlu0 %v180, 96
      %v1093 = vpop.permute.xlu0 %1092
      %v1094 = vrot.slane %v1031, 4
      %v1095 = vrot.slane %v1033, 4
      %v1096 = vrot.slane %v1035, 4
      %v1097 = vrot.slane %v1037, 4
      %v1098 = vrot.slane %v1039, 4
      %v1099 = vrot.slane %v1041, 4
      %v1100 = vrot.slane %v1043, 4
      %v1101 = vrot.slane %v1045, 4
      %v1102 = vrot.slane %v1047, 4
      %v1103 = vrot.slane %v1049, 4
      %v1104 = vrot.slane %v1051, 4
      %v1105 = vrot.slane %v1053, 4
      %v1106 = vrot.slane %v1055, 4
      %v1107 = vrot.slane %v1057, 4
      %v1108 = vrot.slane %v1059, 4
      %v1109 = vrot.slane %v1061, 4
      %v1110 = vrot.slane %v1063, 4
      %v1111 = vrot.slane %v1065, 4
      %v1112 = vrot.slane %v1067, 4
      %v1113 = vrot.slane %v1069, 4
      %v1114 = vrot.slane %v1071, 4
      %v1115 = vrot.slane %v1073, 4
      %v1116 = vrot.slane %v1075, 4
      %v1117 = vrot.slane %v1077, 4
      %v1118 = vrot.slane %v1079, 4
      %v1119 = vrot.slane %v1081, 4
      %v1120 = vrot.slane %v1083, 4
      %v1121 = vrot.slane %v1085, 4
      %v1122 = vrot.slane %v1087, 4
      %v1123 = vrot.slane %v1089, 4
      %v1124 = vrot.slane %v1091, 4
      %v1125 = vrot.slane %v1093, 4
      %v1158 = vunpack.c.l.bf16 %v1094
      %v1159 = vunpack.c.l.bf16 %v1095
      %v1160 = vunpack.c.l.bf16 %v1096
      %v1161 = vunpack.c.l.bf16 %v1097
      %v1162 = vunpack.c.l.bf16 %v1098
      %v1163 = vunpack.c.l.bf16 %v1099
      %v1164 = vunpack.c.l.bf16 %v1100
      %v1165 = vunpack.c.l.bf16 %v1101
      %v1166 = vunpack.c.l.bf16 %v1102
      %v1167 = vunpack.c.l.bf16 %v1103
      %v1168 = vunpack.c.l.bf16 %v1104
      %v1169 = vunpack.c.l.bf16 %v1105
      %v1170 = vunpack.c.l.bf16 %v1106
      %v1171 = vunpack.c.l.bf16 %v1107
      %v1172 = vunpack.c.l.bf16 %v1108
      %v1173 = vunpack.c.l.bf16 %v1109
      %v1174 = vunpack.c.l.bf16 %v1110
      %v1175 = vunpack.c.l.bf16 %v1111
      %v1176 = vunpack.c.l.bf16 %v1112
      %v1177 = vunpack.c.l.bf16 %v1113
      %v1178 = vunpack.c.l.bf16 %v1114
      %v1179 = vunpack.c.l.bf16 %v1115
      %v1180 = vunpack.c.l.bf16 %v1116
      %v1181 = vunpack.c.l.bf16 %v1117
      %v1182 = vunpack.c.l.bf16 %v1118
      %v1183 = vunpack.c.l.bf16 %v1119
      %v1184 = vunpack.c.l.bf16 %v1120
      %v1185 = vunpack.c.l.bf16 %v1121
      %v1186 = vunpack.c.l.bf16 %v1122
      %v1187 = vunpack.c.l.bf16 %v1123
      %v1188 = vunpack.c.l.bf16 %v1124
      %v1189 = vunpack.c.l.bf16 %v1125
      %v1190 = vsel %vm310, %v1158, -inf
      %v1191 = vsel %vm310, %v1159, -inf
      %v1192 = vsel %vm310, %v1160, -inf
      %v1193 = vsel %vm310, %v1161, -inf
      %v1194 = vsel %vm310, %v1162, -inf
      %v1195 = vmax.f32 %v1190, %v1194
      %v1196 = vsel %vm310, %v1163, -inf
      %v1197 = vmax.f32 %v1191, %v1196
      %v1198 = vsel %vm310, %v1164, -inf
      %v1199 = vmax.f32 %v1192, %v1198
      %v1200 = vsel %vm310, %v1165, -inf
      %v1201 = vmax.f32 %v1193, %v1200
      %v1202 = vsel %vm310, %v1166, -inf
      %v1203 = vmax.f32 %v1195, %v1202
      %v1204 = vsel %vm310, %v1167, -inf
      %v1205 = vmax.f32 %v1197, %v1204
      %v1206 = vsel %vm310, %v1168, -inf
      %v1207 = vmax.f32 %v1199, %v1206
      %v1208 = vsel %vm310, %v1169, -inf
      %v1209 = vmax.f32 %v1201, %v1208
      %v1210 = vsel %vm310, %v1170, -inf
      %v1211 = vmax.f32 %v1203, %v1210
      %v1212 = vsel %vm310, %v1171, -inf
      %v1213 = vmax.f32 %v1205, %v1212
      %v1214 = vsel %vm310, %v1172, -inf
      %v1215 = vmax.f32 %v1207, %v1214
      %v1216 = vsel %vm310, %v1173, -inf
      %v1217 = vmax.f32 %v1209, %v1216
      %v1218 = vsel %vm310, %v1174, -inf
      %v1219 = vmax.f32 %v1211, %v1218
      %v1220 = vsel %vm310, %v1175, -inf
      %v1221 = vmax.f32 %v1213, %v1220
      %v1222 = vsel %vm310, %v1176, -inf
      %v1223 = vmax.f32 %v1215, %v1222
      %v1224 = vsel %vm310, %v1177, -inf
      %v1225 = vmax.f32 %v1217, %v1224
      %v1226 = vsel %vm310, %v1178, -inf
      %v1227 = vmax.f32 %v1219, %v1226
      %v1228 = vsel %vm310, %v1179, -inf
      %v1229 = vmax.f32 %v1221, %v1228
      %v1230 = vsel %vm310, %v1180, -inf
      %v1231 = vmax.f32 %v1223, %v1230
      %v1232 = vsel %vm310, %v1181, -inf
      %v1233 = vmax.f32 %v1225, %v1232
      %v1234 = vsel %vm310, %v1182, -inf
      %v1235 = vmax.f32 %v1227, %v1234
      %v1236 = vsel %vm310, %v1183, -inf
      %v1237 = vmax.f32 %v1229, %v1236
      %v1238 = vsel %vm310, %v1184, -inf
      %v1239 = vmax.f32 %v1231, %v1238
      %v1240 = vsel %vm310, %v1185, -inf
      %v1241 = vmax.f32 %v1233, %v1240
      %v1242 = vsel %vm310, %v1186, -inf
      %v1243 = vmax.f32 %v1235, %v1242
      %v1244 = vsel %vm310, %v1187, -inf
      %v1245 = vmax.f32 %v1237, %v1244
      %v1246 = vsel %vm310, %v1188, -inf
      %v1247 = vmax.f32 %v1239, %v1246
      %v1248 = vsel %vm310, %v1189, -inf
      %v1249 = vmax.f32 %v1241, %v1248
      %v1250 = vmax.f32 %v1243, %v1245
      %v1251 = vmax.f32 %v1247, %v1249
      %v1252 = vmax.f32 %v1250, %v1251
      %v1253 = vrot.slane %v1252, 4
      %v1254 = vmax.f32 %v1252, %v1253
      %v1255 = vrot.slane %v1254, 2
      %v1256 = vmax.f32 %v1254, %v1255
      %v1257 = vrot.slane %v1256, 1
      %v1258 = vmax.f32 %v1256, %v1257
      %v1259 = vsub.f32 %v1158, %v1258
      %v1260 = vsub.f32 %v1159, %v1258
      %v1261 = vsub.f32 %v1160, %v1258
      %v1262 = vsub.f32 %v1161, %v1258
      %v1263 = vsub.f32 %v1162, %v1258
      %v1264 = vsub.f32 %v1163, %v1258
      %v1265 = vsub.f32 %v1164, %v1258
      %v1266 = vsub.f32 %v1165, %v1258
      %v1267 = vsub.f32 %v1166, %v1258
      %v1268 = vsub.f32 %v1167, %v1258
      %v1269 = vsub.f32 %v1168, %v1258
      %v1270 = vsub.f32 %v1169, %v1258
      %v1271 = vsub.f32 %v1170, %v1258
      %v1272 = vsub.f32 %v1171, %v1258
      %v1273 = vsub.f32 %v1172, %v1258
      %v1274 = vsub.f32 %v1173, %v1258
      %v1275 = vsub.f32 %v1174, %v1258
      %v1276 = vsub.f32 %v1175, %v1258
      %v1277 = vsub.f32 %v1176, %v1258
      %v1278 = vsub.f32 %v1177, %v1258
      %v1279 = vsub.f32 %v1178, %v1258
      %v1280 = vsub.f32 %v1179, %v1258
      %v1281 = vsub.f32 %v1180, %v1258
      %v1282 = vsub.f32 %v1181, %v1258
      %v1283 = vsub.f32 %v1182, %v1258
      %v1284 = vsub.f32 %v1183, %v1258
      %v1285 = vsub.f32 %v1184, %v1258
      %v1286 = vsub.f32 %v1185, %v1258
      %v1287 = vsub.f32 %v1186, %v1258
      %v1288 = vsub.f32 %v1187, %v1258
      %v1289 = vsub.f32 %v1188, %v1258
      %v1290 = vsub.f32 %v1189, %v1258
      %v1291 = vmul.f32 %v1259, 1.442695
      %v1292 = vpow.pop %v1291
      %v1293 = vmul.f32 %v1260, 1.442695
      %v1294 = vpow.pop %v1293
      %v1295 = vmul.f32 %v1261, 1.442695
      %v1296 = vpow.pop %v1295
      %v1297 = vmul.f32 %v1262, 1.442695
      %v1298 = vpow.pop %v1297
      %v1299 = vmul.f32 %v1263, 1.442695
      %v1300 = vpow.pop %v1299
      %v1301 = vmul.f32 %v1264, 1.442695
      %v1302 = vpow.pop %v1301
      %v1303 = vmul.f32 %v1265, 1.442695
      %v1304 = vpow.pop %v1303
      %v1305 = vmul.f32 %v1266, 1.442695
      %v1306 = vpow.pop %v1305
      %v1307 = vmul.f32 %v1267, 1.442695
      %v1308 = vpow.pop %v1307
      %v1309 = vmul.f32 %v1268, 1.442695
      %v1310 = vpow.pop %v1309
      %v1311 = vmul.f32 %v1269, 1.442695
      %v1312 = vpow.pop %v1311
      %v1313 = vmul.f32 %v1270, 1.442695
      %v1314 = vpow.pop %v1313
      %v1315 = vmul.f32 %v1271, 1.442695
      %v1316 = vpow.pop %v1315
      %v1317 = vmul.f32 %v1272, 1.442695
      %v1318 = vpow.pop %v1317
      %v1319 = vmul.f32 %v1273, 1.442695
      %v1320 = vpow.pop %v1319
      %v1321 = vmul.f32 %v1274, 1.442695
      %v1322 = vpow.pop %v1321
      %v1323 = vmul.f32 %v1275, 1.442695
      %v1324 = vpow.pop %v1323
      %v1325 = vmul.f32 %v1276, 1.442695
      %v1326 = vpow.pop %v1325
      %v1327 = vmul.f32 %v1277, 1.442695
      %v1328 = vpow.pop %v1327
      %v1329 = vmul.f32 %v1278, 1.442695
      %v1330 = vpow.pop %v1329
      %v1331 = vmul.f32 %v1279, 1.442695
      %v1332 = vpow.pop %v1331
      %v1333 = vmul.f32 %v1280, 1.442695
      %v1334 = vpow.pop %v1333
      %v1335 = vmul.f32 %v1281, 1.442695
      %v1336 = vpow.pop %v1335
      %v1337 = vmul.f32 %v1282, 1.442695
      %v1338 = vpow.pop %v1337
      %v1339 = vmul.f32 %v1283, 1.442695
      %v1340 = vpow.pop %v1339
      %v1341 = vmul.f32 %v1284, 1.442695
      %v1342 = vpow.pop %v1341
      %v1343 = vmul.f32 %v1285, 1.442695
      %v1344 = vpow.pop %v1343
      %v1345 = vmul.f32 %v1286, 1.442695
      %v1346 = vpow.pop %v1345
      %v1347 = vmul.f32 %v1287, 1.442695
      %v1348 = vpow.pop %v1347
      %v1349 = vmul.f32 %v1288, 1.442695
      %v1350 = vpow.pop %v1349
      %v1351 = vmul.f32 %v1289, 1.442695
      %v1352 = vpow.pop %v1351
      %v1353 = vmul.f32 %v1290, 1.442695
      %v1354 = vpow.pop %v1353
      %v1355 = vsel %vm310, %v1292, 0.0
      %v1356 = vsel %vm310, %v1294, 0.0
      %v1357 = vadd.f32 %v1355, %v1356
      %v1358 = vsel %vm310, %v1296, 0.0
      %v1359 = vadd.f32 %v1357, %v1358
      %v1360 = vsel %vm310, %v1298, 0.0
      %v1361 = vadd.f32 %v1359, %v1360
      %v1362 = vsel %vm310, %v1300, 0.0
      %v1363 = vadd.f32 %v1361, %v1362
      %v1364 = vsel %vm310, %v1302, 0.0
      %v1365 = vadd.f32 %v1363, %v1364
      %v1366 = vsel %vm310, %v1304, 0.0
      %v1367 = vadd.f32 %v1365, %v1366
      %v1368 = vsel %vm310, %v1306, 0.0
      %v1369 = vadd.f32 %v1367, %v1368
      %v1370 = vsel %vm310, %v1308, 0.0
      %v1371 = vadd.f32 %v1369, %v1370
      %v1372 = vsel %vm310, %v1310, 0.0
      %v1373 = vadd.f32 %v1371, %v1372
      %v1374 = vsel %vm310, %v1312, 0.0
      %v1375 = vadd.f32 %v1373, %v1374
      %v1376 = vsel %vm310, %v1314, 0.0
      %v1377 = vadd.f32 %v1375, %v1376
      %v1378 = vsel %vm310, %v1316, 0.0
      %v1379 = vadd.f32 %v1377, %v1378
      %v1380 = vsel %vm310, %v1318, 0.0
      %v1381 = vadd.f32 %v1379, %v1380
      %v1382 = vsel %vm310, %v1320, 0.0
      %v1383 = vadd.f32 %v1381, %v1382
      %v1384 = vsel %vm310, %v1322, 0.0
      %v1385 = vadd.f32 %v1383, %v1384
      %v1386 = vsel %vm310, %v1324, 0.0
      %v1387 = vadd.f32 %v1385, %v1386
      %v1388 = vsel %vm310, %v1326, 0.0
      %v1389 = vadd.f32 %v1387, %v1388
      %v1390 = vsel %vm310, %v1328, 0.0
      %v1391 = vadd.f32 %v1389, %v1390
      %v1392 = vsel %vm310, %v1330, 0.0
      %v1393 = vadd.f32 %v1391, %v1392
      %v1394 = vsel %vm310, %v1332, 0.0
      %v1395 = vadd.f32 %v1393, %v1394
      %v1396 = vsel %vm310, %v1334, 0.0
      %v1397 = vadd.f32 %v1395, %v1396
      %v1398 = vsel %vm310, %v1336, 0.0
      %v1399 = vadd.f32 %v1397, %v1398
      %v1400 = vsel %vm310, %v1338, 0.0
      %v1401 = vadd.f32 %v1399, %v1400
      %v1402 = vsel %vm310, %v1340, 0.0
      %v1403 = vadd.f32 %v1401, %v1402
      %v1404 = vsel %vm310, %v1342, 0.0
      %v1405 = vadd.f32 %v1403, %v1404
      %v1406 = vsel %vm310, %v1344, 0.0
      %v1407 = vadd.f32 %v1405, %v1406
      %v1408 = vsel %vm310, %v1346, 0.0
      %v1409 = vadd.f32 %v1407, %v1408
      %v1410 = vsel %vm310, %v1348, 0.0
      %v1411 = vadd.f32 %v1409, %v1410
      %v1412 = vsel %vm310, %v1350, 0.0
      %v1413 = vadd.f32 %v1411, %v1412
      %v1414 = vsel %vm310, %v1352, 0.0
      %v1415 = vadd.f32 %v1413, %v1414
      %v1416 = vsel %vm310, %v1354, 0.0
      %v1417 = vadd.f32 %v1415, %v1416
      %v1418 = vrot.slane %v1417, 4
      %v1419 = vadd.f32 %v1417, %v1418
      %v1420 = vrot.slane %v1419, 2
      %v1421 = vadd.f32 %v1419, %v1420
      %v1422 = vrot.slane %v1421, 1
      %v1423 = vadd.f32 %v1421, %v1422
      %v1424 = vrcp.pop %v1423
      %v1425 = vmul.f32 %v1292, %v1424
      %v1426 = vmul.f32 %v1294, %v1424
      %v1427 = vmul.f32 %v1296, %v1424
      %v1428 = vmul.f32 %v1298, %v1424
      %v1429 = vmul.f32 %v1300, %v1424
      %v1430 = vmul.f32 %v1302, %v1424
      %v1431 = vmul.f32 %v1304, %v1424
      %v1432 = vmul.f32 %v1306, %v1424
      %v1433 = vmul.f32 %v1308, %v1424
      %v1434 = vmul.f32 %v1310, %v1424
      %v1435 = vmul.f32 %v1312, %v1424
      %v1436 = vmul.f32 %v1314, %v1424
      %v1437 = vmul.f32 %v1316, %v1424
      %v1438 = vmul.f32 %v1318, %v1424
      %v1439 = vmul.f32 %v1320, %v1424
      %v1440 = vmul.f32 %v1322, %v1424
      %v1441 = vmul.f32 %v1324, %v1424
      %v1442 = vmul.f32 %v1326, %v1424
      %v1443 = vmul.f32 %v1328, %v1424
      %v1444 = vmul.f32 %v1330, %v1424
      %v1445 = vmul.f32 %v1332, %v1424
      %v1446 = vmul.f32 %v1334, %v1424
      %v1447 = vmul.f32 %v1336, %v1424
      %v1448 = vmul.f32 %v1338, %v1424
      %v1449 = vmul.f32 %v1340, %v1424
      %v1450 = vmul.f32 %v1342, %v1424
      %v1451 = vmul.f32 %v1344, %v1424
      %v1452 = vmul.f32 %v1346, %v1424
      %v1453 = vmul.f32 %v1348, %v1424
      %v1454 = vmul.f32 %v1350, %v1424
      %v1455 = vmul.f32 %v1352, %v1424
      %v1456 = vmul.f32 %v1354, %v1424
      %v1457 = vpack.c.bf16 %v1426, %v1425
      %v1458 = vpack.c.bf16 %v1428, %v1427
      %v1459 = vpack.c.bf16 %v1430, %v1429
      %v1460 = vpack.c.bf16 %v1432, %v1431
      %v1461 = vpack.c.bf16 %v1434, %v1433
      %v1462 = vpack.c.bf16 %v1436, %v1435
      %v1463 = vpack.c.bf16 %v1438, %v1437
      %v1464 = vpack.c.bf16 %v1440, %v1439
      %v1465 = vpack.c.bf16 %v1442, %v1441
      %v1466 = vpack.c.bf16 %v1444, %v1443
      %v1467 = vpack.c.bf16 %v1446, %v1445
      %v1468 = vpack.c.bf16 %v1448, %v1447
      %v1469 = vpack.c.bf16 %v1450, %v1449
      %v1470 = vpack.c.bf16 %v1452, %v1451
      %v1471 = vpack.c.bf16 %v1454, %v1453
      %v1472 = vpack.c.bf16 %v1456, %v1455
      %1473 = vxpose.xlu0.c.b16.start [1/8] %v1457, 128
      %1474 = vxpose.xlu0.c.b16.cont [2/8] %v1458, 128
      %1475 = vxpose.xlu0.c.b16.cont [3/8] %v1459, 128
      %1476 = vxpose.xlu0.c.b16.cont [4/8] %v1460, 128
      %1477 = vxpose.xlu0.c.b16.cont [5/8] %v1461, 128
      %1478 = vxpose.xlu0.c.b16.cont [6/8] %v1462, 128
      %1479 = vxpose.xlu0.c.b16.cont [7/8] %v1463, 128
      %1480 = vxpose.xlu0.c.b16.end [8/8] %v1464, 128
      %v1481 = vpop.trf.xlu0
      %v1482 = vpop.trf.xlu0
      %v1483 = vpop.trf.xlu0
      %v1484 = vpop.trf.xlu0
      %v1485 = vpop.trf.xlu0
      %v1486 = vpop.trf.xlu0
      %v1487 = vpop.trf.xlu0
      %v1488 = vpop.trf.xlu0
      %1489 = vxpose.xlu0.c.b16.start [1/8] %v1465, 128
      %1490 = vxpose.xlu0.c.b16.cont [2/8] %v1466, 128
      %1491 = vxpose.xlu0.c.b16.cont [3/8] %v1467, 128
      %1492 = vxpose.xlu0.c.b16.cont [4/8] %v1468, 128
      %1493 = vxpose.xlu0.c.b16.cont [5/8] %v1469, 128
      %1494 = vxpose.xlu0.c.b16.cont [6/8] %v1470, 128
      %1495 = vxpose.xlu0.c.b16.cont [7/8] %v1471, 128
      %1496 = vxpose.xlu0.c.b16.end [8/8] %v1472, 128
      %v1497 = vpop.trf.xlu0
      %v1498 = vpop.trf.xlu0
      %v1499 = vpop.trf.xlu0
      %v1500 = vpop.trf.xlu0
      %v1501 = vpop.trf.xlu0
      %v1502 = vpop.trf.xlu0
      %v1503 = vpop.trf.xlu0
      %v1504 = vpop.trf.xlu0
      %1505 = vrot.lane.b32.xlu0 %v690, 96
      %v1506 = vpop.permute.xlu0 %1505
      %1507 = vrot.lane.b32.xlu0 %v691, 96
      %v1508 = vpop.permute.xlu0 %1507
      %1509 = vrot.lane.b32.xlu0 %v692, 96
      %v1510 = vpop.permute.xlu0 %1509
      %1511 = vrot.lane.b32.xlu0 %v693, 96
      %v1512 = vpop.permute.xlu0 %1511
      %1513 = vrot.lane.b32.xlu0 %v694, 96
      %v1514 = vpop.permute.xlu0 %1513
      %1515 = vrot.lane.b32.xlu0 %v695, 96
      %v1516 = vpop.permute.xlu0 %1515
      %1517 = vrot.lane.b32.xlu0 %v696, 96
      %v1518 = vpop.permute.xlu0 %1517
      %1519 = vrot.lane.b32.xlu0 %v697, 96
      %v1520 = vpop.permute.xlu0 %1519
      %1521 = vrot.lane.b32.xlu0 %v698, 96
      %v1522 = vpop.permute.xlu0 %1521
      %1523 = vrot.lane.b32.xlu0 %v699, 96
      %v1524 = vpop.permute.xlu0 %1523
      %1525 = vrot.lane.b32.xlu0 %v700, 96
      %v1526 = vpop.permute.xlu0 %1525
      %1527 = vrot.lane.b32.xlu0 %v701, 96
      %v1528 = vpop.permute.xlu0 %1527
      %1529 = vrot.lane.b32.xlu0 %v702, 96
      %v1530 = vpop.permute.xlu0 %1529
      %1531 = vrot.lane.b32.xlu0 %v703, 96
      %v1532 = vpop.permute.xlu0 %1531
      %1533 = vrot.lane.b32.xlu0 %v704, 96
      %v1534 = vpop.permute.xlu0 %1533
      %1535 = vrot.lane.b32.xlu0 %v705, 96
      %v1536 = vpop.permute.xlu0 %1535
      %1553 = vmatprep.subr.bf16.mxu0 0
      %1554 = vmatpush1.bf16.msra.mxu0 %v1520
      %1555 = vmatprep.subr.bf16.mxu0 0
      %1556 = vmatpush1.bf16.msra.mxu0 %v1518
      %1557 = vmatprep.subr.bf16.mxu0 0
      %1558 = vmatpush1.bf16.msra.mxu0 %v1516
      %1559 = vmatprep.subr.bf16.mxu0 0
      %1560 = vmatpush1.bf16.msra.mxu0 %v1514
      %1561 = vmatprep.subr.bf16.mxu0 0
      %1562 = vmatpush1.bf16.msra.mxu0 %v1512
      %1563 = vmatprep.subr.bf16.mxu0 0
      %1564 = vmatpush1.bf16.msra.mxu0 %v1510
      %1565 = vmatprep.subr.bf16.mxu0 0
      %1566 = vmatpush1.bf16.msra.mxu0 %v1508
      %1567 = vmatprep.subr.bf16.mxu0 0
      %1568 = vmatpush1.bf16.msra.mxu0 %v1506
      %1569 = vmatprep.subr.bf16.mxu0 0
      %1570 = vmatpush2.bf16.msra.mxu0 %v1536
      %1571 = vmatprep.subr.bf16.mxu0 0
      %1572 = vmatpush2.bf16.msra.mxu0 %v1534
      %1573 = vmatprep.subr.bf16.mxu0 0
      %1574 = vmatpush2.bf16.msra.mxu0 %v1532
      %1575 = vmatprep.subr.bf16.mxu0 0
      %1576 = vmatpush2.bf16.msra.mxu0 %v1530
      %1577 = vmatprep.subr.bf16.mxu0 0
      %1578 = vmatpush2.bf16.msra.mxu0 %v1528
      %1579 = vmatprep.subr.bf16.mxu0 0
      %1580 = vmatpush2.bf16.msra.mxu0 %v1526
      %1581 = vmatprep.subr.bf16.mxu0 0
      %1582 = vmatpush2.bf16.msra.mxu0 %v1524
      %1583 = vmatprep.subr.bf16.mxu0 0
      %1584 = vmatpush2.bf16.msra.mxu0 %v1522
      %1585 = vmatprep.mubr.bf16.mxu0 %v1497
      %1586 = vmatmul.mubr.bf16.gmra.mxu0 %v1481
      %v1587 = vpop.f32.mrf.mxu0
      %v1588 = vadd.f32 0.0, %v1587
      %v1589 = vpop.f32.mrf.mxu0
      %v1590 = vpop.f32.mrf.mxu0
      %v1591 = vadd.f32 0.0, %v1590
      %v1592 = vpop.f32.mrf.mxu0
      %1593 = vmatprep.mubr.bf16.mxu0 %v1498
      %1594 = vmatmul.mubr.bf16.gmra.mxu0 %v1482
      %v1595 = vpop.f32.mrf.mxu0
      %v1596 = vadd.f32 0.0, %v1595
      %v1597 = vpop.f32.mrf.mxu0
      %v1598 = vpop.f32.mrf.mxu0
      %v1599 = vadd.f32 0.0, %v1598
      %v1600 = vpop.f32.mrf.mxu0
      %1601 = vdwg.mxu0
      %v1602 = vpack.c.bf16 %v1591, %v1588
      %v1603 = vpack.c.bf16 %v1599, %v1596
      %1604 = vrot.lane.b32.xlu0 %v805, 96
      %v1605 = vpop.permute.xlu0 %1604
      %1606 = vrot.lane.b32.xlu0 %v806, 96
      %v1607 = vpop.permute.xlu0 %1606
      %1608 = vrot.lane.b32.xlu0 %v807, 96
      %v1609 = vpop.permute.xlu0 %1608
      %1610 = vrot.lane.b32.xlu0 %v808, 96
      %v1611 = vpop.permute.xlu0 %1610
      %1612 = vrot.lane.b32.xlu0 %v809, 96
      %v1613 = vpop.permute.xlu0 %1612
      %1614 = vrot.lane.b32.xlu0 %v810, 96
      %v1615 = vpop.permute.xlu0 %1614
      %1616 = vrot.lane.b32.xlu0 %v811, 96
      %v1617 = vpop.permute.xlu0 %1616
      %1618 = vrot.lane.b32.xlu0 %v812, 96
      %v1619 = vpop.permute.xlu0 %1618
      %1620 = vrot.lane.b32.xlu0 %v813, 96
      %v1621 = vpop.permute.xlu0 %1620
      %1622 = vrot.lane.b32.xlu0 %v814, 96
      %v1623 = vpop.permute.xlu0 %1622
      %1624 = vrot.lane.b32.xlu0 %v815, 96
      %v1625 = vpop.permute.xlu0 %1624
      %1626 = vrot.lane.b32.xlu0 %v816, 96
      %v1627 = vpop.permute.xlu0 %1626
      %1628 = vrot.lane.b32.xlu0 %v817, 96
      %v1629 = vpop.permute.xlu0 %1628
      %1630 = vrot.lane.b32.xlu0 %v818, 96
      %v1631 = vpop.permute.xlu0 %1630
      %1632 = vrot.lane.b32.xlu0 %v819, 96
      %v1633 = vpop.permute.xlu0 %1632
      %1634 = vrot.lane.b32.xlu0 %v820, 96
      %v1635 = vpop.permute.xlu0 %1634
      %v1637 = vsel %vm310, %v1605, 0
      %v1640 = vsel %vm310, %v1607, 0
      %v1643 = vsel %vm310, %v1609, 0
      %v1646 = vsel %vm310, %v1611, 0
      %v1649 = vsel %vm310, %v1613, 0
      %v1652 = vsel %vm310, %v1615, 0
      %v1655 = vsel %vm310, %v1617, 0
      %v1658 = vsel %vm310, %v1619, 0
      %v1661 = vsel %vm310, %v1621, 0
      %v1664 = vsel %vm310, %v1623, 0
      %v1667 = vsel %vm310, %v1625, 0
      %v1670 = vsel %vm310, %v1627, 0
      %v1673 = vsel %vm310, %v1629, 0
      %v1676 = vsel %vm310, %v1631, 0
      %v1679 = vsel %vm310, %v1633, 0
      %v1682 = vsel %vm310, %v1635, 0
      %1684 = vmatprep.subr.bf16.mxu0 0
      %1685 = vmatpush1.bf16.msra.mxu0 0
      %1686 = vmatprep.subr.bf16.mxu0 0
      %1687 = vmatpush1.bf16.msra.mxu0 0
      %1688 = vmatprep.subr.bf16.mxu0 0
      %1689 = vmatpush1.bf16.msra.mxu0 0
      %1690 = vmatprep.subr.bf16.mxu0 0
      %1691 = vmatpush1.bf16.msra.mxu0 0
      %1692 = vmatprep.subr.bf16.mxu0 0
      %1693 = vmatpush1.bf16.msra.mxu0 0
      %1694 = vmatprep.subr.bf16.mxu0 0
      %1695 = vmatpush1.bf16.msra.mxu0 0
      %1696 = vmatprep.subr.bf16.mxu0 0
      %1697 = vmatpush1.bf16.msra.mxu0 %v1603
      %1698 = vmatprep.subr.bf16.mxu0 0
      %1699 = vmatpush1.bf16.msra.mxu0 %v1602
      %1700 = vmatprep.subr.bf16.mxu0 0
      %1701 = vmatpush2.bf16.msra.mxu0 0
      %1702 = vmatprep.subr.bf16.mxu0 0
      %1703 = vmatpush2.bf16.msra.mxu0 0
      %1704 = vmatprep.subr.bf16.mxu0 0
      %1705 = vmatpush2.bf16.msra.mxu0 0
      %1706 = vmatprep.subr.bf16.mxu0 0
      %1707 = vmatpush2.bf16.msra.mxu0 0
      %1708 = vmatprep.subr.bf16.mxu0 0
      %1709 = vmatpush2.bf16.msra.mxu0 0
      %1710 = vmatprep.subr.bf16.mxu0 0
      %1711 = vmatpush2.bf16.msra.mxu0 0
      %1712 = vmatprep.subr.bf16.mxu0 0
      %1713 = vmatpush2.bf16.msra.mxu0 0
      %1714 = vmatprep.subr.bf16.mxu0 0
      %1715 = vmatpush2.bf16.msra.mxu0 0
      %1716 = vmatprep.mubr.bf16.mxu0 0
      %1717 = vmatmul.mubr.bf16.gmra.mxu0 %v1637
      %v1718 = vpop.f32.mrf.mxu0
      %v1719 = vadd.f32 0.0, %v1718
      %v1720 = vpop.f32.mrf.mxu0
      %v1721 = vpop.f32.mrf.mxu0
      %v1722 = vadd.f32 0.0, %v1721
      %v1723 = vpop.f32.mrf.mxu0
      %1724 = vmatprep.mubr.bf16.mxu0 0
      %1725 = vmatmul.mubr.bf16.gmra.mxu0 %v1640
      %v1726 = vpop.f32.mrf.mxu0
      %v1727 = vadd.f32 0.0, %v1726
      %v1728 = vpop.f32.mrf.mxu0
      %v1729 = vpop.f32.mrf.mxu0
      %v1730 = vadd.f32 0.0, %v1729
      %v1731 = vpop.f32.mrf.mxu0
      %1732 = vmatprep.mubr.bf16.mxu0 0
      %1733 = vmatmul.mubr.bf16.gmra.mxu0 %v1643
      %v1734 = vpop.f32.mrf.mxu0
      %v1735 = vadd.f32 0.0, %v1734
      %v1736 = vpop.f32.mrf.mxu0
      %v1737 = vpop.f32.mrf.mxu0
      %v1738 = vadd.f32 0.0, %v1737
      %v1739 = vpop.f32.mrf.mxu0
      %1740 = vmatprep.mubr.bf16.mxu0 0
      %1741 = vmatmul.mubr.bf16.gmra.mxu0 %v1646
      %v1742 = vpop.f32.mrf.mxu0
      %v1743 = vadd.f32 0.0, %v1742
      %v1744 = vpop.f32.mrf.mxu0
      %v1745 = vpop.f32.mrf.mxu0
      %v1746 = vadd.f32 0.0, %v1745
      %v1747 = vpop.f32.mrf.mxu0
      %1748 = vmatprep.mubr.bf16.mxu0 0
      %1749 = vmatmul.mubr.bf16.gmra.mxu0 %v1649
      %v1750 = vpop.f32.mrf.mxu0
      %v1751 = vadd.f32 0.0, %v1750
      %v1752 = vpop.f32.mrf.mxu0
      %v1753 = vpop.f32.mrf.mxu0
      %v1754 = vadd.f32 0.0, %v1753
      %v1755 = vpop.f32.mrf.mxu0
      %1756 = vmatprep.mubr.bf16.mxu0 0
      %1757 = vmatmul.mubr.bf16.gmra.mxu0 %v1652
      %v1758 = vpop.f32.mrf.mxu0
      %v1759 = vadd.f32 0.0, %v1758
      %v1760 = vpop.f32.mrf.mxu0
      %v1761 = vpop.f32.mrf.mxu0
      %v1762 = vadd.f32 0.0, %v1761
      %v1763 = vpop.f32.mrf.mxu0
      %1764 = vmatprep.mubr.bf16.mxu0 0
      %1765 = vmatmul.mubr.bf16.gmra.mxu0 %v1655
      %v1766 = vpop.f32.mrf.mxu0
      %v1767 = vadd.f32 0.0, %v1766
      %v1768 = vpop.f32.mrf.mxu0
      %v1769 = vpop.f32.mrf.mxu0
      %v1770 = vadd.f32 0.0, %v1769
      %v1771 = vpop.f32.mrf.mxu0
      %1772 = vmatprep.mubr.bf16.mxu0 0
      %1773 = vmatmul.mubr.bf16.gmra.mxu0 %v1658
      %v1774 = vpop.f32.mrf.mxu0
      %v1775 = vadd.f32 0.0, %v1774
      %v1776 = vpop.f32.mrf.mxu0
      %v1777 = vpop.f32.mrf.mxu0
      %v1778 = vadd.f32 0.0, %v1777
      %v1779 = vpop.f32.mrf.mxu0
      %1780 = vmatprep.mubr.bf16.mxu0 0
      %1781 = vmatmul.mubr.bf16.gmra.mxu0 %v1661
      %v1782 = vpop.f32.mrf.mxu0
      %v1783 = vadd.f32 0.0, %v1782
      %v1784 = vpop.f32.mrf.mxu0
      %v1785 = vpop.f32.mrf.mxu0
      %v1786 = vadd.f32 0.0, %v1785
      %v1787 = vpop.f32.mrf.mxu0
      %1788 = vmatprep.mubr.bf16.mxu0 0
      %1789 = vmatmul.mubr.bf16.gmra.mxu0 %v1664
      %v1790 = vpop.f32.mrf.mxu0
      %v1791 = vadd.f32 0.0, %v1790
      %v1792 = vpop.f32.mrf.mxu0
      %v1793 = vpop.f32.mrf.mxu0
      %v1794 = vadd.f32 0.0, %v1793
      %v1795 = vpop.f32.mrf.mxu0
      %1796 = vmatprep.mubr.bf16.mxu0 0
      %1797 = vmatmul.mubr.bf16.gmra.mxu0 %v1667
      %v1798 = vpop.f32.mrf.mxu0
      %v1799 = vadd.f32 0.0, %v1798
      %v1800 = vpop.f32.mrf.mxu0
      %v1801 = vpop.f32.mrf.mxu0
      %v1802 = vadd.f32 0.0, %v1801
      %v1803 = vpop.f32.mrf.mxu0
      %1804 = vmatprep.mubr.bf16.mxu0 0
      %1805 = vmatmul.mubr.bf16.gmra.mxu0 %v1670
      %v1806 = vpop.f32.mrf.mxu0
      %v1807 = vadd.f32 0.0, %v1806
      %v1808 = vpop.f32.mrf.mxu0
      %v1809 = vpop.f32.mrf.mxu0
      %v1810 = vadd.f32 0.0, %v1809
      %v1811 = vpop.f32.mrf.mxu0
      %1812 = vmatprep.mubr.bf16.mxu0 0
      %1813 = vmatmul.mubr.bf16.gmra.mxu0 %v1673
      %v1814 = vpop.f32.mrf.mxu0
      %v1815 = vadd.f32 0.0, %v1814
      %v1816 = vpop.f32.mrf.mxu0
      %v1817 = vpop.f32.mrf.mxu0
      %v1818 = vadd.f32 0.0, %v1817
      %v1819 = vpop.f32.mrf.mxu0
      %1820 = vmatprep.mubr.bf16.mxu0 0
      %1821 = vmatmul.mubr.bf16.gmra.mxu0 %v1676
      %v1822 = vpop.f32.mrf.mxu0
      %v1823 = vadd.f32 0.0, %v1822
      %v1824 = vpop.f32.mrf.mxu0
      %v1825 = vpop.f32.mrf.mxu0
      %v1826 = vadd.f32 0.0, %v1825
      %v1827 = vpop.f32.mrf.mxu0
      %1828 = vmatprep.mubr.bf16.mxu0 0
      %1829 = vmatmul.mubr.bf16.gmra.mxu0 %v1679
      %v1830 = vpop.f32.mrf.mxu0
      %v1831 = vadd.f32 0.0, %v1830
      %v1832 = vpop.f32.mrf.mxu0
      %v1833 = vpop.f32.mrf.mxu0
      %v1834 = vadd.f32 0.0, %v1833
      %v1835 = vpop.f32.mrf.mxu0
      %1836 = vmatprep.mubr.bf16.mxu0 0
      %1837 = vmatmul.mubr.bf16.gmra.mxu0 %v1682
      %v1838 = vpop.f32.mrf.mxu0
      %v1839 = vadd.f32 0.0, %v1838
      %v1840 = vpop.f32.mrf.mxu0
      %v1841 = vpop.f32.mrf.mxu0
      %v1842 = vadd.f32 0.0, %v1841
      %v1843 = vpop.f32.mrf.mxu0
      %1844 = vdwg.mxu0
      %1845 = vrot.lane.b32.xlu0 %v118, 64
      %v1846 = vpop.permute.xlu0 %1845
      %1847 = vrot.lane.b32.xlu0 %v120, 64
      %v1848 = vpop.permute.xlu0 %1847
      %1849 = vrot.lane.b32.xlu0 %v122, 64
      %v1850 = vpop.permute.xlu0 %1849
      %1851 = vrot.lane.b32.xlu0 %v124, 64
      %v1852 = vpop.permute.xlu0 %1851
      %1853 = vrot.lane.b32.xlu0 %v126, 64
      %v1854 = vpop.permute.xlu0 %1853
      %1855 = vrot.lane.b32.xlu0 %v128, 64
      %v1856 = vpop.permute.xlu0 %1855
      %1857 = vrot.lane.b32.xlu0 %v130, 64
      %v1858 = vpop.permute.xlu0 %1857
      %1859 = vrot.lane.b32.xlu0 %v132, 64
      %v1860 = vpop.permute.xlu0 %1859
      %1861 = vrot.lane.b32.xlu0 %v134, 64
      %v1862 = vpop.permute.xlu0 %1861
      %1863 = vrot.lane.b32.xlu0 %v136, 64
      %v1864 = vpop.permute.xlu0 %1863
      %1865 = vrot.lane.b32.xlu0 %v138, 64
      %v1866 = vpop.permute.xlu0 %1865
      %1867 = vrot.lane.b32.xlu0 %v140, 64
      %v1868 = vpop.permute.xlu0 %1867
      %1869 = vrot.lane.b32.xlu0 %v142, 64
      %v1870 = vpop.permute.xlu0 %1869
      %1871 = vrot.lane.b32.xlu0 %v144, 64
      %v1872 = vpop.permute.xlu0 %1871
      %1873 = vrot.lane.b32.xlu0 %v146, 64
      %v1874 = vpop.permute.xlu0 %1873
      %1875 = vrot.lane.b32.xlu0 %v148, 64
      %v1876 = vpop.permute.xlu0 %1875
      %1877 = vrot.lane.b32.xlu0 %v150, 64
      %v1878 = vpop.permute.xlu0 %1877
      %1879 = vrot.lane.b32.xlu0 %v152, 64
      %v1880 = vpop.permute.xlu0 %1879
      %1881 = vrot.lane.b32.xlu0 %v154, 64
      %v1882 = vpop.permute.xlu0 %1881
      %1883 = vrot.lane.b32.xlu0 %v156, 64
      %v1884 = vpop.permute.xlu0 %1883
      %1885 = vrot.lane.b32.xlu0 %v158, 64
      %v1886 = vpop.permute.xlu0 %1885
      %1887 = vrot.lane.b32.xlu0 %v160, 64
      %v1888 = vpop.permute.xlu0 %1887
      %1889 = vrot.lane.b32.xlu0 %v162, 64
      %v1890 = vpop.permute.xlu0 %1889
      %1891 = vrot.lane.b32.xlu0 %v164, 64
      %v1892 = vpop.permute.xlu0 %1891
      %1893 = vrot.lane.b32.xlu0 %v166, 64
      %v1894 = vpop.permute.xlu0 %1893
      %1895 = vrot.lane.b32.xlu0 %v168, 64
      %v1896 = vpop.permute.xlu0 %1895
      %1897 = vrot.lane.b32.xlu0 %v170, 64
      %v1898 = vpop.permute.xlu0 %1897
      %1899 = vrot.lane.b32.xlu0 %v172, 64
      %v1900 = vpop.permute.xlu0 %1899
      %1901 = vrot.lane.b32.xlu0 %v174, 64
      %v1902 = vpop.permute.xlu0 %1901
      %1903 = vrot.lane.b32.xlu0 %v176, 64
      %v1904 = vpop.permute.xlu0 %1903
      %1905 = vrot.lane.b32.xlu0 %v178, 64
      %v1906 = vpop.permute.xlu0 %1905
      %1907 = vrot.lane.b32.xlu0 %v180, 64
      %v1908 = vpop.permute.xlu0 %1907
      %v1909 = vrot.slane %v1846, 4
      %v1910 = vrot.slane %v1848, 4
      %v1911 = vrot.slane %v1850, 4
      %v1912 = vrot.slane %v1852, 4
      %v1913 = vrot.slane %v1854, 4
      %v1914 = vrot.slane %v1856, 4
      %v1915 = vrot.slane %v1858, 4
      %v1916 = vrot.slane %v1860, 4
      %v1917 = vrot.slane %v1862, 4
      %v1918 = vrot.slane %v1864, 4
      %v1919 = vrot.slane %v1866, 4
      %v1920 = vrot.slane %v1868, 4
      %v1921 = vrot.slane %v1870, 4
      %v1922 = vrot.slane %v1872, 4
      %v1923 = vrot.slane %v1874, 4
      %v1924 = vrot.slane %v1876, 4
      %v1925 = vrot.slane %v1878, 4
      %v1926 = vrot.slane %v1880, 4
      %v1927 = vrot.slane %v1882, 4
      %v1928 = vrot.slane %v1884, 4
      %v1929 = vrot.slane %v1886, 4
      %v1930 = vrot.slane %v1888, 4
      %v1931 = vrot.slane %v1890, 4
      %v1932 = vrot.slane %v1892, 4
      %v1933 = vrot.slane %v1894, 4
      %v1934 = vrot.slane %v1896, 4
      %v1935 = vrot.slane %v1898, 4
      %v1936 = vrot.slane %v1900, 4
      %v1937 = vrot.slane %v1902, 4
      %v1938 = vrot.slane %v1904, 4
      %v1939 = vrot.slane %v1906, 4
      %v1940 = vrot.slane %v1908, 4
      %v1973 = vunpack.c.l.bf16 %v1909
      %v1974 = vunpack.c.l.bf16 %v1910
      %v1975 = vunpack.c.l.bf16 %v1911
      %v1976 = vunpack.c.l.bf16 %v1912
      %v1977 = vunpack.c.l.bf16 %v1913
      %v1978 = vunpack.c.l.bf16 %v1914
      %v1979 = vunpack.c.l.bf16 %v1915
      %v1980 = vunpack.c.l.bf16 %v1916
      %v1981 = vunpack.c.l.bf16 %v1917
      %v1982 = vunpack.c.l.bf16 %v1918
      %v1983 = vunpack.c.l.bf16 %v1919
      %v1984 = vunpack.c.l.bf16 %v1920
      %v1985 = vunpack.c.l.bf16 %v1921
      %v1986 = vunpack.c.l.bf16 %v1922
      %v1987 = vunpack.c.l.bf16 %v1923
      %v1988 = vunpack.c.l.bf16 %v1924
      %v1989 = vunpack.c.l.bf16 %v1925
      %v1990 = vunpack.c.l.bf16 %v1926
      %v1991 = vunpack.c.l.bf16 %v1927
      %v1992 = vunpack.c.l.bf16 %v1928
      %v1993 = vunpack.c.l.bf16 %v1929
      %v1994 = vunpack.c.l.bf16 %v1930
      %v1995 = vunpack.c.l.bf16 %v1931
      %v1996 = vunpack.c.l.bf16 %v1932
      %v1997 = vunpack.c.l.bf16 %v1933
      %v1998 = vunpack.c.l.bf16 %v1934
      %v1999 = vunpack.c.l.bf16 %v1935
      %v2000 = vunpack.c.l.bf16 %v1936
      %v2001 = vunpack.c.l.bf16 %v1937
      %v2002 = vunpack.c.l.bf16 %v1938
      %v2003 = vunpack.c.l.bf16 %v1939
      %v2004 = vunpack.c.l.bf16 %v1940
      %v2005 = vsel %vm310, %v1973, -inf
      %v2006 = vsel %vm310, %v1974, -inf
      %v2007 = vsel %vm310, %v1975, -inf
      %v2008 = vsel %vm310, %v1976, -inf
      %v2009 = vsel %vm310, %v1977, -inf
      %v2010 = vmax.f32 %v2005, %v2009
      %v2011 = vsel %vm310, %v1978, -inf
      %v2012 = vmax.f32 %v2006, %v2011
      %v2013 = vsel %vm310, %v1979, -inf
      %v2014 = vmax.f32 %v2007, %v2013
      %v2015 = vsel %vm310, %v1980, -inf
      %v2016 = vmax.f32 %v2008, %v2015
      %v2017 = vsel %vm310, %v1981, -inf
      %v2018 = vmax.f32 %v2010, %v2017
      %v2019 = vsel %vm310, %v1982, -inf
      %v2020 = vmax.f32 %v2012, %v2019
      %v2021 = vsel %vm310, %v1983, -inf
      %v2022 = vmax.f32 %v2014, %v2021
      %v2023 = vsel %vm310, %v1984, -inf
      %v2024 = vmax.f32 %v2016, %v2023
      %v2025 = vsel %vm310, %v1985, -inf
      %v2026 = vmax.f32 %v2018, %v2025
      %v2027 = vsel %vm310, %v1986, -inf
      %v2028 = vmax.f32 %v2020, %v2027
      %v2029 = vsel %vm310, %v1987, -inf
      %v2030 = vmax.f32 %v2022, %v2029
      %v2031 = vsel %vm310, %v1988, -inf
      %v2032 = vmax.f32 %v2024, %v2031
      %v2033 = vsel %vm310, %v1989, -inf
      %v2034 = vmax.f32 %v2026, %v2033
      %v2035 = vsel %vm310, %v1990, -inf
      %v2036 = vmax.f32 %v2028, %v2035
      %v2037 = vsel %vm310, %v1991, -inf
      %v2038 = vmax.f32 %v2030, %v2037
      %v2039 = vsel %vm310, %v1992, -inf
      %v2040 = vmax.f32 %v2032, %v2039
      %v2041 = vsel %vm310, %v1993, -inf
      %v2042 = vmax.f32 %v2034, %v2041
      %v2043 = vsel %vm310, %v1994, -inf
      %v2044 = vmax.f32 %v2036, %v2043
      %v2045 = vsel %vm310, %v1995, -inf
      %v2046 = vmax.f32 %v2038, %v2045
      %v2047 = vsel %vm310, %v1996, -inf
      %v2048 = vmax.f32 %v2040, %v2047
      %v2049 = vsel %vm310, %v1997, -inf
      %v2050 = vmax.f32 %v2042, %v2049
      %v2051 = vsel %vm310, %v1998, -inf
      %v2052 = vmax.f32 %v2044, %v2051
      %v2053 = vsel %vm310, %v1999, -inf
      %v2054 = vmax.f32 %v2046, %v2053
      %v2055 = vsel %vm310, %v2000, -inf
      %v2056 = vmax.f32 %v2048, %v2055
      %v2057 = vsel %vm310, %v2001, -inf
      %v2058 = vmax.f32 %v2050, %v2057
      %v2059 = vsel %vm310, %v2002, -inf
      %v2060 = vmax.f32 %v2052, %v2059
      %v2061 = vsel %vm310, %v2003, -inf
      %v2062 = vmax.f32 %v2054, %v2061
      %v2063 = vsel %vm310, %v2004, -inf
      %v2064 = vmax.f32 %v2056, %v2063
      %v2065 = vmax.f32 %v2058, %v2060
      %v2066 = vmax.f32 %v2062, %v2064
      %v2067 = vmax.f32 %v2065, %v2066
      %v2068 = vrot.slane %v2067, 4
      %v2069 = vmax.f32 %v2067, %v2068
      %v2070 = vrot.slane %v2069, 2
      %v2071 = vmax.f32 %v2069, %v2070
      %v2072 = vrot.slane %v2071, 1
      %v2073 = vmax.f32 %v2071, %v2072
      %v2074 = vsub.f32 %v1973, %v2073
      %v2075 = vsub.f32 %v1974, %v2073
      %v2076 = vsub.f32 %v1975, %v2073
      %v2077 = vsub.f32 %v1976, %v2073
      %v2078 = vsub.f32 %v1977, %v2073
      %v2079 = vsub.f32 %v1978, %v2073
      %v2080 = vsub.f32 %v1979, %v2073
      %v2081 = vsub.f32 %v1980, %v2073
      %v2082 = vsub.f32 %v1981, %v2073
      %v2083 = vsub.f32 %v1982, %v2073
      %v2084 = vsub.f32 %v1983, %v2073
      %v2085 = vsub.f32 %v1984, %v2073
      %v2086 = vsub.f32 %v1985, %v2073
      %v2087 = vsub.f32 %v1986, %v2073
      %v2088 = vsub.f32 %v1987, %v2073
      %v2089 = vsub.f32 %v1988, %v2073
      %v2090 = vsub.f32 %v1989, %v2073
      %v2091 = vsub.f32 %v1990, %v2073
      %v2092 = vsub.f32 %v1991, %v2073
      %v2093 = vsub.f32 %v1992, %v2073
      %v2094 = vsub.f32 %v1993, %v2073
      %v2095 = vsub.f32 %v1994, %v2073
      %v2096 = vsub.f32 %v1995, %v2073
      %v2097 = vsub.f32 %v1996, %v2073
      %v2098 = vsub.f32 %v1997, %v2073
      %v2099 = vsub.f32 %v1998, %v2073
      %v2100 = vsub.f32 %v1999, %v2073
      %v2101 = vsub.f32 %v2000, %v2073
      %v2102 = vsub.f32 %v2001, %v2073
      %v2103 = vsub.f32 %v2002, %v2073
      %v2104 = vsub.f32 %v2003, %v2073
      %v2105 = vsub.f32 %v2004, %v2073
      %v2106 = vmul.f32 %v2074, 1.442695
      %v2107 = vpow.pop %v2106
      %v2108 = vmul.f32 %v2075, 1.442695
      %v2109 = vpow.pop %v2108
      %v2110 = vmul.f32 %v2076, 1.442695
      %v2111 = vpow.pop %v2110
      %v2112 = vmul.f32 %v2077, 1.442695
      %v2113 = vpow.pop %v2112
      %v2114 = vmul.f32 %v2078, 1.442695
      %v2115 = vpow.pop %v2114
      %v2116 = vmul.f32 %v2079, 1.442695
      %v2117 = vpow.pop %v2116
      %v2118 = vmul.f32 %v2080, 1.442695
      %v2119 = vpow.pop %v2118
      %v2120 = vmul.f32 %v2081, 1.442695
      %v2121 = vpow.pop %v2120
      %v2122 = vmul.f32 %v2082, 1.442695
      %v2123 = vpow.pop %v2122
      %v2124 = vmul.f32 %v2083, 1.442695
      %v2125 = vpow.pop %v2124
      %v2126 = vmul.f32 %v2084, 1.442695
      %v2127 = vpow.pop %v2126
      %v2128 = vmul.f32 %v2085, 1.442695
      %v2129 = vpow.pop %v2128
      %v2130 = vmul.f32 %v2086, 1.442695
      %v2131 = vpow.pop %v2130
      %v2132 = vmul.f32 %v2087, 1.442695
      %v2133 = vpow.pop %v2132
      %v2134 = vmul.f32 %v2088, 1.442695
      %v2135 = vpow.pop %v2134
      %v2136 = vmul.f32 %v2089, 1.442695
      %v2137 = vpow.pop %v2136
      %v2138 = vmul.f32 %v2090, 1.442695
      %v2139 = vpow.pop %v2138
      %v2140 = vmul.f32 %v2091, 1.442695
      %v2141 = vpow.pop %v2140
      %v2142 = vmul.f32 %v2092, 1.442695
      %v2143 = vpow.pop %v2142
      %v2144 = vmul.f32 %v2093, 1.442695
      %v2145 = vpow.pop %v2144
      %v2146 = vmul.f32 %v2094, 1.442695
      %v2147 = vpow.pop %v2146
      %v2148 = vmul.f32 %v2095, 1.442695
      %v2149 = vpow.pop %v2148
      %v2150 = vmul.f32 %v2096, 1.442695
      %v2151 = vpow.pop %v2150
      %v2152 = vmul.f32 %v2097, 1.442695
      %v2153 = vpow.pop %v2152
      %v2154 = vmul.f32 %v2098, 1.442695
      %v2155 = vpow.pop %v2154
      %v2156 = vmul.f32 %v2099, 1.442695
      %v2157 = vpow.pop %v2156
      %v2158 = vmul.f32 %v2100, 1.442695
      %v2159 = vpow.pop %v2158
      %v2160 = vmul.f32 %v2101, 1.442695
      %v2161 = vpow.pop %v2160
      %v2162 = vmul.f32 %v2102, 1.442695
      %v2163 = vpow.pop %v2162
      %v2164 = vmul.f32 %v2103, 1.442695
      %v2165 = vpow.pop %v2164
      %v2166 = vmul.f32 %v2104, 1.442695
      %v2167 = vpow.pop %v2166
      %v2168 = vmul.f32 %v2105, 1.442695
      %v2169 = vpow.pop %v2168
      %v2170 = vsel %vm310, %v2107, 0.0
      %v2171 = vsel %vm310, %v2109, 0.0
      %v2172 = vadd.f32 %v2170, %v2171
      %v2173 = vsel %vm310, %v2111, 0.0
      %v2174 = vadd.f32 %v2172, %v2173
      %v2175 = vsel %vm310, %v2113, 0.0
      %v2176 = vadd.f32 %v2174, %v2175
      %v2177 = vsel %vm310, %v2115, 0.0
      %v2178 = vadd.f32 %v2176, %v2177
      %v2179 = vsel %vm310, %v2117, 0.0
      %v2180 = vadd.f32 %v2178, %v2179
      %v2181 = vsel %vm310, %v2119, 0.0
      %v2182 = vadd.f32 %v2180, %v2181
      %v2183 = vsel %vm310, %v2121, 0.0
      %v2184 = vadd.f32 %v2182, %v2183
      %v2185 = vsel %vm310, %v2123, 0.0
      %v2186 = vadd.f32 %v2184, %v2185
      %v2187 = vsel %vm310, %v2125, 0.0
      %v2188 = vadd.f32 %v2186, %v2187
      %v2189 = vsel %vm310, %v2127, 0.0
      %v2190 = vadd.f32 %v2188, %v2189
      %v2191 = vsel %vm310, %v2129, 0.0
      %v2192 = vadd.f32 %v2190, %v2191
      %v2193 = vsel %vm310, %v2131, 0.0
      %v2194 = vadd.f32 %v2192, %v2193
      %v2195 = vsel %vm310, %v2133, 0.0
      %v2196 = vadd.f32 %v2194, %v2195
      %v2197 = vsel %vm310, %v2135, 0.0
      %v2198 = vadd.f32 %v2196, %v2197
      %v2199 = vsel %vm310, %v2137, 0.0
      %v2200 = vadd.f32 %v2198, %v2199
      %v2201 = vsel %vm310, %v2139, 0.0
      %v2202 = vadd.f32 %v2200, %v2201
      %v2203 = vsel %vm310, %v2141, 0.0
      %v2204 = vadd.f32 %v2202, %v2203
      %v2205 = vsel %vm310, %v2143, 0.0
      %v2206 = vadd.f32 %v2204, %v2205
      %v2207 = vsel %vm310, %v2145, 0.0
      %v2208 = vadd.f32 %v2206, %v2207
      %v2209 = vsel %vm310, %v2147, 0.0
      %v2210 = vadd.f32 %v2208, %v2209
      %v2211 = vsel %vm310, %v2149, 0.0
      %v2212 = vadd.f32 %v2210, %v2211
      %v2213 = vsel %vm310, %v2151, 0.0
      %v2214 = vadd.f32 %v2212, %v2213
      %v2215 = vsel %vm310, %v2153, 0.0
      %v2216 = vadd.f32 %v2214, %v2215
      %v2217 = vsel %vm310, %v2155, 0.0
      %v2218 = vadd.f32 %v2216, %v2217
      %v2219 = vsel %vm310, %v2157, 0.0
      %v2220 = vadd.f32 %v2218, %v2219
      %v2221 = vsel %vm310, %v2159, 0.0
      %v2222 = vadd.f32 %v2220, %v2221
      %v2223 = vsel %vm310, %v2161, 0.0
      %v2224 = vadd.f32 %v2222, %v2223
      %v2225 = vsel %vm310, %v2163, 0.0
      %v2226 = vadd.f32 %v2224, %v2225
      %v2227 = vsel %vm310, %v2165, 0.0
      %v2228 = vadd.f32 %v2226, %v2227
      %v2229 = vsel %vm310, %v2167, 0.0
      %v2230 = vadd.f32 %v2228, %v2229
      %v2231 = vsel %vm310, %v2169, 0.0
      %v2232 = vadd.f32 %v2230, %v2231
      %v2233 = vrot.slane %v2232, 4
      %v2234 = vadd.f32 %v2232, %v2233
      %v2235 = vrot.slane %v2234, 2
      %v2236 = vadd.f32 %v2234, %v2235
      %v2237 = vrot.slane %v2236, 1
      %v2238 = vadd.f32 %v2236, %v2237
      %v2239 = vrcp.pop %v2238
      %v2240 = vmul.f32 %v2107, %v2239
      %v2241 = vmul.f32 %v2109, %v2239
      %v2242 = vmul.f32 %v2111, %v2239
      %v2243 = vmul.f32 %v2113, %v2239
      %v2244 = vmul.f32 %v2115, %v2239
      %v2245 = vmul.f32 %v2117, %v2239
      %v2246 = vmul.f32 %v2119, %v2239
      %v2247 = vmul.f32 %v2121, %v2239
      %v2248 = vmul.f32 %v2123, %v2239
      %v2249 = vmul.f32 %v2125, %v2239
      %v2250 = vmul.f32 %v2127, %v2239
      %v2251 = vmul.f32 %v2129, %v2239
      %v2252 = vmul.f32 %v2131, %v2239
      %v2253 = vmul.f32 %v2133, %v2239
      %v2254 = vmul.f32 %v2135, %v2239
      %v2255 = vmul.f32 %v2137, %v2239
      %v2256 = vmul.f32 %v2139, %v2239
      %v2257 = vmul.f32 %v2141, %v2239
      %v2258 = vmul.f32 %v2143, %v2239
      %v2259 = vmul.f32 %v2145, %v2239
      %v2260 = vmul.f32 %v2147, %v2239
      %v2261 = vmul.f32 %v2149, %v2239
      %v2262 = vmul.f32 %v2151, %v2239
      %v2263 = vmul.f32 %v2153, %v2239
      %v2264 = vmul.f32 %v2155, %v2239
      %v2265 = vmul.f32 %v2157, %v2239
      %v2266 = vmul.f32 %v2159, %v2239
      %v2267 = vmul.f32 %v2161, %v2239
      %v2268 = vmul.f32 %v2163, %v2239
      %v2269 = vmul.f32 %v2165, %v2239
      %v2270 = vmul.f32 %v2167, %v2239
      %v2271 = vmul.f32 %v2169, %v2239
      %v2272 = vpack.c.bf16 %v2241, %v2240
      %v2273 = vpack.c.bf16 %v2243, %v2242
      %v2274 = vpack.c.bf16 %v2245, %v2244
      %v2275 = vpack.c.bf16 %v2247, %v2246
      %v2276 = vpack.c.bf16 %v2249, %v2248
      %v2277 = vpack.c.bf16 %v2251, %v2250
      %v2278 = vpack.c.bf16 %v2253, %v2252
      %v2279 = vpack.c.bf16 %v2255, %v2254
      %v2280 = vpack.c.bf16 %v2257, %v2256
      %v2281 = vpack.c.bf16 %v2259, %v2258
      %v2282 = vpack.c.bf16 %v2261, %v2260
      %v2283 = vpack.c.bf16 %v2263, %v2262
      %v2284 = vpack.c.bf16 %v2265, %v2264
      %v2285 = vpack.c.bf16 %v2267, %v2266
      %v2286 = vpack.c.bf16 %v2269, %v2268
      %v2287 = vpack.c.bf16 %v2271, %v2270
      %2288 = vxpose.xlu0.c.b16.start [1/8] %v2272, 128
      %2289 = vxpose.xlu0.c.b16.cont [2/8] %v2273, 128
      %2290 = vxpose.xlu0.c.b16.cont [3/8] %v2274, 128
      %2291 = vxpose.xlu0.c.b16.cont [4/8] %v2275, 128
      %2292 = vxpose.xlu0.c.b16.cont [5/8] %v2276, 128
      %2293 = vxpose.xlu0.c.b16.cont [6/8] %v2277, 128
      %2294 = vxpose.xlu0.c.b16.cont [7/8] %v2278, 128
      %2295 = vxpose.xlu0.c.b16.end [8/8] %v2279, 128
      %v2296 = vpop.trf.xlu0
      %v2297 = vpop.trf.xlu0
      %v2298 = vpop.trf.xlu0
      %v2299 = vpop.trf.xlu0
      %v2300 = vpop.trf.xlu0
      %v2301 = vpop.trf.xlu0
      %v2302 = vpop.trf.xlu0
      %v2303 = vpop.trf.xlu0
      %2304 = vxpose.xlu0.c.b16.start [1/8] %v2280, 128
      %2305 = vxpose.xlu0.c.b16.cont [2/8] %v2281, 128
      %2306 = vxpose.xlu0.c.b16.cont [3/8] %v2282, 128
      %2307 = vxpose.xlu0.c.b16.cont [4/8] %v2283, 128
      %2308 = vxpose.xlu0.c.b16.cont [5/8] %v2284, 128
      %2309 = vxpose.xlu0.c.b16.cont [6/8] %v2285, 128
      %2310 = vxpose.xlu0.c.b16.cont [7/8] %v2286, 128
      %2311 = vxpose.xlu0.c.b16.end [8/8] %v2287, 128
      %v2312 = vpop.trf.xlu0
      %v2313 = vpop.trf.xlu0
      %v2314 = vpop.trf.xlu0
      %v2315 = vpop.trf.xlu0
      %v2316 = vpop.trf.xlu0
      %v2317 = vpop.trf.xlu0
      %v2318 = vpop.trf.xlu0
      %v2319 = vpop.trf.xlu0
      %2320 = vrot.lane.b32.xlu0 %v690, 64
      %v2321 = vpop.permute.xlu0 %2320
      %2322 = vrot.lane.b32.xlu0 %v691, 64
      %v2323 = vpop.permute.xlu0 %2322
      %2324 = vrot.lane.b32.xlu0 %v692, 64
      %v2325 = vpop.permute.xlu0 %2324
      %2326 = vrot.lane.b32.xlu0 %v693, 64
      %v2327 = vpop.permute.xlu0 %2326
      %2328 = vrot.lane.b32.xlu0 %v694, 64
      %v2329 = vpop.permute.xlu0 %2328
      %2330 = vrot.lane.b32.xlu0 %v695, 64
      %v2331 = vpop.permute.xlu0 %2330
      %2332 = vrot.lane.b32.xlu0 %v696, 64
      %v2333 = vpop.permute.xlu0 %2332
      %2334 = vrot.lane.b32.xlu0 %v697, 64
      %v2335 = vpop.permute.xlu0 %2334
      %2336 = vrot.lane.b32.xlu0 %v698, 64
      %v2337 = vpop.permute.xlu0 %2336
      %2338 = vrot.lane.b32.xlu0 %v699, 64
      %v2339 = vpop.permute.xlu0 %2338
      %2340 = vrot.lane.b32.xlu0 %v700, 64
      %v2341 = vpop.permute.xlu0 %2340
      %2342 = vrot.lane.b32.xlu0 %v701, 64
      %v2343 = vpop.permute.xlu0 %2342
      %2344 = vrot.lane.b32.xlu0 %v702, 64
      %v2345 = vpop.permute.xlu0 %2344
      %2346 = vrot.lane.b32.xlu0 %v703, 64
      %v2347 = vpop.permute.xlu0 %2346
      %2348 = vrot.lane.b32.xlu0 %v704, 64
      %v2349 = vpop.permute.xlu0 %2348
      %2350 = vrot.lane.b32.xlu0 %v705, 64
      %v2351 = vpop.permute.xlu0 %2350
      %2368 = vmatprep.subr.bf16.mxu0 0
      %2369 = vmatpush1.bf16.msra.mxu0 %v2335
      %2370 = vmatprep.subr.bf16.mxu0 0
      %2371 = vmatpush1.bf16.msra.mxu0 %v2333
      %2372 = vmatprep.subr.bf16.mxu0 0
      %2373 = vmatpush1.bf16.msra.mxu0 %v2331
      %2374 = vmatprep.subr.bf16.mxu0 0
      %2375 = vmatpush1.bf16.msra.mxu0 %v2329
      %2376 = vmatprep.subr.bf16.mxu0 0
      %2377 = vmatpush1.bf16.msra.mxu0 %v2327
      %2378 = vmatprep.subr.bf16.mxu0 0
      %2379 = vmatpush1.bf16.msra.mxu0 %v2325
      %2380 = vmatprep.subr.bf16.mxu0 0
      %2381 = vmatpush1.bf16.msra.mxu0 %v2323
      %2382 = vmatprep.subr.bf16.mxu0 0
      %2383 = vmatpush1.bf16.msra.mxu0 %v2321
      %2384 = vmatprep.subr.bf16.mxu0 0
      %2385 = vmatpush2.bf16.msra.mxu0 %v2351
      %2386 = vmatprep.subr.bf16.mxu0 0
      %2387 = vmatpush2.bf16.msra.mxu0 %v2349
      %2388 = vmatprep.subr.bf16.mxu0 0
      %2389 = vmatpush2.bf16.msra.mxu0 %v2347
      %2390 = vmatprep.subr.bf16.mxu0 0
      %2391 = vmatpush2.bf16.msra.mxu0 %v2345
      %2392 = vmatprep.subr.bf16.mxu0 0
      %2393 = vmatpush2.bf16.msra.mxu0 %v2343
      %2394 = vmatprep.subr.bf16.mxu0 0
      %2395 = vmatpush2.bf16.msra.mxu0 %v2341
      %2396 = vmatprep.subr.bf16.mxu0 0
      %2397 = vmatpush2.bf16.msra.mxu0 %v2339
      %2398 = vmatprep.subr.bf16.mxu0 0
      %2399 = vmatpush2.bf16.msra.mxu0 %v2337
      %2400 = vmatprep.mubr.bf16.mxu0 %v2312
      %2401 = vmatmul.mubr.bf16.gmra.mxu0 %v2296
      %v2402 = vpop.f32.mrf.mxu0
      %v2403 = vadd.f32 0.0, %v2402
      %v2404 = vpop.f32.mrf.mxu0
      %v2405 = vpop.f32.mrf.mxu0
      %v2406 = vadd.f32 0.0, %v2405
      %v2407 = vpop.f32.mrf.mxu0
      %2408 = vmatprep.mubr.bf16.mxu0 %v2313
      %2409 = vmatmul.mubr.bf16.gmra.mxu0 %v2297
      %v2410 = vpop.f32.mrf.mxu0
      %v2411 = vadd.f32 0.0, %v2410
      %v2412 = vpop.f32.mrf.mxu0
      %v2413 = vpop.f32.mrf.mxu0
      %v2414 = vadd.f32 0.0, %v2413
      %v2415 = vpop.f32.mrf.mxu0
      %2416 = vdwg.mxu0
      %v2417 = vpack.c.bf16 %v2406, %v2403
      %v2418 = vpack.c.bf16 %v2414, %v2411
      %2419 = vrot.lane.b32.xlu0 %v805, 64
      %v2420 = vpop.permute.xlu0 %2419
      %2421 = vrot.lane.b32.xlu0 %v806, 64
      %v2422 = vpop.permute.xlu0 %2421
      %2423 = vrot.lane.b32.xlu0 %v807, 64
      %v2424 = vpop.permute.xlu0 %2423
      %2425 = vrot.lane.b32.xlu0 %v808, 64
      %v2426 = vpop.permute.xlu0 %2425
      %2427 = vrot.lane.b32.xlu0 %v809, 64
      %v2428 = vpop.permute.xlu0 %2427
      %2429 = vrot.lane.b32.xlu0 %v810, 64
      %v2430 = vpop.permute.xlu0 %2429
      %2431 = vrot.lane.b32.xlu0 %v811, 64
      %v2432 = vpop.permute.xlu0 %2431
      %2433 = vrot.lane.b32.xlu0 %v812, 64
      %v2434 = vpop.permute.xlu0 %2433
      %2435 = vrot.lane.b32.xlu0 %v813, 64
      %v2436 = vpop.permute.xlu0 %2435
      %2437 = vrot.lane.b32.xlu0 %v814, 64
      %v2438 = vpop.permute.xlu0 %2437
      %2439 = vrot.lane.b32.xlu0 %v815, 64
      %v2440 = vpop.permute.xlu0 %2439
      %2441 = vrot.lane.b32.xlu0 %v816, 64
      %v2442 = vpop.permute.xlu0 %2441
      %2443 = vrot.lane.b32.xlu0 %v817, 64
      %v2444 = vpop.permute.xlu0 %2443
      %2445 = vrot.lane.b32.xlu0 %v818, 64
      %v2446 = vpop.permute.xlu0 %2445
      %2447 = vrot.lane.b32.xlu0 %v819, 64
      %v2448 = vpop.permute.xlu0 %2447
      %2449 = vrot.lane.b32.xlu0 %v820, 64
      %v2450 = vpop.permute.xlu0 %2449
      %v2452 = vsel %vm310, %v2420, 0
      %v2455 = vsel %vm310, %v2422, 0
      %v2458 = vsel %vm310, %v2424, 0
      %v2461 = vsel %vm310, %v2426, 0
      %v2464 = vsel %vm310, %v2428, 0
      %v2467 = vsel %vm310, %v2430, 0
      %v2470 = vsel %vm310, %v2432, 0
      %v2473 = vsel %vm310, %v2434, 0
      %v2476 = vsel %vm310, %v2436, 0
      %v2479 = vsel %vm310, %v2438, 0
      %v2482 = vsel %vm310, %v2440, 0
      %v2485 = vsel %vm310, %v2442, 0
      %v2488 = vsel %vm310, %v2444, 0
      %v2491 = vsel %vm310, %v2446, 0
      %v2494 = vsel %vm310, %v2448, 0
      %v2497 = vsel %vm310, %v2450, 0
      %2499 = vmatprep.subr.bf16.mxu0 0
      %2500 = vmatpush1.bf16.msra.mxu0 0
      %2501 = vmatprep.subr.bf16.mxu0 0
      %2502 = vmatpush1.bf16.msra.mxu0 0
      %2503 = vmatprep.subr.bf16.mxu0 0
      %2504 = vmatpush1.bf16.msra.mxu0 0
      %2505 = vmatprep.subr.bf16.mxu0 0
      %2506 = vmatpush1.bf16.msra.mxu0 0
      %2507 = vmatprep.subr.bf16.mxu0 0
      %2508 = vmatpush1.bf16.msra.mxu0 0
      %2509 = vmatprep.subr.bf16.mxu0 0
      %2510 = vmatpush1.bf16.msra.mxu0 0
      %2511 = vmatprep.subr.bf16.mxu0 0
      %2512 = vmatpush1.bf16.msra.mxu0 %v2418
      %2513 = vmatprep.subr.bf16.mxu0 0
      %2514 = vmatpush1.bf16.msra.mxu0 %v2417
      %2515 = vmatprep.subr.bf16.mxu0 0
      %2516 = vmatpush2.bf16.msra.mxu0 0
      %2517 = vmatprep.subr.bf16.mxu0 0
      %2518 = vmatpush2.bf16.msra.mxu0 0
      %2519 = vmatprep.subr.bf16.mxu0 0
      %2520 = vmatpush2.bf16.msra.mxu0 0
      %2521 = vmatprep.subr.bf16.mxu0 0
      %2522 = vmatpush2.bf16.msra.mxu0 0
      %2523 = vmatprep.subr.bf16.mxu0 0
      %2524 = vmatpush2.bf16.msra.mxu0 0
      %2525 = vmatprep.subr.bf16.mxu0 0
      %2526 = vmatpush2.bf16.msra.mxu0 0
      %2527 = vmatprep.subr.bf16.mxu0 0
      %2528 = vmatpush2.bf16.msra.mxu0 0
      %2529 = vmatprep.subr.bf16.mxu0 0
      %2530 = vmatpush2.bf16.msra.mxu0 0
      %2531 = vmatprep.mubr.bf16.mxu0 0
      %2532 = vmatmul.mubr.bf16.gmra.mxu0 %v2452
      %v2533 = vpop.f32.mrf.mxu0
      %v2534 = vadd.f32 0.0, %v2533
      %v2535 = vpop.f32.mrf.mxu0
      %v2536 = vpop.f32.mrf.mxu0
      %v2537 = vadd.f32 0.0, %v2536
      %v2538 = vpop.f32.mrf.mxu0
      %2539 = vmatprep.mubr.bf16.mxu0 0
      %2540 = vmatmul.mubr.bf16.gmra.mxu0 %v2455
      %v2541 = vpop.f32.mrf.mxu0
      %v2542 = vadd.f32 0.0, %v2541
      %v2543 = vpop.f32.mrf.mxu0
      %v2544 = vpop.f32.mrf.mxu0
      %v2545 = vadd.f32 0.0, %v2544
      %v2546 = vpop.f32.mrf.mxu0
      %2547 = vmatprep.mubr.bf16.mxu0 0
      %2548 = vmatmul.mubr.bf16.gmra.mxu0 %v2458
      %v2549 = vpop.f32.mrf.mxu0
      %v2550 = vadd.f32 0.0, %v2549
      %v2551 = vpop.f32.mrf.mxu0
      %v2552 = vpop.f32.mrf.mxu0
      %v2553 = vadd.f32 0.0, %v2552
      %v2554 = vpop.f32.mrf.mxu0
      %2555 = vmatprep.mubr.bf16.mxu0 0
      %2556 = vmatmul.mubr.bf16.gmra.mxu0 %v2461
      %v2557 = vpop.f32.mrf.mxu0
      %v2558 = vadd.f32 0.0, %v2557
      %v2559 = vpop.f32.mrf.mxu0
      %v2560 = vpop.f32.mrf.mxu0
      %v2561 = vadd.f32 0.0, %v2560
      %v2562 = vpop.f32.mrf.mxu0
      %2563 = vmatprep.mubr.bf16.mxu0 0
      %2564 = vmatmul.mubr.bf16.gmra.mxu0 %v2464
      %v2565 = vpop.f32.mrf.mxu0
      %v2566 = vadd.f32 0.0, %v2565
      %v2567 = vpop.f32.mrf.mxu0
      %v2568 = vpop.f32.mrf.mxu0
      %v2569 = vadd.f32 0.0, %v2568
      %v2570 = vpop.f32.mrf.mxu0
      %2571 = vmatprep.mubr.bf16.mxu0 0
      %2572 = vmatmul.mubr.bf16.gmra.mxu0 %v2467
      %v2573 = vpop.f32.mrf.mxu0
      %v2574 = vadd.f32 0.0, %v2573
      %v2575 = vpop.f32.mrf.mxu0
      %v2576 = vpop.f32.mrf.mxu0
      %v2577 = vadd.f32 0.0, %v2576
      %v2578 = vpop.f32.mrf.mxu0
      %2579 = vmatprep.mubr.bf16.mxu0 0
      %2580 = vmatmul.mubr.bf16.gmra.mxu0 %v2470
      %v2581 = vpop.f32.mrf.mxu0
      %v2582 = vadd.f32 0.0, %v2581
      %v2583 = vpop.f32.mrf.mxu0
      %v2584 = vpop.f32.mrf.mxu0
      %v2585 = vadd.f32 0.0, %v2584
      %v2586 = vpop.f32.mrf.mxu0
      %2587 = vmatprep.mubr.bf16.mxu0 0
      %2588 = vmatmul.mubr.bf16.gmra.mxu0 %v2473
      %v2589 = vpop.f32.mrf.mxu0
      %v2590 = vadd.f32 0.0, %v2589
      %v2591 = vpop.f32.mrf.mxu0
      %v2592 = vpop.f32.mrf.mxu0
      %v2593 = vadd.f32 0.0, %v2592
      %v2594 = vpop.f32.mrf.mxu0
      %2595 = vmatprep.mubr.bf16.mxu0 0
      %2596 = vmatmul.mubr.bf16.gmra.mxu0 %v2476
      %v2597 = vpop.f32.mrf.mxu0
      %v2598 = vadd.f32 0.0, %v2597
      %v2599 = vpop.f32.mrf.mxu0
      %v2600 = vpop.f32.mrf.mxu0
      %v2601 = vadd.f32 0.0, %v2600
      %v2602 = vpop.f32.mrf.mxu0
      %2603 = vmatprep.mubr.bf16.mxu0 0
      %2604 = vmatmul.mubr.bf16.gmra.mxu0 %v2479
      %v2605 = vpop.f32.mrf.mxu0
      %v2606 = vadd.f32 0.0, %v2605
      %v2607 = vpop.f32.mrf.mxu0
      %v2608 = vpop.f32.mrf.mxu0
      %v2609 = vadd.f32 0.0, %v2608
      %v2610 = vpop.f32.mrf.mxu0
      %2611 = vmatprep.mubr.bf16.mxu0 0
      %2612 = vmatmul.mubr.bf16.gmra.mxu0 %v2482
      %v2613 = vpop.f32.mrf.mxu0
      %v2614 = vadd.f32 0.0, %v2613
      %v2615 = vpop.f32.mrf.mxu0
      %v2616 = vpop.f32.mrf.mxu0
      %v2617 = vadd.f32 0.0, %v2616
      %v2618 = vpop.f32.mrf.mxu0
      %2619 = vmatprep.mubr.bf16.mxu0 0
      %2620 = vmatmul.mubr.bf16.gmra.mxu0 %v2485
      %v2621 = vpop.f32.mrf.mxu0
      %v2622 = vadd.f32 0.0, %v2621
      %v2623 = vpop.f32.mrf.mxu0
      %v2624 = vpop.f32.mrf.mxu0
      %v2625 = vadd.f32 0.0, %v2624
      %v2626 = vpop.f32.mrf.mxu0
      %2627 = vmatprep.mubr.bf16.mxu0 0
      %2628 = vmatmul.mubr.bf16.gmra.mxu0 %v2488
      %v2629 = vpop.f32.mrf.mxu0
      %v2630 = vadd.f32 0.0, %v2629
      %v2631 = vpop.f32.mrf.mxu0
      %v2632 = vpop.f32.mrf.mxu0
      %v2633 = vadd.f32 0.0, %v2632
      %v2634 = vpop.f32.mrf.mxu0
      %2635 = vmatprep.mubr.bf16.mxu0 0
      %2636 = vmatmul.mubr.bf16.gmra.mxu0 %v2491
      %v2637 = vpop.f32.mrf.mxu0
      %v2638 = vadd.f32 0.0, %v2637
      %v2639 = vpop.f32.mrf.mxu0
      %v2640 = vpop.f32.mrf.mxu0
      %v2641 = vadd.f32 0.0, %v2640
      %v2642 = vpop.f32.mrf.mxu0
      %2643 = vmatprep.mubr.bf16.mxu0 0
      %2644 = vmatmul.mubr.bf16.gmra.mxu0 %v2494
      %v2645 = vpop.f32.mrf.mxu0
      %v2646 = vadd.f32 0.0, %v2645
      %v2647 = vpop.f32.mrf.mxu0
      %v2648 = vpop.f32.mrf.mxu0
      %v2649 = vadd.f32 0.0, %v2648
      %v2650 = vpop.f32.mrf.mxu0
      %2651 = vmatprep.mubr.bf16.mxu0 0
      %2652 = vmatmul.mubr.bf16.gmra.mxu0 %v2497
      %v2653 = vpop.f32.mrf.mxu0
      %v2654 = vadd.f32 0.0, %v2653
      %v2655 = vpop.f32.mrf.mxu0
      %v2656 = vpop.f32.mrf.mxu0
      %v2657 = vadd.f32 0.0, %v2656
      %v2658 = vpop.f32.mrf.mxu0
      %2659 = vdwg.mxu0
      %2660 = vrot.lane.b32.xlu0 %v118, 32
      %v2661 = vpop.permute.xlu0 %2660
      %2662 = vrot.lane.b32.xlu0 %v120, 32
      %v2663 = vpop.permute.xlu0 %2662
      %2664 = vrot.lane.b32.xlu0 %v122, 32
      %v2665 = vpop.permute.xlu0 %2664
      %2666 = vrot.lane.b32.xlu0 %v124, 32
      %v2667 = vpop.permute.xlu0 %2666
      %2668 = vrot.lane.b32.xlu0 %v126, 32
      %v2669 = vpop.permute.xlu0 %2668
      %2670 = vrot.lane.b32.xlu0 %v128, 32
      %v2671 = vpop.permute.xlu0 %2670
      %2672 = vrot.lane.b32.xlu0 %v130, 32
      %v2673 = vpop.permute.xlu0 %2672
      %2674 = vrot.lane.b32.xlu0 %v132, 32
      %v2675 = vpop.permute.xlu0 %2674
      %2676 = vrot.lane.b32.xlu0 %v134, 32
      %v2677 = vpop.permute.xlu0 %2676
      %2678 = vrot.lane.b32.xlu0 %v136, 32
      %v2679 = vpop.permute.xlu0 %2678
      %2680 = vrot.lane.b32.xlu0 %v138, 32
      %v2681 = vpop.permute.xlu0 %2680
      %2682 = vrot.lane.b32.xlu0 %v140, 32
      %v2683 = vpop.permute.xlu0 %2682
      %2684 = vrot.lane.b32.xlu0 %v142, 32
      %v2685 = vpop.permute.xlu0 %2684
      %2686 = vrot.lane.b32.xlu0 %v144, 32
      %v2687 = vpop.permute.xlu0 %2686
      %2688 = vrot.lane.b32.xlu0 %v146, 32
      %v2689 = vpop.permute.xlu0 %2688
      %2690 = vrot.lane.b32.xlu0 %v148, 32
      %v2691 = vpop.permute.xlu0 %2690
      %2692 = vrot.lane.b32.xlu0 %v150, 32
      %v2693 = vpop.permute.xlu0 %2692
      %2694 = vrot.lane.b32.xlu0 %v152, 32
      %v2695 = vpop.permute.xlu0 %2694
      %2696 = vrot.lane.b32.xlu0 %v154, 32
      %v2697 = vpop.permute.xlu0 %2696
      %2698 = vrot.lane.b32.xlu0 %v156, 32
      %v2699 = vpop.permute.xlu0 %2698
      %2700 = vrot.lane.b32.xlu0 %v158, 32
      %v2701 = vpop.permute.xlu0 %2700
      %2702 = vrot.lane.b32.xlu0 %v160, 32
      %v2703 = vpop.permute.xlu0 %2702
      %2704 = vrot.lane.b32.xlu0 %v162, 32
      %v2705 = vpop.permute.xlu0 %2704
      %2706 = vrot.lane.b32.xlu0 %v164, 32
      %v2707 = vpop.permute.xlu0 %2706
      %2708 = vrot.lane.b32.xlu0 %v166, 32
      %v2709 = vpop.permute.xlu0 %2708
      %2710 = vrot.lane.b32.xlu0 %v168, 32
      %v2711 = vpop.permute.xlu0 %2710
      %2712 = vrot.lane.b32.xlu0 %v170, 32
      %v2713 = vpop.permute.xlu0 %2712
      %2714 = vrot.lane.b32.xlu0 %v172, 32
      %v2715 = vpop.permute.xlu0 %2714
      %2716 = vrot.lane.b32.xlu0 %v174, 32
      %v2717 = vpop.permute.xlu0 %2716
      %2718 = vrot.lane.b32.xlu0 %v176, 32
      %v2719 = vpop.permute.xlu0 %2718
      %2720 = vrot.lane.b32.xlu0 %v178, 32
      %v2721 = vpop.permute.xlu0 %2720
      %2722 = vrot.lane.b32.xlu0 %v180, 32
      %v2723 = vpop.permute.xlu0 %2722
      %v2724 = vrot.slane %v2661, 4
      %v2725 = vrot.slane %v2663, 4
      %v2726 = vrot.slane %v2665, 4
      %v2727 = vrot.slane %v2667, 4
      %v2728 = vrot.slane %v2669, 4
      %v2729 = vrot.slane %v2671, 4
      %v2730 = vrot.slane %v2673, 4
      %v2731 = vrot.slane %v2675, 4
      %v2732 = vrot.slane %v2677, 4
      %v2733 = vrot.slane %v2679, 4
      %v2734 = vrot.slane %v2681, 4
      %v2735 = vrot.slane %v2683, 4
      %v2736 = vrot.slane %v2685, 4
      %v2737 = vrot.slane %v2687, 4
      %v2738 = vrot.slane %v2689, 4
      %v2739 = vrot.slane %v2691, 4
      %v2740 = vrot.slane %v2693, 4
      %v2741 = vrot.slane %v2695, 4
      %v2742 = vrot.slane %v2697, 4
      %v2743 = vrot.slane %v2699, 4
      %v2744 = vrot.slane %v2701, 4
      %v2745 = vrot.slane %v2703, 4
      %v2746 = vrot.slane %v2705, 4
      %v2747 = vrot.slane %v2707, 4
      %v2748 = vrot.slane %v2709, 4
      %v2749 = vrot.slane %v2711, 4
      %v2750 = vrot.slane %v2713, 4
      %v2751 = vrot.slane %v2715, 4
      %v2752 = vrot.slane %v2717, 4
      %v2753 = vrot.slane %v2719, 4
      %v2754 = vrot.slane %v2721, 4
      %v2755 = vrot.slane %v2723, 4
      %v2788 = vunpack.c.l.bf16 %v2724
      %v2789 = vunpack.c.l.bf16 %v2725
      %v2790 = vunpack.c.l.bf16 %v2726
      %v2791 = vunpack.c.l.bf16 %v2727
      %v2792 = vunpack.c.l.bf16 %v2728
      %v2793 = vunpack.c.l.bf16 %v2729
      %v2794 = vunpack.c.l.bf16 %v2730
      %v2795 = vunpack.c.l.bf16 %v2731
      %v2796 = vunpack.c.l.bf16 %v2732
      %v2797 = vunpack.c.l.bf16 %v2733
      %v2798 = vunpack.c.l.bf16 %v2734
      %v2799 = vunpack.c.l.bf16 %v2735
      %v2800 = vunpack.c.l.bf16 %v2736
      %v2801 = vunpack.c.l.bf16 %v2737
      %v2802 = vunpack.c.l.bf16 %v2738
      %v2803 = vunpack.c.l.bf16 %v2739
      %v2804 = vunpack.c.l.bf16 %v2740
      %v2805 = vunpack.c.l.bf16 %v2741
      %v2806 = vunpack.c.l.bf16 %v2742
      %v2807 = vunpack.c.l.bf16 %v2743
      %v2808 = vunpack.c.l.bf16 %v2744
      %v2809 = vunpack.c.l.bf16 %v2745
      %v2810 = vunpack.c.l.bf16 %v2746
      %v2811 = vunpack.c.l.bf16 %v2747
      %v2812 = vunpack.c.l.bf16 %v2748
      %v2813 = vunpack.c.l.bf16 %v2749
      %v2814 = vunpack.c.l.bf16 %v2750
      %v2815 = vunpack.c.l.bf16 %v2751
      %v2816 = vunpack.c.l.bf16 %v2752
      %v2817 = vunpack.c.l.bf16 %v2753
      %v2818 = vunpack.c.l.bf16 %v2754
      %v2819 = vunpack.c.l.bf16 %v2755
      %v2820 = vsel %vm310, %v2788, -inf
      %v2821 = vsel %vm310, %v2789, -inf
      %v2822 = vsel %vm310, %v2790, -inf
      %v2823 = vsel %vm310, %v2791, -inf
      %v2824 = vsel %vm310, %v2792, -inf
      %v2825 = vmax.f32 %v2820, %v2824
      %v2826 = vsel %vm310, %v2793, -inf
      %v2827 = vmax.f32 %v2821, %v2826
      %v2828 = vsel %vm310, %v2794, -inf
      %v2829 = vmax.f32 %v2822, %v2828
      %v2830 = vsel %vm310, %v2795, -inf
      %v2831 = vmax.f32 %v2823, %v2830
      %v2832 = vsel %vm310, %v2796, -inf
      %v2833 = vmax.f32 %v2825, %v2832
      %v2834 = vsel %vm310, %v2797, -inf
      %v2835 = vmax.f32 %v2827, %v2834
      %v2836 = vsel %vm310, %v2798, -inf
      %v2837 = vmax.f32 %v2829, %v2836
      %v2838 = vsel %vm310, %v2799, -inf
      %v2839 = vmax.f32 %v2831, %v2838
      %v2840 = vsel %vm310, %v2800, -inf
      %v2841 = vmax.f32 %v2833, %v2840
      %v2842 = vsel %vm310, %v2801, -inf
      %v2843 = vmax.f32 %v2835, %v2842
      %v2844 = vsel %vm310, %v2802, -inf
      %v2845 = vmax.f32 %v2837, %v2844
      %v2846 = vsel %vm310, %v2803, -inf
      %v2847 = vmax.f32 %v2839, %v2846
      %v2848 = vsel %vm310, %v2804, -inf
      %v2849 = vmax.f32 %v2841, %v2848
      %v2850 = vsel %vm310, %v2805, -inf
      %v2851 = vmax.f32 %v2843, %v2850
      %v2852 = vsel %vm310, %v2806, -inf
      %v2853 = vmax.f32 %v2845, %v2852
      %v2854 = vsel %vm310, %v2807, -inf
      %v2855 = vmax.f32 %v2847, %v2854
      %v2856 = vsel %vm310, %v2808, -inf
      %v2857 = vmax.f32 %v2849, %v2856
      %v2858 = vsel %vm310, %v2809, -inf
      %v2859 = vmax.f32 %v2851, %v2858
      %v2860 = vsel %vm310, %v2810, -inf
      %v2861 = vmax.f32 %v2853, %v2860
      %v2862 = vsel %vm310, %v2811, -inf
      %v2863 = vmax.f32 %v2855, %v2862
      %v2864 = vsel %vm310, %v2812, -inf
      %v2865 = vmax.f32 %v2857, %v2864
      %v2866 = vsel %vm310, %v2813, -inf
      %v2867 = vmax.f32 %v2859, %v2866
      %v2868 = vsel %vm310, %v2814, -inf
      %v2869 = vmax.f32 %v2861, %v2868
      %v2870 = vsel %vm310, %v2815, -inf
      %v2871 = vmax.f32 %v2863, %v2870
      %v2872 = vsel %vm310, %v2816, -inf
      %v2873 = vmax.f32 %v2865, %v2872
      %v2874 = vsel %vm310, %v2817, -inf
      %v2875 = vmax.f32 %v2867, %v2874
      %v2876 = vsel %vm310, %v2818, -inf
      %v2877 = vmax.f32 %v2869, %v2876
      %v2878 = vsel %vm310, %v2819, -inf
      %v2879 = vmax.f32 %v2871, %v2878
      %v2880 = vmax.f32 %v2873, %v2875
      %v2881 = vmax.f32 %v2877, %v2879
      %v2882 = vmax.f32 %v2880, %v2881
      %v2883 = vrot.slane %v2882, 4
      %v2884 = vmax.f32 %v2882, %v2883
      %v2885 = vrot.slane %v2884, 2
      %v2886 = vmax.f32 %v2884, %v2885
      %v2887 = vrot.slane %v2886, 1
      %v2888 = vmax.f32 %v2886, %v2887
      %v2889 = vsub.f32 %v2788, %v2888
      %v2890 = vsub.f32 %v2789, %v2888
      %v2891 = vsub.f32 %v2790, %v2888
      %v2892 = vsub.f32 %v2791, %v2888
      %v2893 = vsub.f32 %v2792, %v2888
      %v2894 = vsub.f32 %v2793, %v2888
      %v2895 = vsub.f32 %v2794, %v2888
      %v2896 = vsub.f32 %v2795, %v2888
      %v2897 = vsub.f32 %v2796, %v2888
      %v2898 = vsub.f32 %v2797, %v2888
      %v2899 = vsub.f32 %v2798, %v2888
      %v2900 = vsub.f32 %v2799, %v2888
      %v2901 = vsub.f32 %v2800, %v2888
      %v2902 = vsub.f32 %v2801, %v2888
      %v2903 = vsub.f32 %v2802, %v2888
      %v2904 = vsub.f32 %v2803, %v2888
      %v2905 = vsub.f32 %v2804, %v2888
      %v2906 = vsub.f32 %v2805, %v2888
      %v2907 = vsub.f32 %v2806, %v2888
      %v2908 = vsub.f32 %v2807, %v2888
      %v2909 = vsub.f32 %v2808, %v2888
      %v2910 = vsub.f32 %v2809, %v2888
      %v2911 = vsub.f32 %v2810, %v2888
      %v2912 = vsub.f32 %v2811, %v2888
      %v2913 = vsub.f32 %v2812, %v2888
      %v2914 = vsub.f32 %v2813, %v2888
      %v2915 = vsub.f32 %v2814, %v2888
      %v2916 = vsub.f32 %v2815, %v2888
      %v2917 = vsub.f32 %v2816, %v2888
      %v2918 = vsub.f32 %v2817, %v2888
      %v2919 = vsub.f32 %v2818, %v2888
      %v2920 = vsub.f32 %v2819, %v2888
      %v2921 = vmul.f32 %v2889, 1.442695
      %v2922 = vpow.pop %v2921
      %v2923 = vmul.f32 %v2890, 1.442695
      %v2924 = vpow.pop %v2923
      %v2925 = vmul.f32 %v2891, 1.442695
      %v2926 = vpow.pop %v2925
      %v2927 = vmul.f32 %v2892, 1.442695
      %v2928 = vpow.pop %v2927
      %v2929 = vmul.f32 %v2893, 1.442695
      %v2930 = vpow.pop %v2929
      %v2931 = vmul.f32 %v2894, 1.442695
      %v2932 = vpow.pop %v2931
      %v2933 = vmul.f32 %v2895, 1.442695
      %v2934 = vpow.pop %v2933
      %v2935 = vmul.f32 %v2896, 1.442695
      %v2936 = vpow.pop %v2935
      %v2937 = vmul.f32 %v2897, 1.442695
      %v2938 = vpow.pop %v2937
      %v2939 = vmul.f32 %v2898, 1.442695
      %v2940 = vpow.pop %v2939
      %v2941 = vmul.f32 %v2899, 1.442695
      %v2942 = vpow.pop %v2941
      %v2943 = vmul.f32 %v2900, 1.442695
      %v2944 = vpow.pop %v2943
      %v2945 = vmul.f32 %v2901, 1.442695
      %v2946 = vpow.pop %v2945
      %v2947 = vmul.f32 %v2902, 1.442695
      %v2948 = vpow.pop %v2947
      %v2949 = vmul.f32 %v2903, 1.442695
      %v2950 = vpow.pop %v2949
      %v2951 = vmul.f32 %v2904, 1.442695
      %v2952 = vpow.pop %v2951
      %v2953 = vmul.f32 %v2905, 1.442695
      %v2954 = vpow.pop %v2953
      %v2955 = vmul.f32 %v2906, 1.442695
      %v2956 = vpow.pop %v2955
      %v2957 = vmul.f32 %v2907, 1.442695
      %v2958 = vpow.pop %v2957
      %v2959 = vmul.f32 %v2908, 1.442695
      %v2960 = vpow.pop %v2959
      %v2961 = vmul.f32 %v2909, 1.442695
      %v2962 = vpow.pop %v2961
      %v2963 = vmul.f32 %v2910, 1.442695
      %v2964 = vpow.pop %v2963
      %v2965 = vmul.f32 %v2911, 1.442695
      %v2966 = vpow.pop %v2965
      %v2967 = vmul.f32 %v2912, 1.442695
      %v2968 = vpow.pop %v2967
      %v2969 = vmul.f32 %v2913, 1.442695
      %v2970 = vpow.pop %v2969
      %v2971 = vmul.f32 %v2914, 1.442695
      %v2972 = vpow.pop %v2971
      %v2973 = vmul.f32 %v2915, 1.442695
      %v2974 = vpow.pop %v2973
      %v2975 = vmul.f32 %v2916, 1.442695
      %v2976 = vpow.pop %v2975
      %v2977 = vmul.f32 %v2917, 1.442695
      %v2978 = vpow.pop %v2977
      %v2979 = vmul.f32 %v2918, 1.442695
      %v2980 = vpow.pop %v2979
      %v2981 = vmul.f32 %v2919, 1.442695
      %v2982 = vpow.pop %v2981
      %v2983 = vmul.f32 %v2920, 1.442695
      %v2984 = vpow.pop %v2983
      %v2985 = vsel %vm310, %v2922, 0.0
      %v2986 = vsel %vm310, %v2924, 0.0
      %v2987 = vadd.f32 %v2985, %v2986
      %v2988 = vsel %vm310, %v2926, 0.0
      %v2989 = vadd.f32 %v2987, %v2988
      %v2990 = vsel %vm310, %v2928, 0.0
      %v2991 = vadd.f32 %v2989, %v2990
      %v2992 = vsel %vm310, %v2930, 0.0
      %v2993 = vadd.f32 %v2991, %v2992
      %v2994 = vsel %vm310, %v2932, 0.0
      %v2995 = vadd.f32 %v2993, %v2994
      %v2996 = vsel %vm310, %v2934, 0.0
      %v2997 = vadd.f32 %v2995, %v2996
      %v2998 = vsel %vm310, %v2936, 0.0
      %v2999 = vadd.f32 %v2997, %v2998
      %v3000 = vsel %vm310, %v2938, 0.0
      %v3001 = vadd.f32 %v2999, %v3000
      %v3002 = vsel %vm310, %v2940, 0.0
      %v3003 = vadd.f32 %v3001, %v3002
      %v3004 = vsel %vm310, %v2942, 0.0
      %v3005 = vadd.f32 %v3003, %v3004
      %v3006 = vsel %vm310, %v2944, 0.0
      %v3007 = vadd.f32 %v3005, %v3006
      %v3008 = vsel %vm310, %v2946, 0.0
      %v3009 = vadd.f32 %v3007, %v3008
      %v3010 = vsel %vm310, %v2948, 0.0
      %v3011 = vadd.f32 %v3009, %v3010
      %v3012 = vsel %vm310, %v2950, 0.0
      %v3013 = vadd.f32 %v3011, %v3012
      %v3014 = vsel %vm310, %v2952, 0.0
      %v3015 = vadd.f32 %v3013, %v3014
      %v3016 = vsel %vm310, %v2954, 0.0
      %v3017 = vadd.f32 %v3015, %v3016
      %v3018 = vsel %vm310, %v2956, 0.0
      %v3019 = vadd.f32 %v3017, %v3018
      %v3020 = vsel %vm310, %v2958, 0.0
      %v3021 = vadd.f32 %v3019, %v3020
      %v3022 = vsel %vm310, %v2960, 0.0
      %v3023 = vadd.f32 %v3021, %v3022
      %v3024 = vsel %vm310, %v2962, 0.0
      %v3025 = vadd.f32 %v3023, %v3024
      %v3026 = vsel %vm310, %v2964, 0.0
      %v3027 = vadd.f32 %v3025, %v3026
      %v3028 = vsel %vm310, %v2966, 0.0
      %v3029 = vadd.f32 %v3027, %v3028
      %v3030 = vsel %vm310, %v2968, 0.0
      %v3031 = vadd.f32 %v3029, %v3030
      %v3032 = vsel %vm310, %v2970, 0.0
      %v3033 = vadd.f32 %v3031, %v3032
      %v3034 = vsel %vm310, %v2972, 0.0
      %v3035 = vadd.f32 %v3033, %v3034
      %v3036 = vsel %vm310, %v2974, 0.0
      %v3037 = vadd.f32 %v3035, %v3036
      %v3038 = vsel %vm310, %v2976, 0.0
      %v3039 = vadd.f32 %v3037, %v3038
      %v3040 = vsel %vm310, %v2978, 0.0
      %v3041 = vadd.f32 %v3039, %v3040
      %v3042 = vsel %vm310, %v2980, 0.0
      %v3043 = vadd.f32 %v3041, %v3042
      %v3044 = vsel %vm310, %v2982, 0.0
      %v3045 = vadd.f32 %v3043, %v3044
      %v3046 = vsel %vm310, %v2984, 0.0
      %v3047 = vadd.f32 %v3045, %v3046
      %v3048 = vrot.slane %v3047, 4
      %v3049 = vadd.f32 %v3047, %v3048
      %v3050 = vrot.slane %v3049, 2
      %v3051 = vadd.f32 %v3049, %v3050
      %v3052 = vrot.slane %v3051, 1
      %v3053 = vadd.f32 %v3051, %v3052
      %v3054 = vrcp.pop %v3053
      %v3055 = vmul.f32 %v2922, %v3054
      %v3056 = vmul.f32 %v2924, %v3054
      %v3057 = vmul.f32 %v2926, %v3054
      %v3058 = vmul.f32 %v2928, %v3054
      %v3059 = vmul.f32 %v2930, %v3054
      %v3060 = vmul.f32 %v2932, %v3054
      %v3061 = vmul.f32 %v2934, %v3054
      %v3062 = vmul.f32 %v2936, %v3054
      %v3063 = vmul.f32 %v2938, %v3054
      %v3064 = vmul.f32 %v2940, %v3054
      %v3065 = vmul.f32 %v2942, %v3054
      %v3066 = vmul.f32 %v2944, %v3054
      %v3067 = vmul.f32 %v2946, %v3054
      %v3068 = vmul.f32 %v2948, %v3054
      %v3069 = vmul.f32 %v2950, %v3054
      %v3070 = vmul.f32 %v2952, %v3054
      %v3071 = vmul.f32 %v2954, %v3054
      %v3072 = vmul.f32 %v2956, %v3054
      %v3073 = vmul.f32 %v2958, %v3054
      %v3074 = vmul.f32 %v2960, %v3054
      %v3075 = vmul.f32 %v2962, %v3054
      %v3076 = vmul.f32 %v2964, %v3054
      %v3077 = vmul.f32 %v2966, %v3054
      %v3078 = vmul.f32 %v2968, %v3054
      %v3079 = vmul.f32 %v2970, %v3054
      %v3080 = vmul.f32 %v2972, %v3054
      %v3081 = vmul.f32 %v2974, %v3054
      %v3082 = vmul.f32 %v2976, %v3054
      %v3083 = vmul.f32 %v2978, %v3054
      %v3084 = vmul.f32 %v2980, %v3054
      %v3085 = vmul.f32 %v2982, %v3054
      %v3086 = vmul.f32 %v2984, %v3054
      %v3087 = vpack.c.bf16 %v3056, %v3055
      %v3088 = vpack.c.bf16 %v3058, %v3057
      %v3089 = vpack.c.bf16 %v3060, %v3059
      %v3090 = vpack.c.bf16 %v3062, %v3061
      %v3091 = vpack.c.bf16 %v3064, %v3063
      %v3092 = vpack.c.bf16 %v3066, %v3065
      %v3093 = vpack.c.bf16 %v3068, %v3067
      %v3094 = vpack.c.bf16 %v3070, %v3069
      %v3095 = vpack.c.bf16 %v3072, %v3071
      %v3096 = vpack.c.bf16 %v3074, %v3073
      %v3097 = vpack.c.bf16 %v3076, %v3075
      %v3098 = vpack.c.bf16 %v3078, %v3077
      %v3099 = vpack.c.bf16 %v3080, %v3079
      %v3100 = vpack.c.bf16 %v3082, %v3081
      %v3101 = vpack.c.bf16 %v3084, %v3083
      %v3102 = vpack.c.bf16 %v3086, %v3085
      %3103 = vxpose.xlu0.c.b16.start [1/8] %v3087, 128
      %3104 = vxpose.xlu0.c.b16.cont [2/8] %v3088, 128
      %3105 = vxpose.xlu0.c.b16.cont [3/8] %v3089, 128
      %3106 = vxpose.xlu0.c.b16.cont [4/8] %v3090, 128
      %3107 = vxpose.xlu0.c.b16.cont [5/8] %v3091, 128
      %3108 = vxpose.xlu0.c.b16.cont [6/8] %v3092, 128
      %3109 = vxpose.xlu0.c.b16.cont [7/8] %v3093, 128
      %3110 = vxpose.xlu0.c.b16.end [8/8] %v3094, 128
      %v3111 = vpop.trf.xlu0
      %v3112 = vpop.trf.xlu0
      %v3113 = vpop.trf.xlu0
      %v3114 = vpop.trf.xlu0
      %v3115 = vpop.trf.xlu0
      %v3116 = vpop.trf.xlu0
      %v3117 = vpop.trf.xlu0
      %v3118 = vpop.trf.xlu0
      %3119 = vxpose.xlu0.c.b16.start [1/8] %v3095, 128
      %3120 = vxpose.xlu0.c.b16.cont [2/8] %v3096, 128
      %3121 = vxpose.xlu0.c.b16.cont [3/8] %v3097, 128
      %3122 = vxpose.xlu0.c.b16.cont [4/8] %v3098, 128
      %3123 = vxpose.xlu0.c.b16.cont [5/8] %v3099, 128
      %3124 = vxpose.xlu0.c.b16.cont [6/8] %v3100, 128
      %3125 = vxpose.xlu0.c.b16.cont [7/8] %v3101, 128
      %3126 = vxpose.xlu0.c.b16.end [8/8] %v3102, 128
      %v3127 = vpop.trf.xlu0
      %v3128 = vpop.trf.xlu0
      %v3129 = vpop.trf.xlu0
      %v3130 = vpop.trf.xlu0
      %v3131 = vpop.trf.xlu0
      %v3132 = vpop.trf.xlu0
      %v3133 = vpop.trf.xlu0
      %v3134 = vpop.trf.xlu0
      %3135 = vrot.lane.b32.xlu0 %v690, 32
      %v3136 = vpop.permute.xlu0 %3135
      %3137 = vrot.lane.b32.xlu0 %v691, 32
      %v3138 = vpop.permute.xlu0 %3137
      %3139 = vrot.lane.b32.xlu0 %v692, 32
      %v3140 = vpop.permute.xlu0 %3139
      %3141 = vrot.lane.b32.xlu0 %v693, 32
      %v3142 = vpop.permute.xlu0 %3141
      %3143 = vrot.lane.b32.xlu0 %v694, 32
      %v3144 = vpop.permute.xlu0 %3143
      %3145 = vrot.lane.b32.xlu0 %v695, 32
      %v3146 = vpop.permute.xlu0 %3145
      %3147 = vrot.lane.b32.xlu0 %v696, 32
      %v3148 = vpop.permute.xlu0 %3147
      %3149 = vrot.lane.b32.xlu0 %v697, 32
      %v3150 = vpop.permute.xlu0 %3149
      %3151 = vrot.lane.b32.xlu0 %v698, 32
      %v3152 = vpop.permute.xlu0 %3151
      %3153 = vrot.lane.b32.xlu0 %v699, 32
      %v3154 = vpop.permute.xlu0 %3153
      %3155 = vrot.lane.b32.xlu0 %v700, 32
      %v3156 = vpop.permute.xlu0 %3155
      %3157 = vrot.lane.b32.xlu0 %v701, 32
      %v3158 = vpop.permute.xlu0 %3157
      %3159 = vrot.lane.b32.xlu0 %v702, 32
      %v3160 = vpop.permute.xlu0 %3159
      %3161 = vrot.lane.b32.xlu0 %v703, 32
      %v3162 = vpop.permute.xlu0 %3161
      %3163 = vrot.lane.b32.xlu0 %v704, 32
      %v3164 = vpop.permute.xlu0 %3163
      %3165 = vrot.lane.b32.xlu0 %v705, 32
      %v3166 = vpop.permute.xlu0 %3165
      %3183 = vmatprep.subr.bf16.mxu0 0
      %3184 = vmatpush1.bf16.msra.mxu0 %v3150
      %3185 = vmatprep.subr.bf16.mxu0 0
      %3186 = vmatpush1.bf16.msra.mxu0 %v3148
      %3187 = vmatprep.subr.bf16.mxu0 0
      %3188 = vmatpush1.bf16.msra.mxu0 %v3146
      %3189 = vmatprep.subr.bf16.mxu0 0
      %3190 = vmatpush1.bf16.msra.mxu0 %v3144
      %3191 = vmatprep.subr.bf16.mxu0 0
      %3192 = vmatpush1.bf16.msra.mxu0 %v3142
      %3193 = vmatprep.subr.bf16.mxu0 0
      %3194 = vmatpush1.bf16.msra.mxu0 %v3140
      %3195 = vmatprep.subr.bf16.mxu0 0
      %3196 = vmatpush1.bf16.msra.mxu0 %v3138
      %3197 = vmatprep.subr.bf16.mxu0 0
      %3198 = vmatpush1.bf16.msra.mxu0 %v3136
      %3199 = vmatprep.subr.bf16.mxu0 0
      %3200 = vmatpush2.bf16.msra.mxu0 %v3166
      %3201 = vmatprep.subr.bf16.mxu0 0
      %3202 = vmatpush2.bf16.msra.mxu0 %v3164
      %3203 = vmatprep.subr.bf16.mxu0 0
      %3204 = vmatpush2.bf16.msra.mxu0 %v3162
      %3205 = vmatprep.subr.bf16.mxu0 0
      %3206 = vmatpush2.bf16.msra.mxu0 %v3160
      %3207 = vmatprep.subr.bf16.mxu0 0
      %3208 = vmatpush2.bf16.msra.mxu0 %v3158
      %3209 = vmatprep.subr.bf16.mxu0 0
      %3210 = vmatpush2.bf16.msra.mxu0 %v3156
      %3211 = vmatprep.subr.bf16.mxu0 0
      %3212 = vmatpush2.bf16.msra.mxu0 %v3154
      %3213 = vmatprep.subr.bf16.mxu0 0
      %3214 = vmatpush2.bf16.msra.mxu0 %v3152
      %3215 = vmatprep.mubr.bf16.mxu0 %v3127
      %3216 = vmatmul.mubr.bf16.gmra.mxu0 %v3111
      %v3217 = vpop.f32.mrf.mxu0
      %v3218 = vadd.f32 0.0, %v3217
      %v3219 = vpop.f32.mrf.mxu0
      %v3220 = vpop.f32.mrf.mxu0
      %v3221 = vadd.f32 0.0, %v3220
      %v3222 = vpop.f32.mrf.mxu0
      %3223 = vmatprep.mubr.bf16.mxu0 %v3128
      %3224 = vmatmul.mubr.bf16.gmra.mxu0 %v3112
      %v3225 = vpop.f32.mrf.mxu0
      %v3226 = vadd.f32 0.0, %v3225
      %v3227 = vpop.f32.mrf.mxu0
      %v3228 = vpop.f32.mrf.mxu0
      %v3229 = vadd.f32 0.0, %v3228
      %v3230 = vpop.f32.mrf.mxu0
      %3231 = vdwg.mxu0
      %v3232 = vpack.c.bf16 %v3221, %v3218
      %v3233 = vpack.c.bf16 %v3229, %v3226
      %3234 = vrot.lane.b32.xlu0 %v805, 32
      %v3235 = vpop.permute.xlu0 %3234
      %3236 = vrot.lane.b32.xlu0 %v806, 32
      %v3237 = vpop.permute.xlu0 %3236
      %3238 = vrot.lane.b32.xlu0 %v807, 32
      %v3239 = vpop.permute.xlu0 %3238
      %3240 = vrot.lane.b32.xlu0 %v808, 32
      %v3241 = vpop.permute.xlu0 %3240
      %3242 = vrot.lane.b32.xlu0 %v809, 32
      %v3243 = vpop.permute.xlu0 %3242
      %3244 = vrot.lane.b32.xlu0 %v810, 32
      %v3245 = vpop.permute.xlu0 %3244
      %3246 = vrot.lane.b32.xlu0 %v811, 32
      %v3247 = vpop.permute.xlu0 %3246
      %3248 = vrot.lane.b32.xlu0 %v812, 32
      %v3249 = vpop.permute.xlu0 %3248
      %3250 = vrot.lane.b32.xlu0 %v813, 32
      %v3251 = vpop.permute.xlu0 %3250
      %3252 = vrot.lane.b32.xlu0 %v814, 32
      %v3253 = vpop.permute.xlu0 %3252
      %3254 = vrot.lane.b32.xlu0 %v815, 32
      %v3255 = vpop.permute.xlu0 %3254
      %3256 = vrot.lane.b32.xlu0 %v816, 32
      %v3257 = vpop.permute.xlu0 %3256
      %3258 = vrot.lane.b32.xlu0 %v817, 32
      %v3259 = vpop.permute.xlu0 %3258
      %3260 = vrot.lane.b32.xlu0 %v818, 32
      %v3261 = vpop.permute.xlu0 %3260
      %3262 = vrot.lane.b32.xlu0 %v819, 32
      %v3263 = vpop.permute.xlu0 %3262
      %3264 = vrot.lane.b32.xlu0 %v820, 32
      %v3265 = vpop.permute.xlu0 %3264
      %v3267 = vsel %vm310, %v3235, 0
      %v3270 = vsel %vm310, %v3237, 0
      %v3273 = vsel %vm310, %v3239, 0
      %v3276 = vsel %vm310, %v3241, 0
      %v3279 = vsel %vm310, %v3243, 0
      %v3282 = vsel %vm310, %v3245, 0
      %v3285 = vsel %vm310, %v3247, 0
      %v3288 = vsel %vm310, %v3249, 0
      %v3291 = vsel %vm310, %v3251, 0
      %v3294 = vsel %vm310, %v3253, 0
      %v3297 = vsel %vm310, %v3255, 0
      %v3300 = vsel %vm310, %v3257, 0
      %v3303 = vsel %vm310, %v3259, 0
      %v3306 = vsel %vm310, %v3261, 0
      %v3309 = vsel %vm310, %v3263, 0
      %v3312 = vsel %vm310, %v3265, 0
      %3314 = vmatprep.subr.bf16.mxu0 0
      %3315 = vmatpush1.bf16.msra.mxu0 0
      %3316 = vmatprep.subr.bf16.mxu0 0
      %3317 = vmatpush1.bf16.msra.mxu0 0
      %3318 = vmatprep.subr.bf16.mxu0 0
      %3319 = vmatpush1.bf16.msra.mxu0 0
      %3320 = vmatprep.subr.bf16.mxu0 0
      %3321 = vmatpush1.bf16.msra.mxu0 0
      %3322 = vmatprep.subr.bf16.mxu0 0
      %3323 = vmatpush1.bf16.msra.mxu0 0
      %3324 = vmatprep.subr.bf16.mxu0 0
      %3325 = vmatpush1.bf16.msra.mxu0 0
      %3326 = vmatprep.subr.bf16.mxu0 0
      %3327 = vmatpush1.bf16.msra.mxu0 %v3233
      %3328 = vmatprep.subr.bf16.mxu0 0
      %3329 = vmatpush1.bf16.msra.mxu0 %v3232
      %3330 = vmatprep.subr.bf16.mxu0 0
      %3331 = vmatpush2.bf16.msra.mxu0 0
      %3332 = vmatprep.subr.bf16.mxu0 0
      %3333 = vmatpush2.bf16.msra.mxu0 0
      %3334 = vmatprep.subr.bf16.mxu0 0
      %3335 = vmatpush2.bf16.msra.mxu0 0
      %3336 = vmatprep.subr.bf16.mxu0 0
      %3337 = vmatpush2.bf16.msra.mxu0 0
      %3338 = vmatprep.subr.bf16.mxu0 0
      %3339 = vmatpush2.bf16.msra.mxu0 0
      %3340 = vmatprep.subr.bf16.mxu0 0
      %3341 = vmatpush2.bf16.msra.mxu0 0
      %3342 = vmatprep.subr.bf16.mxu0 0
      %3343 = vmatpush2.bf16.msra.mxu0 0
      %3344 = vmatprep.subr.bf16.mxu0 0
      %3345 = vmatpush2.bf16.msra.mxu0 0
      %3346 = vmatprep.mubr.bf16.mxu0 0
      %3347 = vmatmul.mubr.bf16.gmra.mxu0 %v3267
      %v3348 = vpop.f32.mrf.mxu0
      %v3349 = vadd.f32 0.0, %v3348
      %v3350 = vpop.f32.mrf.mxu0
      %v3351 = vpop.f32.mrf.mxu0
      %v3352 = vadd.f32 0.0, %v3351
      %v3353 = vpop.f32.mrf.mxu0
      %3354 = vmatprep.mubr.bf16.mxu0 0
      %3355 = vmatmul.mubr.bf16.gmra.mxu0 %v3270
      %v3356 = vpop.f32.mrf.mxu0
      %v3357 = vadd.f32 0.0, %v3356
      %v3358 = vpop.f32.mrf.mxu0
      %v3359 = vpop.f32.mrf.mxu0
      %v3360 = vadd.f32 0.0, %v3359
      %v3361 = vpop.f32.mrf.mxu0
      %3362 = vmatprep.mubr.bf16.mxu0 0
      %3363 = vmatmul.mubr.bf16.gmra.mxu0 %v3273
      %v3364 = vpop.f32.mrf.mxu0
      %v3365 = vadd.f32 0.0, %v3364
      %v3366 = vpop.f32.mrf.mxu0
      %v3367 = vpop.f32.mrf.mxu0
      %v3368 = vadd.f32 0.0, %v3367
      %v3369 = vpop.f32.mrf.mxu0
      %3370 = vmatprep.mubr.bf16.mxu0 0
      %3371 = vmatmul.mubr.bf16.gmra.mxu0 %v3276
      %v3372 = vpop.f32.mrf.mxu0
      %v3373 = vadd.f32 0.0, %v3372
      %v3374 = vpop.f32.mrf.mxu0
      %v3375 = vpop.f32.mrf.mxu0
      %v3376 = vadd.f32 0.0, %v3375
      %v3377 = vpop.f32.mrf.mxu0
      %3378 = vmatprep.mubr.bf16.mxu0 0
      %3379 = vmatmul.mubr.bf16.gmra.mxu0 %v3279
      %v3380 = vpop.f32.mrf.mxu0
      %v3381 = vadd.f32 0.0, %v3380
      %v3382 = vpop.f32.mrf.mxu0
      %v3383 = vpop.f32.mrf.mxu0
      %v3384 = vadd.f32 0.0, %v3383
      %v3385 = vpop.f32.mrf.mxu0
      %3386 = vmatprep.mubr.bf16.mxu0 0
      %3387 = vmatmul.mubr.bf16.gmra.mxu0 %v3282
      %v3388 = vpop.f32.mrf.mxu0
      %v3389 = vadd.f32 0.0, %v3388
      %v3390 = vpop.f32.mrf.mxu0
      %v3391 = vpop.f32.mrf.mxu0
      %v3392 = vadd.f32 0.0, %v3391
      %v3393 = vpop.f32.mrf.mxu0
      %3394 = vmatprep.mubr.bf16.mxu0 0
      %3395 = vmatmul.mubr.bf16.gmra.mxu0 %v3285
      %v3396 = vpop.f32.mrf.mxu0
      %v3397 = vadd.f32 0.0, %v3396
      %v3398 = vpop.f32.mrf.mxu0
      %v3399 = vpop.f32.mrf.mxu0
      %v3400 = vadd.f32 0.0, %v3399
      %v3401 = vpop.f32.mrf.mxu0
      %3402 = vmatprep.mubr.bf16.mxu0 0
      %3403 = vmatmul.mubr.bf16.gmra.mxu0 %v3288
      %v3404 = vpop.f32.mrf.mxu0
      %v3405 = vadd.f32 0.0, %v3404
      %v3406 = vpop.f32.mrf.mxu0
      %v3407 = vpop.f32.mrf.mxu0
      %v3408 = vadd.f32 0.0, %v3407
      %v3409 = vpop.f32.mrf.mxu0
      %3410 = vmatprep.mubr.bf16.mxu0 0
      %3411 = vmatmul.mubr.bf16.gmra.mxu0 %v3291
      %v3412 = vpop.f32.mrf.mxu0
      %v3413 = vadd.f32 0.0, %v3412
      %v3414 = vpop.f32.mrf.mxu0
      %v3415 = vpop.f32.mrf.mxu0
      %v3416 = vadd.f32 0.0, %v3415
      %v3417 = vpop.f32.mrf.mxu0
      %3418 = vmatprep.mubr.bf16.mxu0 0
      %3419 = vmatmul.mubr.bf16.gmra.mxu0 %v3294
      %v3420 = vpop.f32.mrf.mxu0
      %v3421 = vadd.f32 0.0, %v3420
      %v3422 = vpop.f32.mrf.mxu0
      %v3423 = vpop.f32.mrf.mxu0
      %v3424 = vadd.f32 0.0, %v3423
      %v3425 = vpop.f32.mrf.mxu0
      %3426 = vmatprep.mubr.bf16.mxu0 0
      %3427 = vmatmul.mubr.bf16.gmra.mxu0 %v3297
      %v3428 = vpop.f32.mrf.mxu0
      %v3429 = vadd.f32 0.0, %v3428
      %v3430 = vpop.f32.mrf.mxu0
      %v3431 = vpop.f32.mrf.mxu0
      %v3432 = vadd.f32 0.0, %v3431
      %v3433 = vpop.f32.mrf.mxu0
      %3434 = vmatprep.mubr.bf16.mxu0 0
      %3435 = vmatmul.mubr.bf16.gmra.mxu0 %v3300
      %v3436 = vpop.f32.mrf.mxu0
      %v3437 = vadd.f32 0.0, %v3436
      %v3438 = vpop.f32.mrf.mxu0
      %v3439 = vpop.f32.mrf.mxu0
      %v3440 = vadd.f32 0.0, %v3439
      %v3441 = vpop.f32.mrf.mxu0
      %3442 = vmatprep.mubr.bf16.mxu0 0
      %3443 = vmatmul.mubr.bf16.gmra.mxu0 %v3303
      %v3444 = vpop.f32.mrf.mxu0
      %v3445 = vadd.f32 0.0, %v3444
      %v3446 = vpop.f32.mrf.mxu0
      %v3447 = vpop.f32.mrf.mxu0
      %v3448 = vadd.f32 0.0, %v3447
      %v3449 = vpop.f32.mrf.mxu0
      %3450 = vmatprep.mubr.bf16.mxu0 0
      %3451 = vmatmul.mubr.bf16.gmra.mxu0 %v3306
      %v3452 = vpop.f32.mrf.mxu0
      %v3453 = vadd.f32 0.0, %v3452
      %v3454 = vpop.f32.mrf.mxu0
      %v3455 = vpop.f32.mrf.mxu0
      %v3456 = vadd.f32 0.0, %v3455
      %v3457 = vpop.f32.mrf.mxu0
      %3458 = vmatprep.mubr.bf16.mxu0 0
      %3459 = vmatmul.mubr.bf16.gmra.mxu0 %v3309
      %v3460 = vpop.f32.mrf.mxu0
      %v3461 = vadd.f32 0.0, %v3460
      %v3462 = vpop.f32.mrf.mxu0
      %v3463 = vpop.f32.mrf.mxu0
      %v3464 = vadd.f32 0.0, %v3463
      %v3465 = vpop.f32.mrf.mxu0
      %3466 = vmatprep.mubr.bf16.mxu0 0
      %3467 = vmatmul.mubr.bf16.gmra.mxu0 %v3312
      %v3468 = vpop.f32.mrf.mxu0
      %v3469 = vadd.f32 0.0, %v3468
      %v3470 = vpop.f32.mrf.mxu0
      %v3471 = vpop.f32.mrf.mxu0
      %v3472 = vadd.f32 0.0, %v3471
      %v3473 = vpop.f32.mrf.mxu0
      %3474 = vdwg.mxu0
      %3507 = vrot.lane.b32.xlu0 %v1719, 32
      %v3508 = vpop.permute.xlu0 %3507
      %3509 = vrot.lane.b32.xlu0 %v1722, 32
      %v3510 = vpop.permute.xlu0 %3509
      %3511 = vrot.lane.b32.xlu0 %v1727, 32
      %v3512 = vpop.permute.xlu0 %3511
      %3513 = vrot.lane.b32.xlu0 %v1730, 32
      %v3514 = vpop.permute.xlu0 %3513
      %3515 = vrot.lane.b32.xlu0 %v1735, 32
      %v3516 = vpop.permute.xlu0 %3515
      %3517 = vrot.lane.b32.xlu0 %v1738, 32
      %v3518 = vpop.permute.xlu0 %3517
      %3519 = vrot.lane.b32.xlu0 %v1743, 32
      %v3520 = vpop.permute.xlu0 %3519
      %3521 = vrot.lane.b32.xlu0 %v1746, 32
      %v3522 = vpop.permute.xlu0 %3521
      %3523 = vrot.lane.b32.xlu0 %v1751, 32
      %v3524 = vpop.permute.xlu0 %3523
      %3525 = vrot.lane.b32.xlu0 %v1754, 32
      %v3526 = vpop.permute.xlu0 %3525
      %3527 = vrot.lane.b32.xlu0 %v1759, 32
      %v3528 = vpop.permute.xlu0 %3527
      %3529 = vrot.lane.b32.xlu0 %v1762, 32
      %v3530 = vpop.permute.xlu0 %3529
      %3531 = vrot.lane.b32.xlu0 %v1767, 32
      %v3532 = vpop.permute.xlu0 %3531
      %3533 = vrot.lane.b32.xlu0 %v1770, 32
      %v3534 = vpop.permute.xlu0 %3533
      %3535 = vrot.lane.b32.xlu0 %v1775, 32
      %v3536 = vpop.permute.xlu0 %3535
      %3537 = vrot.lane.b32.xlu0 %v1778, 32
      %v3538 = vpop.permute.xlu0 %3537
      %3539 = vrot.lane.b32.xlu0 %v1783, 32
      %v3540 = vpop.permute.xlu0 %3539
      %3541 = vrot.lane.b32.xlu0 %v1786, 32
      %v3542 = vpop.permute.xlu0 %3541
      %3543 = vrot.lane.b32.xlu0 %v1791, 32
      %v3544 = vpop.permute.xlu0 %3543
      %3545 = vrot.lane.b32.xlu0 %v1794, 32
      %v3546 = vpop.permute.xlu0 %3545
      %3547 = vrot.lane.b32.xlu0 %v1799, 32
      %v3548 = vpop.permute.xlu0 %3547
      %3549 = vrot.lane.b32.xlu0 %v1802, 32
      %v3550 = vpop.permute.xlu0 %3549
      %3551 = vrot.lane.b32.xlu0 %v1807, 32
      %v3552 = vpop.permute.xlu0 %3551
      %3553 = vrot.lane.b32.xlu0 %v1810, 32
      %v3554 = vpop.permute.xlu0 %3553
      %3555 = vrot.lane.b32.xlu0 %v1815, 32
      %v3556 = vpop.permute.xlu0 %3555
      %3557 = vrot.lane.b32.xlu0 %v1818, 32
      %v3558 = vpop.permute.xlu0 %3557
      %3559 = vrot.lane.b32.xlu0 %v1823, 32
      %v3560 = vpop.permute.xlu0 %3559
      %3561 = vrot.lane.b32.xlu0 %v1826, 32
      %v3562 = vpop.permute.xlu0 %3561
      %3563 = vrot.lane.b32.xlu0 %v1831, 32
      %v3564 = vpop.permute.xlu0 %3563
      %3565 = vrot.lane.b32.xlu0 %v1834, 32
      %v3566 = vpop.permute.xlu0 %3565
      %3567 = vrot.lane.b32.xlu0 %v1839, 32
      %v3568 = vpop.permute.xlu0 %3567
      %3569 = vrot.lane.b32.xlu0 %v1842, 32
      %v3570 = vpop.permute.xlu0 %3569
      %3635 = vrot.lane.b32.xlu0 %v2534, 64
      %v3636 = vpop.permute.xlu0 %3635
      %3637 = vrot.lane.b32.xlu0 %v2537, 64
      %v3638 = vpop.permute.xlu0 %3637
      %3639 = vrot.lane.b32.xlu0 %v2542, 64
      %v3640 = vpop.permute.xlu0 %3639
      %3641 = vrot.lane.b32.xlu0 %v2545, 64
      %v3642 = vpop.permute.xlu0 %3641
      %3643 = vrot.lane.b32.xlu0 %v2550, 64
      %v3644 = vpop.permute.xlu0 %3643
      %3645 = vrot.lane.b32.xlu0 %v2553, 64
      %v3646 = vpop.permute.xlu0 %3645
      %3647 = vrot.lane.b32.xlu0 %v2558, 64
      %v3648 = vpop.permute.xlu0 %3647
      %3649 = vrot.lane.b32.xlu0 %v2561, 64
      %v3650 = vpop.permute.xlu0 %3649
      %3651 = vrot.lane.b32.xlu0 %v2566, 64
      %v3652 = vpop.permute.xlu0 %3651
      %3653 = vrot.lane.b32.xlu0 %v2569, 64
      %v3654 = vpop.permute.xlu0 %3653
      %3655 = vrot.lane.b32.xlu0 %v2574, 64
      %v3656 = vpop.permute.xlu0 %3655
      %3657 = vrot.lane.b32.xlu0 %v2577, 64
      %v3658 = vpop.permute.xlu0 %3657
      %3659 = vrot.lane.b32.xlu0 %v2582, 64
      %v3660 = vpop.permute.xlu0 %3659
      %3661 = vrot.lane.b32.xlu0 %v2585, 64
      %v3662 = vpop.permute.xlu0 %3661
      %3663 = vrot.lane.b32.xlu0 %v2590, 64
      %v3664 = vpop.permute.xlu0 %3663
      %3665 = vrot.lane.b32.xlu0 %v2593, 64
      %v3666 = vpop.permute.xlu0 %3665
      %3667 = vrot.lane.b32.xlu0 %v2598, 64
      %v3668 = vpop.permute.xlu0 %3667
      %3669 = vrot.lane.b32.xlu0 %v2601, 64
      %v3670 = vpop.permute.xlu0 %3669
      %3671 = vrot.lane.b32.xlu0 %v2606, 64
      %v3672 = vpop.permute.xlu0 %3671
      %3673 = vrot.lane.b32.xlu0 %v2609, 64
      %v3674 = vpop.permute.xlu0 %3673
      %3675 = vrot.lane.b32.xlu0 %v2614, 64
      %v3676 = vpop.permute.xlu0 %3675
      %3677 = vrot.lane.b32.xlu0 %v2617, 64
      %v3678 = vpop.permute.xlu0 %3677
      %3679 = vrot.lane.b32.xlu0 %v2622, 64
      %v3680 = vpop.permute.xlu0 %3679
      %3681 = vrot.lane.b32.xlu0 %v2625, 64
      %v3682 = vpop.permute.xlu0 %3681
      %3683 = vrot.lane.b32.xlu0 %v2630, 64
      %v3684 = vpop.permute.xlu0 %3683
      %3685 = vrot.lane.b32.xlu0 %v2633, 64
      %v3686 = vpop.permute.xlu0 %3685
      %3687 = vrot.lane.b32.xlu0 %v2638, 64
      %v3688 = vpop.permute.xlu0 %3687
      %3689 = vrot.lane.b32.xlu0 %v2641, 64
      %v3690 = vpop.permute.xlu0 %3689
      %3691 = vrot.lane.b32.xlu0 %v2646, 64
      %v3692 = vpop.permute.xlu0 %3691
      %3693 = vrot.lane.b32.xlu0 %v2649, 64
      %v3694 = vpop.permute.xlu0 %3693
      %3695 = vrot.lane.b32.xlu0 %v2654, 64
      %v3696 = vpop.permute.xlu0 %3695
      %3697 = vrot.lane.b32.xlu0 %v2657, 64
      %v3698 = vpop.permute.xlu0 %3697
      %3763 = vrot.lane.b32.xlu0 %v3349, 96
      %v3764 = vpop.permute.xlu0 %3763
      %3765 = vrot.lane.b32.xlu0 %v3352, 96
      %v3766 = vpop.permute.xlu0 %3765
      %3767 = vrot.lane.b32.xlu0 %v3357, 96
      %v3768 = vpop.permute.xlu0 %3767
      %3769 = vrot.lane.b32.xlu0 %v3360, 96
      %v3770 = vpop.permute.xlu0 %3769
      %3771 = vrot.lane.b32.xlu0 %v3365, 96
      %v3772 = vpop.permute.xlu0 %3771
      %3773 = vrot.lane.b32.xlu0 %v3368, 96
      %v3774 = vpop.permute.xlu0 %3773
      %3775 = vrot.lane.b32.xlu0 %v3373, 96
      %v3776 = vpop.permute.xlu0 %3775
      %3777 = vrot.lane.b32.xlu0 %v3376, 96
      %v3778 = vpop.permute.xlu0 %3777
      %3779 = vrot.lane.b32.xlu0 %v3381, 96
      %v3780 = vpop.permute.xlu0 %3779
      %3781 = vrot.lane.b32.xlu0 %v3384, 96
      %v3782 = vpop.permute.xlu0 %3781
      %3783 = vrot.lane.b32.xlu0 %v3389, 96
      %v3784 = vpop.permute.xlu0 %3783
      %3785 = vrot.lane.b32.xlu0 %v3392, 96
      %v3786 = vpop.permute.xlu0 %3785
      %3787 = vrot.lane.b32.xlu0 %v3397, 96
      %v3788 = vpop.permute.xlu0 %3787
      %3789 = vrot.lane.b32.xlu0 %v3400, 96
      %v3790 = vpop.permute.xlu0 %3789
      %3791 = vrot.lane.b32.xlu0 %v3405, 96
      %v3792 = vpop.permute.xlu0 %3791
      %3793 = vrot.lane.b32.xlu0 %v3408, 96
      %v3794 = vpop.permute.xlu0 %3793
      %3795 = vrot.lane.b32.xlu0 %v3413, 96
      %v3796 = vpop.permute.xlu0 %3795
      %3797 = vrot.lane.b32.xlu0 %v3416, 96
      %v3798 = vpop.permute.xlu0 %3797
      %3799 = vrot.lane.b32.xlu0 %v3421, 96
      %v3800 = vpop.permute.xlu0 %3799
      %3801 = vrot.lane.b32.xlu0 %v3424, 96
      %v3802 = vpop.permute.xlu0 %3801
      %3803 = vrot.lane.b32.xlu0 %v3429, 96
      %v3804 = vpop.permute.xlu0 %3803
      %3805 = vrot.lane.b32.xlu0 %v3432, 96
      %v3806 = vpop.permute.xlu0 %3805
      %3807 = vrot.lane.b32.xlu0 %v3437, 96
      %v3808 = vpop.permute.xlu0 %3807
      %3809 = vrot.lane.b32.xlu0 %v3440, 96
      %v3810 = vpop.permute.xlu0 %3809
      %3811 = vrot.lane.b32.xlu0 %v3445, 96
      %v3812 = vpop.permute.xlu0 %3811
      %3813 = vrot.lane.b32.xlu0 %v3448, 96
      %v3814 = vpop.permute.xlu0 %3813
      %3815 = vrot.lane.b32.xlu0 %v3453, 96
      %v3816 = vpop.permute.xlu0 %3815
      %3817 = vrot.lane.b32.xlu0 %v3456, 96
      %v3818 = vpop.permute.xlu0 %3817
      %3819 = vrot.lane.b32.xlu0 %v3461, 96
      %v3820 = vpop.permute.xlu0 %3819
      %3821 = vrot.lane.b32.xlu0 %v3464, 96
      %v3822 = vpop.permute.xlu0 %3821
      %3823 = vrot.lane.b32.xlu0 %v3469, 96
      %v3824 = vpop.permute.xlu0 %3823
      %3825 = vrot.lane.b32.xlu0 %v3472, 96
      %v3826 = vpop.permute.xlu0 %3825
      %v3859 = vsel %vm310, %v904, %v3508
      %v3860 = vsel %vm310, %v907, %v3510
      %v3861 = vsel %vm310, %v912, %v3512
      %v3862 = vsel %vm310, %v915, %v3514
      %v3863 = vsel %vm310, %v920, %v3516
      %v3864 = vsel %vm310, %v923, %v3518
      %v3865 = vsel %vm310, %v928, %v3520
      %v3866 = vsel %vm310, %v931, %v3522
      %v3867 = vsel %vm310, %v936, %v3524
      %v3868 = vsel %vm310, %v939, %v3526
      %v3869 = vsel %vm310, %v944, %v3528
      %v3870 = vsel %vm310, %v947, %v3530
      %v3871 = vsel %vm310, %v952, %v3532
      %v3872 = vsel %vm310, %v955, %v3534
      %v3873 = vsel %vm310, %v960, %v3536
      %v3874 = vsel %vm310, %v963, %v3538
      %v3875 = vsel %vm310, %v968, %v3540
      %v3876 = vsel %vm310, %v971, %v3542
      %v3877 = vsel %vm310, %v976, %v3544
      %v3878 = vsel %vm310, %v979, %v3546
      %v3879 = vsel %vm310, %v984, %v3548
      %v3880 = vsel %vm310, %v987, %v3550
      %v3881 = vsel %vm310, %v992, %v3552
      %v3882 = vsel %vm310, %v995, %v3554
      %v3883 = vsel %vm310, %v1000, %v3556
      %v3884 = vsel %vm310, %v1003, %v3558
      %v3885 = vsel %vm310, %v1008, %v3560
      %v3886 = vsel %vm310, %v1011, %v3562
      %v3887 = vsel %vm310, %v1016, %v3564
      %v3888 = vsel %vm310, %v1019, %v3566
      %v3889 = vsel %vm310, %v1024, %v3568
      %v3890 = vsel %vm310, %v1027, %v3570
      %vm3891 = vcmask 523264
      %v3892 = vsel %vm3891, %v3859, %v3636
      %v3893 = vsel %vm3891, %v3860, %v3638
      %v3894 = vsel %vm3891, %v3861, %v3640
      %v3895 = vsel %vm3891, %v3862, %v3642
      %v3896 = vsel %vm3891, %v3863, %v3644
      %v3897 = vsel %vm3891, %v3864, %v3646
      %v3898 = vsel %vm3891, %v3865, %v3648
      %v3899 = vsel %vm3891, %v3866, %v3650
      %v3900 = vsel %vm3891, %v3867, %v3652
      %v3901 = vsel %vm3891, %v3868, %v3654
      %v3902 = vsel %vm3891, %v3869, %v3656
      %v3903 = vsel %vm3891, %v3870, %v3658
      %v3904 = vsel %vm3891, %v3871, %v3660
      %v3905 = vsel %vm3891, %v3872, %v3662
      %v3906 = vsel %vm3891, %v3873, %v3664
      %v3907 = vsel %vm3891, %v3874, %v3666
      %v3908 = vsel %vm3891, %v3875, %v3668
      %v3909 = vsel %vm3891, %v3876, %v3670
      %v3910 = vsel %vm3891, %v3877, %v3672
      %v3911 = vsel %vm3891, %v3878, %v3674
      %v3912 = vsel %vm3891, %v3879, %v3676
      %v3913 = vsel %vm3891, %v3880, %v3678
      %v3914 = vsel %vm3891, %v3881, %v3680
      %v3915 = vsel %vm3891, %v3882, %v3682
      %v3916 = vsel %vm3891, %v3883, %v3684
      %v3917 = vsel %vm3891, %v3884, %v3686
      %v3918 = vsel %vm3891, %v3885, %v3688
      %v3919 = vsel %vm3891, %v3886, %v3690
      %v3920 = vsel %vm3891, %v3887, %v3692
      %v3921 = vsel %vm3891, %v3888, %v3694
      %v3922 = vsel %vm3891, %v3889, %v3696
      %v3923 = vsel %vm3891, %v3890, %v3698
      %vm3924 = vcmask 785408
      %v3925 = vsel %vm3924, %v3892, %v3764
      %v3926 = vsel %vm3924, %v3893, %v3766
      %v3927 = vsel %vm3924, %v3894, %v3768
      %v3928 = vsel %vm3924, %v3895, %v3770
      %v3929 = vsel %vm3924, %v3896, %v3772
      %v3930 = vsel %vm3924, %v3897, %v3774
      %v3931 = vsel %vm3924, %v3898, %v3776
      %v3932 = vsel %vm3924, %v3899, %v3778
      %v3933 = vsel %vm3924, %v3900, %v3780
      %v3934 = vsel %vm3924, %v3901, %v3782
      %v3935 = vsel %vm3924, %v3902, %v3784
      %v3936 = vsel %vm3924, %v3903, %v3786
      %v3937 = vsel %vm3924, %v3904, %v3788
      %v3938 = vsel %vm3924, %v3905, %v3790
      %v3939 = vsel %vm3924, %v3906, %v3792
      %v3940 = vsel %vm3924, %v3907, %v3794
      %v3941 = vsel %vm3924, %v3908, %v3796
      %v3942 = vsel %vm3924, %v3909, %v3798
      %v3943 = vsel %vm3924, %v3910, %v3800
      %v3944 = vsel %vm3924, %v3911, %v3802
      %v3945 = vsel %vm3924, %v3912, %v3804
      %v3946 = vsel %vm3924, %v3913, %v3806
      %v3947 = vsel %vm3924, %v3914, %v3808
      %v3948 = vsel %vm3924, %v3915, %v3810
      %v3949 = vsel %vm3924, %v3916, %v3812
      %v3950 = vsel %vm3924, %v3917, %v3814
      %v3951 = vsel %vm3924, %v3918, %v3816
      %v3952 = vsel %vm3924, %v3919, %v3818
      %v3953 = vsel %vm3924, %v3920, %v3820
      %v3954 = vsel %vm3924, %v3921, %v3822
      %v3955 = vsel %vm3924, %v3922, %v3824
      %v3956 = vsel %vm3924, %v3923, %v3826
      %v3957 = vpack.c.bf16 %v3926, %v3925
      %v3958 = vpack.c.bf16 %v3928, %v3927
      %v3959 = vpack.c.bf16 %v3930, %v3929
      %v3960 = vpack.c.bf16 %v3932, %v3931
      %v3961 = vpack.c.bf16 %v3934, %v3933
      %v3962 = vpack.c.bf16 %v3936, %v3935
      %v3963 = vpack.c.bf16 %v3938, %v3937
      %v3964 = vpack.c.bf16 %v3940, %v3939
      %v3965 = vpack.c.bf16 %v3942, %v3941
      %v3966 = vpack.c.bf16 %v3944, %v3943
      %v3967 = vpack.c.bf16 %v3946, %v3945
      %v3968 = vpack.c.bf16 %v3948, %v3947
      %v3969 = vpack.c.bf16 %v3950, %v3949
      %v3970 = vpack.c.bf16 %v3952, %v3951
      %v3971 = vpack.c.bf16 %v3954, %v3953
      %v3972 = vpack.c.bf16 %v3956, %v3955
      %v3989 = vunpack.c.l.b16 %v3957
      %v3990 = vunpack.c.h.b16 %v3957
      %v3991 = vunpack.c.l.b16 %v3958
      %v3992 = vunpack.c.h.b16 %v3958
      %v3993 = vunpack.c.l.b16 %v3959
      %v3994 = vunpack.c.h.b16 %v3959
      %v3995 = vunpack.c.l.b16 %v3960
      %v3996 = vunpack.c.h.b16 %v3960
      %v3997 = vunpack.c.l.b16 %v3961
      %v3998 = vunpack.c.h.b16 %v3961
      %v3999 = vunpack.c.l.b16 %v3962
      %v4000 = vunpack.c.h.b16 %v3962
      %v4001 = vunpack.c.l.b16 %v3963
      %v4002 = vunpack.c.h.b16 %v3963
      %v4003 = vunpack.c.l.b16 %v3964
      %v4004 = vunpack.c.h.b16 %v3964
      %v4005 = vunpack.c.l.b16 %v3965
      %v4006 = vunpack.c.h.b16 %v3965
      %v4007 = vunpack.c.l.b16 %v3966
      %v4008 = vunpack.c.h.b16 %v3966
      %v4009 = vunpack.c.l.b16 %v3967
      %v4010 = vunpack.c.h.b16 %v3967
      %v4011 = vunpack.c.l.b16 %v3968
      %v4012 = vunpack.c.h.b16 %v3968
      %v4013 = vunpack.c.l.b16 %v3969
      %v4014 = vunpack.c.h.b16 %v3969
      %v4015 = vunpack.c.l.b16 %v3970
      %v4016 = vunpack.c.h.b16 %v3970
      %v4017 = vunpack.c.l.b16 %v3971
      %v4018 = vunpack.c.h.b16 %v3971
      %v4019 = vunpack.c.l.b16 %v3972
      %v4020 = vunpack.c.h.b16 %v3972
      %v4021 = vpack.c.b16 %v3989, %v3989
      %v4022 = vpack.c.b16 %v3990, %v3990
      %v4023 = vpack.c.b16 %v3991, %v3991
      %v4024 = vpack.c.b16 %v3992, %v3992
      %v4025 = vpack.c.b16 %v3993, %v3993
      %v4026 = vpack.c.b16 %v3994, %v3994
      %v4027 = vpack.c.b16 %v3995, %v3995
      %v4028 = vpack.c.b16 %v3996, %v3996
      %v4029 = vpack.c.b16 %v3997, %v3997
      %v4030 = vpack.c.b16 %v3998, %v3998
      %v4031 = vpack.c.b16 %v3999, %v3999
      %v4032 = vpack.c.b16 %v4000, %v4000
      %v4033 = vpack.c.b16 %v4001, %v4001
      %v4034 = vpack.c.b16 %v4002, %v4002
      %v4035 = vpack.c.b16 %v4003, %v4003
      %v4036 = vpack.c.b16 %v4004, %v4004
      %v4037 = vpack.c.b16 %v4005, %v4005
      %v4038 = vpack.c.b16 %v4006, %v4006
      %v4039 = vpack.c.b16 %v4007, %v4007
      %v4040 = vpack.c.b16 %v4008, %v4008
      %v4041 = vpack.c.b16 %v4009, %v4009
      %v4042 = vpack.c.b16 %v4010, %v4010
      %v4043 = vpack.c.b16 %v4011, %v4011
      %v4044 = vpack.c.b16 %v4012, %v4012
      %v4045 = vpack.c.b16 %v4013, %v4013
      %v4046 = vpack.c.b16 %v4014, %v4014
      %v4047 = vpack.c.b16 %v4015, %v4015
      %v4048 = vpack.c.b16 %v4016, %v4016
      %v4049 = vpack.c.b16 %v4017, %v4017
      %v4050 = vpack.c.b16 %v4018, %v4018
      %v4051 = vpack.c.b16 %v4019, %v4019
      %v4052 = vpack.c.b16 %v4020, %v4020
      %4085 = vst [vmem:[%s116] sm:$0xf] %v4021
      %4086 = vst [vmem:[%s116 + $0x4] sm:$0xf] %v4022
      %4087 = vst [vmem:[%s116 + $0x8] sm:$0xf] %v4023
      %4088 = vst [vmem:[%s116 + $0xc] sm:$0xf] %v4024
      %4089 = vst [vmem:[%s116 + $0x10] sm:$0xf] %v4025
      %4090 = vst [vmem:[%s116 + $0x14] sm:$0xf] %v4026
      %4091 = vst [vmem:[%s116 + $0x18] sm:$0xf] %v4027
      %4092 = vst [vmem:[%s116 + $0x1c] sm:$0xf] %v4028
      %4093 = vst [vmem:[%s116 + $0x20] sm:$0xf] %v4029
      %4094 = vst [vmem:[%s116 + $0x24] sm:$0xf] %v4030
      %4095 = vst [vmem:[%s116 + $0x28] sm:$0xf] %v4031
      %4096 = vst [vmem:[%s116 + $0x2c] sm:$0xf] %v4032
      %4097 = vst [vmem:[%s116 + $0x30] sm:$0xf] %v4033
      %4098 = vst [vmem:[%s116 + $0x34] sm:$0xf] %v4034
      %4099 = vst [vmem:[%s116 + $0x38] sm:$0xf] %v4035
      %4100 = vst [vmem:[%s116 + $0x3c] sm:$0xf] %v4036
      %4101 = vst [vmem:[%s116 + $0x40] sm:$0xf] %v4037
      %4102 = vst [vmem:[%s116 + $0x44] sm:$0xf] %v4038
      %4103 = vst [vmem:[%s116 + $0x48] sm:$0xf] %v4039
      %4104 = vst [vmem:[%s116 + $0x4c] sm:$0xf] %v4040
      %4105 = vst [vmem:[%s116 + $0x50] sm:$0xf] %v4041
      %4106 = vst [vmem:[%s116 + $0x54] sm:$0xf] %v4042
      %4107 = vst [vmem:[%s116 + $0x58] sm:$0xf] %v4043
      %4108 = vst [vmem:[%s116 + $0x5c] sm:$0xf] %v4044
      %4109 = vst [vmem:[%s116 + $0x60] sm:$0xf] %v4045
      %4110 = vst [vmem:[%s116 + $0x64] sm:$0xf] %v4046
      %4111 = vst [vmem:[%s116 + $0x68] sm:$0xf] %v4047
      %4112 = vst [vmem:[%s116 + $0x6c] sm:$0xf] %v4048
      %4113 = vst [vmem:[%s116 + $0x70] sm:$0xf] %v4049
      %4114 = vst [vmem:[%s116 + $0x74] sm:$0xf] %v4050
      %4115 = vst [vmem:[%s116 + $0x78] sm:$0xf] %v4051
      %4116 = vst [vmem:[%s116 + $0x7c] sm:$0xf] %v4052
      %p4117 = scmp.lt.s32.totalorder %s12, 1
      %s4118 = scalar_select %p4117, %s12, 1
      %s4119 = smul.addr %s4118, 32
      %s4120 = smul.addr %s4119, 4
      %s4121 = scalar_lea.vmem %s1, %s4120
      // Predicated region
      $region25: #{_lambda_.8} parent=23 // pred_check
        %p4122 = pneg %p56
      $region26: #{_lambda_.8} parent=23 // pred_check_branch
        %4124 = sbr.rel (%p4122) target = $region28
      $region27: #{_lambda_.8} parent=23 // pred_region
        _
      $region28: #{_lambda_.8} parent=23 // pred_fallthru
        _
    $region24: #{_lambda_.8} parent=5 // pred_fallthru
      _
    %p4125 = scmp.le.s32.totalorder 2, %s7
    // Predicated region
    $region29: #{_lambda_.8} parent=5 // pred_check
      %p4126 = pneg %p4125
    $region30: #{_lambda_.8} parent=5 // pred_check_branch
      %4128 = sbr.rel (%p4126) target = $region32
    $region31: #{_lambda_.8} parent=5 // pred_region
      %s4129 = ssub.s32 %s7, 2
      // Predicated region
      $region33: #{_lambda_.8} parent=31 // pred_check
        %p4130 = pneg %p62
      $region34: #{_lambda_.8} parent=31 // pred_check_branch
        %4132 = sbr.rel (%p4130) target = $region36
      $region35: #{_lambda_.8} parent=31 // pred_region
        %p4133 = scmp.lt.s32.totalorder %s13, 1
        %s4134 = scalar_select %p4133, %s13, 1
        %s4135 = smul.addr %s4134, 32
        %s4136 = smul.addr %s4135, 4
        %s4137 = scalar_lea.vmem %s1, %s4136
      $region36: #{_lambda_.8} parent=31 // pred_fallthru
        _
    $region32: #{_lambda_.8} parent=5 // pred_fallthru
      _
  $region6: #{_lambda_.8} parent=0 // loop_footer
    %s11 = sadd.s32 1, %s7
  $region7: #{_lambda_.8} parent=0 // loop_footer_branch
    %6 = sbr.rel target = $region3
  $region8: #{_lambda_.8} parent=0 // loop_exit
    _

// kernel: _lambda_.11
$region0: #{_lambda_.11}
  #allocation0 [shape = 'u32[]', space=smem, size = 0x4, offset = 0x4, fixed_abs, tag = 'smem constant byte address 0x4 - core index']
  #allocation1 [shape = 'u32[144,128]{1,0:T(1,128)}', space=vmem, size = 0x12000, scoped, tag = 'internal scratch']
  %s0 = inlined_call_operand.vmem [shape: bf16[512,256], index: 0, kind: input, shape index: {}]
  %s1 = inlined_call_operand.vmem [shape: bf16[256,128], index: 1, kind: input, shape index: {}]
  %s2 = inlined_call_operand.vmem [shape: f32[1,128], index: 2, kind: input, shape index: {}]
  %s3 = inlined_call_operand.vmem [shape: f32[1,128], index: 3, kind: input, shape index: {}]
  %s4 = inlined_call_operand.vmem [shape: f32[512,128], index: 4, kind: input, shape index: {}]
  %s5 = inlined_call_operand.hbm [shape: f32[512,128], index: 5, kind: output, shape index: {}]
  %s6 = sld [smem:[#allocation0]]
  $region53: #{_lambda_.11} parent=0
    _
  %s8 = ssub.s32 1, %s6
  %s9 = scalar_select 0, %s8, %s6
  $region1: #{_lambda_.11} parent=0
    #allocation2 [shape = 'u8[262144]{0}', space=vmem, size = 0x40000, scoped, tag = 'output window, operand 0']
    #allocation3 [shape = 's32[2]{0}', space=sflag, size = 0x8, scoped, tag = 'scoped memory for _lambda_.11']
    %10 = vsyncpa [#allocation3], 0
    %s11 = scalar_lea.sflag [#allocation3], 1
    %12 = vsyncpa %s11, 0
    loop: start=0, step=1, limit=4
    $region2: #{_lambda_.11} parent=1 // loop_pre_header
      _
    $region3: #{_lambda_.11} parent=1 // loop_header
      %s14 = sphi 0, %s18
      %p15 = scmp.ge.s32.totalorder %s14, 4
      %s21 = sphi 0, %s33
      %s22 = sphi 0, %s29
      %s23 = sphi 0, %s21
      %s24 = sphi 0, %s22
      %s25 = sphi 0, %s23
      %s26 = sphi 0, %s24
      %s36 = sphi 0, %s38
      %s39 = sphi 0, %s36
      %s40 = sphi 0, %s39
      %s56 = sphi 0, %s40
      %s62 = sphi 0, %s64
      %s65 = sphi 0, %s62
      %s66 = sphi 0, %s65
      %s82 = sphi 0, %s66
      %s88 = sphi 0, %s90
      %s91 = sphi 0, %s88
      %s92 = sphi 0, %s91
      %s108 = sphi 0, %s92
      %s114 = sphi 0, %s116
      %s117 = sphi 0, %s114
      %s118 = sphi 0, %s117
      %s134 = sphi 0, %s118
      %s142 = sphi 0, %s144
      %s145 = sphi 0, %s142
      %s146 = sphi 0, %s145
      %s162 = sphi 0, %s146
      %s170 = sphi 0, %s172
      %s173 = sphi 0, %s170
      %s174 = sphi 0, %s173
      %s190 = sphi 0, %s174
    $region4: #{_lambda_.11} parent=1 // loop_header_branch
      %17 = sbr.rel (%p15) target = $region8
    $region5: #{_lambda_.11} parent=1 // loop_body
      %s19 = ssub.s32 %s14, 1
      %s20 = ssub.s32 %s14, 2
      %s27 = sadd.s32 1, %s22
      %p28 = scmp.ge.s32.totalorder %s27, 1
      %s29 = scalar_select %p28, 0, %s27
      %s30 = sadd.s32 1, %s21
      %s31 = scalar_select %p28, %s30, %s21
      %p32 = scmp.ge.s32.totalorder %s31, 2
      %s33 = scalar_select %p32, 0, %s31
      %s34 = ssub.s32 %s21, %s33
      %p35 = scmp.eq.s32.totalorder %s34, 0
      %s37 = sadd.s32 %s36, 1
      %s38 = scalar_select %p35, %s36, %s37
      %p41 = pneg %p35
      %p42 = scmp.eq.s32.totalorder %s14, 1
      %p43 = por %p41, %p42
      %p44 = scmp.ne.s32.totalorder %s36, %s39
      %p45 = scmp.eq.s32.totalorder %s14, 0
      %p46 = por %p44, %p45
      %p47 = scmp.ne.s32.totalorder %s36, %s39
      %p48 = scmp.eq.s32.totalorder %s19, 1
      %p49 = por %p47, %p48
      %p50 = scmp.ne.s32.totalorder %s39, %s40
      %p51 = scmp.eq.s32.totalorder %s19, 0
      %p52 = por %p50, %p51
      %p53 = scmp.ne.s32.totalorder %s39, %s40
      %p54 = scmp.eq.s32.totalorder %s20, 1
      %p55 = por %p53, %p54
      %p57 = scmp.ne.s32.totalorder %s40, %s56
      %p58 = scmp.eq.s32.totalorder %s20, 0
      %p59 = por %p57, %p58
      %s60 = ssub.s32 %s22, %s29
      %p61 = scmp.eq.s32.totalorder %s60, 0
      %s63 = sadd.s32 %s62, 1
      %s64 = scalar_select %p61, %s62, %s63
      %p67 = pneg %p61
      %p68 = scmp.eq.s32.totalorder %s14, 1
      %p69 = por %p67, %p68
      %p70 = scmp.ne.s32.totalorder %s62, %s65
      %p71 = scmp.eq.s32.totalorder %s14, 0
      %p72 = por %p70, %p71
      %p73 = scmp.ne.s32.totalorder %s62, %s65
      %p74 = scmp.eq.s32.totalorder %s19, 1
      %p75 = por %p73, %p74
      %p76 = scmp.ne.s32.totalorder %s65, %s66
      %p77 = scmp.eq.s32.totalorder %s19, 0
      %p78 = por %p76, %p77
      %p79 = scmp.ne.s32.totalorder %s65, %s66
      %p80 = scmp.eq.s32.totalorder %s20, 1
      %p81 = por %p79, %p80
      %p83 = scmp.ne.s32.totalorder %s66, %s82
      %p84 = scmp.eq.s32.totalorder %s20, 0
      %p85 = por %p83, %p84
      %s86 = ssub.s32 %s22, %s29
      %p87 = scmp.eq.s32.totalorder %s86, 0
      %s89 = sadd.s32 %s88, 1
      %s90 = scalar_select %p87, %s88, %s89
      %p93 = pneg %p87
      %p94 = scmp.eq.s32.totalorder %s14, 1
      %p95 = por %p93, %p94
      %p96 = scmp.ne.s32.totalorder %s88, %s91
      %p97 = scmp.eq.s32.totalorder %s14, 0
      %p98 = por %p96, %p97
      %p99 = scmp.ne.s32.totalorder %s88, %s91
      %p100 = scmp.eq.s32.totalorder %s19, 1
      %p101 = por %p99, %p100
      %p102 = scmp.ne.s32.totalorder %s91, %s92
      %p103 = scmp.eq.s32.totalorder %s19, 0
      %p104 = por %p102, %p103
      %p105 = scmp.ne.s32.totalorder %s91, %s92
      %p106 = scmp.eq.s32.totalorder %s20, 1
      %p107 = por %p105, %p106
      %p109 = scmp.ne.s32.totalorder %s92, %s108
      %p110 = scmp.eq.s32.totalorder %s20, 0
      %p111 = por %p109, %p110
      %s112 = ssub.s32 %s22, %s29
      %p113 = scmp.eq.s32.totalorder %s112, 0
      %s115 = sadd.s32 %s114, 1
      %s116 = scalar_select %p113, %s114, %s115
      %p119 = pneg %p113
      %p120 = scmp.eq.s32.totalorder %s14, 1
      %p121 = por %p119, %p120
      %p122 = scmp.ne.s32.totalorder %s114, %s117
      %p123 = scmp.eq.s32.totalorder %s14, 0
      %p124 = por %p122, %p123
      %p125 = scmp.ne.s32.totalorder %s114, %s117
      %p126 = scmp.eq.s32.totalorder %s19, 1
      %p127 = por %p125, %p126
      %p128 = scmp.ne.s32.totalorder %s117, %s118
      %p129 = scmp.eq.s32.totalorder %s19, 0
      %p130 = por %p128, %p129
      %p131 = scmp.ne.s32.totalorder %s117, %s118
      %p132 = scmp.eq.s32.totalorder %s20, 1
      %p133 = por %p131, %p132
      %p135 = scmp.ne.s32.totalorder %s118, %s134
      %p136 = scmp.eq.s32.totalorder %s20, 0
      %p137 = por %p135, %p136
      %s138 = ssub.s32 %s21, %s33
      %s139 = ssub.s32 %s22, %s29
      %s140 = sor.u32 %s138, %s139
      %p141 = scmp.eq.s32.totalorder %s140, 0
      %s143 = sadd.s32 %s142, 1
      %s144 = scalar_select %p141, %s142, %s143
      %p147 = pneg %p141
      %p148 = scmp.eq.s32.totalorder %s14, 1
      %p149 = por %p147, %p148
      %p150 = scmp.ne.s32.totalorder %s142, %s145
      %p151 = scmp.eq.s32.totalorder %s14, 0
      %p152 = por %p150, %p151
      %p153 = scmp.ne.s32.totalorder %s142, %s145
      %p154 = scmp.eq.s32.totalorder %s19, 1
      %p155 = por %p153, %p154
      %p156 = scmp.ne.s32.totalorder %s145, %s146
      %p157 = scmp.eq.s32.totalorder %s19, 0
      %p158 = por %p156, %p157
      %p159 = scmp.ne.s32.totalorder %s145, %s146
      %p160 = scmp.eq.s32.totalorder %s20, 1
      %p161 = por %p159, %p160
      %p163 = scmp.ne.s32.totalorder %s146, %s162
      %p164 = scmp.eq.s32.totalorder %s20, 0
      %p165 = por %p163, %p164
      %s166 = ssub.s32 %s21, %s33
      %s167 = ssub.s32 %s22, %s29
      %s168 = sor.u32 %s166, %s167
      %p169 = scmp.eq.s32.totalorder %s168, 0
      %s171 = sadd.s32 %s170, 1
      %s172 = scalar_select %p169, %s170, %s171
      %p175 = pneg %p169
      %p176 = scmp.eq.s32.totalorder %s14, 1
      %p177 = por %p175, %p176
      %p178 = scmp.ne.s32.totalorder %s170, %s173
      %p179 = scmp.eq.s32.totalorder %s14, 0
      %p180 = por %p178, %p179
      %p181 = scmp.ne.s32.totalorder %s170, %s173
      %p182 = scmp.eq.s32.totalorder %s19, 1
      %p183 = por %p181, %p182
      %p184 = scmp.ne.s32.totalorder %s173, %s174
      %p185 = scmp.eq.s32.totalorder %s19, 0
      %p186 = por %p184, %p185
      %p187 = scmp.ne.s32.totalorder %s173, %s174
      %p188 = scmp.eq.s32.totalorder %s20, 1
      %p189 = por %p187, %p188
      %p191 = scmp.ne.s32.totalorder %s174, %s190
      %p192 = scmp.eq.s32.totalorder %s20, 0
      %p193 = por %p191, %p192
      %p194 = scmp.le.s32.totalorder 1, %s14
      %p195 = scmp.lt.s32.totalorder %s14, 3
      %p196 = pnand %p194, %p195
      %p197 = pneg %p196
      // Predicated region
      $region9: #{_lambda_.11} parent=5 // pred_check
        _
      $region10: #{_lambda_.11} parent=5 // pred_check_branch
        %199 = sbr.rel (%p196) target = $region12
      $region11: #{_lambda_.11} parent=5 // pred_region
        %s200 = ssub.s32 %s14, 1
        // Predicated region
        $region13: #{_lambda_.11} parent=11 // pred_check
          %p201 = pneg %p78
        $region14: #{_lambda_.11} parent=11 // pred_check_branch
          %203 = sbr.rel (%p201) target = $region16
        $region15: #{_lambda_.11} parent=11 // pred_region
          %p204 = scmp.lt.s32.totalorder %s24, 0
          %s205 = scalar_select %p204, %s24, 0
          %s206 = smul.addr %s205, 4
          %s207 = scalar_lea.vmem %s1, %s206
        $region16: #{_lambda_.11} parent=11 // pred_fallthru
          _
        // Predicated region
        $region17: #{_lambda_.11} parent=11 // pred_check
          %p208 = pneg %p104
        $region18: #{_lambda_.11} parent=11 // pred_check_branch
          %210 = sbr.rel (%p208) target = $region20
        $region19: #{_lambda_.11} parent=11 // pred_region
          %p211 = scmp.lt.s32.totalorder %s24, 0
          %s212 = scalar_select %p211, %s24, 0
          %s213 = scalar_lea.vmem %s2, %s212
        $region20: #{_lambda_.11} parent=11 // pred_fallthru
          _
        // Predicated region
        $region21: #{_lambda_.11} parent=11 // pred_check
          %p214 = pneg %p130
        $region22: #{_lambda_.11} parent=11 // pred_check_branch
          %216 = sbr.rel (%p214) target = $region24
        $region23: #{_lambda_.11} parent=11 // pred_region
          %p217 = scmp.lt.s32.totalorder %s24, 0
          %s218 = scalar_select %p217, %s24, 0
          %s219 = scalar_lea.vmem %s3, %s218
        $region24: #{_lambda_.11} parent=11 // pred_fallthru
          _
      $region12: #{_lambda_.11} parent=5 // pred_fallthru
        _
      %p220 = scmp.lt.s32.totalorder %s14, 2
      // Predicated region
      $region25: #{_lambda_.11} parent=5 // pred_check
        %p221 = pneg %p220
      $region26: #{_lambda_.11} parent=5 // pred_check_branch
        %223 = sbr.rel (%p221) target = $region28
      $region27: #{_lambda_.11} parent=5 // pred_region
        // Predicated region
        $region29: #{_lambda_.11} parent=27 // pred_check
          %p224 = pneg %p46
        $region30: #{_lambda_.11} parent=27 // pred_check_branch
          %226 = sbr.rel (%p224) target = $region32
        $region31: #{_lambda_.11} parent=27 // pred_region
          %s227 = smul.u32 32, %s21
          %p228 = scmp.lt.s32.totalorder %s227, 63
          %s229 = scalar_select %p228, %s227, 63
          %s230 = smul.addr %s229, 2
          %s231 = smul.addr %s230, 4
          %s232 = scalar_lea.vmem %s0, %s231
          %s233 = smul.u32 32, %s21
        $region32: #{_lambda_.11} parent=27 // pred_fallthru
          _
        // Predicated region
        $region33: #{_lambda_.11} parent=27 // pred_check
          %p234 = pneg %p152
        $region34: #{_lambda_.11} parent=27 // pred_check_branch
          %236 = sbr.rel (%p234) target = $region36
        $region35: #{_lambda_.11} parent=27 // pred_region
          %s237 = smul.u32 32, %s21
          %p238 = scmp.lt.s32.totalorder %s237, 63
          %s239 = scalar_select %p238, %s237, 63
          %p240 = scmp.lt.s32.totalorder %s22, 0
          %s241 = scalar_select %p240, %s22, 0
          %s242 = sadd.s32 %s241, %s239
          %s243 = smul.addr %s242, 8
          %s244 = scalar_lea.vmem %s4, %s243
          %s245 = smul.u32 32, %s21
        $region36: #{_lambda_.11} parent=27 // pred_fallthru
          _
      $region28: #{_lambda_.11} parent=5 // pred_fallthru
        _
      %p246 = scmp.le.s32.totalorder 1, %s14
      %p247 = scmp.lt.s32.totalorder %s14, 3
      %p248 = pnand %p246, %p247
      %p249 = pneg %p248
      // Predicated region
      $region37: #{_lambda_.11} parent=5 // pred_check
        _
      $region38: #{_lambda_.11} parent=5 // pred_check_branch
        %251 = sbr.rel (%p248) target = $region40
      $region39: #{_lambda_.11} parent=5 // pred_region
        %s252 = ssub.s32 %s14, 1
        %s253 = smul.u32 32, %s23
        %p254 = scmp.lt.s32.totalorder %s253, 63
        %s255 = scalar_select %p254, %s253, 63
        %s256 = smul.addr %s255, 2
        %s257 = smul.addr %s256, 4
        %s258 = scalar_lea.vmem %s0, %s257
        %p259 = pneg %p52
        %p260 = pneg %p49
        %p261 = scmp.lt.s32.totalorder %s24, 0
        %s262 = scalar_select %p261, %s24, 0
        %s263 = smul.addr %s262, 4
        %s264 = scalar_lea.vmem %s1, %s263
        %p265 = pneg %p78
        %p266 = pneg %p75
        %p267 = scmp.lt.s32.totalorder %s24, 0
        %s268 = scalar_select %p267, %s24, 0
        %s269 = scalar_lea.vmem %s2, %s268
        %p270 = pneg %p104
        %p271 = pneg %p101
        %p272 = scmp.lt.s32.totalorder %s24, 0
        %s273 = scalar_select %p272, %s24, 0
        %s274 = scalar_lea.vmem %s3, %s273
        %p275 = pneg %p130
        %p276 = pneg %p127
        %s277 = smul.u32 32, %s23
        %p278 = scmp.lt.s32.totalorder %s277, 63
        %s279 = scalar_select %p278, %s277, 63
        %p280 = scmp.lt.s32.totalorder %s24, 0
        %s281 = scalar_select %p280, %s24, 0
        %s282 = sadd.s32 %s281, %s279
        %s283 = smul.addr %s282, 8
        %s284 = scalar_lea.vmem %s4, %s283
        %p285 = pneg %p158
        %p286 = pneg %p155
        %p287 = pneg %p186
        %p288 = pneg %p183
        %s289 = sand.u32 %s173, 1
        %s290 = scalar_lea.sflag [#allocation3], %s289
        %s291 = sand.u32 %s173, 1
        %s292 = smul.addr %s291, 256
        %s293 = scalar_lea.vmem [#allocation2], %s292
        %s294 = smul.u32 32, %s23
        %p295 = scmp.lt.s32.totalorder %s294, 63
        %s296 = scalar_select %p295, %s294, 63
        %s297 = smul.addr %s296, 2
        %s298 = smul.addr %s297, 4
        %s299 = scalar_lea.vmem %s0, %s298
        %s300 = smul.u32 32, %s23
        %p301 = scmp.lt.s32.totalorder %s24, 0
        %s302 = scalar_select %p301, %s24, 0
        %s303 = smul.addr %s302, 4
        %s304 = scalar_lea.vmem %s1, %s303
        %p305 = scmp.lt.s32.totalorder %s24, 0
        %s306 = scalar_select %p305, %s24, 0
        %s307 = scalar_lea.vmem %s2, %s306
        %p308 = scmp.lt.s32.totalorder %s24, 0
        %s309 = scalar_select %p308, %s24, 0
        %s310 = scalar_lea.vmem %s3, %s309
        %s311 = smul.u32 32, %s23
        %p312 = scmp.lt.s32.totalorder %s311, 63
        %s313 = scalar_select %p312, %s311, 63
        %p314 = scmp.lt.s32.totalorder %s24, 0
        %s315 = scalar_select %p314, %s24, 0
        %s316 = sadd.s32 %s315, %s313
        %s317 = smul.addr %s316, 8
        %s318 = scalar_lea.vmem %s4, %s317
        %s319 = smul.u32 32, %s23
        %s320 = smul.u32 32, %s23
        %v322 = vld [vmem:[%s299] sm:$0xff]
        %v323 = vld [vmem:[%s299 + $0x8] sm:$0xff]
        %v324 = vld [vmem:[%s299 + $0x10] sm:$0xff]
        %v325 = vld [vmem:[%s299 + $0x18] sm:$0xff]
        %v326 = vld [vmem:[%s299 + $0x20] sm:$0xff]
        %v327 = vld [vmem:[%s299 + $0x28] sm:$0xff]
        %v328 = vld [vmem:[%s299 + $0x30] sm:$0xff]
        %v329 = vld [vmem:[%s299 + $0x38] sm:$0xff]
        %v330 = vld [vmem:[%s299 + $0x40] sm:$0xff]
        %v331 = vld [vmem:[%s299 + $0x48] sm:$0xff]
        %v332 = vld [vmem:[%s299 + $0x50] sm:$0xff]
        %v333 = vld [vmem:[%s299 + $0x58] sm:$0xff]
        %v334 = vld [vmem:[%s299 + $0x60] sm:$0xff]
        %v335 = vld [vmem:[%s299 + $0x68] sm:$0xff]
        %v336 = vld [vmem:[%s299 + $0x70] sm:$0xff]
        %v337 = vld [vmem:[%s299 + $0x78] sm:$0xff]
        %v338 = vld [vmem:[%s299 + $0x80] sm:$0xff]
        %v339 = vld [vmem:[%s299 + $0x88] sm:$0xff]
        %v340 = vld [vmem:[%s299 + $0x90] sm:$0xff]
        %v341 = vld [vmem:[%s299 + $0x98] sm:$0xff]
        %v342 = vld [vmem:[%s299 + $0xa0] sm:$0xff]
        %v343 = vld [vmem:[%s299 + $0xa8] sm:$0xff]
        %v344 = vld [vmem:[%s299 + $0xb0] sm:$0xff]
        %v345 = vld [vmem:[%s299 + $0xb8] sm:$0xff]
        %v346 = vld [vmem:[%s299 + $0xc0] sm:$0xff]
        %v347 = vld [vmem:[%s299 + $0xc8] sm:$0xff]
        %v348 = vld [vmem:[%s299 + $0xd0] sm:$0xff]
        %v349 = vld [vmem:[%s299 + $0xd8] sm:$0xff]
        %v350 = vld [vmem:[%s299 + $0xe0] sm:$0xff]
        %v351 = vld [vmem:[%s299 + $0xe8] sm:$0xff]
        %v352 = vld [vmem:[%s299 + $0xf0] sm:$0xff]
        %v353 = vld [vmem:[%s299 + $0xf8] sm:$0xff]
        %v354 = vld [vmem:[%s304] sm:$0xf]
        %v355 = vld [vmem:[%s304 + $0x4] sm:$0xf]
        %v356 = vld [vmem:[%s304 + $0x8] sm:$0xf]
        %v357 = vld [vmem:[%s304 + $0xc] sm:$0xf]
        %v358 = vld [vmem:[%s304 + $0x10] sm:$0xf]
        %v359 = vld [vmem:[%s304 + $0x14] sm:$0xf]
        %v360 = vld [vmem:[%s304 + $0x18] sm:$0xf]
        %v361 = vld [vmem:[%s304 + $0x1c] sm:$0xf]
        %v362 = vld [vmem:[%s304 + $0x20] sm:$0xf]
        %v363 = vld [vmem:[%s304 + $0x24] sm:$0xf]
        %v364 = vld [vmem:[%s304 + $0x28] sm:$0xf]
        %v365 = vld [vmem:[%s304 + $0x2c] sm:$0xf]
        %v366 = vld [vmem:[%s304 + $0x30] sm:$0xf]
        %v367 = vld [vmem:[%s304 + $0x34] sm:$0xf]
        %v368 = vld [vmem:[%s304 + $0x38] sm:$0xf]
        %v369 = vld [vmem:[%s304 + $0x3c] sm:$0xf]
        %v370 = vld [vmem:[%s304 + $0x40] sm:$0xf]
        %v371 = vld [vmem:[%s304 + $0x44] sm:$0xf]
        %v372 = vld [vmem:[%s304 + $0x48] sm:$0xf]
        %v373 = vld [vmem:[%s304 + $0x4c] sm:$0xf]
        %v374 = vld [vmem:[%s304 + $0x50] sm:$0xf]
        %v375 = vld [vmem:[%s304 + $0x54] sm:$0xf]
        %v376 = vld [vmem:[%s304 + $0x58] sm:$0xf]
        %v377 = vld [vmem:[%s304 + $0x5c] sm:$0xf]
        %v378 = vld [vmem:[%s304 + $0x60] sm:$0xf]
        %v379 = vld [vmem:[%s304 + $0x64] sm:$0xf]
        %v380 = vld [vmem:[%s304 + $0x68] sm:$0xf]
        %v381 = vld [vmem:[%s304 + $0x6c] sm:$0xf]
        %v382 = vld [vmem:[%s304 + $0x70] sm:$0xf]
        %v383 = vld [vmem:[%s304 + $0x74] sm:$0xf]
        %v384 = vld [vmem:[%s304 + $0x78] sm:$0xf]
        %v385 = vld [vmem:[%s304 + $0x7c] sm:$0xf]
        %v386 = vld [vmem:[%s318] sm:$0xff]
        %v387 = vld [vmem:[%s318 + $0x8] sm:$0xff]
        %v388 = vld [vmem:[%s318 + $0x10] sm:$0xff]
        %v389 = vld [vmem:[%s318 + $0x18] sm:$0xff]
        %v390 = vld [vmem:[%s318 + $0x20] sm:$0xff]
        %v391 = vld [vmem:[%s318 + $0x28] sm:$0xff]
        %v392 = vld [vmem:[%s318 + $0x30] sm:$0xff]
        %v393 = vld [vmem:[%s318 + $0x38] sm:$0xff]
        %v394 = vld [vmem:[%s318 + $0x40] sm:$0xff]
        %v395 = vld [vmem:[%s318 + $0x48] sm:$0xff]
        %v396 = vld [vmem:[%s318 + $0x50] sm:$0xff]
        %v397 = vld [vmem:[%s318 + $0x58] sm:$0xff]
        %v398 = vld [vmem:[%s318 + $0x60] sm:$0xff]
        %v399 = vld [vmem:[%s318 + $0x68] sm:$0xff]
        %v400 = vld [vmem:[%s318 + $0x70] sm:$0xff]
        %v401 = vld [vmem:[%s318 + $0x78] sm:$0xff]
        %v402 = vld [vmem:[%s318 + $0x80] sm:$0xff]
        %v403 = vld [vmem:[%s318 + $0x88] sm:$0xff]
        %v404 = vld [vmem:[%s318 + $0x90] sm:$0xff]
        %v405 = vld [vmem:[%s318 + $0x98] sm:$0xff]
        %v406 = vld [vmem:[%s318 + $0xa0] sm:$0xff]
        %v407 = vld [vmem:[%s318 + $0xa8] sm:$0xff]
        %v408 = vld [vmem:[%s318 + $0xb0] sm:$0xff]
        %v409 = vld [vmem:[%s318 + $0xb8] sm:$0xff]
        %v410 = vld [vmem:[%s318 + $0xc0] sm:$0xff]
        %v411 = vld [vmem:[%s318 + $0xc8] sm:$0xff]
        %v412 = vld [vmem:[%s318 + $0xd0] sm:$0xff]
        %v413 = vld [vmem:[%s318 + $0xd8] sm:$0xff]
        %v414 = vld [vmem:[%s318 + $0xe0] sm:$0xff]
        %v415 = vld [vmem:[%s318 + $0xe8] sm:$0xff]
        %v416 = vld [vmem:[%s318 + $0xf0] sm:$0xff]
        %v417 = vld [vmem:[%s318 + $0xf8] sm:$0xff]
        %v418 = vld [vmem:[%s307] sm:$0x1]
        %v420 = vlaneseq
        %v421 = vshrl.u32 %v420, 7
        %v422 = vsub.s32 0, %v421
        %v423 = vrot.slane %v418, %v422
        %v457 = vunpack.c.l.b16 %v322
        %v458 = vunpack.c.h.b16 %v322
        %v459 = vunpack.c.l.b16 %v323
        %v460 = vunpack.c.h.b16 %v323
        %v461 = vunpack.c.l.b16 %v324
        %v462 = vunpack.c.h.b16 %v324
        %v463 = vunpack.c.l.b16 %v325
        %v464 = vunpack.c.h.b16 %v325
        %v465 = vunpack.c.l.b16 %v326
        %v466 = vunpack.c.h.b16 %v326
        %v467 = vunpack.c.l.b16 %v327
        %v468 = vunpack.c.h.b16 %v327
        %v469 = vunpack.c.l.b16 %v328
        %v470 = vunpack.c.h.b16 %v328
        %v471 = vunpack.c.l.b16 %v329
        %v472 = vunpack.c.h.b16 %v329
        %v473 = vunpack.c.l.b16 %v330
        %v474 = vunpack.c.h.b16 %v330
        %v475 = vunpack.c.l.b16 %v331
        %v476 = vunpack.c.h.b16 %v331
        %v477 = vunpack.c.l.b16 %v332
        %v478 = vunpack.c.h.b16 %v332
        %v479 = vunpack.c.l.b16 %v333
        %v480 = vunpack.c.h.b16 %v333
        %v481 = vunpack.c.l.b16 %v334
        %v482 = vunpack.c.h.b16 %v334
        %v483 = vunpack.c.l.b16 %v335
        %v484 = vunpack.c.h.b16 %v335
        %v485 = vunpack.c.l.b16 %v336
        %v486 = vunpack.c.h.b16 %v336
        %v487 = vunpack.c.l.b16 %v337
        %v488 = vunpack.c.h.b16 %v337
        %v489 = vunpack.c.l.b16 %v338
        %v490 = vunpack.c.h.b16 %v338
        %v491 = vunpack.c.l.b16 %v339
        %v492 = vunpack.c.h.b16 %v339
        %v493 = vunpack.c.l.b16 %v340
        %v494 = vunpack.c.h.b16 %v340
        %v495 = vunpack.c.l.b16 %v341
        %v496 = vunpack.c.h.b16 %v341
        %v497 = vunpack.c.l.b16 %v342
        %v498 = vunpack.c.h.b16 %v342
        %v499 = vunpack.c.l.b16 %v343
        %v500 = vunpack.c.h.b16 %v343
        %v501 = vunpack.c.l.b16 %v344
        %v502 = vunpack.c.h.b16 %v344
        %v503 = vunpack.c.l.b16 %v345
        %v504 = vunpack.c.h.b16 %v345
        %v505 = vunpack.c.l.b16 %v346
        %v506 = vunpack.c.h.b16 %v346
        %v507 = vunpack.c.l.b16 %v347
        %v508 = vunpack.c.h.b16 %v347
        %v509 = vunpack.c.l.b16 %v348
        %v510 = vunpack.c.h.b16 %v348
        %v511 = vunpack.c.l.b16 %v349
        %v512 = vunpack.c.h.b16 %v349
        %v513 = vunpack.c.l.b16 %v350
        %v514 = vunpack.c.h.b16 %v350
        %v515 = vunpack.c.l.b16 %v351
        %v516 = vunpack.c.h.b16 %v351
        %v517 = vunpack.c.l.b16 %v352
        %v518 = vunpack.c.h.b16 %v352
        %v519 = vunpack.c.l.b16 %v353
        %v520 = vunpack.c.h.b16 %v353
        %v521 = vpack.c.b16 %v459, %v457
        %v522 = vpack.c.b16 %v460, %v458
        %v523 = vpack.c.b16 %v463, %v461
        %v524 = vpack.c.b16 %v464, %v462
        %v525 = vpack.c.b16 %v467, %v465
        %v526 = vpack.c.b16 %v468, %v466
        %v527 = vpack.c.b16 %v471, %v469
        %v528 = vpack.c.b16 %v472, %v470
        %v529 = vpack.c.b16 %v475, %v473
        %v530 = vpack.c.b16 %v476, %v474
        %v531 = vpack.c.b16 %v479, %v477
        %v532 = vpack.c.b16 %v480, %v478
        %v533 = vpack.c.b16 %v483, %v481
        %v534 = vpack.c.b16 %v484, %v482
        %v535 = vpack.c.b16 %v487, %v485
        %v536 = vpack.c.b16 %v488, %v486
        %v537 = vpack.c.b16 %v491, %v489
        %v538 = vpack.c.b16 %v492, %v490
        %v539 = vpack.c.b16 %v495, %v493
        %v540 = vpack.c.b16 %v496, %v494
        %v541 = vpack.c.b16 %v499, %v497
        %v542 = vpack.c.b16 %v500, %v498
        %v543 = vpack.c.b16 %v503, %v501
        %v544 = vpack.c.b16 %v504, %v502
        %v545 = vpack.c.b16 %v507, %v505
        %v546 = vpack.c.b16 %v508, %v506
        %v547 = vpack.c.b16 %v511, %v509
        %v548 = vpack.c.b16 %v512, %v510
        %v549 = vpack.c.b16 %v515, %v513
        %v550 = vpack.c.b16 %v516, %v514
        %v551 = vpack.c.b16 %v519, %v517
        %v552 = vpack.c.b16 %v520, %v518
        %v617 = vunpack.c.l.b16 %v354
        %v618 = vunpack.c.l.b16 %v355
        %v619 = vunpack.c.l.b16 %v356
        %v620 = vunpack.c.l.b16 %v357
        %v621 = vunpack.c.l.b16 %v358
        %v622 = vunpack.c.l.b16 %v359
        %v623 = vunpack.c.l.b16 %v360
        %v624 = vunpack.c.l.b16 %v361
        %v625 = vunpack.c.l.b16 %v362
        %v626 = vunpack.c.l.b16 %v363
        %v627 = vunpack.c.l.b16 %v364
        %v628 = vunpack.c.l.b16 %v365
        %v629 = vunpack.c.l.b16 %v366
        %v630 = vunpack.c.l.b16 %v367
        %v631 = vunpack.c.l.b16 %v368
        %v632 = vunpack.c.l.b16 %v369
        %v633 = vunpack.c.l.b16 %v370
        %v634 = vunpack.c.l.b16 %v371
        %v635 = vunpack.c.l.b16 %v372
        %v636 = vunpack.c.l.b16 %v373
        %v637 = vunpack.c.l.b16 %v374
        %v638 = vunpack.c.l.b16 %v375
        %v639 = vunpack.c.l.b16 %v376
        %v640 = vunpack.c.l.b16 %v377
        %v641 = vunpack.c.l.b16 %v378
        %v642 = vunpack.c.l.b16 %v379
        %v643 = vunpack.c.l.b16 %v380
        %v644 = vunpack.c.l.b16 %v381
        %v645 = vunpack.c.l.b16 %v382
        %v646 = vunpack.c.l.b16 %v383
        %v647 = vunpack.c.l.b16 %v384
        %v648 = vunpack.c.l.b16 %v385
        %v649 = vpack.c.b16 %v618, %v617
        %v650 = vpack.c.b16 %v620, %v619
        %v651 = vpack.c.b16 %v622, %v621
        %v652 = vpack.c.b16 %v624, %v623
        %v653 = vpack.c.b16 %v626, %v625
        %v654 = vpack.c.b16 %v628, %v627
        %v655 = vpack.c.b16 %v630, %v629
        %v656 = vpack.c.b16 %v632, %v631
        %v657 = vpack.c.b16 %v634, %v633
        %v658 = vpack.c.b16 %v636, %v635
        %v659 = vpack.c.b16 %v638, %v637
        %v660 = vpack.c.b16 %v640, %v639
        %v661 = vpack.c.b16 %v642, %v641
        %v662 = vpack.c.b16 %v644, %v643
        %v663 = vpack.c.b16 %v646, %v645
        %v664 = vpack.c.b16 %v648, %v647
        %681 = vmatprep.subr.bf16.mxu0 0
        %682 = vmatpush1.bf16.msra.mxu0 %v656
        %683 = vmatprep.subr.bf16.mxu0 0
        %684 = vmatpush1.bf16.msra.mxu0 %v655
        %685 = vmatprep.subr.bf16.mxu0 0
        %686 = vmatpush1.bf16.msra.mxu0 %v654
        %687 = vmatprep.subr.bf16.mxu0 0
        %688 = vmatpush1.bf16.msra.mxu0 %v653
        %689 = vmatprep.subr.bf16.mxu0 0
        %690 = vmatpush1.bf16.msra.mxu0 %v652
        %691 = vmatprep.subr.bf16.mxu0 0
        %692 = vmatpush1.bf16.msra.mxu0 %v651
        %693 = vmatprep.subr.bf16.mxu0 0
        %694 = vmatpush1.bf16.msra.mxu0 %v650
        %695 = vmatprep.subr.bf16.mxu0 0
        %696 = vmatpush1.bf16.msra.mxu0 %v649
        %697 = vmatprep.subr.bf16.mxu0 0
        %698 = vmatpush2.bf16.msra.mxu0 %v664
        %699 = vmatprep.subr.bf16.mxu0 0
        %700 = vmatpush2.bf16.msra.mxu0 %v663
        %701 = vmatprep.subr.bf16.mxu0 0
        %702 = vmatpush2.bf16.msra.mxu0 %v662
        %703 = vmatprep.subr.bf16.mxu0 0
        %704 = vmatpush2.bf16.msra.mxu0 %v661
        %705 = vmatprep.subr.bf16.mxu0 0
        %706 = vmatpush2.bf16.msra.mxu0 %v660
        %707 = vmatprep.subr.bf16.mxu0 0
        %708 = vmatpush2.bf16.msra.mxu0 %v659
        %709 = vmatprep.subr.bf16.mxu0 0
        %710 = vmatpush2.bf16.msra.mxu0 %v658
        %711 = vmatprep.subr.bf16.mxu0 0
        %712 = vmatpush2.bf16.msra.mxu0 %v657
        %713 = vmatprep.mubr.bf16.mxu0 %v522
        %714 = vmatmul.mubr.bf16.gmra.mxu0 %v521
        %v715 = vpop.f32.mrf.mxu0
        %v716 = vadd.f32 %v423, %v715
        %v717 = vpop.f32.mrf.mxu0
        %v718 = vpop.f32.mrf.mxu0
        %v719 = vadd.f32 %v423, %v718
        %v720 = vpop.f32.mrf.mxu0
        %721 = vmatprep.mubr.bf16.mxu0 %v524
        %722 = vmatmul.mubr.bf16.gmra.mxu0 %v523
        %v723 = vpop.f32.mrf.mxu0
        %v724 = vadd.f32 %v423, %v723
        %v725 = vpop.f32.mrf.mxu0
        %v726 = vpop.f32.mrf.mxu0
        %v727 = vadd.f32 %v423, %v726
        %v728 = vpop.f32.mrf.mxu0
        %729 = vmatprep.mubr.bf16.mxu0 %v526
        %730 = vmatmul.mubr.bf16.gmra.mxu0 %v525
        %v731 = vpop.f32.mrf.mxu0
        %v732 = vadd.f32 %v423, %v731
        %v733 = vpop.f32.mrf.mxu0
        %v734 = vpop.f32.mrf.mxu0
        %v735 = vadd.f32 %v423, %v734
        %v736 = vpop.f32.mrf.mxu0
        %737 = vmatprep.mubr.bf16.mxu0 %v528
        %738 = vmatmul.mubr.bf16.gmra.mxu0 %v527
        %v739 = vpop.f32.mrf.mxu0
        %v740 = vadd.f32 %v423, %v739
        %v741 = vpop.f32.mrf.mxu0
        %v742 = vpop.f32.mrf.mxu0
        %v743 = vadd.f32 %v423, %v742
        %v744 = vpop.f32.mrf.mxu0
        %745 = vmatprep.mubr.bf16.mxu0 %v530
        %746 = vmatmul.mubr.bf16.gmra.mxu0 %v529
        %v747 = vpop.f32.mrf.mxu0
        %v748 = vadd.f32 %v423, %v747
        %v749 = vpop.f32.mrf.mxu0
        %v750 = vpop.f32.mrf.mxu0
        %v751 = vadd.f32 %v423, %v750
        %v752 = vpop.f32.mrf.mxu0
        %753 = vmatprep.mubr.bf16.mxu0 %v532
        %754 = vmatmul.mubr.bf16.gmra.mxu0 %v531
        %v755 = vpop.f32.mrf.mxu0
        %v756 = vadd.f32 %v423, %v755
        %v757 = vpop.f32.mrf.mxu0
        %v758 = vpop.f32.mrf.mxu0
        %v759 = vadd.f32 %v423, %v758
        %v760 = vpop.f32.mrf.mxu0
        %761 = vmatprep.mubr.bf16.mxu0 %v534
        %762 = vmatmul.mubr.bf16.gmra.mxu0 %v533
        %v763 = vpop.f32.mrf.mxu0
        %v764 = vadd.f32 %v423, %v763
        %v765 = vpop.f32.mrf.mxu0
        %v766 = vpop.f32.mrf.mxu0
        %v767 = vadd.f32 %v423, %v766
        %v768 = vpop.f32.mrf.mxu0
        %769 = vmatprep.mubr.bf16.mxu0 %v536
        %770 = vmatmul.mubr.bf16.gmra.mxu0 %v535
        %v771 = vpop.f32.mrf.mxu0
        %v772 = vadd.f32 %v423, %v771
        %v773 = vpop.f32.mrf.mxu0
        %v774 = vpop.f32.mrf.mxu0
        %v775 = vadd.f32 %v423, %v774
        %v776 = vpop.f32.mrf.mxu0
        %777 = vmatprep.mubr.bf16.mxu0 %v538
        %778 = vmatmul.mubr.bf16.gmra.mxu0 %v537
        %v779 = vpop.f32.mrf.mxu0
        %v780 = vadd.f32 %v423, %v779
        %v781 = vpop.f32.mrf.mxu0
        %v782 = vpop.f32.mrf.mxu0
        %v783 = vadd.f32 %v423, %v782
        %v784 = vpop.f32.mrf.mxu0
        %785 = vmatprep.mubr.bf16.mxu0 %v540
        %786 = vmatmul.mubr.bf16.gmra.mxu0 %v539
        %v787 = vpop.f32.mrf.mxu0
        %v788 = vadd.f32 %v423, %v787
        %v789 = vpop.f32.mrf.mxu0
        %v790 = vpop.f32.mrf.mxu0
        %v791 = vadd.f32 %v423, %v790
        %v792 = vpop.f32.mrf.mxu0
        %793 = vmatprep.mubr.bf16.mxu0 %v542
        %794 = vmatmul.mubr.bf16.gmra.mxu0 %v541
        %v795 = vpop.f32.mrf.mxu0
        %v796 = vadd.f32 %v423, %v795
        %v797 = vpop.f32.mrf.mxu0
        %v798 = vpop.f32.mrf.mxu0
        %v799 = vadd.f32 %v423, %v798
        %v800 = vpop.f32.mrf.mxu0
        %801 = vmatprep.mubr.bf16.mxu0 %v544
        %802 = vmatmul.mubr.bf16.gmra.mxu0 %v543
        %v803 = vpop.f32.mrf.mxu0
        %v804 = vadd.f32 %v423, %v803
        %v805 = vpop.f32.mrf.mxu0
        %v806 = vpop.f32.mrf.mxu0
        %v807 = vadd.f32 %v423, %v806
        %v808 = vpop.f32.mrf.mxu0
        %809 = vmatprep.mubr.bf16.mxu0 %v546
        %810 = vmatmul.mubr.bf16.gmra.mxu0 %v545
        %v811 = vpop.f32.mrf.mxu0
        %v812 = vadd.f32 %v423, %v811
        %v813 = vpop.f32.mrf.mxu0
        %v814 = vpop.f32.mrf.mxu0
        %v815 = vadd.f32 %v423, %v814
        %v816 = vpop.f32.mrf.mxu0
        %817 = vmatprep.mubr.bf16.mxu0 %v548
        %818 = vmatmul.mubr.bf16.gmra.mxu0 %v547
        %v819 = vpop.f32.mrf.mxu0
        %v820 = vadd.f32 %v423, %v819
        %v821 = vpop.f32.mrf.mxu0
        %v822 = vpop.f32.mrf.mxu0
        %v823 = vadd.f32 %v423, %v822
        %v824 = vpop.f32.mrf.mxu0
        %825 = vmatprep.mubr.bf16.mxu0 %v550
        %826 = vmatmul.mubr.bf16.gmra.mxu0 %v549
        %v827 = vpop.f32.mrf.mxu0
        %v828 = vadd.f32 %v423, %v827
        %v829 = vpop.f32.mrf.mxu0
        %v830 = vpop.f32.mrf.mxu0
        %v831 = vadd.f32 %v423, %v830
        %v832 = vpop.f32.mrf.mxu0
        %833 = vmatprep.mubr.bf16.mxu0 %v552
        %834 = vmatmul.mubr.bf16.gmra.mxu0 %v551
        %v835 = vpop.f32.mrf.mxu0
        %v836 = vadd.f32 %v423, %v835
        %v837 = vpop.f32.mrf.mxu0
        %v838 = vpop.f32.mrf.mxu0
        %v839 = vadd.f32 %v423, %v838
        %v840 = vpop.f32.mrf.mxu0
        %841 = vdwg.mxu0
        %v842 = vld [vmem:[%s310] sm:$0x1]
        %v844 = vlaneseq
        %v845 = vshrl.u32 %v844, 7
        %v846 = vsub.s32 0, %v845
        %v847 = vrot.slane %v842, %v846
        %v849 = vmul.f32 %v716, %v847
        %v850 = vmul.f32 %v719, %v847
        %v851 = vmul.f32 %v724, %v847
        %v852 = vmul.f32 %v727, %v847
        %v853 = vmul.f32 %v732, %v847
        %v854 = vmul.f32 %v735, %v847
        %v855 = vmul.f32 %v740, %v847
        %v856 = vmul.f32 %v743, %v847
        %v857 = vmul.f32 %v748, %v847
        %v858 = vmul.f32 %v751, %v847
        %v859 = vmul.f32 %v756, %v847
        %v860 = vmul.f32 %v759, %v847
        %v861 = vmul.f32 %v764, %v847
        %v862 = vmul.f32 %v767, %v847
        %v863 = vmul.f32 %v772, %v847
        %v864 = vmul.f32 %v775, %v847
        %v865 = vmul.f32 %v780, %v847
        %v866 = vmul.f32 %v783, %v847
        %v867 = vmul.f32 %v788, %v847
        %v868 = vmul.f32 %v791, %v847
        %v869 = vmul.f32 %v796, %v847
        %v870 = vmul.f32 %v799, %v847
        %v871 = vmul.f32 %v804, %v847
        %v872 = vmul.f32 %v807, %v847
        %v873 = vmul.f32 %v812, %v847
        %v874 = vmul.f32 %v815, %v847
        %v875 = vmul.f32 %v820, %v847
        %v876 = vmul.f32 %v823, %v847
        %v877 = vmul.f32 %v828, %v847
        %v878 = vmul.f32 %v831, %v847
        %v879 = vmul.f32 %v836, %v847
        %v880 = vmul.f32 %v839, %v847
        %v881 = vadd.f32 %v386, %v849
        %v882 = vadd.f32 %v387, %v850
        %v883 = vadd.f32 %v388, %v851
        %v884 = vadd.f32 %v389, %v852
        %v885 = vadd.f32 %v390, %v853
        %v886 = vadd.f32 %v391, %v854
        %v887 = vadd.f32 %v392, %v855
        %v888 = vadd.f32 %v393, %v856
        %v889 = vadd.f32 %v394, %v857
        %v890 = vadd.f32 %v395, %v858
        %v891 = vadd.f32 %v396, %v859
        %v892 = vadd.f32 %v397, %v860
        %v893 = vadd.f32 %v398, %v861
        %v894 = vadd.f32 %v399, %v862
        %v895 = vadd.f32 %v400, %v863
        %v896 = vadd.f32 %v401, %v864
        %v897 = vadd.f32 %v402, %v865
        %v898 = vadd.f32 %v403, %v866
        %v899 = vadd.f32 %v404, %v867
        %v900 = vadd.f32 %v405, %v868
        %v901 = vadd.f32 %v406, %v869
        %v902 = vadd.f32 %v407, %v870
        %v903 = vadd.f32 %v408, %v871
        %v904 = vadd.f32 %v409, %v872
        %v905 = vadd.f32 %v410, %v873
        %v906 = vadd.f32 %v411, %v874
        %v907 = vadd.f32 %v412, %v875
        %v908 = vadd.f32 %v413, %v876
        %v909 = vadd.f32 %v414, %v877
        %v910 = vadd.f32 %v415, %v878
        %v911 = vadd.f32 %v416, %v879
        %v912 = vadd.f32 %v417, %v880
        %913 = vst [vmem:[%s293] sm:$0xff] %v881
        %914 = vst [vmem:[%s293 + $0x8] sm:$0xff] %v882
        %915 = vst [vmem:[%s293 + $0x10] sm:$0xff] %v883
        %916 = vst [vmem:[%s293 + $0x18] sm:$0xff] %v884
        %917 = vst [vmem:[%s293 + $0x20] sm:$0xff] %v885
        %918 = vst [vmem:[%s293 + $0x28] sm:$0xff] %v886
        %919 = vst [vmem:[%s293 + $0x30] sm:$0xff] %v887
        %920 = vst [vmem:[%s293 + $0x38] sm:$0xff] %v888
        %921 = vst [vmem:[%s293 + $0x40] sm:$0xff] %v889
        %922 = vst [vmem:[%s293 + $0x48] sm:$0xff] %v890
        %923 = vst [vmem:[%s293 + $0x50] sm:$0xff] %v891
        %924 = vst [vmem:[%s293 + $0x58] sm:$0xff] %v892
        %925 = vst [vmem:[%s293 + $0x60] sm:$0xff] %v893
        %926 = vst [vmem:[%s293 + $0x68] sm:$0xff] %v894
        %927 = vst [vmem:[%s293 + $0x70] sm:$0xff] %v895
        %928 = vst [vmem:[%s293 + $0x78] sm:$0xff] %v896
        %929 = vst [vmem:[%s293 + $0x80] sm:$0xff] %v897
        %930 = vst [vmem:[%s293 + $0x88] sm:$0xff] %v898
        %931 = vst [vmem:[%s293 + $0x90] sm:$0xff] %v899
        %932 = vst [vmem:[%s293 + $0x98] sm:$0xff] %v900
        %933 = vst [vmem:[%s293 + $0xa0] sm:$0xff] %v901
        %934 = vst [vmem:[%s293 + $0xa8] sm:$0xff] %v902
        %935 = vst [vmem:[%s293 + $0xb0] sm:$0xff] %v903
        %936 = vst [vmem:[%s293 + $0xb8] sm:$0xff] %v904
        %937 = vst [vmem:[%s293 + $0xc0] sm:$0xff] %v905
        %938 = vst [vmem:[%s293 + $0xc8] sm:$0xff] %v906
        %939 = vst [vmem:[%s293 + $0xd0] sm:$0xff] %v907
        %940 = vst [vmem:[%s293 + $0xd8] sm:$0xff] %v908
        %941 = vst [vmem:[%s293 + $0xe0] sm:$0xff] %v909
        %942 = vst [vmem:[%s293 + $0xe8] sm:$0xff] %v910
        %943 = vst [vmem:[%s293 + $0xf0] sm:$0xff] %v911
        %944 = vst [vmem:[%s293 + $0xf8] sm:$0xff] %v912
        %s945 = sand.u32 %s173, 1
        %s946 = scalar_lea.sflag [#allocation3], %s945
        %s947 = sand.u32 %s173, 1
        %s948 = smul.addr %s947, 256
        %s949 = scalar_lea.vmem [#allocation2], %s948
        // Predicated region
        $region41: #{_lambda_.11} parent=39 // pred_check
          %p950 = pneg %p183
        $region42: #{_lambda_.11} parent=39 // pred_check_branch
          %952 = sbr.rel (%p950) target = $region44
        $region43: #{_lambda_.11} parent=39 // pred_region
          %s953 = smul.u32 32, %s23
          %s955 = ssub.s32 4096, 4096
          %956 = vsyncadd %s946, %s955
          %s957 = sadd.s32 %s24, %s953
          %s958 = smul.addr %s957, 128
          %s959 = scalar_lea.hbm %s5, %s958
          %s960 = sshll.u32 %s949, 4
          %s961 = int_to_ptr.vmem [resolvable:$true] %s960
          %966 = dma.vmem_to_hbm [thread:$0]  %s961, 4096, %s959, %s946, 128, 128, 8
        $region44: #{_lambda_.11} parent=39 // pred_fallthru
          _
      $region40: #{_lambda_.11} parent=5 // pred_fallthru
        _
      %p967 = scmp.le.s32.totalorder 2, %s14
      // Predicated region
      $region45: #{_lambda_.11} parent=5 // pred_check
        %p968 = pneg %p967
      $region46: #{_lambda_.11} parent=5 // pred_check_branch
        %970 = sbr.rel (%p968) target = $region48
      $region47: #{_lambda_.11} parent=5 // pred_region
        %s971 = ssub.s32 %s14, 2
        // Predicated region
        $region49: #{_lambda_.11} parent=47 // pred_check
          %p972 = pneg %p189
        $region50: #{_lambda_.11} parent=47 // pred_check_branch
          %974 = sbr.rel (%p972) target = $region52
        $region51: #{_lambda_.11} parent=47 // pred_region
          %s975 = sand.u32 %s174, 1
          %s976 = scalar_lea.sflag [#allocation3], %s975
          %s977 = sand.u32 %s174, 1
          %s978 = smul.addr %s977, 256
          %s979 = scalar_lea.vmem [#allocation2], %s978
          %980 = dma.done %s976, 4096
        $region52: #{_lambda_.11} parent=47 // pred_fallthru
          _
      $region48: #{_lambda_.11} parent=5 // pred_fallthru
        _
    $region6: #{_lambda_.11} parent=1 // loop_footer
      %s18 = sadd.s32 1, %s14
    $region7: #{_lambda_.11} parent=1 // loop_footer_branch
      %13 = sbr.rel target = $region3
    $region8: #{_lambda_.11} parent=1 // loop_exit
      _
    %981 = vsyncpa [#allocation3], 1
    %s982 = scalar_lea.sflag [#allocation3], 1
    %983 = vsyncpa %s982, 1

// kernel: _lambda_.10
$region0: #{_lambda_.10}
  #allocation0 [shape = 'u32[]', space=smem, size = 0x4, offset = 0x4, fixed_abs, tag = 'smem constant byte address 0x4 - core index']
  #allocation1 [shape = 'u32[144,128]{1,0:T(1,128)}', space=vmem, size = 0x12000, scoped, tag = 'internal scratch']
  %s0 = inlined_call_operand.vmem [shape: f32[512,128], index: 0, kind: input, shape index: {}]
  %s1 = inlined_call_operand.vmem [shape: f32[1,128], index: 1, kind: input, shape index: {}]
  %s2 = inlined_call_operand.vmem [shape: f32[1,128], index: 2, kind: input, shape index: {}]
  %s3 = inlined_call_operand.vmem [shape: bf16[128,256], index: 3, kind: input, shape index: {}]
  %s4 = inlined_call_operand.vmem [shape: bf16[128,256], index: 4, kind: input, shape index: {}]
  %s5 = inlined_call_operand.vmem [shape: f32[1,256], index: 5, kind: input, shape index: {}, may-alias: {5,6}]
  %s6 = inlined_call_operand.vmem [shape: f32[1,256], index: 6, kind: input, shape index: {}, may-alias: {5,6}]
  %s7 = inlined_call_operand.vmem [shape: bf16[512,256], index: 7, kind: output, shape index: {}]
  %s8 = sld [smem:[#allocation0]]
  $region61: #{_lambda_.10} parent=0
    _
  %s10 = ssub.s32 1, %s8
  %s11 = scalar_select 0, %s10, %s8
  loop: start=0, step=1, limit=4
  $region2: #{_lambda_.10} parent=0 // loop_pre_header
    _
  $region3: #{_lambda_.10} parent=0 // loop_header
    %s13 = sphi 0, %s17
    %p14 = scmp.ge.s32.totalorder %s13, 4
    %s20 = sphi 0, %s32
    %s21 = sphi 0, %s28
    %s22 = sphi 0, %s20
    %s23 = sphi 0, %s21
    %s24 = sphi 0, %s22
    %s25 = sphi 0, %s23
    %s35 = sphi 0, %s37
    %s38 = sphi 0, %s35
    %s39 = sphi 0, %s38
    %s55 = sphi 0, %s39
    %s59 = sphi 0, %s59
    %s61 = sphi 0, %s59
    %s62 = sphi 0, %s61
    %s76 = sphi 0, %s62
    %s80 = sphi 0, %s80
    %s82 = sphi 0, %s80
    %s83 = sphi 0, %s82
    %s97 = sphi 0, %s83
    %s103 = sphi 0, %s105
    %s106 = sphi 0, %s103
    %s107 = sphi 0, %s106
    %s123 = sphi 0, %s107
    %s129 = sphi 0, %s131
    %s132 = sphi 0, %s129
    %s133 = sphi 0, %s132
    %s149 = sphi 0, %s133
    %s155 = sphi 0, %s157
    %s158 = sphi 0, %s155
    %s159 = sphi 0, %s158
    %s175 = sphi 0, %s159
    %s181 = sphi 0, %s183
    %s184 = sphi 0, %s181
    %s185 = sphi 0, %s184
    %s201 = sphi 0, %s185
    %s209 = sphi 0, %s211
    %s212 = sphi 0, %s209
    %s213 = sphi 0, %s212
    %s229 = sphi 0, %s213
  $region4: #{_lambda_.10} parent=0 // loop_header_branch
    %16 = sbr.rel (%p14) target = $region8
  $region5: #{_lambda_.10} parent=0 // loop_body
    %s18 = ssub.s32 %s13, 1
    %s19 = ssub.s32 %s13, 2
    %s26 = sadd.s32 1, %s21
    %p27 = scmp.ge.s32.totalorder %s26, 1
    %s28 = scalar_select %p27, 0, %s26
    %s29 = sadd.s32 1, %s20
    %s30 = scalar_select %p27, %s29, %s20
    %p31 = scmp.ge.s32.totalorder %s30, 2
    %s32 = scalar_select %p31, 0, %s30
    %s33 = ssub.s32 %s20, %s32
    %p34 = scmp.eq.s32.totalorder %s33, 0
    %s36 = sadd.s32 %s35, 1
    %s37 = scalar_select %p34, %s35, %s36
    %p40 = pneg %p34
    %p41 = scmp.eq.s32.totalorder %s13, 1
    %p42 = por %p40, %p41
    %p43 = scmp.ne.s32.totalorder %s35, %s38
    %p44 = scmp.eq.s32.totalorder %s13, 0
    %p45 = por %p43, %p44
    %p46 = scmp.ne.s32.totalorder %s35, %s38
    %p47 = scmp.eq.s32.totalorder %s18, 1
    %p48 = por %p46, %p47
    %p49 = scmp.ne.s32.totalorder %s38, %s39
    %p50 = scmp.eq.s32.totalorder %s18, 0
    %p51 = por %p49, %p50
    %p52 = scmp.ne.s32.totalorder %s38, %s39
    %p53 = scmp.eq.s32.totalorder %s19, 1
    %p54 = por %p52, %p53
    %p56 = scmp.ne.s32.totalorder %s39, %s55
    %p57 = scmp.eq.s32.totalorder %s19, 0
    %p58 = por %p56, %p57
    %s60 = sadd.s32 %s59, 1
    %p63 = scmp.eq.s32.totalorder %s13, 1
    %p64 = scmp.ne.s32.totalorder %s59, %s61
    %p65 = scmp.eq.s32.totalorder %s13, 0
    %p66 = por %p64, %p65
    %p67 = scmp.ne.s32.totalorder %s59, %s61
    %p68 = scmp.eq.s32.totalorder %s18, 1
    %p69 = por %p67, %p68
    %p70 = scmp.ne.s32.totalorder %s61, %s62
    %p71 = scmp.eq.s32.totalorder %s18, 0
    %p72 = por %p70, %p71
    %p73 = scmp.ne.s32.totalorder %s61, %s62
    %p74 = scmp.eq.s32.totalorder %s19, 1
    %p75 = por %p73, %p74
    %p77 = scmp.ne.s32.totalorder %s62, %s76
    %p78 = scmp.eq.s32.totalorder %s19, 0
    %p79 = por %p77, %p78
    %s81 = sadd.s32 %s80, 1
    %p84 = scmp.eq.s32.totalorder %s13, 1
    %p85 = scmp.ne.s32.totalorder %s80, %s82
    %p86 = scmp.eq.s32.totalorder %s13, 0
    %p87 = por %p85, %p86
    %p88 = scmp.ne.s32.totalorder %s80, %s82
    %p89 = scmp.eq.s32.totalorder %s18, 1
    %p90 = por %p88, %p89
    %p91 = scmp.ne.s32.totalorder %s82, %s83
    %p92 = scmp.eq.s32.totalorder %s18, 0
    %p93 = por %p91, %p92
    %p94 = scmp.ne.s32.totalorder %s82, %s83
    %p95 = scmp.eq.s32.totalorder %s19, 1
    %p96 = por %p94, %p95
    %p98 = scmp.ne.s32.totalorder %s83, %s97
    %p99 = scmp.eq.s32.totalorder %s19, 0
    %p100 = por %p98, %p99
    %s101 = ssub.s32 %s21, %s28
    %p102 = scmp.eq.s32.totalorder %s101, 0
    %s104 = sadd.s32 %s103, 1
    %s105 = scalar_select %p102, %s103, %s104
    %p108 = pneg %p102
    %p109 = scmp.eq.s32.totalorder %s13, 1
    %p110 = por %p108, %p109
    %p111 = scmp.ne.s32.totalorder %s103, %s106
    %p112 = scmp.eq.s32.totalorder %s13, 0
    %p113 = por %p111, %p112
    %p114 = scmp.ne.s32.totalorder %s103, %s106
    %p115 = scmp.eq.s32.totalorder %s18, 1
    %p116 = por %p114, %p115
    %p117 = scmp.ne.s32.totalorder %s106, %s107
    %p118 = scmp.eq.s32.totalorder %s18, 0
    %p119 = por %p117, %p118
    %p120 = scmp.ne.s32.totalorder %s106, %s107
    %p121 = scmp.eq.s32.totalorder %s19, 1
    %p122 = por %p120, %p121
    %p124 = scmp.ne.s32.totalorder %s107, %s123
    %p125 = scmp.eq.s32.totalorder %s19, 0
    %p126 = por %p124, %p125
    %s127 = ssub.s32 %s21, %s28
    %p128 = scmp.eq.s32.totalorder %s127, 0
    %s130 = sadd.s32 %s129, 1
    %s131 = scalar_select %p128, %s129, %s130
    %p134 = pneg %p128
    %p135 = scmp.eq.s32.totalorder %s13, 1
    %p136 = por %p134, %p135
    %p137 = scmp.ne.s32.totalorder %s129, %s132
    %p138 = scmp.eq.s32.totalorder %s13, 0
    %p139 = por %p137, %p138
    %p140 = scmp.ne.s32.totalorder %s129, %s132
    %p141 = scmp.eq.s32.totalorder %s18, 1
    %p142 = por %p140, %p141
    %p143 = scmp.ne.s32.totalorder %s132, %s133
    %p144 = scmp.eq.s32.totalorder %s18, 0
    %p145 = por %p143, %p144
    %p146 = scmp.ne.s32.totalorder %s132, %s133
    %p147 = scmp.eq.s32.totalorder %s19, 1
    %p148 = por %p146, %p147
    %p150 = scmp.ne.s32.totalorder %s133, %s149
    %p151 = scmp.eq.s32.totalorder %s19, 0
    %p152 = por %p150, %p151
    %s153 = ssub.s32 %s21, %s28
    %p154 = scmp.eq.s32.totalorder %s153, 0
    %s156 = sadd.s32 %s155, 1
    %s157 = scalar_select %p154, %s155, %s156
    %p160 = pneg %p154
    %p161 = scmp.eq.s32.totalorder %s13, 1
    %p162 = por %p160, %p161
    %p163 = scmp.ne.s32.totalorder %s155, %s158
    %p164 = scmp.eq.s32.totalorder %s13, 0
    %p165 = por %p163, %p164
    %p166 = scmp.ne.s32.totalorder %s155, %s158
    %p167 = scmp.eq.s32.totalorder %s18, 1
    %p168 = por %p166, %p167
    %p169 = scmp.ne.s32.totalorder %s158, %s159
    %p170 = scmp.eq.s32.totalorder %s18, 0
    %p171 = por %p169, %p170
    %p172 = scmp.ne.s32.totalorder %s158, %s159
    %p173 = scmp.eq.s32.totalorder %s19, 1
    %p174 = por %p172, %p173
    %p176 = scmp.ne.s32.totalorder %s159, %s175
    %p177 = scmp.eq.s32.totalorder %s19, 0
    %p178 = por %p176, %p177
    %s179 = ssub.s32 %s21, %s28
    %p180 = scmp.eq.s32.totalorder %s179, 0
    %s182 = sadd.s32 %s181, 1
    %s183 = scalar_select %p180, %s181, %s182
    %p186 = pneg %p180
    %p187 = scmp.eq.s32.totalorder %s13, 1
    %p188 = por %p186, %p187
    %p189 = scmp.ne.s32.totalorder %s181, %s184
    %p190 = scmp.eq.s32.totalorder %s13, 0
    %p191 = por %p189, %p190
    %p192 = scmp.ne.s32.totalorder %s181, %s184
    %p193 = scmp.eq.s32.totalorder %s18, 1
    %p194 = por %p192, %p193
    %p195 = scmp.ne.s32.totalorder %s184, %s185
    %p196 = scmp.eq.s32.totalorder %s18, 0
    %p197 = por %p195, %p196
    %p198 = scmp.ne.s32.totalorder %s184, %s185
    %p199 = scmp.eq.s32.totalorder %s19, 1
    %p200 = por %p198, %p199
    %p202 = scmp.ne.s32.totalorder %s185, %s201
    %p203 = scmp.eq.s32.totalorder %s19, 0
    %p204 = por %p202, %p203
    %s205 = ssub.s32 %s20, %s32
    %s206 = ssub.s32 %s21, %s28
    %s207 = sor.u32 %s205, %s206
    %p208 = scmp.eq.s32.totalorder %s207, 0
    %s210 = sadd.s32 %s209, 1
    %s211 = scalar_select %p208, %s209, %s210
    %p214 = pneg %p208
    %p215 = scmp.eq.s32.totalorder %s13, 1
    %p216 = por %p214, %p215
    %p217 = scmp.ne.s32.totalorder %s209, %s212
    %p218 = scmp.eq.s32.totalorder %s13, 0
    %p219 = por %p217, %p218
    %p220 = scmp.ne.s32.totalorder %s209, %s212
    %p221 = scmp.eq.s32.totalorder %s18, 1
    %p222 = por %p220, %p221
    %p223 = scmp.ne.s32.totalorder %s212, %s213
    %p224 = scmp.eq.s32.totalorder %s18, 0
    %p225 = por %p223, %p224
    %p226 = scmp.ne.s32.totalorder %s212, %s213
    %p227 = scmp.eq.s32.totalorder %s19, 1
    %p228 = por %p226, %p227
    %p230 = scmp.ne.s32.totalorder %s213, %s229
    %p231 = scmp.eq.s32.totalorder %s19, 0
    %p232 = por %p230, %p231
    %p233 = scmp.le.s32.totalorder 1, %s13
    %p234 = scmp.lt.s32.totalorder %s13, 3
    %p235 = pnand %p233, %p234
    %p236 = pneg %p235
    // Predicated region
    $region9: #{_lambda_.10} parent=5 // pred_check
      _
    $region10: #{_lambda_.10} parent=5 // pred_check_branch
      %238 = sbr.rel (%p235) target = $region12
    $region11: #{_lambda_.10} parent=5 // pred_region
      %s239 = ssub.s32 %s13, 1
      // Predicated region
      $region13: #{_lambda_.10} parent=11 // pred_check
        %p240 = pneg %p72
      $region14: #{_lambda_.10} parent=11 // pred_check_branch
        %242 = sbr.rel (%p240) target = $region16
      $region15: #{_lambda_.10} parent=11 // pred_region
        _
      $region16: #{_lambda_.10} parent=11 // pred_fallthru
        _
      // Predicated region
      $region17: #{_lambda_.10} parent=11 // pred_check
        %p243 = pneg %p93
      $region18: #{_lambda_.10} parent=11 // pred_check_branch
        %245 = sbr.rel (%p243) target = $region20
      $region19: #{_lambda_.10} parent=11 // pred_region
        _
      $region20: #{_lambda_.10} parent=11 // pred_fallthru
        _
      // Predicated region
      $region21: #{_lambda_.10} parent=11 // pred_check
        %p246 = pneg %p119
      $region22: #{_lambda_.10} parent=11 // pred_check_branch
        %248 = sbr.rel (%p246) target = $region24
      $region23: #{_lambda_.10} parent=11 // pred_region
        %s249 = smul.u32 2, %s23
        %p250 = scmp.lt.s32.totalorder %s249, 1
        %s251 = scalar_select %p250, %s249, 1
        %s252 = smul.addr %s251, 4
        %s253 = scalar_lea.vmem %s3, %s252
        %s254 = smul.u32 2, %s23
      $region24: #{_lambda_.10} parent=11 // pred_fallthru
        _
      // Predicated region
      $region25: #{_lambda_.10} parent=11 // pred_check
        %p255 = pneg %p145
      $region26: #{_lambda_.10} parent=11 // pred_check_branch
        %257 = sbr.rel (%p255) target = $region28
      $region27: #{_lambda_.10} parent=11 // pred_region
        %s258 = smul.u32 2, %s23
        %p259 = scmp.lt.s32.totalorder %s258, 1
        %s260 = scalar_select %p259, %s258, 1
        %s261 = smul.addr %s260, 4
        %s262 = scalar_lea.vmem %s4, %s261
        %s263 = smul.u32 2, %s23
      $region28: #{_lambda_.10} parent=11 // pred_fallthru
        _
      // Predicated region
      $region29: #{_lambda_.10} parent=11 // pred_check
        %p264 = pneg %p171
      $region30: #{_lambda_.10} parent=11 // pred_check_branch
        %266 = sbr.rel (%p264) target = $region32
      $region31: #{_lambda_.10} parent=11 // pred_region
        %s267 = smul.u32 2, %s23
        %p268 = scmp.lt.s32.totalorder %s267, 1
        %s269 = scalar_select %p268, %s267, 1
        %s270 = scalar_lea.vmem %s5, %s269
        %s271 = smul.u32 2, %s23
      $region32: #{_lambda_.10} parent=11 // pred_fallthru
        _
      // Predicated region
      $region33: #{_lambda_.10} parent=11 // pred_check
        %p272 = pneg %p197
      $region34: #{_lambda_.10} parent=11 // pred_check_branch
        %274 = sbr.rel (%p272) target = $region36
      $region35: #{_lambda_.10} parent=11 // pred_region
        %s275 = smul.u32 2, %s23
        %p276 = scmp.lt.s32.totalorder %s275, 1
        %s277 = scalar_select %p276, %s275, 1
        %s278 = scalar_lea.vmem %s6, %s277
        %s279 = smul.u32 2, %s23
      $region36: #{_lambda_.10} parent=11 // pred_fallthru
        _
    $region12: #{_lambda_.10} parent=5 // pred_fallthru
      _
    %p280 = scmp.lt.s32.totalorder %s13, 2
    // Predicated region
    $region37: #{_lambda_.10} parent=5 // pred_check
      %p281 = pneg %p280
    $region38: #{_lambda_.10} parent=5 // pred_check_branch
      %283 = sbr.rel (%p281) target = $region40
    $region39: #{_lambda_.10} parent=5 // pred_region
      // Predicated region
      $region41: #{_lambda_.10} parent=39 // pred_check
        %p284 = pneg %p45
      $region42: #{_lambda_.10} parent=39 // pred_check_branch
        %286 = sbr.rel (%p284) target = $region44
      $region43: #{_lambda_.10} parent=39 // pred_region
        %s287 = smul.u32 32, %s20
        %p288 = scmp.lt.s32.totalorder %s287, 63
        %s289 = scalar_select %p288, %s287, 63
        %s290 = smul.addr %s289, 8
        %s291 = scalar_lea.vmem %s0, %s290
        %s292 = smul.u32 32, %s20
      $region44: #{_lambda_.10} parent=39 // pred_fallthru
        _
    $region40: #{_lambda_.10} parent=5 // pred_fallthru
      _
    %p293 = scmp.le.s32.totalorder 1, %s13
    %p294 = scmp.lt.s32.totalorder %s13, 3
    %p295 = pnand %p293, %p294
    %p296 = pneg %p295
    // Predicated region
    $region45: #{_lambda_.10} parent=5 // pred_check
      _
    $region46: #{_lambda_.10} parent=5 // pred_check_branch
      %298 = sbr.rel (%p295) target = $region48
    $region47: #{_lambda_.10} parent=5 // pred_region
      %s299 = ssub.s32 %s13, 1
      %s300 = smul.u32 32, %s22
      %p301 = scmp.lt.s32.totalorder %s300, 63
      %s302 = scalar_select %p301, %s300, 63
      %s303 = smul.addr %s302, 8
      %s304 = scalar_lea.vmem %s0, %s303
      %p305 = pneg %p51
      %p306 = pneg %p48
      %p307 = pneg %p72
      %p308 = pneg %p69
      %p309 = pneg %p93
      %p310 = pneg %p90
      %s311 = smul.u32 2, %s23
      %p312 = scmp.lt.s32.totalorder %s311, 1
      %s313 = scalar_select %p312, %s311, 1
      %s314 = smul.addr %s313, 4
      %s315 = scalar_lea.vmem %s3, %s314
      %p316 = pneg %p119
      %p317 = pneg %p116
      %s318 = smul.u32 2, %s23
      %p319 = scmp.lt.s32.totalorder %s318, 1
      %s320 = scalar_select %p319, %s318, 1
      %s321 = smul.addr %s320, 4
      %s322 = scalar_lea.vmem %s4, %s321
      %p323 = pneg %p145
      %p324 = pneg %p142
      %s325 = smul.u32 2, %s23
      %p326 = scmp.lt.s32.totalorder %s325, 1
      %s327 = scalar_select %p326, %s325, 1
      %s328 = scalar_lea.vmem %s5, %s327
      %p329 = pneg %p171
      %p330 = pneg %p168
      %s331 = smul.u32 2, %s23
      %p332 = scmp.lt.s32.totalorder %s331, 1
      %s333 = scalar_select %p332, %s331, 1
      %s334 = scalar_lea.vmem %s6, %s333
      %p335 = pneg %p197
      %p336 = pneg %p194
      %p337 = pneg %p225
      %p338 = pneg %p222
      %s339 = smul.u32 32, %s22
      %s340 = smul.u32 2, %s23
      %p341 = scmp.lt.s32.totalorder %s339, 63
      %s342 = scalar_select %p341, %s339, 63
      %p343 = scmp.lt.s32.totalorder %s340, 1
      %s344 = scalar_select %p343, %s340, 1
      %s345 = smul.addr %s342, 2
      %s346 = sadd.s32 %s344, %s345
      %s347 = smul.addr %s346, 4
      %s348 = scalar_lea.vmem %s7, %s347
      %s349 = smul.u32 32, %s22
      %p350 = scmp.lt.s32.totalorder %s349, 63
      %s351 = scalar_select %p350, %s349, 63
      %s352 = smul.addr %s351, 8
      %s353 = scalar_lea.vmem %s0, %s352
      %s354 = smul.u32 32, %s22
      %s355 = smul.u32 2, %s23
      %p356 = scmp.lt.s32.totalorder %s355, 1
      %s357 = scalar_select %p356, %s355, 1
      %s358 = smul.addr %s357, 4
      %s359 = scalar_lea.vmem %s3, %s358
      %s360 = smul.u32 2, %s23
      %s361 = smul.u32 2, %s23
      %p362 = scmp.lt.s32.totalorder %s361, 1
      %s363 = scalar_select %p362, %s361, 1
      %s364 = smul.addr %s363, 4
      %s365 = scalar_lea.vmem %s4, %s364
      %s366 = smul.u32 2, %s23
      %s367 = smul.u32 2, %s23
      %p368 = scmp.lt.s32.totalorder %s367, 1
      %s369 = scalar_select %p368, %s367, 1
      %s370 = scalar_lea.vmem %s5, %s369
      %s371 = smul.u32 2, %s23
      %s372 = smul.u32 2, %s23
      %p373 = scmp.lt.s32.totalorder %s372, 1
      %s374 = scalar_select %p373, %s372, 1
      %s375 = scalar_lea.vmem %s6, %s374
      %s376 = smul.u32 2, %s23
      %s377 = smul.u32 32, %s22
      %s378 = smul.u32 2, %s23
      %p379 = scmp.lt.s32.totalorder %s377, 63
      %s380 = scalar_select %p379, %s377, 63
      %p381 = scmp.lt.s32.totalorder %s378, 1
      %s382 = scalar_select %p381, %s378, 1
      %s383 = smul.addr %s380, 2
      %s384 = sadd.s32 %s382, %s383
      %s385 = smul.addr %s384, 4
      %s386 = scalar_lea.vmem %s7, %s385
      %s387 = smul.u32 32, %s22
      %s388 = smul.u32 2, %s23
      %v390 = vld [vmem:[%s353] sm:$0xff]
      %v391 = vld [vmem:[%s353 + $0x8] sm:$0xff]
      %v392 = vld [vmem:[%s353 + $0x10] sm:$0xff]
      %v393 = vld [vmem:[%s353 + $0x18] sm:$0xff]
      %v394 = vld [vmem:[%s353 + $0x20] sm:$0xff]
      %v395 = vld [vmem:[%s353 + $0x28] sm:$0xff]
      %v396 = vld [vmem:[%s353 + $0x30] sm:$0xff]
      %v397 = vld [vmem:[%s353 + $0x38] sm:$0xff]
      %v398 = vld [vmem:[%s353 + $0x40] sm:$0xff]
      %v399 = vld [vmem:[%s353 + $0x48] sm:$0xff]
      %v400 = vld [vmem:[%s353 + $0x50] sm:$0xff]
      %v401 = vld [vmem:[%s353 + $0x58] sm:$0xff]
      %v402 = vld [vmem:[%s353 + $0x60] sm:$0xff]
      %v403 = vld [vmem:[%s353 + $0x68] sm:$0xff]
      %v404 = vld [vmem:[%s353 + $0x70] sm:$0xff]
      %v405 = vld [vmem:[%s353 + $0x78] sm:$0xff]
      %v406 = vld [vmem:[%s353 + $0x80] sm:$0xff]
      %v407 = vld [vmem:[%s353 + $0x88] sm:$0xff]
      %v408 = vld [vmem:[%s353 + $0x90] sm:$0xff]
      %v409 = vld [vmem:[%s353 + $0x98] sm:$0xff]
      %v410 = vld [vmem:[%s353 + $0xa0] sm:$0xff]
      %v411 = vld [vmem:[%s353 + $0xa8] sm:$0xff]
      %v412 = vld [vmem:[%s353 + $0xb0] sm:$0xff]
      %v413 = vld [vmem:[%s353 + $0xb8] sm:$0xff]
      %v414 = vld [vmem:[%s353 + $0xc0] sm:$0xff]
      %v415 = vld [vmem:[%s353 + $0xc8] sm:$0xff]
      %v416 = vld [vmem:[%s353 + $0xd0] sm:$0xff]
      %v417 = vld [vmem:[%s353 + $0xd8] sm:$0xff]
      %v418 = vld [vmem:[%s353 + $0xe0] sm:$0xff]
      %v419 = vld [vmem:[%s353 + $0xe8] sm:$0xff]
      %v420 = vld [vmem:[%s353 + $0xf0] sm:$0xff]
      %v421 = vld [vmem:[%s353 + $0xf8] sm:$0xff]
      %422 = vadd.xlane.f32.xlu0 %v390
      %v423 = vpop.xlane.xlu0 %422
      %424 = vadd.xlane.f32.xlu0 %v391
      %v425 = vpop.xlane.xlu0 %424
      %426 = vadd.xlane.f32.xlu0 %v392
      %v427 = vpop.xlane.xlu0 %426
      %428 = vadd.xlane.f32.xlu0 %v393
      %v429 = vpop.xlane.xlu0 %428
      %430 = vadd.xlane.f32.xlu0 %v394
      %v431 = vpop.xlane.xlu0 %430
      %432 = vadd.xlane.f32.xlu0 %v395
      %v433 = vpop.xlane.xlu0 %432
      %434 = vadd.xlane.f32.xlu0 %v396
      %v435 = vpop.xlane.xlu0 %434
      %436 = vadd.xlane.f32.xlu0 %v397
      %v437 = vpop.xlane.xlu0 %436
      %438 = vadd.xlane.f32.xlu0 %v398
      %v439 = vpop.xlane.xlu0 %438
      %440 = vadd.xlane.f32.xlu0 %v399
      %v441 = vpop.xlane.xlu0 %440
      %442 = vadd.xlane.f32.xlu0 %v400
      %v443 = vpop.xlane.xlu0 %442
      %444 = vadd.xlane.f32.xlu0 %v401
      %v445 = vpop.xlane.xlu0 %444
      %446 = vadd.xlane.f32.xlu0 %v402
      %v447 = vpop.xlane.xlu0 %446
      %448 = vadd.xlane.f32.xlu0 %v403
      %v449 = vpop.xlane.xlu0 %448
      %450 = vadd.xlane.f32.xlu0 %v404
      %v451 = vpop.xlane.xlu0 %450
      %452 = vadd.xlane.f32.xlu0 %v405
      %v453 = vpop.xlane.xlu0 %452
      %454 = vadd.xlane.f32.xlu0 %v406
      %v455 = vpop.xlane.xlu0 %454
      %456 = vadd.xlane.f32.xlu0 %v407
      %v457 = vpop.xlane.xlu0 %456
      %458 = vadd.xlane.f32.xlu0 %v408
      %v459 = vpop.xlane.xlu0 %458
      %460 = vadd.xlane.f32.xlu0 %v409
      %v461 = vpop.xlane.xlu0 %460
      %462 = vadd.xlane.f32.xlu0 %v410
      %v463 = vpop.xlane.xlu0 %462
      %464 = vadd.xlane.f32.xlu0 %v411
      %v465 = vpop.xlane.xlu0 %464
      %466 = vadd.xlane.f32.xlu0 %v412
      %v467 = vpop.xlane.xlu0 %466
      %468 = vadd.xlane.f32.xlu0 %v413
      %v469 = vpop.xlane.xlu0 %468
      %470 = vadd.xlane.f32.xlu0 %v414
      %v471 = vpop.xlane.xlu0 %470
      %472 = vadd.xlane.f32.xlu0 %v415
      %v473 = vpop.xlane.xlu0 %472
      %474 = vadd.xlane.f32.xlu0 %v416
      %v475 = vpop.xlane.xlu0 %474
      %476 = vadd.xlane.f32.xlu0 %v417
      %v477 = vpop.xlane.xlu0 %476
      %478 = vadd.xlane.f32.xlu0 %v418
      %v479 = vpop.xlane.xlu0 %478
      %480 = vadd.xlane.f32.xlu0 %v419
      %v481 = vpop.xlane.xlu0 %480
      %482 = vadd.xlane.f32.xlu0 %v420
      %v483 = vpop.xlane.xlu0 %482
      %484 = vadd.xlane.f32.xlu0 %v421
      %v485 = vpop.xlane.xlu0 %484
      %v486 = vrcp.pop 128.0
      %v487 = vmul.f32 %v423, %v486
      %v488 = vmul.f32 %v425, %v486
      %v489 = vmul.f32 %v427, %v486
      %v490 = vmul.f32 %v429, %v486
      %v491 = vmul.f32 %v431, %v486
      %v492 = vmul.f32 %v433, %v486
      %v493 = vmul.f32 %v435, %v486
      %v494 = vmul.f32 %v437, %v486
      %v495 = vmul.f32 %v439, %v486
      %v496 = vmul.f32 %v441, %v486
      %v497 = vmul.f32 %v443, %v486
      %v498 = vmul.f32 %v445, %v486
      %v499 = vmul.f32 %v447, %v486
      %v500 = vmul.f32 %v449, %v486
      %v501 = vmul.f32 %v451, %v486
      %v502 = vmul.f32 %v453, %v486
      %v503 = vmul.f32 %v455, %v486
      %v504 = vmul.f32 %v457, %v486
      %v505 = vmul.f32 %v459, %v486
      %v506 = vmul.f32 %v461, %v486
      %v507 = vmul.f32 %v463, %v486
      %v508 = vmul.f32 %v465, %v486
      %v509 = vmul.f32 %v467, %v486
      %v510 = vmul.f32 %v469, %v486
      %v511 = vmul.f32 %v471, %v486
      %v512 = vmul.f32 %v473, %v486
      %v513 = vmul.f32 %v475, %v486
      %v514 = vmul.f32 %v477, %v486
      %v515 = vmul.f32 %v479, %v486
      %v516 = vmul.f32 %v481, %v486
      %v517 = vmul.f32 %v483, %v486
      %v518 = vmul.f32 %v485, %v486
      %v519 = vsub.f32 %v390, %v487
      %v520 = vsub.f32 %v391, %v488
      %v521 = vsub.f32 %v392, %v489
      %v522 = vsub.f32 %v393, %v490
      %v523 = vsub.f32 %v394, %v491
      %v524 = vsub.f32 %v395, %v492
      %v525 = vsub.f32 %v396, %v493
      %v526 = vsub.f32 %v397, %v494
      %v527 = vsub.f32 %v398, %v495
      %v528 = vsub.f32 %v399, %v496
      %v529 = vsub.f32 %v400, %v497
      %v530 = vsub.f32 %v401, %v498
      %v531 = vsub.f32 %v402, %v499
      %v532 = vsub.f32 %v403, %v500
      %v533 = vsub.f32 %v404, %v501
      %v534 = vsub.f32 %v405, %v502
      %v535 = vsub.f32 %v406, %v503
      %v536 = vsub.f32 %v407, %v504
      %v537 = vsub.f32 %v408, %v505
      %v538 = vsub.f32 %v409, %v506
      %v539 = vsub.f32 %v410, %v507
      %v540 = vsub.f32 %v411, %v508
      %v541 = vsub.f32 %v412, %v509
      %v542 = vsub.f32 %v413, %v510
      %v543 = vsub.f32 %v414, %v511
      %v544 = vsub.f32 %v415, %v512
      %v545 = vsub.f32 %v416, %v513
      %v546 = vsub.f32 %v417, %v514
      %v547 = vsub.f32 %v418, %v515
      %v548 = vsub.f32 %v419, %v516
      %v549 = vsub.f32 %v420, %v517
      %v550 = vsub.f32 %v421, %v518
      %v551 = vmul.f32 %v519, %v519
      %v552 = vmul.f32 %v520, %v520
      %v553 = vmul.f32 %v521, %v521
      %v554 = vmul.f32 %v522, %v522
      %v555 = vmul.f32 %v523, %v523
      %v556 = vmul.f32 %v524, %v524
      %v557 = vmul.f32 %v525, %v525
      %v558 = vmul.f32 %v526, %v526
      %v559 = vmul.f32 %v527, %v527
      %v560 = vmul.f32 %v528, %v528
      %v561 = vmul.f32 %v529, %v529
      %v562 = vmul.f32 %v530, %v530
      %v563 = vmul.f32 %v531, %v531
      %v564 = vmul.f32 %v532, %v532
      %v565 = vmul.f32 %v533, %v533
      %v566 = vmul.f32 %v534, %v534
      %v567 = vmul.f32 %v535, %v535
      %v568 = vmul.f32 %v536, %v536
      %v569 = vmul.f32 %v537, %v537
      %v570 = vmul.f32 %v538, %v538
      %v571 = vmul.f32 %v539, %v539
      %v572 = vmul.f32 %v540, %v540
      %v573 = vmul.f32 %v541, %v541
      %v574 = vmul.f32 %v542, %v542
      %v575 = vmul.f32 %v543, %v543
      %v576 = vmul.f32 %v544, %v544
      %v577 = vmul.f32 %v545, %v545
      %v578 = vmul.f32 %v546, %v546
      %v579 = vmul.f32 %v547, %v547
      %v580 = vmul.f32 %v548, %v548
      %v581 = vmul.f32 %v549, %v549
      %v582 = vmul.f32 %v550, %v550
      %583 = vadd.xlane.f32.xlu0 %v551
      %v584 = vpop.xlane.xlu0 %583
      %585 = vadd.xlane.f32.xlu0 %v552
      %v586 = vpop.xlane.xlu0 %585
      %587 = vadd.xlane.f32.xlu0 %v553
      %v588 = vpop.xlane.xlu0 %587
      %589 = vadd.xlane.f32.xlu0 %v554
      %v590 = vpop.xlane.xlu0 %589
      %591 = vadd.xlane.f32.xlu0 %v555
      %v592 = vpop.xlane.xlu0 %591
      %593 = vadd.xlane.f32.xlu0 %v556
      %v594 = vpop.xlane.xlu0 %593
      %595 = vadd.xlane.f32.xlu0 %v557
      %v596 = vpop.xlane.xlu0 %595
      %597 = vadd.xlane.f32.xlu0 %v558
      %v598 = vpop.xlane.xlu0 %597
      %599 = vadd.xlane.f32.xlu0 %v559
      %v600 = vpop.xlane.xlu0 %599
      %601 = vadd.xlane.f32.xlu0 %v560
      %v602 = vpop.xlane.xlu0 %601
      %603 = vadd.xlane.f32.xlu0 %v561
      %v604 = vpop.xlane.xlu0 %603
      %605 = vadd.xlane.f32.xlu0 %v562
      %v606 = vpop.xlane.xlu0 %605
      %607 = vadd.xlane.f32.xlu0 %v563
      %v608 = vpop.xlane.xlu0 %607
      %609 = vadd.xlane.f32.xlu0 %v564
      %v610 = vpop.xlane.xlu0 %609
      %611 = vadd.xlane.f32.xlu0 %v565
      %v612 = vpop.xlane.xlu0 %611
      %613 = vadd.xlane.f32.xlu0 %v566
      %v614 = vpop.xlane.xlu0 %613
      %615 = vadd.xlane.f32.xlu0 %v567
      %v616 = vpop.xlane.xlu0 %615
      %617 = vadd.xlane.f32.xlu0 %v568
      %v618 = vpop.xlane.xlu0 %617
      %619 = vadd.xlane.f32.xlu0 %v569
      %v620 = vpop.xlane.xlu0 %619
      %621 = vadd.xlane.f32.xlu0 %v570
      %v622 = vpop.xlane.xlu0 %621
      %623 = vadd.xlane.f32.xlu0 %v571
      %v624 = vpop.xlane.xlu0 %623
      %625 = vadd.xlane.f32.xlu0 %v572
      %v626 = vpop.xlane.xlu0 %625
      %627 = vadd.xlane.f32.xlu0 %v573
      %v628 = vpop.xlane.xlu0 %627
      %629 = vadd.xlane.f32.xlu0 %v574
      %v630 = vpop.xlane.xlu0 %629
      %631 = vadd.xlane.f32.xlu0 %v575
      %v632 = vpop.xlane.xlu0 %631
      %633 = vadd.xlane.f32.xlu0 %v576
      %v634 = vpop.xlane.xlu0 %633
      %635 = vadd.xlane.f32.xlu0 %v577
      %v636 = vpop.xlane.xlu0 %635
      %637 = vadd.xlane.f32.xlu0 %v578
      %v638 = vpop.xlane.xlu0 %637
      %639 = vadd.xlane.f32.xlu0 %v579
      %v640 = vpop.xlane.xlu0 %639
      %641 = vadd.xlane.f32.xlu0 %v580
      %v642 = vpop.xlane.xlu0 %641
      %643 = vadd.xlane.f32.xlu0 %v581
      %v644 = vpop.xlane.xlu0 %643
      %645 = vadd.xlane.f32.xlu0 %v582
      %v646 = vpop.xlane.xlu0 %645
      %v647 = vmul.f32 %v584, %v486
      %v648 = vmul.f32 %v586, %v486
      %v649 = vmul.f32 %v588, %v486
      %v650 = vmul.f32 %v590, %v486
      %v651 = vmul.f32 %v592, %v486
      %v652 = vmul.f32 %v594, %v486
      %v653 = vmul.f32 %v596, %v486
      %v654 = vmul.f32 %v598, %v486
      %v655 = vmul.f32 %v600, %v486
      %v656 = vmul.f32 %v602, %v486
      %v657 = vmul.f32 %v604, %v486
      %v658 = vmul.f32 %v606, %v486
      %v659 = vmul.f32 %v608, %v486
      %v660 = vmul.f32 %v610, %v486
      %v661 = vmul.f32 %v612, %v486
      %v662 = vmul.f32 %v614, %v486
      %v663 = vmul.f32 %v616, %v486
      %v664 = vmul.f32 %v618, %v486
      %v665 = vmul.f32 %v620, %v486
      %v666 = vmul.f32 %v622, %v486
      %v667 = vmul.f32 %v624, %v486
      %v668 = vmul.f32 %v626, %v486
      %v669 = vmul.f32 %v628, %v486
      %v670 = vmul.f32 %v630, %v486
      %v671 = vmul.f32 %v632, %v486
      %v672 = vmul.f32 %v634, %v486
      %v673 = vmul.f32 %v636, %v486
      %v674 = vmul.f32 %v638, %v486
      %v675 = vmul.f32 %v640, %v486
      %v676 = vmul.f32 %v642, %v486
      %v677 = vmul.f32 %v644, %v486
      %v678 = vmul.f32 %v646, %v486
      %v679 = vadd.f32 %v647, 1e-05
      %v680 = vadd.f32 %v648, 1e-05
      %v681 = vadd.f32 %v649, 1e-05
      %v682 = vadd.f32 %v650, 1e-05
      %v683 = vadd.f32 %v651, 1e-05
      %v684 = vadd.f32 %v652, 1e-05
      %v685 = vadd.f32 %v653, 1e-05
      %v686 = vadd.f32 %v654, 1e-05
      %v687 = vadd.f32 %v655, 1e-05
      %v688 = vadd.f32 %v656, 1e-05
      %v689 = vadd.f32 %v657, 1e-05
      %v690 = vadd.f32 %v658, 1e-05
      %v691 = vadd.f32 %v659, 1e-05
      %v692 = vadd.f32 %v660, 1e-05
      %v693 = vadd.f32 %v661, 1e-05
      %v694 = vadd.f32 %v662, 1e-05
      %v695 = vadd.f32 %v663, 1e-05
      %v696 = vadd.f32 %v664, 1e-05
      %v697 = vadd.f32 %v665, 1e-05
      %v698 = vadd.f32 %v666, 1e-05
      %v699 = vadd.f32 %v667, 1e-05
      %v700 = vadd.f32 %v668, 1e-05
      %v701 = vadd.f32 %v669, 1e-05
      %v702 = vadd.f32 %v670, 1e-05
      %v703 = vadd.f32 %v671, 1e-05
      %v704 = vadd.f32 %v672, 1e-05
      %v705 = vadd.f32 %v673, 1e-05
      %v706 = vadd.f32 %v674, 1e-05
      %v707 = vadd.f32 %v675, 1e-05
      %v708 = vadd.f32 %v676, 1e-05
      %v709 = vadd.f32 %v677, 1e-05
      %v710 = vadd.f32 %v678, 1e-05
      %v711 = vrsqrt.pop %v679
      %v712 = vrsqrt.pop %v680
      %v713 = vrsqrt.pop %v681
      %v714 = vrsqrt.pop %v682
      %v715 = vrsqrt.pop %v683
      %v716 = vrsqrt.pop %v684
      %v717 = vrsqrt.pop %v685
      %v718 = vrsqrt.pop %v686
      %v719 = vrsqrt.pop %v687
      %v720 = vrsqrt.pop %v688
      %v721 = vrsqrt.pop %v689
      %v722 = vrsqrt.pop %v690
      %v723 = vrsqrt.pop %v691
      %v724 = vrsqrt.pop %v692
      %v725 = vrsqrt.pop %v693
      %v726 = vrsqrt.pop %v694
      %v727 = vrsqrt.pop %v695
      %v728 = vrsqrt.pop %v696
      %v729 = vrsqrt.pop %v697
      %v730 = vrsqrt.pop %v698
      %v731 = vrsqrt.pop %v699
      %v732 = vrsqrt.pop %v700
      %v733 = vrsqrt.pop %v701
      %v734 = vrsqrt.pop %v702
      %v735 = vrsqrt.pop %v703
      %v736 = vrsqrt.pop %v704
      %v737 = vrsqrt.pop %v705
      %v738 = vrsqrt.pop %v706
      %v739 = vrsqrt.pop %v707
      %v740 = vrsqrt.pop %v708
      %v741 = vrsqrt.pop %v709
      %v742 = vrsqrt.pop %v710
      %v743 = vmul.f32 %v519, %v711
      %v744 = vmul.f32 %v520, %v712
      %v745 = vmul.f32 %v521, %v713
      %v746 = vmul.f32 %v522, %v714
      %v747 = vmul.f32 %v523, %v715
      %v748 = vmul.f32 %v524, %v716
      %v749 = vmul.f32 %v525, %v717
      %v750 = vmul.f32 %v526, %v718
      %v751 = vmul.f32 %v527, %v719
      %v752 = vmul.f32 %v528, %v720
      %v753 = vmul.f32 %v529, %v721
      %v754 = vmul.f32 %v530, %v722
      %v755 = vmul.f32 %v531, %v723
      %v756 = vmul.f32 %v532, %v724
      %v757 = vmul.f32 %v533, %v725
      %v758 = vmul.f32 %v534, %v726
      %v759 = vmul.f32 %v535, %v727
      %v760 = vmul.f32 %v536, %v728
      %v761 = vmul.f32 %v537, %v729
      %v762 = vmul.f32 %v538, %v730
      %v763 = vmul.f32 %v539, %v731
      %v764 = vmul.f32 %v540, %v732
      %v765 = vmul.f32 %v541, %v733
      %v766 = vmul.f32 %v542, %v734
      %v767 = vmul.f32 %v543, %v735
      %v768 = vmul.f32 %v544, %v736
      %v769 = vmul.f32 %v545, %v737
      %v770 = vmul.f32 %v546, %v738
      %v771 = vmul.f32 %v547, %v739
      %v772 = vmul.f32 %v548, %v740
      %v773 = vmul.f32 %v549, %v741
      %v774 = vmul.f32 %v550, %v742
      %v775 = vld [vmem:[%s1] sm:$0x1]
      %v777 = vlaneseq
      %v778 = vshrl.u32 %v777, 7
      %v779 = vsub.s32 0, %v778
      %v780 = vrot.slane %v775, %v779
      %v782 = vmul.f32 %v743, %v780
      %v783 = vmul.f32 %v744, %v780
      %v784 = vmul.f32 %v745, %v780
      %v785 = vmul.f32 %v746, %v780
      %v786 = vmul.f32 %v747, %v780
      %v787 = vmul.f32 %v748, %v780
      %v788 = vmul.f32 %v749, %v780
      %v789 = vmul.f32 %v750, %v780
      %v790 = vmul.f32 %v751, %v780
      %v791 = vmul.f32 %v752, %v780
      %v792 = vmul.f32 %v753, %v780
      %v793 = vmul.f32 %v754, %v780
      %v794 = vmul.f32 %v755, %v780
      %v795 = vmul.f32 %v756, %v780
      %v796 = vmul.f32 %v757, %v780
      %v797 = vmul.f32 %v758, %v780
      %v798 = vmul.f32 %v759, %v780
      %v799 = vmul.f32 %v760, %v780
      %v800 = vmul.f32 %v761, %v780
      %v801 = vmul.f32 %v762, %v780
      %v802 = vmul.f32 %v763, %v780
      %v803 = vmul.f32 %v764, %v780
      %v804 = vmul.f32 %v765, %v780
      %v805 = vmul.f32 %v766, %v780
      %v806 = vmul.f32 %v767, %v780
      %v807 = vmul.f32 %v768, %v780
      %v808 = vmul.f32 %v769, %v780
      %v809 = vmul.f32 %v770, %v780
      %v810 = vmul.f32 %v771, %v780
      %v811 = vmul.f32 %v772, %v780
      %v812 = vmul.f32 %v773, %v780
      %v813 = vmul.f32 %v774, %v780
      %v814 = vld [vmem:[%s2] sm:$0x1]
      %v816 = vlaneseq
      %v817 = vshrl.u32 %v816, 7
      %v818 = vsub.s32 0, %v817
      %v819 = vrot.slane %v814, %v818
      %v821 = vadd.f32 %v782, %v819
      %v822 = vadd.f32 %v783, %v819
      %v823 = vadd.f32 %v784, %v819
      %v824 = vadd.f32 %v785, %v819
      %v825 = vadd.f32 %v786, %v819
      %v826 = vadd.f32 %v787, %v819
      %v827 = vadd.f32 %v788, %v819
      %v828 = vadd.f32 %v789, %v819
      %v829 = vadd.f32 %v790, %v819
      %v830 = vadd.f32 %v791, %v819
      %v831 = vadd.f32 %v792, %v819
      %v832 = vadd.f32 %v793, %v819
      %v833 = vadd.f32 %v794, %v819
      %v834 = vadd.f32 %v795, %v819
      %v835 = vadd.f32 %v796, %v819
      %v836 = vadd.f32 %v797, %v819
      %v837 = vadd.f32 %v798, %v819
      %v838 = vadd.f32 %v799, %v819
      %v839 = vadd.f32 %v800, %v819
      %v840 = vadd.f32 %v801, %v819
      %v841 = vadd.f32 %v802, %v819
      %v842 = vadd.f32 %v803, %v819
      %v843 = vadd.f32 %v804, %v819
      %v844 = vadd.f32 %v805, %v819
      %v845 = vadd.f32 %v806, %v819
      %v846 = vadd.f32 %v807, %v819
      %v847 = vadd.f32 %v808, %v819
      %v848 = vadd.f32 %v809, %v819
      %v849 = vadd.f32 %v810, %v819
      %v850 = vadd.f32 %v811, %v819
      %v851 = vadd.f32 %v812, %v819
      %v852 = vadd.f32 %v813, %v819
      %v853 = vpack.c.bf16 %v822, %v821
      %v854 = vpack.c.bf16 %v824, %v823
      %v855 = vpack.c.bf16 %v826, %v825
      %v856 = vpack.c.bf16 %v828, %v827
      %v857 = vpack.c.bf16 %v830, %v829
      %v858 = vpack.c.bf16 %v832, %v831
      %v859 = vpack.c.bf16 %v834, %v833
      %v860 = vpack.c.bf16 %v836, %v835
      %v861 = vpack.c.bf16 %v838, %v837
      %v862 = vpack.c.bf16 %v840, %v839
      %v863 = vpack.c.bf16 %v842, %v841
      %v864 = vpack.c.bf16 %v844, %v843
      %v865 = vpack.c.bf16 %v846, %v845
      %v866 = vpack.c.bf16 %v848, %v847
      %v867 = vpack.c.bf16 %v850, %v849
      %v868 = vpack.c.bf16 %v852, %v851
      %v869 = vld [vmem:[%s359] sm:$0xff]
      %v870 = vld [vmem:[%s359 + $0x8] sm:$0xff]
      %v871 = vld [vmem:[%s359 + $0x10] sm:$0xff]
      %v872 = vld [vmem:[%s359 + $0x18] sm:$0xff]
      %v873 = vld [vmem:[%s359 + $0x20] sm:$0xff]
      %v874 = vld [vmem:[%s359 + $0x28] sm:$0xff]
      %v875 = vld [vmem:[%s359 + $0x30] sm:$0xff]
      %v876 = vld [vmem:[%s359 + $0x38] sm:$0xff]
      %v877 = vld [vmem:[%s359 + $0x40] sm:$0xff]
      %v878 = vld [vmem:[%s359 + $0x48] sm:$0xff]
      %v879 = vld [vmem:[%s359 + $0x50] sm:$0xff]
      %v880 = vld [vmem:[%s359 + $0x58] sm:$0xff]
      %v881 = vld [vmem:[%s359 + $0x60] sm:$0xff]
      %v882 = vld [vmem:[%s359 + $0x68] sm:$0xff]
      %v883 = vld [vmem:[%s359 + $0x70] sm:$0xff]
      %v884 = vld [vmem:[%s359 + $0x78] sm:$0xff]
      %v885 = vld [vmem:[%s370] sm:$0x3]
      %v887 = vlaneseq
      %v888 = vshrl.u32 %v887, 7
      %v889 = vsub.s32 0, %v888
      %v890 = vrot.slane %v885, %v889
      %v891 = vlaneseq
      %v892 = vshrl.u32 %v891, 7
      %v893 = vsub.s32 1, %v892
      %v894 = vrot.slane %v885, %v893
      %v913 = vunpack.c.l.b16 %v869
      %v914 = vunpack.c.h.b16 %v869
      %v915 = vunpack.c.l.b16 %v870
      %v916 = vunpack.c.h.b16 %v870
      %v917 = vunpack.c.l.b16 %v871
      %v918 = vunpack.c.h.b16 %v871
      %v919 = vunpack.c.l.b16 %v872
      %v920 = vunpack.c.h.b16 %v872
      %v921 = vunpack.c.l.b16 %v873
      %v922 = vunpack.c.h.b16 %v873
      %v923 = vunpack.c.l.b16 %v874
      %v924 = vunpack.c.h.b16 %v874
      %v925 = vunpack.c.l.b16 %v875
      %v926 = vunpack.c.h.b16 %v875
      %v927 = vunpack.c.l.b16 %v876
      %v928 = vunpack.c.h.b16 %v876
      %v929 = vunpack.c.l.b16 %v877
      %v930 = vunpack.c.h.b16 %v877
      %v931 = vunpack.c.l.b16 %v878
      %v932 = vunpack.c.h.b16 %v878
      %v933 = vunpack.c.l.b16 %v879
      %v934 = vunpack.c.h.b16 %v879
      %v935 = vunpack.c.l.b16 %v880
      %v936 = vunpack.c.h.b16 %v880
      %v937 = vunpack.c.l.b16 %v881
      %v938 = vunpack.c.h.b16 %v881
      %v939 = vunpack.c.l.b16 %v882
      %v940 = vunpack.c.h.b16 %v882
      %v941 = vunpack.c.l.b16 %v883
      %v942 = vunpack.c.h.b16 %v883
      %v943 = vunpack.c.l.b16 %v884
      %v944 = vunpack.c.h.b16 %v884
      %v945 = vpack.c.b16 %v915, %v913
      %v946 = vpack.c.b16 %v916, %v914
      %v947 = vpack.c.b16 %v919, %v917
      %v948 = vpack.c.b16 %v920, %v918
      %v949 = vpack.c.b16 %v923, %v921
      %v950 = vpack.c.b16 %v924, %v922
      %v951 = vpack.c.b16 %v927, %v925
      %v952 = vpack.c.b16 %v928, %v926
      %v953 = vpack.c.b16 %v931, %v929
      %v954 = vpack.c.b16 %v932, %v930
      %v955 = vpack.c.b16 %v935, %v933
      %v956 = vpack.c.b16 %v936, %v934
      %v957 = vpack.c.b16 %v939, %v937
      %v958 = vpack.c.b16 %v940, %v938
      %v959 = vpack.c.b16 %v943, %v941
      %v960 = vpack.c.b16 %v944, %v942
      %977 = vmatprep.subr.bf16.mxu0 %v960
      %978 = vmatpush1.bf16.msra.mxu0 %v959
      %979 = vmatprep.subr.bf16.mxu0 %v958
      %980 = vmatpush1.bf16.msra.mxu0 %v957
      %981 = vmatprep.subr.bf16.mxu0 %v956
      %982 = vmatpush1.bf16.msra.mxu0 %v955
      %983 = vmatprep.subr.bf16.mxu0 %v954
      %984 = vmatpush1.bf16.msra.mxu0 %v953
      %985 = vmatprep.subr.bf16.mxu0 %v952
      %986 = vmatpush1.bf16.msra.mxu0 %v951
      %987 = vmatprep.subr.bf16.mxu0 %v950
      %988 = vmatpush1.bf16.msra.mxu0 %v949
      %989 = vmatprep.subr.bf16.mxu0 %v948
      %990 = vmatpush1.bf16.msra.mxu0 %v947
      %991 = vmatprep.subr.bf16.mxu0 %v946
      %992 = vmatpush1.bf16.msra.mxu0 %v945
      %993 = vmatprep.subr.bf16.mxu0 0
      %994 = vmatpush2.bf16.msra.mxu0 0
      %995 = vmatprep.subr.bf16.mxu0 0
      %996 = vmatpush2.bf16.msra.mxu0 0
      %997 = vmatprep.subr.bf16.mxu0 0
      %998 = vmatpush2.bf16.msra.mxu0 0
      %999 = vmatprep.subr.bf16.mxu0 0
      %1000 = vmatpush2.bf16.msra.mxu0 0
      %1001 = vmatprep.subr.bf16.mxu0 0
      %1002 = vmatpush2.bf16.msra.mxu0 0
      %1003 = vmatprep.subr.bf16.mxu0 0
      %1004 = vmatpush2.bf16.msra.mxu0 0
      %1005 = vmatprep.subr.bf16.mxu0 0
      %1006 = vmatpush2.bf16.msra.mxu0 0
      %1007 = vmatprep.subr.bf16.mxu0 0
      %1008 = vmatpush2.bf16.msra.mxu0 0
      %1009 = vmatprep.mubr.bf16.mxu0 0
      %1010 = vmatmul.mubr.bf16.gmra.mxu0 %v853
      %v1011 = vpop.f32.mrf.mxu0
      %v1012 = vadd.f32 %v890, %v1011
      %v1013 = vpop.f32.mrf.mxu0
      %v1014 = vadd.f32 %v894, %v1013
      %v1015 = vpop.f32.mrf.mxu0
      %v1016 = vadd.f32 %v890, %v1015
      %v1017 = vpop.f32.mrf.mxu0
      %v1018 = vadd.f32 %v894, %v1017
      %1019 = vmatprep.mubr.bf16.mxu0 0
      %1020 = vmatmul.mubr.bf16.gmra.mxu0 %v854
      %v1021 = vpop.f32.mrf.mxu0
      %v1022 = vadd.f32 %v890, %v1021
      %v1023 = vpop.f32.mrf.mxu0
      %v1024 = vadd.f32 %v894, %v1023
      %v1025 = vpop.f32.mrf.mxu0
      %v1026 = vadd.f32 %v890, %v1025
      %v1027 = vpop.f32.mrf.mxu0
      %v1028 = vadd.f32 %v894, %v1027
      %1029 = vmatprep.mubr.bf16.mxu0 0
      %1030 = vmatmul.mubr.bf16.gmra.mxu0 %v855
      %v1031 = vpop.f32.mrf.mxu0
      %v1032 = vadd.f32 %v890, %v1031
      %v1033 = vpop.f32.mrf.mxu0
      %v1034 = vadd.f32 %v894, %v1033
      %v1035 = vpop.f32.mrf.mxu0
      %v1036 = vadd.f32 %v890, %v1035
      %v1037 = vpop.f32.mrf.mxu0
      %v1038 = vadd.f32 %v894, %v1037
      %1039 = vmatprep.mubr.bf16.mxu0 0
      %1040 = vmatmul.mubr.bf16.gmra.mxu0 %v856
      %v1041 = vpop.f32.mrf.mxu0
      %v1042 = vadd.f32 %v890, %v1041
      %v1043 = vpop.f32.mrf.mxu0
      %v1044 = vadd.f32 %v894, %v1043
      %v1045 = vpop.f32.mrf.mxu0
      %v1046 = vadd.f32 %v890, %v1045
      %v1047 = vpop.f32.mrf.mxu0
      %v1048 = vadd.f32 %v894, %v1047
      %1049 = vmatprep.mubr.bf16.mxu0 0
      %1050 = vmatmul.mubr.bf16.gmra.mxu0 %v857
      %v1051 = vpop.f32.mrf.mxu0
      %v1052 = vadd.f32 %v890, %v1051
      %v1053 = vpop.f32.mrf.mxu0
      %v1054 = vadd.f32 %v894, %v1053
      %v1055 = vpop.f32.mrf.mxu0
      %v1056 = vadd.f32 %v890, %v1055
      %v1057 = vpop.f32.mrf.mxu0
      %v1058 = vadd.f32 %v894, %v1057
      %1059 = vmatprep.mubr.bf16.mxu0 0
      %1060 = vmatmul.mubr.bf16.gmra.mxu0 %v858
      %v1061 = vpop.f32.mrf.mxu0
      %v1062 = vadd.f32 %v890, %v1061
      %v1063 = vpop.f32.mrf.mxu0
      %v1064 = vadd.f32 %v894, %v1063
      %v1065 = vpop.f32.mrf.mxu0
      %v1066 = vadd.f32 %v890, %v1065
      %v1067 = vpop.f32.mrf.mxu0
      %v1068 = vadd.f32 %v894, %v1067
      %1069 = vmatprep.mubr.bf16.mxu0 0
      %1070 = vmatmul.mubr.bf16.gmra.mxu0 %v859
      %v1071 = vpop.f32.mrf.mxu0
      %v1072 = vadd.f32 %v890, %v1071
      %v1073 = vpop.f32.mrf.mxu0
      %v1074 = vadd.f32 %v894, %v1073
      %v1075 = vpop.f32.mrf.mxu0
      %v1076 = vadd.f32 %v890, %v1075
      %v1077 = vpop.f32.mrf.mxu0
      %v1078 = vadd.f32 %v894, %v1077
      %1079 = vmatprep.mubr.bf16.mxu0 0
      %1080 = vmatmul.mubr.bf16.gmra.mxu0 %v860
      %v1081 = vpop.f32.mrf.mxu0
      %v1082 = vadd.f32 %v890, %v1081
      %v1083 = vpop.f32.mrf.mxu0
      %v1084 = vadd.f32 %v894, %v1083
      %v1085 = vpop.f32.mrf.mxu0
      %v1086 = vadd.f32 %v890, %v1085
      %v1087 = vpop.f32.mrf.mxu0
      %v1088 = vadd.f32 %v894, %v1087
      %1089 = vmatprep.mubr.bf16.mxu0 0
      %1090 = vmatmul.mubr.bf16.gmra.mxu0 %v861
      %v1091 = vpop.f32.mrf.mxu0
      %v1092 = vadd.f32 %v890, %v1091
      %v1093 = vpop.f32.mrf.mxu0
      %v1094 = vadd.f32 %v894, %v1093
      %v1095 = vpop.f32.mrf.mxu0
      %v1096 = vadd.f32 %v890, %v1095
      %v1097 = vpop.f32.mrf.mxu0
      %v1098 = vadd.f32 %v894, %v1097
      %1099 = vmatprep.mubr.bf16.mxu0 0
      %1100 = vmatmul.mubr.bf16.gmra.mxu0 %v862
      %v1101 = vpop.f32.mrf.mxu0
      %v1102 = vadd.f32 %v890, %v1101
      %v1103 = vpop.f32.mrf.mxu0
      %v1104 = vadd.f32 %v894, %v1103
      %v1105 = vpop.f32.mrf.mxu0
      %v1106 = vadd.f32 %v890, %v1105
      %v1107 = vpop.f32.mrf.mxu0
      %v1108 = vadd.f32 %v894, %v1107
      %1109 = vmatprep.mubr.bf16.mxu0 0
      %1110 = vmatmul.mubr.bf16.gmra.mxu0 %v863
      %v1111 = vpop.f32.mrf.mxu0
      %v1112 = vadd.f32 %v890, %v1111
      %v1113 = vpop.f32.mrf.mxu0
      %v1114 = vadd.f32 %v894, %v1113
      %v1115 = vpop.f32.mrf.mxu0
      %v1116 = vadd.f32 %v890, %v1115
      %v1117 = vpop.f32.mrf.mxu0
      %v1118 = vadd.f32 %v894, %v1117
      %1119 = vmatprep.mubr.bf16.mxu0 0
      %1120 = vmatmul.mubr.bf16.gmra.mxu0 %v864
      %v1121 = vpop.f32.mrf.mxu0
      %v1122 = vadd.f32 %v890, %v1121
      %v1123 = vpop.f32.mrf.mxu0
      %v1124 = vadd.f32 %v894, %v1123
      %v1125 = vpop.f32.mrf.mxu0
      %v1126 = vadd.f32 %v890, %v1125
      %v1127 = vpop.f32.mrf.mxu0
      %v1128 = vadd.f32 %v894, %v1127
      %1129 = vmatprep.mubr.bf16.mxu0 0
      %1130 = vmatmul.mubr.bf16.gmra.mxu0 %v865
      %v1131 = vpop.f32.mrf.mxu0
      %v1132 = vadd.f32 %v890, %v1131
      %v1133 = vpop.f32.mrf.mxu0
      %v1134 = vadd.f32 %v894, %v1133
      %v1135 = vpop.f32.mrf.mxu0
      %v1136 = vadd.f32 %v890, %v1135
      %v1137 = vpop.f32.mrf.mxu0
      %v1138 = vadd.f32 %v894, %v1137
      %1139 = vmatprep.mubr.bf16.mxu0 0
      %1140 = vmatmul.mubr.bf16.gmra.mxu0 %v866
      %v1141 = vpop.f32.mrf.mxu0
      %v1142 = vadd.f32 %v890, %v1141
      %v1143 = vpop.f32.mrf.mxu0
      %v1144 = vadd.f32 %v894, %v1143
      %v1145 = vpop.f32.mrf.mxu0
      %v1146 = vadd.f32 %v890, %v1145
      %v1147 = vpop.f32.mrf.mxu0
      %v1148 = vadd.f32 %v894, %v1147
      %1149 = vmatprep.mubr.bf16.mxu0 0
      %1150 = vmatmul.mubr.bf16.gmra.mxu0 %v867
      %v1151 = vpop.f32.mrf.mxu0
      %v1152 = vadd.f32 %v890, %v1151
      %v1153 = vpop.f32.mrf.mxu0
      %v1154 = vadd.f32 %v894, %v1153
      %v1155 = vpop.f32.mrf.mxu0
      %v1156 = vadd.f32 %v890, %v1155
      %v1157 = vpop.f32.mrf.mxu0
      %v1158 = vadd.f32 %v894, %v1157
      %1159 = vmatprep.mubr.bf16.mxu0 0
      %1160 = vmatmul.mubr.bf16.gmra.mxu0 %v868
      %v1161 = vpop.f32.mrf.mxu0
      %v1162 = vadd.f32 %v890, %v1161
      %v1163 = vpop.f32.mrf.mxu0
      %v1164 = vadd.f32 %v894, %v1163
      %v1165 = vpop.f32.mrf.mxu0
      %v1166 = vadd.f32 %v890, %v1165
      %v1167 = vpop.f32.mrf.mxu0
      %v1168 = vadd.f32 %v894, %v1167
      %1169 = vdwg.mxu0
      %v1170 = vld [vmem:[%s365] sm:$0xff]
      %v1171 = vld [vmem:[%s365 + $0x8] sm:$0xff]
      %v1172 = vld [vmem:[%s365 + $0x10] sm:$0xff]
      %v1173 = vld [vmem:[%s365 + $0x18] sm:$0xff]
      %v1174 = vld [vmem:[%s365 + $0x20] sm:$0xff]
      %v1175 = vld [vmem:[%s365 + $0x28] sm:$0xff]
      %v1176 = vld [vmem:[%s365 + $0x30] sm:$0xff]
      %v1177 = vld [vmem:[%s365 + $0x38] sm:$0xff]
      %v1178 = vld [vmem:[%s365 + $0x40] sm:$0xff]
      %v1179 = vld [vmem:[%s365 + $0x48] sm:$0xff]
      %v1180 = vld [vmem:[%s365 + $0x50] sm:$0xff]
      %v1181 = vld [vmem:[%s365 + $0x58] sm:$0xff]
      %v1182 = vld [vmem:[%s365 + $0x60] sm:$0xff]
      %v1183 = vld [vmem:[%s365 + $0x68] sm:$0xff]
      %v1184 = vld [vmem:[%s365 + $0x70] sm:$0xff]
      %v1185 = vld [vmem:[%s365 + $0x78] sm:$0xff]
      %v1186 = vld [vmem:[%s375] sm:$0x3]
      %v1188 = vlaneseq
      %v1189 = vshrl.u32 %v1188, 7
      %v1190 = vsub.s32 0, %v1189
      %v1191 = vrot.slane %v1186, %v1190
      %v1192 = vlaneseq
      %v1193 = vshrl.u32 %v1192, 7
      %v1194 = vsub.s32 1, %v1193
      %v1195 = vrot.slane %v1186, %v1194
      %v1214 = vunpack.c.l.b16 %v1170
      %v1215 = vunpack.c.h.b16 %v1170
      %v1216 = vunpack.c.l.b16 %v1171
      %v1217 = vunpack.c.h.b16 %v1171
      %v1218 = vunpack.c.l.b16 %v1172
      %v1219 = vunpack.c.h.b16 %v1172
      %v1220 = vunpack.c.l.b16 %v1173
      %v1221 = vunpack.c.h.b16 %v1173
      %v1222 = vunpack.c.l.b16 %v1174
      %v1223 = vunpack.c.h.b16 %v1174
      %v1224 = vunpack.c.l.b16 %v1175
      %v1225 = vunpack.c.h.b16 %v1175
      %v1226 = vunpack.c.l.b16 %v1176
      %v1227 = vunpack.c.h.b16 %v1176
      %v1228 = vunpack.c.l.b16 %v1177
      %v1229 = vunpack.c.h.b16 %v1177
      %v1230 = vunpack.c.l.b16 %v1178
      %v1231 = vunpack.c.h.b16 %v1178
      %v1232 = vunpack.c.l.b16 %v1179
      %v1233 = vunpack.c.h.b16 %v1179
      %v1234 = vunpack.c.l.b16 %v1180
      %v1235 = vunpack.c.h.b16 %v1180
      %v1236 = vunpack.c.l.b16 %v1181
      %v1237 = vunpack.c.h.b16 %v1181
      %v1238 = vunpack.c.l.b16 %v1182
      %v1239 = vunpack.c.h.b16 %v1182
      %v1240 = vunpack.c.l.b16 %v1183
      %v1241 = vunpack.c.h.b16 %v1183
      %v1242 = vunpack.c.l.b16 %v1184
      %v1243 = vunpack.c.h.b16 %v1184
      %v1244 = vunpack.c.l.b16 %v1185
      %v1245 = vunpack.c.h.b16 %v1185
      %v1246 = vpack.c.b16 %v1216, %v1214
      %v1247 = vpack.c.b16 %v1217, %v1215
      %v1248 = vpack.c.b16 %v1220, %v1218
      %v1249 = vpack.c.b16 %v1221, %v1219
      %v1250 = vpack.c.b16 %v1224, %v1222
      %v1251 = vpack.c.b16 %v1225, %v1223
      %v1252 = vpack.c.b16 %v1228, %v1226
      %v1253 = vpack.c.b16 %v1229, %v1227
      %v1254 = vpack.c.b16 %v1232, %v1230
      %v1255 = vpack.c.b16 %v1233, %v1231
      %v1256 = vpack.c.b16 %v1236, %v1234
      %v1257 = vpack.c.b16 %v1237, %v1235
      %v1258 = vpack.c.b16 %v1240, %v1238
      %v1259 = vpack.c.b16 %v1241, %v1239
      %v1260 = vpack.c.b16 %v1244, %v1242
      %v1261 = vpack.c.b16 %v1245, %v1243
      %1278 = vmatprep.subr.bf16.mxu0 %v1261
      %1279 = vmatpush1.bf16.msra.mxu0 %v1260
      %1280 = vmatprep.subr.bf16.mxu0 %v1259
      %1281 = vmatpush1.bf16.msra.mxu0 %v1258
      %1282 = vmatprep.subr.bf16.mxu0 %v1257
      %1283 = vmatpush1.bf16.msra.mxu0 %v1256
      %1284 = vmatprep.subr.bf16.mxu0 %v1255
      %1285 = vmatpush1.bf16.msra.mxu0 %v1254
      %1286 = vmatprep.subr.bf16.mxu0 %v1253
      %1287 = vmatpush1.bf16.msra.mxu0 %v1252
      %1288 = vmatprep.subr.bf16.mxu0 %v1251
      %1289 = vmatpush1.bf16.msra.mxu0 %v1250
      %1290 = vmatprep.subr.bf16.mxu0 %v1249
      %1291 = vmatpush1.bf16.msra.mxu0 %v1248
      %1292 = vmatprep.subr.bf16.mxu0 %v1247
      %1293 = vmatpush1.bf16.msra.mxu0 %v1246
      %1294 = vmatprep.subr.bf16.mxu0 0
      %1295 = vmatpush2.bf16.msra.mxu0 0
      %1296 = vmatprep.subr.bf16.mxu0 0
      %1297 = vmatpush2.bf16.msra.mxu0 0
      %1298 = vmatprep.subr.bf16.mxu0 0
      %1299 = vmatpush2.bf16.msra.mxu0 0
      %1300 = vmatprep.subr.bf16.mxu0 0
      %1301 = vmatpush2.bf16.msra.mxu0 0
      %1302 = vmatprep.subr.bf16.mxu0 0
      %1303 = vmatpush2.bf16.msra.mxu0 0
      %1304 = vmatprep.subr.bf16.mxu0 0
      %1305 = vmatpush2.bf16.msra.mxu0 0
      %1306 = vmatprep.subr.bf16.mxu0 0
      %1307 = vmatpush2.bf16.msra.mxu0 0
      %1308 = vmatprep.subr.bf16.mxu0 0
      %1309 = vmatpush2.bf16.msra.mxu0 0
      %1310 = vmatprep.mubr.bf16.mxu0 0
      %1311 = vmatmul.mubr.bf16.gmra.mxu0 %v853
      %v1312 = vpop.f32.mrf.mxu0
      %v1313 = vadd.f32 %v1191, %v1312
      %v1314 = vpop.f32.mrf.mxu0
      %v1315 = vadd.f32 %v1195, %v1314
      %v1316 = vpop.f32.mrf.mxu0
      %v1317 = vadd.f32 %v1191, %v1316
      %v1318 = vpop.f32.mrf.mxu0
      %v1319 = vadd.f32 %v1195, %v1318
      %1320 = vmatprep.mubr.bf16.mxu0 0
      %1321 = vmatmul.mubr.bf16.gmra.mxu0 %v854
      %v1322 = vpop.f32.mrf.mxu0
      %v1323 = vadd.f32 %v1191, %v1322
      %v1324 = vpop.f32.mrf.mxu0
      %v1325 = vadd.f32 %v1195, %v1324
      %v1326 = vpop.f32.mrf.mxu0
      %v1327 = vadd.f32 %v1191, %v1326
      %v1328 = vpop.f32.mrf.mxu0
      %v1329 = vadd.f32 %v1195, %v1328
      %1330 = vmatprep.mubr.bf16.mxu0 0
      %1331 = vmatmul.mubr.bf16.gmra.mxu0 %v855
      %v1332 = vpop.f32.mrf.mxu0
      %v1333 = vadd.f32 %v1191, %v1332
      %v1334 = vpop.f32.mrf.mxu0
      %v1335 = vadd.f32 %v1195, %v1334
      %v1336 = vpop.f32.mrf.mxu0
      %v1337 = vadd.f32 %v1191, %v1336
      %v1338 = vpop.f32.mrf.mxu0
      %v1339 = vadd.f32 %v1195, %v1338
      %1340 = vmatprep.mubr.bf16.mxu0 0
      %1341 = vmatmul.mubr.bf16.gmra.mxu0 %v856
      %v1342 = vpop.f32.mrf.mxu0
      %v1343 = vadd.f32 %v1191, %v1342
      %v1344 = vpop.f32.mrf.mxu0
      %v1345 = vadd.f32 %v1195, %v1344
      %v1346 = vpop.f32.mrf.mxu0
      %v1347 = vadd.f32 %v1191, %v1346
      %v1348 = vpop.f32.mrf.mxu0
      %v1349 = vadd.f32 %v1195, %v1348
      %1350 = vmatprep.mubr.bf16.mxu0 0
      %1351 = vmatmul.mubr.bf16.gmra.mxu0 %v857
      %v1352 = vpop.f32.mrf.mxu0
      %v1353 = vadd.f32 %v1191, %v1352
      %v1354 = vpop.f32.mrf.mxu0
      %v1355 = vadd.f32 %v1195, %v1354
      %v1356 = vpop.f32.mrf.mxu0
      %v1357 = vadd.f32 %v1191, %v1356
      %v1358 = vpop.f32.mrf.mxu0
      %v1359 = vadd.f32 %v1195, %v1358
      %1360 = vmatprep.mubr.bf16.mxu0 0
      %1361 = vmatmul.mubr.bf16.gmra.mxu0 %v858
      %v1362 = vpop.f32.mrf.mxu0
      %v1363 = vadd.f32 %v1191, %v1362
      %v1364 = vpop.f32.mrf.mxu0
      %v1365 = vadd.f32 %v1195, %v1364
      %v1366 = vpop.f32.mrf.mxu0
      %v1367 = vadd.f32 %v1191, %v1366
      %v1368 = vpop.f32.mrf.mxu0
      %v1369 = vadd.f32 %v1195, %v1368
      %1370 = vmatprep.mubr.bf16.mxu0 0
      %1371 = vmatmul.mubr.bf16.gmra.mxu0 %v859
      %v1372 = vpop.f32.mrf.mxu0
      %v1373 = vadd.f32 %v1191, %v1372
      %v1374 = vpop.f32.mrf.mxu0
      %v1375 = vadd.f32 %v1195, %v1374
      %v1376 = vpop.f32.mrf.mxu0
      %v1377 = vadd.f32 %v1191, %v1376
      %v1378 = vpop.f32.mrf.mxu0
      %v1379 = vadd.f32 %v1195, %v1378
      %1380 = vmatprep.mubr.bf16.mxu0 0
      %1381 = vmatmul.mubr.bf16.gmra.mxu0 %v860
      %v1382 = vpop.f32.mrf.mxu0
      %v1383 = vadd.f32 %v1191, %v1382
      %v1384 = vpop.f32.mrf.mxu0
      %v1385 = vadd.f32 %v1195, %v1384
      %v1386 = vpop.f32.mrf.mxu0
      %v1387 = vadd.f32 %v1191, %v1386
      %v1388 = vpop.f32.mrf.mxu0
      %v1389 = vadd.f32 %v1195, %v1388
      %1390 = vmatprep.mubr.bf16.mxu0 0
      %1391 = vmatmul.mubr.bf16.gmra.mxu0 %v861
      %v1392 = vpop.f32.mrf.mxu0
      %v1393 = vadd.f32 %v1191, %v1392
      %v1394 = vpop.f32.mrf.mxu0
      %v1395 = vadd.f32 %v1195, %v1394
      %v1396 = vpop.f32.mrf.mxu0
      %v1397 = vadd.f32 %v1191, %v1396
      %v1398 = vpop.f32.mrf.mxu0
      %v1399 = vadd.f32 %v1195, %v1398
      %1400 = vmatprep.mubr.bf16.mxu0 0
      %1401 = vmatmul.mubr.bf16.gmra.mxu0 %v862
      %v1402 = vpop.f32.mrf.mxu0
      %v1403 = vadd.f32 %v1191, %v1402
      %v1404 = vpop.f32.mrf.mxu0
      %v1405 = vadd.f32 %v1195, %v1404
      %v1406 = vpop.f32.mrf.mxu0
      %v1407 = vadd.f32 %v1191, %v1406
      %v1408 = vpop.f32.mrf.mxu0
      %v1409 = vadd.f32 %v1195, %v1408
      %1410 = vmatprep.mubr.bf16.mxu0 0
      %1411 = vmatmul.mubr.bf16.gmra.mxu0 %v863
      %v1412 = vpop.f32.mrf.mxu0
      %v1413 = vadd.f32 %v1191, %v1412
      %v1414 = vpop.f32.mrf.mxu0
      %v1415 = vadd.f32 %v1195, %v1414
      %v1416 = vpop.f32.mrf.mxu0
      %v1417 = vadd.f32 %v1191, %v1416
      %v1418 = vpop.f32.mrf.mxu0
      %v1419 = vadd.f32 %v1195, %v1418
      %1420 = vmatprep.mubr.bf16.mxu0 0
      %1421 = vmatmul.mubr.bf16.gmra.mxu0 %v864
      %v1422 = vpop.f32.mrf.mxu0
      %v1423 = vadd.f32 %v1191, %v1422
      %v1424 = vpop.f32.mrf.mxu0
      %v1425 = vadd.f32 %v1195, %v1424
      %v1426 = vpop.f32.mrf.mxu0
      %v1427 = vadd.f32 %v1191, %v1426
      %v1428 = vpop.f32.mrf.mxu0
      %v1429 = vadd.f32 %v1195, %v1428
      %1430 = vmatprep.mubr.bf16.mxu0 0
      %1431 = vmatmul.mubr.bf16.gmra.mxu0 %v865
      %v1432 = vpop.f32.mrf.mxu0
      %v1433 = vadd.f32 %v1191, %v1432
      %v1434 = vpop.f32.mrf.mxu0
      %v1435 = vadd.f32 %v1195, %v1434
      %v1436 = vpop.f32.mrf.mxu0
      %v1437 = vadd.f32 %v1191, %v1436
      %v1438 = vpop.f32.mrf.mxu0
      %v1439 = vadd.f32 %v1195, %v1438
      %1440 = vmatprep.mubr.bf16.mxu0 0
      %1441 = vmatmul.mubr.bf16.gmra.mxu0 %v866
      %v1442 = vpop.f32.mrf.mxu0
      %v1443 = vadd.f32 %v1191, %v1442
      %v1444 = vpop.f32.mrf.mxu0
      %v1445 = vadd.f32 %v1195, %v1444
      %v1446 = vpop.f32.mrf.mxu0
      %v1447 = vadd.f32 %v1191, %v1446
      %v1448 = vpop.f32.mrf.mxu0
      %v1449 = vadd.f32 %v1195, %v1448
      %1450 = vmatprep.mubr.bf16.mxu0 0
      %1451 = vmatmul.mubr.bf16.gmra.mxu0 %v867
      %v1452 = vpop.f32.mrf.mxu0
      %v1453 = vadd.f32 %v1191, %v1452
      %v1454 = vpop.f32.mrf.mxu0
      %v1455 = vadd.f32 %v1195, %v1454
      %v1456 = vpop.f32.mrf.mxu0
      %v1457 = vadd.f32 %v1191, %v1456
      %v1458 = vpop.f32.mrf.mxu0
      %v1459 = vadd.f32 %v1195, %v1458
      %1460 = vmatprep.mubr.bf16.mxu0 0
      %1461 = vmatmul.mubr.bf16.gmra.mxu0 %v868
      %v1462 = vpop.f32.mrf.mxu0
      %v1463 = vadd.f32 %v1191, %v1462
      %v1464 = vpop.f32.mrf.mxu0
      %v1465 = vadd.f32 %v1195, %v1464
      %v1466 = vpop.f32.mrf.mxu0
      %v1467 = vadd.f32 %v1191, %v1466
      %v1468 = vpop.f32.mrf.mxu0
      %v1469 = vadd.f32 %v1195, %v1468
      %1470 = vdwg.mxu0
      %v1471 = vmul.f32 %v1313, %v1313
      %v1472 = vmul.f32 %v1315, %v1315
      %v1473 = vmul.f32 %v1317, %v1317
      %v1474 = vmul.f32 %v1319, %v1319
      %v1475 = vmul.f32 %v1323, %v1323
      %v1476 = vmul.f32 %v1325, %v1325
      %v1477 = vmul.f32 %v1327, %v1327
      %v1478 = vmul.f32 %v1329, %v1329
      %v1479 = vmul.f32 %v1333, %v1333
      %v1480 = vmul.f32 %v1335, %v1335
      %v1481 = vmul.f32 %v1337, %v1337
      %v1482 = vmul.f32 %v1339, %v1339
      %v1483 = vmul.f32 %v1343, %v1343
      %v1484 = vmul.f32 %v1345, %v1345
      %v1485 = vmul.f32 %v1347, %v1347
      %v1486 = vmul.f32 %v1349, %v1349
      %v1487 = vmul.f32 %v1353, %v1353
      %v1488 = vmul.f32 %v1355, %v1355
      %v1489 = vmul.f32 %v1357, %v1357
      %v1490 = vmul.f32 %v1359, %v1359
      %v1491 = vmul.f32 %v1363, %v1363
      %v1492 = vmul.f32 %v1365, %v1365
      %v1493 = vmul.f32 %v1367, %v1367
      %v1494 = vmul.f32 %v1369, %v1369
      %v1495 = vmul.f32 %v1373, %v1373
      %v1496 = vmul.f32 %v1375, %v1375
      %v1497 = vmul.f32 %v1377, %v1377
      %v1498 = vmul.f32 %v1379, %v1379
      %v1499 = vmul.f32 %v1383, %v1383
      %v1500 = vmul.f32 %v1385, %v1385
      %v1501 = vmul.f32 %v1387, %v1387
      %v1502 = vmul.f32 %v1389, %v1389
      %v1503 = vmul.f32 %v1393, %v1393
      %v1504 = vmul.f32 %v1395, %v1395
      %v1505 = vmul.f32 %v1397, %v1397
      %v1506 = vmul.f32 %v1399, %v1399
      %v1507 = vmul.f32 %v1403, %v1403
      %v1508 = vmul.f32 %v1405, %v1405
      %v1509 = vmul.f32 %v1407, %v1407
      %v1510 = vmul.f32 %v1409, %v1409
      %v1511 = vmul.f32 %v1413, %v1413
      %v1512 = vmul.f32 %v1415, %v1415
      %v1513 = vmul.f32 %v1417, %v1417
      %v1514 = vmul.f32 %v1419, %v1419
      %v1515 = vmul.f32 %v1423, %v1423
      %v1516 = vmul.f32 %v1425, %v1425
      %v1517 = vmul.f32 %v1427, %v1427
      %v1518 = vmul.f32 %v1429, %v1429
      %v1519 = vmul.f32 %v1433, %v1433
      %v1520 = vmul.f32 %v1435, %v1435
      %v1521 = vmul.f32 %v1437, %v1437
      %v1522 = vmul.f32 %v1439, %v1439
      %v1523 = vmul.f32 %v1443, %v1443
      %v1524 = vmul.f32 %v1445, %v1445
      %v1525 = vmul.f32 %v1447, %v1447
      %v1526 = vmul.f32 %v1449, %v1449
      %v1527 = vmul.f32 %v1453, %v1453
      %v1528 = vmul.f32 %v1455, %v1455
      %v1529 = vmul.f32 %v1457, %v1457
      %v1530 = vmul.f32 %v1459, %v1459
      %v1531 = vmul.f32 %v1463, %v1463
      %v1532 = vmul.f32 %v1465, %v1465
      %v1533 = vmul.f32 %v1467, %v1467
      %v1534 = vmul.f32 %v1469, %v1469
      %v1535 = vmul.f32 %v1313, %v1471
      %v1536 = vmul.f32 %v1315, %v1472
      %v1537 = vmul.f32 %v1317, %v1473
      %v1538 = vmul.f32 %v1319, %v1474
      %v1539 = vmul.f32 %v1323, %v1475
      %v1540 = vmul.f32 %v1325, %v1476
      %v1541 = vmul.f32 %v1327, %v1477
      %v1542 = vmul.f32 %v1329, %v1478
      %v1543 = vmul.f32 %v1333, %v1479
      %v1544 = vmul.f32 %v1335, %v1480
      %v1545 = vmul.f32 %v1337, %v1481
      %v1546 = vmul.f32 %v1339, %v1482
      %v1547 = vmul.f32 %v1343, %v1483
      %v1548 = vmul.f32 %v1345, %v1484
      %v1549 = vmul.f32 %v1347, %v1485
      %v1550 = vmul.f32 %v1349, %v1486
      %v1551 = vmul.f32 %v1353, %v1487
      %v1552 = vmul.f32 %v1355, %v1488
      %v1553 = vmul.f32 %v1357, %v1489
      %v1554 = vmul.f32 %v1359, %v1490
      %v1555 = vmul.f32 %v1363, %v1491
      %v1556 = vmul.f32 %v1365, %v1492
      %v1557 = vmul.f32 %v1367, %v1493
      %v1558 = vmul.f32 %v1369, %v1494
      %v1559 = vmul.f32 %v1373, %v1495
      %v1560 = vmul.f32 %v1375, %v1496
      %v1561 = vmul.f32 %v1377, %v1497
      %v1562 = vmul.f32 %v1379, %v1498
      %v1563 = vmul.f32 %v1383, %v1499
      %v1564 = vmul.f32 %v1385, %v1500
      %v1565 = vmul.f32 %v1387, %v1501
      %v1566 = vmul.f32 %v1389, %v1502
      %v1567 = vmul.f32 %v1393, %v1503
      %v1568 = vmul.f32 %v1395, %v1504
      %v1569 = vmul.f32 %v1397, %v1505
      %v1570 = vmul.f32 %v1399, %v1506
      %v1571 = vmul.f32 %v1403, %v1507
      %v1572 = vmul.f32 %v1405, %v1508
      %v1573 = vmul.f32 %v1407, %v1509
      %v1574 = vmul.f32 %v1409, %v1510
      %v1575 = vmul.f32 %v1413, %v1511
      %v1576 = vmul.f32 %v1415, %v1512
      %v1577 = vmul.f32 %v1417, %v1513
      %v1578 = vmul.f32 %v1419, %v1514
      %v1579 = vmul.f32 %v1423, %v1515
      %v1580 = vmul.f32 %v1425, %v1516
      %v1581 = vmul.f32 %v1427, %v1517
      %v1582 = vmul.f32 %v1429, %v1518
      %v1583 = vmul.f32 %v1433, %v1519
      %v1584 = vmul.f32 %v1435, %v1520
      %v1585 = vmul.f32 %v1437, %v1521
      %v1586 = vmul.f32 %v1439, %v1522
      %v1587 = vmul.f32 %v1443, %v1523
      %v1588 = vmul.f32 %v1445, %v1524
      %v1589 = vmul.f32 %v1447, %v1525
      %v1590 = vmul.f32 %v1449, %v1526
      %v1591 = vmul.f32 %v1453, %v1527
      %v1592 = vmul.f32 %v1455, %v1528
      %v1593 = vmul.f32 %v1457, %v1529
      %v1594 = vmul.f32 %v1459, %v1530
      %v1595 = vmul.f32 %v1463, %v1531
      %v1596 = vmul.f32 %v1465, %v1532
      %v1597 = vmul.f32 %v1467, %v1533
      %v1598 = vmul.f32 %v1469, %v1534
      %v1599 = vmul.f32 %v1535, 0.044715
      %v1600 = vmul.f32 %v1536, 0.044715
      %v1601 = vmul.f32 %v1537, 0.044715
      %v1602 = vmul.f32 %v1538, 0.044715
      %v1603 = vmul.f32 %v1539, 0.044715
      %v1604 = vmul.f32 %v1540, 0.044715
      %v1605 = vmul.f32 %v1541, 0.044715
      %v1606 = vmul.f32 %v1542, 0.044715
      %v1607 = vmul.f32 %v1543, 0.044715
      %v1608 = vmul.f32 %v1544, 0.044715
      %v1609 = vmul.f32 %v1545, 0.044715
      %v1610 = vmul.f32 %v1546, 0.044715
      %v1611 = vmul.f32 %v1547, 0.044715
      %v1612 = vmul.f32 %v1548, 0.044715
      %v1613 = vmul.f32 %v1549, 0.044715
      %v1614 = vmul.f32 %v1550, 0.044715
      %v1615 = vmul.f32 %v1551, 0.044715
      %v1616 = vmul.f32 %v1552, 0.044715
      %v1617 = vmul.f32 %v1553, 0.044715
      %v1618 = vmul.f32 %v1554, 0.044715
      %v1619 = vmul.f32 %v1555, 0.044715
      %v1620 = vmul.f32 %v1556, 0.044715
      %v1621 = vmul.f32 %v1557, 0.044715
      %v1622 = vmul.f32 %v1558, 0.044715
      %v1623 = vmul.f32 %v1559, 0.044715
      %v1624 = vmul.f32 %v1560, 0.044715
      %v1625 = vmul.f32 %v1561, 0.044715
      %v1626 = vmul.f32 %v1562, 0.044715
      %v1627 = vmul.f32 %v1563, 0.044715
      %v1628 = vmul.f32 %v1564, 0.044715
      %v1629 = vmul.f32 %v1565, 0.044715
      %v1630 = vmul.f32 %v1566, 0.044715
      %v1631 = vmul.f32 %v1567, 0.044715
      %v1632 = vmul.f32 %v1568, 0.044715
      %v1633 = vmul.f32 %v1569, 0.044715
      %v1634 = vmul.f32 %v1570, 0.044715
      %v1635 = vmul.f32 %v1571, 0.044715
      %v1636 = vmul.f32 %v1572, 0.044715
      %v1637 = vmul.f32 %v1573, 0.044715
      %v1638 = vmul.f32 %v1574, 0.044715
      %v1639 = vmul.f32 %v1575, 0.044715
      %v1640 = vmul.f32 %v1576, 0.044715
      %v1641 = vmul.f32 %v1577, 0.044715
      %v1642 = vmul.f32 %v1578, 0.044715
      %v1643 = vmul.f32 %v1579, 0.044715
      %v1644 = vmul.f32 %v1580, 0.044715
      %v1645 = vmul.f32 %v1581, 0.044715
      %v1646 = vmul.f32 %v1582, 0.044715
      %v1647 = vmul.f32 %v1583, 0.044715
      %v1648 = vmul.f32 %v1584, 0.044715
      %v1649 = vmul.f32 %v1585, 0.044715
      %v1650 = vmul.f32 %v1586, 0.044715
      %v1651 = vmul.f32 %v1587, 0.044715
      %v1652 = vmul.f32 %v1588, 0.044715
      %v1653 = vmul.f32 %v1589, 0.044715
      %v1654 = vmul.f32 %v1590, 0.044715
      %v1655 = vmul.f32 %v1591, 0.044715
      %v1656 = vmul.f32 %v1592, 0.044715
      %v1657 = vmul.f32 %v1593, 0.044715
      %v1658 = vmul.f32 %v1594, 0.044715
      %v1659 = vmul.f32 %v1595, 0.044715
      %v1660 = vmul.f32 %v1596, 0.044715
      %v1661 = vmul.f32 %v1597, 0.044715
      %v1662 = vmul.f32 %v1598, 0.044715
      %v1663 = vadd.f32 %v1313, %v1599
      %v1664 = vadd.f32 %v1315, %v1600
      %v1665 = vadd.f32 %v1317, %v1601
      %v1666 = vadd.f32 %v1319, %v1602
      %v1667 = vadd.f32 %v1323, %v1603
      %v1668 = vadd.f32 %v1325, %v1604
      %v1669 = vadd.f32 %v1327, %v1605
      %v1670 = vadd.f32 %v1329, %v1606
      %v1671 = vadd.f32 %v1333, %v1607
      %v1672 = vadd.f32 %v1335, %v1608
      %v1673 = vadd.f32 %v1337, %v1609
      %v1674 = vadd.f32 %v1339, %v1610
      %v1675 = vadd.f32 %v1343, %v1611
      %v1676 = vadd.f32 %v1345, %v1612
      %v1677 = vadd.f32 %v1347, %v1613
      %v1678 = vadd.f32 %v1349, %v1614
      %v1679 = vadd.f32 %v1353, %v1615
      %v1680 = vadd.f32 %v1355, %v1616
      %v1681 = vadd.f32 %v1357, %v1617
      %v1682 = vadd.f32 %v1359, %v1618
      %v1683 = vadd.f32 %v1363, %v1619
      %v1684 = vadd.f32 %v1365, %v1620
      %v1685 = vadd.f32 %v1367, %v1621
      %v1686 = vadd.f32 %v1369, %v1622
      %v1687 = vadd.f32 %v1373, %v1623
      %v1688 = vadd.f32 %v1375, %v1624
      %v1689 = vadd.f32 %v1377, %v1625
      %v1690 = vadd.f32 %v1379, %v1626
      %v1691 = vadd.f32 %v1383, %v1627
      %v1692 = vadd.f32 %v1385, %v1628
      %v1693 = vadd.f32 %v1387, %v1629
      %v1694 = vadd.f32 %v1389, %v1630
      %v1695 = vadd.f32 %v1393, %v1631
      %v1696 = vadd.f32 %v1395, %v1632
      %v1697 = vadd.f32 %v1397, %v1633
      %v1698 = vadd.f32 %v1399, %v1634
      %v1699 = vadd.f32 %v1403, %v1635
      %v1700 = vadd.f32 %v1405, %v1636
      %v1701 = vadd.f32 %v1407, %v1637
      %v1702 = vadd.f32 %v1409, %v1638
      %v1703 = vadd.f32 %v1413, %v1639
      %v1704 = vadd.f32 %v1415, %v1640
      %v1705 = vadd.f32 %v1417, %v1641
      %v1706 = vadd.f32 %v1419, %v1642
      %v1707 = vadd.f32 %v1423, %v1643
      %v1708 = vadd.f32 %v1425, %v1644
      %v1709 = vadd.f32 %v1427, %v1645
      %v1710 = vadd.f32 %v1429, %v1646
      %v1711 = vadd.f32 %v1433, %v1647
      %v1712 = vadd.f32 %v1435, %v1648
      %v1713 = vadd.f32 %v1437, %v1649
      %v1714 = vadd.f32 %v1439, %v1650
      %v1715 = vadd.f32 %v1443, %v1651
      %v1716 = vadd.f32 %v1445, %v1652
      %v1717 = vadd.f32 %v1447, %v1653
      %v1718 = vadd.f32 %v1449, %v1654
      %v1719 = vadd.f32 %v1453, %v1655
      %v1720 = vadd.f32 %v1455, %v1656
      %v1721 = vadd.f32 %v1457, %v1657
      %v1722 = vadd.f32 %v1459, %v1658
      %v1723 = vadd.f32 %v1463, %v1659
      %v1724 = vadd.f32 %v1465, %v1660
      %v1725 = vadd.f32 %v1467, %v1661
      %v1726 = vadd.f32 %v1469, %v1662
      %v1727 = vmul.f32 %v1663, 0.7978846
      %v1728 = vmul.f32 %v1664, 0.7978846
      %v1729 = vmul.f32 %v1665, 0.7978846
      %v1730 = vmul.f32 %v1666, 0.7978846
      %v1731 = vmul.f32 %v1667, 0.7978846
      %v1732 = vmul.f32 %v1668, 0.7978846
      %v1733 = vmul.f32 %v1669, 0.7978846
      %v1734 = vmul.f32 %v1670, 0.7978846
      %v1735 = vmul.f32 %v1671, 0.7978846
      %v1736 = vmul.f32 %v1672, 0.7978846
      %v1737 = vmul.f32 %v1673, 0.7978846
      %v1738 = vmul.f32 %v1674, 0.7978846
      %v1739 = vmul.f32 %v1675, 0.7978846
      %v1740 = vmul.f32 %v1676, 0.7978846
      %v1741 = vmul.f32 %v1677, 0.7978846
      %v1742 = vmul.f32 %v1678, 0.7978846
      %v1743 = vmul.f32 %v1679, 0.7978846
      %v1744 = vmul.f32 %v1680, 0.7978846
      %v1745 = vmul.f32 %v1681, 0.7978846
      %v1746 = vmul.f32 %v1682, 0.7978846
      %v1747 = vmul.f32 %v1683, 0.7978846
      %v1748 = vmul.f32 %v1684, 0.7978846
      %v1749 = vmul.f32 %v1685, 0.7978846
      %v1750 = vmul.f32 %v1686, 0.7978846
      %v1751 = vmul.f32 %v1687, 0.7978846
      %v1752 = vmul.f32 %v1688, 0.7978846
      %v1753 = vmul.f32 %v1689, 0.7978846
      %v1754 = vmul.f32 %v1690, 0.7978846
      %v1755 = vmul.f32 %v1691, 0.7978846
      %v1756 = vmul.f32 %v1692, 0.7978846
      %v1757 = vmul.f32 %v1693, 0.7978846
      %v1758 = vmul.f32 %v1694, 0.7978846
      %v1759 = vmul.f32 %v1695, 0.7978846
      %v1760 = vmul.f32 %v1696, 0.7978846
      %v1761 = vmul.f32 %v1697, 0.7978846
      %v1762 = vmul.f32 %v1698, 0.7978846
      %v1763 = vmul.f32 %v1699, 0.7978846
      %v1764 = vmul.f32 %v1700, 0.7978846
      %v1765 = vmul.f32 %v1701, 0.7978846
      %v1766 = vmul.f32 %v1702, 0.7978846
      %v1767 = vmul.f32 %v1703, 0.7978846
      %v1768 = vmul.f32 %v1704, 0.7978846
      %v1769 = vmul.f32 %v1705, 0.7978846
      %v1770 = vmul.f32 %v1706, 0.7978846
      %v1771 = vmul.f32 %v1707, 0.7978846
      %v1772 = vmul.f32 %v1708, 0.7978846
      %v1773 = vmul.f32 %v1709, 0.7978846
      %v1774 = vmul.f32 %v1710, 0.7978846
      %v1775 = vmul.f32 %v1711, 0.7978846
      %v1776 = vmul.f32 %v1712, 0.7978846
      %v1777 = vmul.f32 %v1713, 0.7978846
      %v1778 = vmul.f32 %v1714, 0.7978846
      %v1779 = vmul.f32 %v1715, 0.7978846
      %v1780 = vmul.f32 %v1716, 0.7978846
      %v1781 = vmul.f32 %v1717, 0.7978846
      %v1782 = vmul.f32 %v1718, 0.7978846
      %v1783 = vmul.f32 %v1719, 0.7978846
      %v1784 = vmul.f32 %v1720, 0.7978846
      %v1785 = vmul.f32 %v1721, 0.7978846
      %v1786 = vmul.f32 %v1722, 0.7978846
      %v1787 = vmul.f32 %v1723, 0.7978846
      %v1788 = vmul.f32 %v1724, 0.7978846
      %v1789 = vmul.f32 %v1725, 0.7978846
      %v1790 = vmul.f32 %v1726, 0.7978846
      %v1791 = vtanh.pop %v1727
      %v1792 = vtanh.pop %v1728
      %v1793 = vtanh.pop %v1729
      %v1794 = vtanh.pop %v1730
      %v1795 = vtanh.pop %v1731
      %v1796 = vtanh.pop %v1732
      %v1797 = vtanh.pop %v1733
      %v1798 = vtanh.pop %v1734
      %v1799 = vtanh.pop %v1735
      %v1800 = vtanh.pop %v1736
      %v1801 = vtanh.pop %v1737
      %v1802 = vtanh.pop %v1738
      %v1803 = vtanh.pop %v1739
      %v1804 = vtanh.pop %v1740
      %v1805 = vtanh.pop %v1741
      %v1806 = vtanh.pop %v1742
      %v1807 = vtanh.pop %v1743
      %v1808 = vtanh.pop %v1744
      %v1809 = vtanh.pop %v1745
      %v1810 = vtanh.pop %v1746
      %v1811 = vtanh.pop %v1747
      %v1812 = vtanh.pop %v1748
      %v1813 = vtanh.pop %v1749
      %v1814 = vtanh.pop %v1750
      %v1815 = vtanh.pop %v1751
      %v1816 = vtanh.pop %v1752
      %v1817 = vtanh.pop %v1753
      %v1818 = vtanh.pop %v1754
      %v1819 = vtanh.pop %v1755
      %v1820 = vtanh.pop %v1756
      %v1821 = vtanh.pop %v1757
      %v1822 = vtanh.pop %v1758
      %v1823 = vtanh.pop %v1759
      %v1824 = vtanh.pop %v1760
      %v1825 = vtanh.pop %v1761
      %v1826 = vtanh.pop %v1762
      %v1827 = vtanh.pop %v1763
      %v1828 = vtanh.pop %v1764
      %v1829 = vtanh.pop %v1765
      %v1830 = vtanh.pop %v1766
      %v1831 = vtanh.pop %v1767
      %v1832 = vtanh.pop %v1768
      %v1833 = vtanh.pop %v1769
      %v1834 = vtanh.pop %v1770
      %v1835 = vtanh.pop %v1771
      %v1836 = vtanh.pop %v1772
      %v1837 = vtanh.pop %v1773
      %v1838 = vtanh.pop %v1774
      %v1839 = vtanh.pop %v1775
      %v1840 = vtanh.pop %v1776
      %v1841 = vtanh.pop %v1777
      %v1842 = vtanh.pop %v1778
      %v1843 = vtanh.pop %v1779
      %v1844 = vtanh.pop %v1780
      %v1845 = vtanh.pop %v1781
      %v1846 = vtanh.pop %v1782
      %v1847 = vtanh.pop %v1783
      %v1848 = vtanh.pop %v1784
      %v1849 = vtanh.pop %v1785
      %v1850 = vtanh.pop %v1786
      %v1851 = vtanh.pop %v1787
      %v1852 = vtanh.pop %v1788
      %v1853 = vtanh.pop %v1789
      %v1854 = vtanh.pop %v1790
      %v1855 = vadd.f32 %v1791, 1.0
      %v1856 = vadd.f32 %v1792, 1.0
      %v1857 = vadd.f32 %v1793, 1.0
      %v1858 = vadd.f32 %v1794, 1.0
      %v1859 = vadd.f32 %v1795, 1.0
      %v1860 = vadd.f32 %v1796, 1.0
      %v1861 = vadd.f32 %v1797, 1.0
      %v1862 = vadd.f32 %v1798, 1.0
      %v1863 = vadd.f32 %v1799, 1.0
      %v1864 = vadd.f32 %v1800, 1.0
      %v1865 = vadd.f32 %v1801, 1.0
      %v1866 = vadd.f32 %v1802, 1.0
      %v1867 = vadd.f32 %v1803, 1.0
      %v1868 = vadd.f32 %v1804, 1.0
      %v1869 = vadd.f32 %v1805, 1.0
      %v1870 = vadd.f32 %v1806, 1.0
      %v1871 = vadd.f32 %v1807, 1.0
      %v1872 = vadd.f32 %v1808, 1.0
      %v1873 = vadd.f32 %v1809, 1.0
      %v1874 = vadd.f32 %v1810, 1.0
      %v1875 = vadd.f32 %v1811, 1.0
      %v1876 = vadd.f32 %v1812, 1.0
      %v1877 = vadd.f32 %v1813, 1.0
      %v1878 = vadd.f32 %v1814, 1.0
      %v1879 = vadd.f32 %v1815, 1.0
      %v1880 = vadd.f32 %v1816, 1.0
      %v1881 = vadd.f32 %v1817, 1.0
      %v1882 = vadd.f32 %v1818, 1.0
      %v1883 = vadd.f32 %v1819, 1.0
      %v1884 = vadd.f32 %v1820, 1.0
      %v1885 = vadd.f32 %v1821, 1.0
      %v1886 = vadd.f32 %v1822, 1.0
      %v1887 = vadd.f32 %v1823, 1.0
      %v1888 = vadd.f32 %v1824, 1.0
      %v1889 = vadd.f32 %v1825, 1.0
      %v1890 = vadd.f32 %v1826, 1.0
      %v1891 = vadd.f32 %v1827, 1.0
      %v1892 = vadd.f32 %v1828, 1.0
      %v1893 = vadd.f32 %v1829, 1.0
      %v1894 = vadd.f32 %v1830, 1.0
      %v1895 = vadd.f32 %v1831, 1.0
      %v1896 = vadd.f32 %v1832, 1.0
      %v1897 = vadd.f32 %v1833, 1.0
      %v1898 = vadd.f32 %v1834, 1.0
      %v1899 = vadd.f32 %v1835, 1.0
      %v1900 = vadd.f32 %v1836, 1.0
      %v1901 = vadd.f32 %v1837, 1.0
      %v1902 = vadd.f32 %v1838, 1.0
      %v1903 = vadd.f32 %v1839, 1.0
      %v1904 = vadd.f32 %v1840, 1.0
      %v1905 = vadd.f32 %v1841, 1.0
      %v1906 = vadd.f32 %v1842, 1.0
      %v1907 = vadd.f32 %v1843, 1.0
      %v1908 = vadd.f32 %v1844, 1.0
      %v1909 = vadd.f32 %v1845, 1.0
      %v1910 = vadd.f32 %v1846, 1.0
      %v1911 = vadd.f32 %v1847, 1.0
      %v1912 = vadd.f32 %v1848, 1.0
      %v1913 = vadd.f32 %v1849, 1.0
      %v1914 = vadd.f32 %v1850, 1.0
      %v1915 = vadd.f32 %v1851, 1.0
      %v1916 = vadd.f32 %v1852, 1.0
      %v1917 = vadd.f32 %v1853, 1.0
      %v1918 = vadd.f32 %v1854, 1.0
      %v1919 = vmul.f32 %v1855, 0.5
      %v1920 = vmul.f32 %v1856, 0.5
      %v1921 = vmul.f32 %v1857, 0.5
      %v1922 = vmul.f32 %v1858, 0.5
      %v1923 = vmul.f32 %v1859, 0.5
      %v1924 = vmul.f32 %v1860, 0.5
      %v1925 = vmul.f32 %v1861, 0.5
      %v1926 = vmul.f32 %v1862, 0.5
      %v1927 = vmul.f32 %v1863, 0.5
      %v1928 = vmul.f32 %v1864, 0.5
      %v1929 = vmul.f32 %v1865, 0.5
      %v1930 = vmul.f32 %v1866, 0.5
      %v1931 = vmul.f32 %v1867, 0.5
      %v1932 = vmul.f32 %v1868, 0.5
      %v1933 = vmul.f32 %v1869, 0.5
      %v1934 = vmul.f32 %v1870, 0.5
      %v1935 = vmul.f32 %v1871, 0.5
      %v1936 = vmul.f32 %v1872, 0.5
      %v1937 = vmul.f32 %v1873, 0.5
      %v1938 = vmul.f32 %v1874, 0.5
      %v1939 = vmul.f32 %v1875, 0.5
      %v1940 = vmul.f32 %v1876, 0.5
      %v1941 = vmul.f32 %v1877, 0.5
      %v1942 = vmul.f32 %v1878, 0.5
      %v1943 = vmul.f32 %v1879, 0.5
      %v1944 = vmul.f32 %v1880, 0.5
      %v1945 = vmul.f32 %v1881, 0.5
      %v1946 = vmul.f32 %v1882, 0.5
      %v1947 = vmul.f32 %v1883, 0.5
      %v1948 = vmul.f32 %v1884, 0.5
      %v1949 = vmul.f32 %v1885, 0.5
      %v1950 = vmul.f32 %v1886, 0.5
      %v1951 = vmul.f32 %v1887, 0.5
      %v1952 = vmul.f32 %v1888, 0.5
      %v1953 = vmul.f32 %v1889, 0.5
      %v1954 = vmul.f32 %v1890, 0.5
      %v1955 = vmul.f32 %v1891, 0.5
      %v1956 = vmul.f32 %v1892, 0.5
      %v1957 = vmul.f32 %v1893, 0.5
      %v1958 = vmul.f32 %v1894, 0.5
      %v1959 = vmul.f32 %v1895, 0.5
      %v1960 = vmul.f32 %v1896, 0.5
      %v1961 = vmul.f32 %v1897, 0.5
      %v1962 = vmul.f32 %v1898, 0.5
      %v1963 = vmul.f32 %v1899, 0.5
      %v1964 = vmul.f32 %v1900, 0.5
      %v1965 = vmul.f32 %v1901, 0.5
      %v1966 = vmul.f32 %v1902, 0.5
      %v1967 = vmul.f32 %v1903, 0.5
      %v1968 = vmul.f32 %v1904, 0.5
      %v1969 = vmul.f32 %v1905, 0.5
      %v1970 = vmul.f32 %v1906, 0.5
      %v1971 = vmul.f32 %v1907, 0.5
      %v1972 = vmul.f32 %v1908, 0.5
      %v1973 = vmul.f32 %v1909, 0.5
      %v1974 = vmul.f32 %v1910, 0.5
      %v1975 = vmul.f32 %v1911, 0.5
      %v1976 = vmul.f32 %v1912, 0.5
      %v1977 = vmul.f32 %v1913, 0.5
      %v1978 = vmul.f32 %v1914, 0.5
      %v1979 = vmul.f32 %v1915, 0.5
      %v1980 = vmul.f32 %v1916, 0.5
      %v1981 = vmul.f32 %v1917, 0.5
      %v1982 = vmul.f32 %v1918, 0.5
      %v1983 = vmul.f32 %v1313, %v1919
      %v1984 = vmul.f32 %v1315, %v1920
      %v1985 = vmul.f32 %v1317, %v1921
      %v1986 = vmul.f32 %v1319, %v1922
      %v1987 = vmul.f32 %v1323, %v1923
      %v1988 = vmul.f32 %v1325, %v1924
      %v1989 = vmul.f32 %v1327, %v1925
      %v1990 = vmul.f32 %v1329, %v1926
      %v1991 = vmul.f32 %v1333, %v1927
      %v1992 = vmul.f32 %v1335, %v1928
      %v1993 = vmul.f32 %v1337, %v1929
      %v1994 = vmul.f32 %v1339, %v1930
      %v1995 = vmul.f32 %v1343, %v1931
      %v1996 = vmul.f32 %v1345, %v1932
      %v1997 = vmul.f32 %v1347, %v1933
      %v1998 = vmul.f32 %v1349, %v1934
      %v1999 = vmul.f32 %v1353, %v1935
      %v2000 = vmul.f32 %v1355, %v1936
      %v2001 = vmul.f32 %v1357, %v1937
      %v2002 = vmul.f32 %v1359, %v1938
      %v2003 = vmul.f32 %v1363, %v1939
      %v2004 = vmul.f32 %v1365, %v1940
      %v2005 = vmul.f32 %v1367, %v1941
      %v2006 = vmul.f32 %v1369, %v1942
      %v2007 = vmul.f32 %v1373, %v1943
      %v2008 = vmul.f32 %v1375, %v1944
      %v2009 = vmul.f32 %v1377, %v1945
      %v2010 = vmul.f32 %v1379, %v1946
      %v2011 = vmul.f32 %v1383, %v1947
      %v2012 = vmul.f32 %v1385, %v1948
      %v2013 = vmul.f32 %v1387, %v1949
      %v2014 = vmul.f32 %v1389, %v1950
      %v2015 = vmul.f32 %v1393, %v1951
      %v2016 = vmul.f32 %v1395, %v1952
      %v2017 = vmul.f32 %v1397, %v1953
      %v2018 = vmul.f32 %v1399, %v1954
      %v2019 = vmul.f32 %v1403, %v1955
      %v2020 = vmul.f32 %v1405, %v1956
      %v2021 = vmul.f32 %v1407, %v1957
      %v2022 = vmul.f32 %v1409, %v1958
      %v2023 = vmul.f32 %v1413, %v1959
      %v2024 = vmul.f32 %v1415, %v1960
      %v2025 = vmul.f32 %v1417, %v1961
      %v2026 = vmul.f32 %v1419, %v1962
      %v2027 = vmul.f32 %v1423, %v1963
      %v2028 = vmul.f32 %v1425, %v1964
      %v2029 = vmul.f32 %v1427, %v1965
      %v2030 = vmul.f32 %v1429, %v1966
      %v2031 = vmul.f32 %v1433, %v1967
      %v2032 = vmul.f32 %v1435, %v1968
      %v2033 = vmul.f32 %v1437, %v1969
      %v2034 = vmul.f32 %v1439, %v1970
      %v2035 = vmul.f32 %v1443, %v1971
      %v2036 = vmul.f32 %v1445, %v1972
      %v2037 = vmul.f32 %v1447, %v1973
      %v2038 = vmul.f32 %v1449, %v1974
      %v2039 = vmul.f32 %v1453, %v1975
      %v2040 = vmul.f32 %v1455, %v1976
      %v2041 = vmul.f32 %v1457, %v1977
      %v2042 = vmul.f32 %v1459, %v1978
      %v2043 = vmul.f32 %v1463, %v1979
      %v2044 = vmul.f32 %v1465, %v1980
      %v2045 = vmul.f32 %v1467, %v1981
      %v2046 = vmul.f32 %v1469, %v1982
      %v2047 = vmul.f32 %v1012, %v1983
      %v2048 = vmul.f32 %v1014, %v1984
      %v2049 = vmul.f32 %v1016, %v1985
      %v2050 = vmul.f32 %v1018, %v1986
      %v2051 = vmul.f32 %v1022, %v1987
      %v2052 = vmul.f32 %v1024, %v1988
      %v2053 = vmul.f32 %v1026, %v1989
      %v2054 = vmul.f32 %v1028, %v1990
      %v2055 = vmul.f32 %v1032, %v1991
      %v2056 = vmul.f32 %v1034, %v1992
      %v2057 = vmul.f32 %v1036, %v1993
      %v2058 = vmul.f32 %v1038, %v1994
      %v2059 = vmul.f32 %v1042, %v1995
      %v2060 = vmul.f32 %v1044, %v1996
      %v2061 = vmul.f32 %v1046, %v1997
      %v2062 = vmul.f32 %v1048, %v1998
      %v2063 = vmul.f32 %v1052, %v1999
      %v2064 = vmul.f32 %v1054, %v2000
      %v2065 = vmul.f32 %v1056, %v2001
      %v2066 = vmul.f32 %v1058, %v2002
      %v2067 = vmul.f32 %v1062, %v2003
      %v2068 = vmul.f32 %v1064, %v2004
      %v2069 = vmul.f32 %v1066, %v2005
      %v2070 = vmul.f32 %v1068, %v2006
      %v2071 = vmul.f32 %v1072, %v2007
      %v2072 = vmul.f32 %v1074, %v2008
      %v2073 = vmul.f32 %v1076, %v2009
      %v2074 = vmul.f32 %v1078, %v2010
      %v2075 = vmul.f32 %v1082, %v2011
      %v2076 = vmul.f32 %v1084, %v2012
      %v2077 = vmul.f32 %v1086, %v2013
      %v2078 = vmul.f32 %v1088, %v2014
      %v2079 = vmul.f32 %v1092, %v2015
      %v2080 = vmul.f32 %v1094, %v2016
      %v2081 = vmul.f32 %v1096, %v2017
      %v2082 = vmul.f32 %v1098, %v2018
      %v2083 = vmul.f32 %v1102, %v2019
      %v2084 = vmul.f32 %v1104, %v2020
      %v2085 = vmul.f32 %v1106, %v2021
      %v2086 = vmul.f32 %v1108, %v2022
      %v2087 = vmul.f32 %v1112, %v2023
      %v2088 = vmul.f32 %v1114, %v2024
      %v2089 = vmul.f32 %v1116, %v2025
      %v2090 = vmul.f32 %v1118, %v2026
      %v2091 = vmul.f32 %v1122, %v2027
      %v2092 = vmul.f32 %v1124, %v2028
      %v2093 = vmul.f32 %v1126, %v2029
      %v2094 = vmul.f32 %v1128, %v2030
      %v2095 = vmul.f32 %v1132, %v2031
      %v2096 = vmul.f32 %v1134, %v2032
      %v2097 = vmul.f32 %v1136, %v2033
      %v2098 = vmul.f32 %v1138, %v2034
      %v2099 = vmul.f32 %v1142, %v2035
      %v2100 = vmul.f32 %v1144, %v2036
      %v2101 = vmul.f32 %v1146, %v2037
      %v2102 = vmul.f32 %v1148, %v2038
      %v2103 = vmul.f32 %v1152, %v2039
      %v2104 = vmul.f32 %v1154, %v2040
      %v2105 = vmul.f32 %v1156, %v2041
      %v2106 = vmul.f32 %v1158, %v2042
      %v2107 = vmul.f32 %v1162, %v2043
      %v2108 = vmul.f32 %v1164, %v2044
      %v2109 = vmul.f32 %v1166, %v2045
      %v2110 = vmul.f32 %v1168, %v2046
      %v2111 = vpack.c.bf16 %v2049, %v2047
      %v2112 = vpack.c.bf16 %v2050, %v2048
      %v2113 = vpack.c.bf16 %v2053, %v2051
      %v2114 = vpack.c.bf16 %v2054, %v2052
      %v2115 = vpack.c.bf16 %v2057, %v2055
      %v2116 = vpack.c.bf16 %v2058, %v2056
      %v2117 = vpack.c.bf16 %v2061, %v2059
      %v2118 = vpack.c.bf16 %v2062, %v2060
      %v2119 = vpack.c.bf16 %v2065, %v2063
      %v2120 = vpack.c.bf16 %v2066, %v2064
      %v2121 = vpack.c.bf16 %v2069, %v2067
      %v2122 = vpack.c.bf16 %v2070, %v2068
      %v2123 = vpack.c.bf16 %v2073, %v2071
      %v2124 = vpack.c.bf16 %v2074, %v2072
      %v2125 = vpack.c.bf16 %v2077, %v2075
      %v2126 = vpack.c.bf16 %v2078, %v2076
      %v2127 = vpack.c.bf16 %v2081, %v2079
      %v2128 = vpack.c.bf16 %v2082, %v2080
      %v2129 = vpack.c.bf16 %v2085, %v2083
      %v2130 = vpack.c.bf16 %v2086, %v2084
      %v2131 = vpack.c.bf16 %v2089, %v2087
      %v2132 = vpack.c.bf16 %v2090, %v2088
      %v2133 = vpack.c.bf16 %v2093, %v2091
      %v2134 = vpack.c.bf16 %v2094, %v2092
      %v2135 = vpack.c.bf16 %v2097, %v2095
      %v2136 = vpack.c.bf16 %v2098, %v2096
      %v2137 = vpack.c.bf16 %v2101, %v2099
      %v2138 = vpack.c.bf16 %v2102, %v2100
      %v2139 = vpack.c.bf16 %v2105, %v2103
      %v2140 = vpack.c.bf16 %v2106, %v2104
      %v2141 = vpack.c.bf16 %v2109, %v2107
      %v2142 = vpack.c.bf16 %v2110, %v2108
      %v2175 = vunpack.c.l.b16 %v2111
      %v2176 = vunpack.c.l.b16 %v2112
      %v2177 = vunpack.c.h.b16 %v2111
      %v2178 = vunpack.c.h.b16 %v2112
      %v2179 = vunpack.c.l.b16 %v2113
      %v2180 = vunpack.c.l.b16 %v2114
      %v2181 = vunpack.c.h.b16 %v2113
      %v2182 = vunpack.c.h.b16 %v2114
      %v2183 = vunpack.c.l.b16 %v2115
      %v2184 = vunpack.c.l.b16 %v2116
      %v2185 = vunpack.c.h.b16 %v2115
      %v2186 = vunpack.c.h.b16 %v2116
      %v2187 = vunpack.c.l.b16 %v2117
      %v2188 = vunpack.c.l.b16 %v2118
      %v2189 = vunpack.c.h.b16 %v2117
      %v2190 = vunpack.c.h.b16 %v2118
      %v2191 = vunpack.c.l.b16 %v2119
      %v2192 = vunpack.c.l.b16 %v2120
      %v2193 = vunpack.c.h.b16 %v2119
      %v2194 = vunpack.c.h.b16 %v2120
      %v2195 = vunpack.c.l.b16 %v2121
      %v2196 = vunpack.c.l.b16 %v2122
      %v2197 = vunpack.c.h.b16 %v2121
      %v2198 = vunpack.c.h.b16 %v2122
      %v2199 = vunpack.c.l.b16 %v2123
      %v2200 = vunpack.c.l.b16 %v2124
      %v2201 = vunpack.c.h.b16 %v2123
      %v2202 = vunpack.c.h.b16 %v2124
      %v2203 = vunpack.c.l.b16 %v2125
      %v2204 = vunpack.c.l.b16 %v2126
      %v2205 = vunpack.c.h.b16 %v2125
      %v2206 = vunpack.c.h.b16 %v2126
      %v2207 = vunpack.c.l.b16 %v2127
      %v2208 = vunpack.c.l.b16 %v2128
      %v2209 = vunpack.c.h.b16 %v2127
      %v2210 = vunpack.c.h.b16 %v2128
      %v2211 = vunpack.c.l.b16 %v2129
      %v2212 = vunpack.c.l.b16 %v2130
      %v2213 = vunpack.c.h.b16 %v2129
      %v2214 = vunpack.c.h.b16 %v2130
      %v2215 = vunpack.c.l.b16 %v2131
      %v2216 = vunpack.c.l.b16 %v2132
      %v2217 = vunpack.c.h.b16 %v2131
      %v2218 = vunpack.c.h.b16 %v2132
      %v2219 = vunpack.c.l.b16 %v2133
      %v2220 = vunpack.c.l.b16 %v2134
      %v2221 = vunpack.c.h.b16 %v2133
      %v2222 = vunpack.c.h.b16 %v2134
      %v2223 = vunpack.c.l.b16 %v2135
      %v2224 = vunpack.c.l.b16 %v2136
      %v2225 = vunpack.c.h.b16 %v2135
      %v2226 = vunpack.c.h.b16 %v2136
      %v2227 = vunpack.c.l.b16 %v2137
      %v2228 = vunpack.c.l.b16 %v2138
      %v2229 = vunpack.c.h.b16 %v2137
      %v2230 = vunpack.c.h.b16 %v2138
      %v2231 = vunpack.c.l.b16 %v2139
      %v2232 = vunpack.c.l.b16 %v2140
      %v2233 = vunpack.c.h.b16 %v2139
      %v2234 = vunpack.c.h.b16 %v2140
      %v2235 = vunpack.c.l.b16 %v2141
      %v2236 = vunpack.c.l.b16 %v2142
      %v2237 = vunpack.c.h.b16 %v2141
      %v2238 = vunpack.c.h.b16 %v2142
      %v2239 = vpack.c.b16 %v2176, %v2175
      %v2240 = vpack.c.b16 %v2178, %v2177
      %v2241 = vpack.c.b16 %v2180, %v2179
      %v2242 = vpack.c.b16 %v2182, %v2181
      %v2243 = vpack.c.b16 %v2184, %v2183
      %v2244 = vpack.c.b16 %v2186, %v2185
      %v2245 = vpack.c.b16 %v2188, %v2187
      %v2246 = vpack.c.b16 %v2190, %v2189
      %v2247 = vpack.c.b16 %v2192, %v2191
      %v2248 = vpack.c.b16 %v2194, %v2193
      %v2249 = vpack.c.b16 %v2196, %v2195
      %v2250 = vpack.c.b16 %v2198, %v2197
      %v2251 = vpack.c.b16 %v2200, %v2199
      %v2252 = vpack.c.b16 %v2202, %v2201
      %v2253 = vpack.c.b16 %v2204, %v2203
      %v2254 = vpack.c.b16 %v2206, %v2205
      %v2255 = vpack.c.b16 %v2208, %v2207
      %v2256 = vpack.c.b16 %v2210, %v2209
      %v2257 = vpack.c.b16 %v2212, %v2211
      %v2258 = vpack.c.b16 %v2214, %v2213
      %v2259 = vpack.c.b16 %v2216, %v2215
      %v2260 = vpack.c.b16 %v2218, %v2217
      %v2261 = vpack.c.b16 %v2220, %v2219
      %v2262 = vpack.c.b16 %v2222, %v2221
      %v2263 = vpack.c.b16 %v2224, %v2223
      %v2264 = vpack.c.b16 %v2226, %v2225
      %v2265 = vpack.c.b16 %v2228, %v2227
      %v2266 = vpack.c.b16 %v2230, %v2229
      %v2267 = vpack.c.b16 %v2232, %v2231
      %v2268 = vpack.c.b16 %v2234, %v2233
      %v2269 = vpack.c.b16 %v2236, %v2235
      %v2270 = vpack.c.b16 %v2238, %v2237
      %2303 = vst [vmem:[%s386] sm:$0xff] %v2239
      %2304 = vst [vmem:[%s386 + $0x8] sm:$0xff] %v2240
      %2305 = vst [vmem:[%s386 + $0x10] sm:$0xff] %v2241
      %2306 = vst [vmem:[%s386 + $0x18] sm:$0xff] %v2242
      %2307 = vst [vmem:[%s386 + $0x20] sm:$0xff] %v2243
      %2308 = vst [vmem:[%s386 + $0x28] sm:$0xff] %v2244
      %2309 = vst [vmem:[%s386 + $0x30] sm:$0xff] %v2245
      %2310 = vst [vmem:[%s386 + $0x38] sm:$0xff] %v2246
      %2311 = vst [vmem:[%s386 + $0x40] sm:$0xff] %v2247
      %2312 = vst [vmem:[%s386 + $0x48] sm:$0xff] %v2248
      %2313 = vst [vmem:[%s386 + $0x50] sm:$0xff] %v2249
      %2314 = vst [vmem:[%s386 + $0x58] sm:$0xff] %v2250
      %2315 = vst [vmem:[%s386 + $0x60] sm:$0xff] %v2251
      %2316 = vst [vmem:[%s386 + $0x68] sm:$0xff] %v2252
      %2317 = vst [vmem:[%s386 + $0x70] sm:$0xff] %v2253
      %2318 = vst [vmem:[%s386 + $0x78] sm:$0xff] %v2254
      %2319 = vst [vmem:[%s386 + $0x80] sm:$0xff] %v2255
      %2320 = vst [vmem:[%s386 + $0x88] sm:$0xff] %v2256
      %2321 = vst [vmem:[%s386 + $0x90] sm:$0xff] %v2257
      %2322 = vst [vmem:[%s386 + $0x98] sm:$0xff] %v2258
      %2323 = vst [vmem:[%s386 + $0xa0] sm:$0xff] %v2259
      %2324 = vst [vmem:[%s386 + $0xa8] sm:$0xff] %v2260
      %2325 = vst [vmem:[%s386 + $0xb0] sm:$0xff] %v2261
      %2326 = vst [vmem:[%s386 + $0xb8] sm:$0xff] %v2262
      %2327 = vst [vmem:[%s386 + $0xc0] sm:$0xff] %v2263
      %2328 = vst [vmem:[%s386 + $0xc8] sm:$0xff] %v2264
      %2329 = vst [vmem:[%s386 + $0xd0] sm:$0xff] %v2265
      %2330 = vst [vmem:[%s386 + $0xd8] sm:$0xff] %v2266
      %2331 = vst [vmem:[%s386 + $0xe0] sm:$0xff] %v2267
      %2332 = vst [vmem:[%s386 + $0xe8] sm:$0xff] %v2268
      %2333 = vst [vmem:[%s386 + $0xf0] sm:$0xff] %v2269
      %2334 = vst [vmem:[%s386 + $0xf8] sm:$0xff] %v2270
      %s2335 = smul.u32 32, %s22
      %s2336 = smul.u32 2, %s23
      %p2337 = scmp.lt.s32.totalorder %s2335, 63
      %s2338 = scalar_select %p2337, %s2335, 63
      %p2339 = scmp.lt.s32.totalorder %s2336, 1
      %s2340 = scalar_select %p2339, %s2336, 1
      %s2341 = smul.addr %s2338, 2
      %s2342 = sadd.s32 %s2340, %s2341
      %s2343 = smul.addr %s2342, 4
      %s2344 = scalar_lea.vmem %s7, %s2343
      // Predicated region
      $region49: #{_lambda_.10} parent=47 // pred_check
        %p2345 = pneg %p222
      $region50: #{_lambda_.10} parent=47 // pred_check_branch
        %2347 = sbr.rel (%p2345) target = $region52
      $region51: #{_lambda_.10} parent=47 // pred_region
        %s2348 = smul.u32 32, %s22
        %s2349 = smul.u32 2, %s23
      $region52: #{_lambda_.10} parent=47 // pred_fallthru
        _
    $region48: #{_lambda_.10} parent=5 // pred_fallthru
      _
    %p2350 = scmp.le.s32.totalorder 2, %s13
    // Predicated region
    $region53: #{_lambda_.10} parent=5 // pred_check
      %p2351 = pneg %p2350
    $region54: #{_lambda_.10} parent=5 // pred_check_branch
      %2353 = sbr.rel (%p2351) target = $region56
    $region55: #{_lambda_.10} parent=5 // pred_region
      %s2354 = ssub.s32 %s13, 2
      // Predicated region
      $region57: #{_lambda_.10} parent=55 // pred_check
        %p2355 = pneg %p228
      $region58: #{_lambda_.10} parent=55 // pred_check_branch
        %2357 = sbr.rel (%p2355) target = $region60
      $region59: #{_lambda_.10} parent=55 // pred_region
        %s2358 = smul.u32 32, %s24
        %s2359 = smul.u32 2, %s25
        %p2360 = scmp.lt.s32.totalorder %s2358, 63
        %s2361 = scalar_select %p2360, %s2358, 63
        %p2362 = scmp.lt.s32.totalorder %s2359, 1
        %s2363 = scalar_select %p2362, %s2359, 1
        %s2364 = smul.addr %s2361, 2
        %s2365 = sadd.s32 %s2363, %s2364
        %s2366 = smul.addr %s2365, 4
        %s2367 = scalar_lea.vmem %s7, %s2366
      $region60: #{_lambda_.10} parent=55 // pred_fallthru
        _
    $region56: #{_lambda_.10} parent=5 // pred_fallthru
      _
  $region6: #{_lambda_.10} parent=0 // loop_footer
    %s17 = sadd.s32 1, %s13
  $region7: #{_lambda_.10} parent=0 // loop_footer_branch
    %12 = sbr.rel target = $region3
  $region8: #{_lambda_.10} parent=0 // loop_exit
    _

</llo_original>
